<compile_context>
chip_gen: v7x
topology: tpu7x:2x2x1
jax: 0.10.0
libtpu: 0.0.40
codegen_flags: <defaults>
</compile_context>

<pallas_src>
import functools

import jax
import jax.numpy as jnp
from jax import lax
from jax.experimental import pallas as pl
from jax.experimental.pallas import tpu as pltpu

EPS = 1e-5                       # BatchNorm2d default eps
VMEM_LIMIT = 48 * 1024 * 1024    # explicit scoped-VMEM budget (safe on v5e/v6e/v7x)


# ------------------------------ helpers -------------------------------------

def _round_up(x, m):
    return (x + m - 1) // m * m


def _pick_tile(padded, unit, max_tile):
    """Largest multiple of `unit` that divides `padded` and is <= max_tile."""
    n = padded // unit
    best = 1
    for d in range(1, min(n, max(1, max_tile // unit)) + 1):
        if n % d == 0:
            best = d
    return best * unit


def _pad2(x, rows, cols, dtype):
    x = x.astype(dtype)
    return jnp.pad(x, ((0, rows - x.shape[0]), (0, cols - x.shape[1])))


# ----------------------------- Pallas kernels ------------------------------

def _mm_bias_kernel(a_ref, b_ref, bias_ref, o_ref, acc_ref, *, relu, gk):
    k = pl.program_id(2)

    @pl.when(k == 0)
    def _():
        acc_ref[...] = jnp.zeros_like(acc_ref)

    acc_ref[...] += jnp.dot(a_ref[...], b_ref[...],
                            preferred_element_type=jnp.float32)

    @pl.when(k == gk - 1)
    def _():
        y = acc_ref[...] + bias_ref[...]
        if relu:
            y = jnp.maximum(y, 0.0)
        o_ref[...] = y


def matmul_bias(a, b, bias, relu=False):
    """(M,K)@(K,N) + bias, optional ReLU.  bf16 MXU operands, f32 accumulator,
    tiled over M/N/K with zero padding; returns f32 (M,N)."""
    M, K = a.shape
    _, N = b.shape
    Mp, Kp, Np = _round_up(M, 16), _round_up(K, 128), _round_up(N, 128)
    tm = _pick_tile(Mp, 16, 512)
    tk = _pick_tile(Kp, 128, 512)
    tn = _pick_tile(Np, 128, 512)
    gm, gn, gk = Mp // tm, Np // tn, Kp // tk

    a_p = _pad2(a, Mp, Kp, jnp.bfloat16)
    b_p = _pad2(b, Kp, Np, jnp.bfloat16)
    bias_p = jnp.pad(bias.astype(jnp.float32), (0, Np - N)).reshape(1, Np)

    out = pl.pallas_call(
        functools.partial(_mm_bias_kernel, relu=relu, gk=gk),
        grid=(gm, gn, gk),
        in_specs=[pl.BlockSpec((tm, tk), lambda i, j, k: (i, k)),
                  pl.BlockSpec((tk, tn), lambda i, j, k: (k, j)),
                  pl.BlockSpec((1, tn), lambda i, j, k: (0, j))],
        out_specs=pl.BlockSpec((tm, tn), lambda i, j, k: (i, j)),
        out_shape=jax.ShapeDtypeStruct((Mp, Np), jnp.float32),
        scratch_shapes=[pltpu.VMEM((tm, tn), jnp.float32)],
        compiler_params=pltpu.CompilerParams(
            dimension_semantics=("parallel", "parallel", "arbitrary"),
            vmem_limit_bytes=VMEM_LIMIT),
        cost_estimate=pl.CostEstimate(
            flops=2 * Mp * Np * Kp, transcendentals=0,
            bytes_accessed=2 * (Mp * Kp + Kp * Np) + 4 * Mp * Np),
    )(a_p, b_p, bias_p)
    return out[:M, :N]


def _mm_stats_kernel(a_ref, b_ref, y_ref, sum_ref, ssq_ref, acc_ref, *, gk):
    # grid = (gn, gm, gk): j outermost so sum/ssq (index (0, j)) stay VMEM-
    # resident across all M tiles of a given N tile (accumulator pattern).
    i = pl.program_id(1)
    k = pl.program_id(2)

    @pl.when(k == 0)
    def _():
        acc_ref[...] = jnp.zeros_like(acc_ref)

    acc_ref[...] += jnp.dot(a_ref[...], b_ref[...],
                            preferred_element_type=jnp.float32)

    @pl.when(jnp.logical_and(k == gk - 1, i == 0))
    def _():
        sum_ref[...] = jnp.zeros_like(sum_ref)
        ssq_ref[...] = jnp.zeros_like(ssq_ref)

    @pl.when(k == gk - 1)
    def _():
        y = acc_ref[...]
        y_ref[...] = y
        sum_ref[...] += jnp.sum(y, axis=0, keepdims=True)
        ssq_ref[...] += jnp.sum(y * y, axis=0, keepdims=True)


def matmul_stats(a, b):
    """(M,K)@(K,N) (no bias) + fused per-channel sum / sum-of-squares.
    Returns (y_padded (Mp,Np) f32, sums (1,Np), sumsqs (1,Np)).  Zero-padded
    rows/cols contribute exactly zero to the statistics."""
    M, K = a.shape
    _, N = b.shape
    Mp, Kp, Np = _round_up(M, 16), _round_up(K, 128), _round_up(N, 128)
    tm = _pick_tile(Mp, 16, 512)
    tk = _pick_tile(Kp, 128, 512)
    tn = _pick_tile(Np, 128, 512)
    gm, gn, gk = Mp // tm, Np // tn, Kp // tk

    a_p = _pad2(a, Mp, Kp, jnp.bfloat16)
    b_p = _pad2(b, Kp, Np, jnp.bfloat16)

    y_p, s, ss = pl.pallas_call(
        functools.partial(_mm_stats_kernel, gk=gk),
        grid=(gn, gm, gk),
        in_specs=[pl.BlockSpec((tm, tk), lambda j, i, k: (i, k)),
                  pl.BlockSpec((tk, tn), lambda j, i, k: (k, j))],
        out_specs=[pl.BlockSpec((tm, tn), lambda j, i, k: (i, j)),
                   pl.BlockSpec((1, tn), lambda j, i, k: (0, j)),
                   pl.BlockSpec((1, tn), lambda j, i, k: (0, j))],
        out_shape=(jax.ShapeDtypeStruct((Mp, Np), jnp.float32),
                   jax.ShapeDtypeStruct((1, Np), jnp.float32),
                   jax.ShapeDtypeStruct((1, Np), jnp.float32)),
        scratch_shapes=[pltpu.VMEM((tm, tn), jnp.float32)],
        compiler_params=pltpu.CompilerParams(
            dimension_semantics=("parallel", "arbitrary", "arbitrary"),
            vmem_limit_bytes=VMEM_LIMIT),
        cost_estimate=pl.CostEstimate(
            flops=2 * Mp * Np * Kp, transcendentals=0,
            bytes_accessed=2 * (Mp * Kp + Kp * Np) + 4 * Mp * Np),
    )(a_p, b_p)
    return y_p, s, ss


def _scale_relu_kernel(y_ref, sc_ref, sh_ref, o_ref):
    o_ref[...] = jnp.maximum(y_ref[...] * sc_ref[...] + sh_ref[...], 0.0)


def bn_scale_relu(y_p, scale_p, shift_p):
    """y*scale + shift, ReLU — tiled over M (lane axis = channels)."""
    Mp, Np = y_p.shape
    tm = _pick_tile(Mp, 8, 512)
    return pl.pallas_call(
        _scale_relu_kernel,
        grid=(Mp // tm,),
        in_specs=[pl.BlockSpec((tm, Np), lambda i: (i, 0)),
                  pl.BlockSpec((1, Np), lambda i: (0, 0)),
                  pl.BlockSpec((1, Np), lambda i: (0, 0))],
        out_specs=pl.BlockSpec((tm, Np), lambda i: (i, 0)),
        out_shape=jax.ShapeDtypeStruct((Mp, Np), jnp.float32),
        compiler_params=pltpu.CompilerParams(
            dimension_semantics=("parallel",),
            vmem_limit_bytes=VMEM_LIMIT),
    )(y_p, scale_p.reshape(1, Np), shift_p.reshape(1, Np))


def _bilstm_kernel(gx_ref, whh_ref, out_ref, *, hidden):
    """One LSTM direction per grid step (d=0 fwd, d=1 time-reversed bwd).
    Whole time loop inside the kernel; h/c live in vregs."""
    T = gx_ref.shape[0]
    b = gx_ref.shape[1]
    whh = whh_ref[...]                                    # (hidden, 4H) bf16
    h = jnp.zeros((b, hidden), jnp.float32)
    c = jnp.zeros((b, hidden), jnp.float32)
    for t in range(T):                                    # static unroll (small T)
        gates = gx_ref[t] + jnp.dot(h.astype(jnp.bfloat16), whh,
                                    preferred_element_type=jnp.float32)
        i_g = jax.nn.sigmoid(gates[:, 0 * hidden:1 * hidden])
        f_g = jax.nn.sigmoid(gates[:, 1 * hidden:2 * hidden])
        g_g = jnp.tanh(gates[:, 2 * hidden:3 * hidden])
        o_g = jax.nn.sigmoid(gates[:, 3 * hidden:4 * hidden])
        c = f_g * c + i_g * g_g
        h = o_g * jnp.tanh(c)
        out_ref[t] = h


def bilstm_layer(x, p_fwd, p_bwd, hidden):
    """One bidirectional LSTM layer.  x: (T, b, din) -> (T, b, 2*hidden)."""
    T, b, din = x.shape
    # Single big input projection for both directions and all timesteps.
    w_cat = jnp.concatenate([p_fwd[0].T, p_bwd[0].T], axis=1)          # (din, 8H)
    bias_cat = jnp.concatenate([p_fwd[2] + p_fwd[3], p_bwd[2] + p_bwd[3]])
    gx_all = matmul_bias(x.reshape(T * b, din), w_cat, bias_cat)       # (T*b, 8H)
    gx_all = gx_all.reshape(T, b, 2, 4 * hidden)
    gx_f = gx_all[:, :, 0, :]
    gx_b = jnp.flip(gx_all[:, :, 1, :], axis=0)         # time-reversed for bwd
    gx = jnp.stack([gx_f, gx_b])                        # (2, T, b, 4H) f32
    whh = jnp.stack([p_fwd[1].T, p_bwd[1].T]).astype(jnp.bfloat16)  # (2, H, 4H)

    out = pl.pallas_call(
        functools.partial(_bilstm_kernel, hidden=hidden),
        grid=(2,),
        in_specs=[pl.BlockSpec((None, T, b, 4 * hidden), lambda d: (d, 0, 0, 0)),
                  pl.BlockSpec((None, hidden, 4 * hidden), lambda d: (d, 0, 0))],
        out_specs=pl.BlockSpec((None, T, b, hidden), lambda d: (d, 0, 0, 0)),
        out_shape=jax.ShapeDtypeStruct((2, T, b, hidden), jnp.float32),
        compiler_params=pltpu.CompilerParams(
            dimension_semantics=("parallel",),      # 2 directions -> 2 cores on v7x
            vmem_limit_bytes=VMEM_LIMIT),
    )(gx, whh)

    fwd = out[0]
    bwd = jnp.flip(out[1], axis=0)
    return jnp.concatenate([fwd, bwd], axis=-1)


# ------------------------------ JAX glue ------------------------------------

def im2col_nhwc(x, kh, kw, sh, sw, ph, pw):
    """x: (N, H, W, C) -> patches (N*Ho*Wo, kh*kw*C) in (kh, kw, C) order."""
    N, H, W, C = x.shape
    xp = jnp.pad(x, ((0, 0), (ph, ph), (pw, pw), (0, 0)))
    Ho = (H + 2 * ph - kh) // sh + 1
    Wo = (W + 2 * pw - kw) // sw + 1
    cols = []
    for i in range(kh):
        for j in range(kw):
            cols.append(xp[:, i:i + sh * Ho:sh, j:j + sw * Wo:sw, :])
    p = jnp.stack(cols, axis=3)                     # (N, Ho, Wo, kh*kw, C)
    return p.reshape(N * Ho * Wo, kh * kw * C), Ho, Wo


def conv_block(x, w, b, stride, pad, bn=None):
    """Conv2d (+ optional training-mode BatchNorm) + ReLU, NHWC in/out."""
    Cout, Cin, kh, kw = w.shape
    sh, sw = stride
    patches, Ho, Wo = im2col_nhwc(x, kh, kw, sh, sw, pad, pad)
    wmat = w.transpose(2, 3, 1, 0).reshape(kh * kw * Cin, Cout)  # (kh,kw,Cin)->Cout
    N = x.shape[0]
    M = N * Ho * Wo
    if bn is None:
        y = matmul_bias(patches, wmat, b, relu=True)
    else:
        gamma, beta = bn
        # Conv bias is per-channel constant -> removed exactly by training-mode
        # BatchNorm; skip it so zero-padded rows contribute 0 to the stats.
        y_p, s, ss = matmul_stats(patches, wmat)
        s = s[0, :Cout]
        ss = ss[0, :Cout]
        mean = s / M
        var = ss / M - mean * mean                 # biased variance (batch stats)
        scale = gamma * lax.rsqrt(var + EPS)
        shift = beta - mean * scale
        Np = y_p.shape[1]
        y = bn_scale_relu(y_p,
                          jnp.pad(scale, (0, Np - Cout)),
                          jnp.pad(shift, (0, Np - Cout)))[:M, :Cout]
    return y.reshape(N, Ho, Wo, Cout)


def bilstm(x, lstm_params, hidden):
    out = x
    for layer in lstm_params:
        out = bilstm_layer(out, layer[0], layer[1], hidden)
    return out


def crnn_forward(x, params, nhidden):
    strides = [(2, 2), (2, 2), (1, 1), (2, 1), (1, 1), (2, 1), (1, 1)]
    pads = [1, 1, 1, 1, 1, 1, 0]
    bn_layers = (2, 4, 6)
    h = jnp.transpose(x, (0, 2, 3, 1))               # NCHW -> NHWC, once
    for i in range(7):
        bn = params[f'bn{i}'] if i in bn_layers else None
        h = conv_block(h, params[f'conv{i}_w'], params[f'conv{i}_b'],
                       strides[i], pads[i], bn=bn)
    N, Hh, W, C = h.shape
    assert Hh == 1, 'the height of conv must be 1'
    # NHWC (N,1,W,C) -> (W, N, C)  == squeeze(2).permute(2,0,1) in NCHW land
    seq = h.reshape(N, W, C).transpose(1, 0, 2)
    rec = bilstm(seq, params['lstm'], nhidden)
    T, b, hh = rec.shape
    out = matmul_bias(rec.reshape(T * b, hh), params['emb_w'].T,
                      params['emb_b'], relu=False)
    return out.reshape(T, b, -1)


def init_params(key, nchannels, nclass, nhidden, num_layers):
    ks = [3, 3, 3, 3, 3, 3, 2]
    nm = [64, 128, 256, 256, 512, 512, 512]
    bn_layers = (2, 4, 6)
    n_keys = 7 * 2 + num_layers * 2 * 4 + 2
    keys = iter(jax.random.split(key, n_keys))
    params = {}
    prev = nchannels
    for i in range(7):
        fan_in = prev * ks[i] * ks[i]
        params[f'conv{i}_w'] = (
            jax.random.normal(next(keys), (nm[i], prev, ks[i], ks[i]),
                              jnp.float32) * (2.0 / fan_in) ** 0.5)
        params[f'conv{i}_b'] = (
            jax.random.normal(next(keys), (nm[i],), jnp.float32) * 0.01)
        if i in bn_layers:
            params[f'bn{i}'] = (jnp.ones((nm[i],), jnp.float32),
                                jnp.zeros((nm[i],), jnp.float32))
        prev = nm[i]

    lstm = []
    std = 1.0 / (nhidden ** 0.5)
    for l in range(num_layers):
        din = 512 if l == 0 else 2 * nhidden
        dirs = []
        for _ in range(2):
            w_ih = jax.random.uniform(next(keys), (4 * nhidden, din),
                                      jnp.float32, -std, std)
            w_hh = jax.random.uniform(next(keys), (4 * nhidden, nhidden),
                                      jnp.float32, -std, std)
            b_ih = jax.random.uniform(next(keys), (4 * nhidden,),
                                      jnp.float32, -std, std)
            b_hh = jax.random.uniform(next(keys), (4 * nhidden,),
                                      jnp.float32, -std, std)
            dirs.append((w_ih, w_hh, b_ih, b_hh))
        lstm.append(tuple(dirs))
    params['lstm'] = tuple(lstm)

    std_e = 1.0 / ((2 * nhidden) ** 0.5)
    params['emb_w'] = jax.random.uniform(next(keys), (nclass, 2 * nhidden),
                                         jnp.float32, -std_e, std_e)
    params['emb_b'] = jax.random.uniform(next(keys), (nclass,),
                                         jnp.float32, -std_e, std_e)
    return params


if __name__ == "__main__":
    key = jax.random.PRNGKey(0)
    kx, kp = jax.random.split(key)

    nchannels, nclass, nhidden, num_layers = 1, 10, 32, 2
    batch, H, W = 2, 32, 16   # H=32 -> conv stack reduces height to exactly 1

    x = jax.random.normal(kx, (batch, nchannels, H, W), jnp.float32)
    params = init_params(kp, nchannels, nclass, nhidden, num_layers)

    fwd = jax.jit(lambda xx, pp: crnn_forward(xx, pp, nhidden))
    out = fwd(x, params)
    out = jax.block_until_ready(out)

    # Expected: T = 3 (W=16 -> 8 -> 4 -> 4 -> 4 -> 4 -> 4 -> 3), b=2, nclass=10
    assert out.shape == (3, batch, nclass), out.shape
    assert bool(jnp.all(jnp.isfinite(out)))
    print("KERNEL_OK")
</pallas_src>

<mosaic_0001>
module attributes {stable_mosaic.version = 11 : i64} {
  func.func @_mm_bias_kernel(%arg0: i32, %arg1: i32, %arg2: i32, %arg3: memref<256x128xbf16, #tpu.memory_space<vmem>>, %arg4: memref<128x128xbf16, #tpu.memory_space<vmem>>, %arg5: memref<1x128xf32, #tpu.memory_space<vmem>>, %arg6: memref<256x128xf32, #tpu.memory_space<vmem>>, %arg7: memref<256x128xf32, #tpu.memory_space<vmem>>) attributes {dimension_semantics = [#tpu.dimension_semantics<parallel>, #tpu.dimension_semantics<parallel>, #tpu.dimension_semantics<arbitrary>], iteration_bounds = array<i64: 1, 1, 1>, scalar_prefetch = 0 : i64, scratch_operands = 1 : i64, tpu.core_type = #tpu.core_type<tc>, window_params = [{transform_indices = @transform_0, window_bounds = array<i64: 256, 128>}, {transform_indices = @transform_1, window_bounds = array<i64: 128, 128>}, {transform_indices = @transform_2, window_bounds = array<i64: 1, 128>}, {transform_indices = @transform_3, window_bounds = array<i64: 256, 128>}]} {
    %c0_i32 = arith.constant 0 : i32
    %0 = arith.cmpi eq, %arg2, %c0_i32 : i32
    %1 = arith.extui %0 : i1 to i32
    %c0_i32_0 = arith.constant 0 : i32
    %2 = arith.cmpi ne, %1, %c0_i32_0 : i32
    scf.if %2 {
      %cst_10 = arith.constant 0.000000e+00 : f32
      %12 = vector.broadcast %cst_10 : f32 to vector<256x128xf32>
      %c0_11 = arith.constant 0 : index
      %c0_12 = arith.constant 0 : index
      %13 = vector.load %arg7[%c0_11, %c0_12] : memref<256x128xf32, #tpu.memory_space<vmem>>, vector<256x128xf32>
      tpu.vector_store %arg7[%c0_11, %c0_12], %12 {strides = array<i32>} : memref<256x128xf32, #tpu.memory_space<vmem>>, vector<256x128xf32>,
    } else {
    }
    %c0 = arith.constant 0 : index
    %c0_1 = arith.constant 0 : index
    %3 = vector.load %arg7[%c0, %c0_1] : memref<256x128xf32, #tpu.memory_space<vmem>>, vector<256x128xf32>
    %c0_2 = arith.constant 0 : index
    %c0_3 = arith.constant 0 : index
    %4 = vector.load %arg3[%c0_2, %c0_3] : memref<256x128xbf16, #tpu.memory_space<vmem>>, vector<256x128xbf16>
    %c0_4 = arith.constant 0 : index
    %c0_5 = arith.constant 0 : index
    %5 = vector.load %arg4[%c0_4, %c0_5] : memref<128x128xbf16, #tpu.memory_space<vmem>>, vector<128x128xbf16>
    %cst = arith.constant dense<0.000000e+00> : vector<256x128xf32>
    %6 = tpu.matmul %4, %5, %cst {dimension_numbers = #tpu.dot_dimension_numbers<[1], [0], [0], [1], [0, 0, 1, 1], [], []>} : vector<256x128xbf16>, vector<128x128xbf16>, vector<256x128xf32> -> vector<256x128xf32>
    %7 = arith.addf %3, %6 : vector<256x128xf32>
    %c0_6 = arith.constant 0 : index
    %c0_7 = arith.constant 0 : index
    %8 = vector.load %arg7[%c0_6, %c0_7] : memref<256x128xf32, #tpu.memory_space<vmem>>, vector<256x128xf32>
    tpu.vector_store %arg7[%c0_6, %c0_7], %7 {strides = array<i32>} : memref<256x128xf32, #tpu.memory_space<vmem>>, vector<256x128xf32>,
    %c0_i32_8 = arith.constant 0 : i32
    %9 = arith.cmpi eq, %arg2, %c0_i32_8 : i32
    %10 = arith.extui %9 : i1 to i32
    %c0_i32_9 = arith.constant 0 : i32
    %11 = arith.cmpi ne, %10, %c0_i32_9 : i32
    scf.if %11 {
      %c0_10 = arith.constant 0 : index
      %c0_11 = arith.constant 0 : index
      %12 = vector.load %arg7[%c0_10, %c0_11] : memref<256x128xf32, #tpu.memory_space<vmem>>, vector<256x128xf32>
      %c0_12 = arith.constant 0 : index
      %c0_13 = arith.constant 0 : index
      %13 = vector.load %arg5[%c0_12, %c0_13] : memref<1x128xf32, #tpu.memory_space<vmem>>, vector<1x128xf32>
      %14 = vector.broadcast %13 : vector<1x128xf32> to vector<256x128xf32>
      %15 = arith.addf %12, %14 : vector<256x128xf32>
      %cst_14 = arith.constant 0.000000e+00 : f32
      %16 = vector.broadcast %cst_14 : f32 to vector<256x128xf32>
      %17 = arith.maximumf %15, %16 : vector<256x128xf32>
      %c0_15 = arith.constant 0 : index
      %c0_16 = arith.constant 0 : index
      %18 = vector.load %arg6[%c0_15, %c0_16] : memref<256x128xf32, #tpu.memory_space<vmem>>, vector<256x128xf32>
      tpu.vector_store %arg6[%c0_15, %c0_16], %17 {strides = array<i32>} : memref<256x128xf32, #tpu.memory_space<vmem>>, vector<256x128xf32>,
    } else {
    }
    return
  }
  func.func @transform_0(%arg0: i32, %arg1: i32, %arg2: i32) -> (i32, i32) {
    %c0_i32 = arith.constant 0 : i32
    return %arg0, %arg2 : i32, i32
  }
  func.func @transform_1(%arg0: i32, %arg1: i32, %arg2: i32) -> (i32, i32) {
    %c0_i32 = arith.constant 0 : i32
    return %arg2, %arg1 : i32, i32
  }
  func.func @transform_2(%arg0: i32, %arg1: i32, %arg2: i32) -> (i32, i32) {
    %c0_i32 = arith.constant 0 : i32
    %c0_i32_0 = arith.constant 0 : i32
    return %c0_i32, %arg1 : i32, i32
  }
  func.func @transform_3(%arg0: i32, %arg1: i32, %arg2: i32) -> (i32, i32) {
    %c0_i32 = arith.constant 0 : i32
    return %arg0, %arg1 : i32, i32
  }
}

module attributes {stable_mosaic.version = 11 : i64} {
  func.func @_mm_bias_kernel(%arg0: i32, %arg1: i32, %arg2: i32, %arg3: memref<64x128xbf16, #tpu.memory_space<vmem>>, %arg4: memref<128x128xbf16, #tpu.memory_space<vmem>>, %arg5: memref<1x128xf32, #tpu.memory_space<vmem>>, %arg6: memref<64x128xf32, #tpu.memory_space<vmem>>, %arg7: memref<64x128xf32, #tpu.memory_space<vmem>>) attributes {dimension_semantics = [#tpu.dimension_semantics<parallel>, #tpu.dimension_semantics<parallel>, #tpu.dimension_semantics<arbitrary>], iteration_bounds = array<i64: 1, 1, 5>, scalar_prefetch = 0 : i64, scratch_operands = 1 : i64, tpu.core_type = #tpu.core_type<tc>, window_params = [{transform_indices = @transform_0, window_bounds = array<i64: 64, 128>}, {transform_indices = @transform_1, window_bounds = array<i64: 128, 128>}, {transform_indices = @transform_2, window_bounds = array<i64: 1, 128>}, {transform_indices = @transform_3, window_bounds = array<i64: 64, 128>}]} {
    %c0_i32 = arith.constant 0 : i32
    %0 = arith.cmpi eq, %arg2, %c0_i32 : i32
    %1 = arith.extui %0 : i1 to i32
    %c0_i32_0 = arith.constant 0 : i32
    %2 = arith.cmpi ne, %1, %c0_i32_0 : i32
    scf.if %2 {
      %cst_9 = arith.constant 0.000000e+00 : f32
      %12 = vector.broadcast %cst_9 : f32 to vector<64x128xf32>
      %c0_10 = arith.constant 0 : index
      %c0_11 = arith.constant 0 : index
      %13 = vector.load %arg7[%c0_10, %c0_11] : memref<64x128xf32, #tpu.memory_space<vmem>>, vector<64x128xf32>
      tpu.vector_store %arg7[%c0_10, %c0_11], %12 {strides = array<i32>} : memref<64x128xf32, #tpu.memory_space<vmem>>, vector<64x128xf32>,
    } else {
    }
    %c0 = arith.constant 0 : index
    %c0_1 = arith.constant 0 : index
    %3 = vector.load %arg7[%c0, %c0_1] : memref<64x128xf32, #tpu.memory_space<vmem>>, vector<64x128xf32>
    %c0_2 = arith.constant 0 : index
    %c0_3 = arith.constant 0 : index
    %4 = vector.load %arg3[%c0_2, %c0_3] : memref<64x128xbf16, #tpu.memory_space<vmem>>, vector<64x128xbf16>
    %c0_4 = arith.constant 0 : index
    %c0_5 = arith.constant 0 : index
    %5 = vector.load %arg4[%c0_4, %c0_5] : memref<128x128xbf16, #tpu.memory_space<vmem>>, vector<128x128xbf16>
    %cst = arith.constant dense<0.000000e+00> : vector<64x128xf32>
    %6 = tpu.matmul %4, %5, %cst {dimension_numbers = #tpu.dot_dimension_numbers<[1], [0], [0], [1], [0, 0, 1, 1], [], []>} : vector<64x128xbf16>, vector<128x128xbf16>, vector<64x128xf32> -> vector<64x128xf32>
    %7 = arith.addf %3, %6 : vector<64x128xf32>
    %c0_6 = arith.constant 0 : index
    %c0_7 = arith.constant 0 : index
    %8 = vector.load %arg7[%c0_6, %c0_7] : memref<64x128xf32, #tpu.memory_space<vmem>>, vector<64x128xf32>
    tpu.vector_store %arg7[%c0_6, %c0_7], %7 {strides = array<i32>} : memref<64x128xf32, #tpu.memory_space<vmem>>, vector<64x128xf32>,
    %c4_i32 = arith.constant 4 : i32
    %9 = arith.cmpi eq, %arg2, %c4_i32 : i32
    %10 = arith.extui %9 : i1 to i32
    %c0_i32_8 = arith.constant 0 : i32
    %11 = arith.cmpi ne, %10, %c0_i32_8 : i32
    scf.if %11 {
      %c0_9 = arith.constant 0 : index
      %c0_10 = arith.constant 0 : index
      %12 = vector.load %arg7[%c0_9, %c0_10] : memref<64x128xf32, #tpu.memory_space<vmem>>, vector<64x128xf32>
      %c0_11 = arith.constant 0 : index
      %c0_12 = arith.constant 0 : index
      %13 = vector.load %arg5[%c0_11, %c0_12] : memref<1x128xf32, #tpu.memory_space<vmem>>, vector<1x128xf32>
      %14 = vector.broadcast %13 : vector<1x128xf32> to vector<64x128xf32>
      %15 = arith.addf %12, %14 : vector<64x128xf32>
      %cst_13 = arith.constant 0.000000e+00 : f32
      %16 = vector.broadcast %cst_13 : f32 to vector<64x128xf32>
      %17 = arith.maximumf %15, %16 : vector<64x128xf32>
      %c0_14 = arith.constant 0 : index
      %c0_15 = arith.constant 0 : index
      %18 = vector.load %arg6[%c0_14, %c0_15] : memref<64x128xf32, #tpu.memory_space<vmem>>, vector<64x128xf32>
      tpu.vector_store %arg6[%c0_14, %c0_15], %17 {strides = array<i32>} : memref<64x128xf32, #tpu.memory_space<vmem>>, vector<64x128xf32>,
    } else {
    }
    return
  }
  func.func @transform_0(%arg0: i32, %arg1: i32, %arg2: i32) -> (i32, i32) {
    %c0_i32 = arith.constant 0 : i32
    return %arg0, %arg2 : i32, i32
  }
  func.func @transform_1(%arg0: i32, %arg1: i32, %arg2: i32) -> (i32, i32) {
    %c0_i32 = arith.constant 0 : i32
    return %arg2, %arg1 : i32, i32
  }
  func.func @transform_2(%arg0: i32, %arg1: i32, %arg2: i32) -> (i32, i32) {
    %c0_i32 = arith.constant 0 : i32
    %c0_i32_0 = arith.constant 0 : i32
    return %c0_i32, %arg1 : i32, i32
  }
  func.func @transform_3(%arg0: i32, %arg1: i32, %arg2: i32) -> (i32, i32) {
    %c0_i32 = arith.constant 0 : i32
    return %arg0, %arg1 : i32, i32
  }
}

module attributes {stable_mosaic.version = 11 : i64} {
  func.func @_mm_stats_kernel(%arg0: i32, %arg1: i32, %arg2: i32, %arg3: memref<64x384xbf16, #tpu.memory_space<vmem>>, %arg4: memref<384x256xbf16, #tpu.memory_space<vmem>>, %arg5: memref<64x256xf32, #tpu.memory_space<vmem>>, %arg6: memref<1x256xf32, #tpu.memory_space<vmem>>, %arg7: memref<1x256xf32, #tpu.memory_space<vmem>>, %arg8: memref<64x256xf32, #tpu.memory_space<vmem>>) attributes {dimension_semantics = [#tpu.dimension_semantics<parallel>, #tpu.dimension_semantics<arbitrary>, #tpu.dimension_semantics<arbitrary>], iteration_bounds = array<i64: 1, 1, 3>, scalar_prefetch = 0 : i64, scratch_operands = 1 : i64, tpu.core_type = #tpu.core_type<tc>, window_params = [{transform_indices = @transform_0, window_bounds = array<i64: 64, 384>}, {transform_indices = @transform_1, window_bounds = array<i64: 384, 256>}, {transform_indices = @transform_2, window_bounds = array<i64: 64, 256>}, {transform_indices = @transform_3, window_bounds = array<i64: 1, 256>}, {transform_indices = @transform_4, window_bounds = array<i64: 1, 256>}]} {
    %c0_i32 = arith.constant 0 : i32
    %0 = arith.cmpi eq, %arg2, %c0_i32 : i32
    %1 = arith.extui %0 : i1 to i32
    %c0_i32_0 = arith.constant 0 : i32
    %2 = arith.cmpi ne, %1, %c0_i32_0 : i32
    scf.if %2 {
      %cst_12 = arith.constant 0.000000e+00 : f32
      %17 = vector.broadcast %cst_12 : f32 to vector<64x256xf32>
      %c0_13 = arith.constant 0 : index
      %c0_14 = arith.constant 0 : index
      %18 = vector.load %arg8[%c0_13, %c0_14] : memref<64x256xf32, #tpu.memory_space<vmem>>, vector<64x256xf32>
      tpu.vector_store %arg8[%c0_13, %c0_14], %17 {strides = array<i32>} : memref<64x256xf32, #tpu.memory_space<vmem>>, vector<64x256xf32>,
    } else {
    }
    %c0 = arith.constant 0 : index
    %c0_1 = arith.constant 0 : index
    %3 = vector.load %arg8[%c0, %c0_1] : memref<64x256xf32, #tpu.memory_space<vmem>>, vector<64x256xf32>
    %c0_2 = arith.constant 0 : index
    %c0_3 = arith.constant 0 : index
    %4 = vector.load %arg3[%c0_2, %c0_3] : memref<64x384xbf16, #tpu.memory_space<vmem>>, vector<64x384xbf16>
    %c0_4 = arith.constant 0 : index
    %c0_5 = arith.constant 0 : index
    %5 = vector.load %arg4[%c0_4, %c0_5] : memref<384x256xbf16, #tpu.memory_space<vmem>>, vector<384x256xbf16>
    %cst = arith.constant dense<0.000000e+00> : vector<64x256xf32>
    %6 = tpu.matmul %4, %5, %cst {dimension_numbers = #tpu.dot_dimension_numbers<[1], [0], [0], [1], [0, 0, 1, 1], [], []>} : vector<64x384xbf16>, vector<384x256xbf16>, vector<64x256xf32> -> vector<64x256xf32>
    %7 = arith.addf %3, %6 : vector<64x256xf32>
    %c0_6 = arith.constant 0 : index
    %c0_7 = arith.constant 0 : index
    %8 = vector.load %arg8[%c0_6, %c0_7] : memref<64x256xf32, #tpu.memory_space<vmem>>, vector<64x256xf32>
    tpu.vector_store %arg8[%c0_6, %c0_7], %7 {strides = array<i32>} : memref<64x256xf32, #tpu.memory_space<vmem>>, vector<64x256xf32>,
    %c2_i32 = arith.constant 2 : i32
    %9 = arith.cmpi eq, %arg2, %c2_i32 : i32
    %c0_i32_8 = arith.constant 0 : i32
    %10 = arith.cmpi eq, %arg1, %c0_i32_8 : i32
    %11 = arith.andi %9, %10 : i1
    %12 = arith.extui %11 : i1 to i32
    %c0_i32_9 = arith.constant 0 : i32
    %13 = arith.cmpi ne, %12, %c0_i32_9 : i32
    scf.if %13 {
      %cst_12 = arith.constant 0.000000e+00 : f32
      %17 = vector.broadcast %cst_12 : f32 to vector<1x256xf32>
      %c0_13 = arith.constant 0 : index
      %c0_14 = arith.constant 0 : index
      %18 = vector.load %arg6[%c0_13, %c0_14] : memref<1x256xf32, #tpu.memory_space<vmem>>, vector<1x256xf32>
      tpu.vector_store %arg6[%c0_13, %c0_14], %17 {strides = array<i32>} : memref<1x256xf32, #tpu.memory_space<vmem>>, vector<1x256xf32>,
      %cst_15 = arith.constant 0.000000e+00 : f32
      %19 = vector.broadcast %cst_15 : f32 to vector<1x256xf32>
      %c0_16 = arith.constant 0 : index
      %c0_17 = arith.constant 0 : index
      %20 = vector.load %arg7[%c0_16, %c0_17] : memref<1x256xf32, #tpu.memory_space<vmem>>, vector<1x256xf32>
      tpu.vector_store %arg7[%c0_16, %c0_17], %19 {strides = array<i32>} : memref<1x256xf32, #tpu.memory_space<vmem>>, vector<1x256xf32>,
    } else {
    }
    %c2_i32_10 = arith.constant 2 : i32
    %14 = arith.cmpi eq, %arg2, %c2_i32_10 : i32
    %15 = arith.extui %14 : i1 to i32
    %c0_i32_11 = arith.constant 0 : i32
    %16 = arith.cmpi ne, %15, %c0_i32_11 : i32
    scf.if %16 {
      %c0_12 = arith.constant 0 : index
      %c0_13 = arith.constant 0 : index
      %17 = vector.load %arg8[%c0_12, %c0_13] : memref<64x256xf32, #tpu.memory_space<vmem>>, vector<64x256xf32>
      %c0_14 = arith.constant 0 : index
      %c0_15 = arith.constant 0 : index
      %18 = vector.load %arg5[%c0_14, %c0_15] : memref<64x256xf32, #tpu.memory_space<vmem>>, vector<64x256xf32>
      tpu.vector_store %arg5[%c0_14, %c0_15], %17 {strides = array<i32>} : memref<64x256xf32, #tpu.memory_space<vmem>>, vector<64x256xf32>,
      %c0_16 = arith.constant 0 : index
      %c0_17 = arith.constant 0 : index
      %19 = vector.load %arg6[%c0_16, %c0_17] : memref<1x256xf32, #tpu.memory_space<vmem>>, vector<1x256xf32>
      %cst_18 = arith.constant dense<0.000000e+00> : vector<256xf32>
      %20 = vector.multi_reduction <add>, %17, %cst_18 [0] : vector<64x256xf32> to vector<256xf32>
      %21 = vector.shape_cast %20 : vector<256xf32> to vector<1x256xf32>
      %22 = arith.addf %19, %21 : vector<1x256xf32>
      %c0_19 = arith.constant 0 : index
      %c0_20 = arith.constant 0 : index
      %23 = vector.load %arg6[%c0_19, %c0_20] : memref<1x256xf32, #tpu.memory_space<vmem>>, vector<1x256xf32>
      tpu.vector_store %arg6[%c0_19, %c0_20], %22 {strides = array<i32>} : memref<1x256xf32, #tpu.memory_space<vmem>>, vector<1x256xf32>,
      %c0_21 = arith.constant 0 : index
      %c0_22 = arith.constant 0 : index
      %24 = vector.load %arg7[%c0_21, %c0_22] : memref<1x256xf32, #tpu.memory_space<vmem>>, vector<1x256xf32>
      %25 = arith.mulf %17, %17 : vector<64x256xf32>
      %cst_23 = arith.constant dense<0.000000e+00> : vector<256xf32>
      %26 = vector.multi_reduction <add>, %25, %cst_23 [0] : vector<64x256xf32> to vector<256xf32>
      %27 = vector.shape_cast %26 : vector<256xf32> to vector<1x256xf32>
      %28 = arith.addf %24, %27 : vector<1x256xf32>
      %c0_24 = arith.constant 0 : index
      %c0_25 = arith.constant 0 : index
      %29 = vector.load %arg7[%c0_24, %c0_25] : memref<1x256xf32, #tpu.memory_space<vmem>>, vector<1x256xf32>
      tpu.vector_store %arg7[%c0_24, %c0_25], %28 {strides = array<i32>} : memref<1x256xf32, #tpu.memory_space<vmem>>, vector<1x256xf32>,
    } else {
    }
    return
  }
  func.func @transform_0(%arg0: i32, %arg1: i32, %arg2: i32) -> (i32, i32) {
    %c0_i32 = arith.constant 0 : i32
    return %arg1, %arg2 : i32, i32
  }
  func.func @transform_1(%arg0: i32, %arg1: i32, %arg2: i32) -> (i32, i32) {
    %c0_i32 = arith.constant 0 : i32
    return %arg2, %arg0 : i32, i32
  }
  func.func @transform_2(%arg0: i32, %arg1: i32, %arg2: i32) -> (i32, i32) {
    %c0_i32 = arith.constant 0 : i32
    return %arg1, %arg0 : i32, i32
  }
  func.func @transform_3(%arg0: i32, %arg1: i32, %arg2: i32) -> (i32, i32) {
    %c0_i32 = arith.constant 0 : i32
    %c0_i32_0 = arith.constant 0 : i32
    return %c0_i32, %arg0 : i32, i32
  }
  func.func @transform_4(%arg0: i32, %arg1: i32, %arg2: i32) -> (i32, i32) {
    %c0_i32 = arith.constant 0 : i32
    %c0_i32_0 = arith.constant 0 : i32
    return %c0_i32, %arg0 : i32, i32
  }
}

module attributes {stable_mosaic.version = 11 : i64} {
  func.func @_scale_relu_kernel(%arg0: i32, %arg1: memref<64x256xf32, #tpu.memory_space<vmem>>, %arg2: memref<1x256xf32, #tpu.memory_space<vmem>>, %arg3: memref<1x256xf32, #tpu.memory_space<vmem>>, %arg4: memref<64x256xf32, #tpu.memory_space<vmem>>) attributes {dimension_semantics = [#tpu.dimension_semantics<parallel>], iteration_bounds = array<i64: 1>, scalar_prefetch = 0 : i64, scratch_operands = 0 : i64, tpu.core_type = #tpu.core_type<tc>, window_params = [{transform_indices = @transform_0, window_bounds = array<i64: 64, 256>}, {pipeline_mode = #tpu.pipeline_mode<synchronous>, transform_indices = @transform_1, window_bounds = array<i64: 1, 256>}, {pipeline_mode = #tpu.pipeline_mode<synchronous>, transform_indices = @transform_2, window_bounds = array<i64: 1, 256>}, {transform_indices = @transform_3, window_bounds = array<i64: 64, 256>}]} {
    %c0 = arith.constant 0 : index
    %c0_0 = arith.constant 0 : index
    %0 = vector.load %arg1[%c0, %c0_0] : memref<64x256xf32, #tpu.memory_space<vmem>>, vector<64x256xf32>
    %c0_1 = arith.constant 0 : index
    %c0_2 = arith.constant 0 : index
    %1 = vector.load %arg2[%c0_1, %c0_2] : memref<1x256xf32, #tpu.memory_space<vmem>>, vector<1x256xf32>
    %2 = vector.broadcast %1 : vector<1x256xf32> to vector<64x256xf32>
    %3 = arith.mulf %0, %2 : vector<64x256xf32>
    %c0_3 = arith.constant 0 : index
    %c0_4 = arith.constant 0 : index
    %4 = vector.load %arg3[%c0_3, %c0_4] : memref<1x256xf32, #tpu.memory_space<vmem>>, vector<1x256xf32>
    %5 = vector.broadcast %4 : vector<1x256xf32> to vector<64x256xf32>
    %6 = arith.addf %3, %5 : vector<64x256xf32>
    %cst = arith.constant 0.000000e+00 : f32
    %7 = vector.broadcast %cst : f32 to vector<64x256xf32>
    %8 = arith.maximumf %6, %7 : vector<64x256xf32>
    %c0_5 = arith.constant 0 : index
    %c0_6 = arith.constant 0 : index
    %9 = vector.load %arg4[%c0_5, %c0_6] : memref<64x256xf32, #tpu.memory_space<vmem>>, vector<64x256xf32>
    tpu.vector_store %arg4[%c0_5, %c0_6], %8 {strides = array<i32>} : memref<64x256xf32, #tpu.memory_space<vmem>>, vector<64x256xf32>,
    return
  }
  func.func @transform_0(%arg0: i32) -> (i32, i32) {
    %c0_i32 = arith.constant 0 : i32
    %c0_i32_0 = arith.constant 0 : i32
    return %arg0, %c0_i32 : i32, i32
  }
  func.func @transform_1(%arg0: i32) -> (i32, i32) {
    %c0_i32 = arith.constant 0 : i32
    %c0_i32_0 = arith.constant 0 : i32
    %c0_i32_1 = arith.constant 0 : i32
    return %c0_i32, %c0_i32_0 : i32, i32
  }
  func.func @transform_2(%arg0: i32) -> (i32, i32) {
    %c0_i32 = arith.constant 0 : i32
    %c0_i32_0 = arith.constant 0 : i32
    %c0_i32_1 = arith.constant 0 : i32
    return %c0_i32, %c0_i32_0 : i32, i32
  }
  func.func @transform_3(%arg0: i32) -> (i32, i32) {
    %c0_i32 = arith.constant 0 : i32
    %c0_i32_0 = arith.constant 0 : i32
    return %arg0, %c0_i32 : i32, i32
  }
}

module attributes {stable_mosaic.version = 11 : i64} {
  func.func @_mm_bias_kernel(%arg0: i32, %arg1: i32, %arg2: i32, %arg3: memref<32x384xbf16, #tpu.memory_space<vmem>>, %arg4: memref<384x256xbf16, #tpu.memory_space<vmem>>, %arg5: memref<1x256xf32, #tpu.memory_space<vmem>>, %arg6: memref<32x256xf32, #tpu.memory_space<vmem>>, %arg7: memref<32x256xf32, #tpu.memory_space<vmem>>) attributes {dimension_semantics = [#tpu.dimension_semantics<parallel>, #tpu.dimension_semantics<parallel>, #tpu.dimension_semantics<arbitrary>], iteration_bounds = array<i64: 1, 1, 6>, scalar_prefetch = 0 : i64, scratch_operands = 1 : i64, tpu.core_type = #tpu.core_type<tc>, window_params = [{transform_indices = @transform_0, window_bounds = array<i64: 32, 384>}, {transform_indices = @transform_1, window_bounds = array<i64: 384, 256>}, {transform_indices = @transform_2, window_bounds = array<i64: 1, 256>}, {transform_indices = @transform_3, window_bounds = array<i64: 32, 256>}]} {
    %c0_i32 = arith.constant 0 : i32
    %0 = arith.cmpi eq, %arg2, %c0_i32 : i32
    %1 = arith.extui %0 : i1 to i32
    %c0_i32_0 = arith.constant 0 : i32
    %2 = arith.cmpi ne, %1, %c0_i32_0 : i32
    scf.if %2 {
      %cst_9 = arith.constant 0.000000e+00 : f32
      %12 = vector.broadcast %cst_9 : f32 to vector<32x256xf32>
      %c0_10 = arith.constant 0 : index
      %c0_11 = arith.constant 0 : index
      %13 = vector.load %arg7[%c0_10, %c0_11] : memref<32x256xf32, #tpu.memory_space<vmem>>, vector<32x256xf32>
      tpu.vector_store %arg7[%c0_10, %c0_11], %12 {strides = array<i32>} : memref<32x256xf32, #tpu.memory_space<vmem>>, vector<32x256xf32>,
    } else {
    }
    %c0 = arith.constant 0 : index
    %c0_1 = arith.constant 0 : index
    %3 = vector.load %arg7[%c0, %c0_1] : memref<32x256xf32, #tpu.memory_space<vmem>>, vector<32x256xf32>
    %c0_2 = arith.constant 0 : index
    %c0_3 = arith.constant 0 : index
    %4 = vector.load %arg3[%c0_2, %c0_3] : memref<32x384xbf16, #tpu.memory_space<vmem>>, vector<32x384xbf16>
    %c0_4 = arith.constant 0 : index
    %c0_5 = arith.constant 0 : index
    %5 = vector.load %arg4[%c0_4, %c0_5] : memref<384x256xbf16, #tpu.memory_space<vmem>>, vector<384x256xbf16>
    %cst = arith.constant dense<0.000000e+00> : vector<32x256xf32>
    %6 = tpu.matmul %4, %5, %cst {dimension_numbers = #tpu.dot_dimension_numbers<[1], [0], [0], [1], [0, 0, 1, 1], [], []>} : vector<32x384xbf16>, vector<384x256xbf16>, vector<32x256xf32> -> vector<32x256xf32>
    %7 = arith.addf %3, %6 : vector<32x256xf32>
    %c0_6 = arith.constant 0 : index
    %c0_7 = arith.constant 0 : index
    %8 = vector.load %arg7[%c0_6, %c0_7] : memref<32x256xf32, #tpu.memory_space<vmem>>, vector<32x256xf32>
    tpu.vector_store %arg7[%c0_6, %c0_7], %7 {strides = array<i32>} : memref<32x256xf32, #tpu.memory_space<vmem>>, vector<32x256xf32>,
    %c5_i32 = arith.constant 5 : i32
    %9 = arith.cmpi eq, %arg2, %c5_i32 : i32
    %10 = arith.extui %9 : i1 to i32
    %c0_i32_8 = arith.constant 0 : i32
    %11 = arith.cmpi ne, %10, %c0_i32_8 : i32
    scf.if %11 {
      %c0_9 = arith.constant 0 : index
      %c0_10 = arith.constant 0 : index
      %12 = vector.load %arg7[%c0_9, %c0_10] : memref<32x256xf32, #tpu.memory_space<vmem>>, vector<32x256xf32>
      %c0_11 = arith.constant 0 : index
      %c0_12 = arith.constant 0 : index
      %13 = vector.load %arg5[%c0_11, %c0_12] : memref<1x256xf32, #tpu.memory_space<vmem>>, vector<1x256xf32>
      %14 = vector.broadcast %13 : vector<1x256xf32> to vector<32x256xf32>
      %15 = arith.addf %12, %14 : vector<32x256xf32>
      %cst_13 = arith.constant 0.000000e+00 : f32
      %16 = vector.broadcast %cst_13 : f32 to vector<32x256xf32>
      %17 = arith.maximumf %15, %16 : vector<32x256xf32>
      %c0_14 = arith.constant 0 : index
      %c0_15 = arith.constant 0 : index
      %18 = vector.load %arg6[%c0_14, %c0_15] : memref<32x256xf32, #tpu.memory_space<vmem>>, vector<32x256xf32>
      tpu.vector_store %arg6[%c0_14, %c0_15], %17 {strides = array<i32>} : memref<32x256xf32, #tpu.memory_space<vmem>>, vector<32x256xf32>,
    } else {
    }
    return
  }
  func.func @transform_0(%arg0: i32, %arg1: i32, %arg2: i32) -> (i32, i32) {
    %c0_i32 = arith.constant 0 : i32
    return %arg0, %arg2 : i32, i32
  }
  func.func @transform_1(%arg0: i32, %arg1: i32, %arg2: i32) -> (i32, i32) {
    %c0_i32 = arith.constant 0 : i32
    return %arg2, %arg1 : i32, i32
  }
  func.func @transform_2(%arg0: i32, %arg1: i32, %arg2: i32) -> (i32, i32) {
    %c0_i32 = arith.constant 0 : i32
    %c0_i32_0 = arith.constant 0 : i32
    return %c0_i32, %arg1 : i32, i32
  }
  func.func @transform_3(%arg0: i32, %arg1: i32, %arg2: i32) -> (i32, i32) {
    %c0_i32 = arith.constant 0 : i32
    return %arg0, %arg1 : i32, i32
  }
}

module attributes {stable_mosaic.version = 11 : i64} {
  func.func @_mm_stats_kernel(%arg0: i32, %arg1: i32, %arg2: i32, %arg3: memref<32x384xbf16, #tpu.memory_space<vmem>>, %arg4: memref<384x512xbf16, #tpu.memory_space<vmem>>, %arg5: memref<32x512xf32, #tpu.memory_space<vmem>>, %arg6: memref<1x512xf32, #tpu.memory_space<vmem>>, %arg7: memref<1x512xf32, #tpu.memory_space<vmem>>, %arg8: memref<32x512xf32, #tpu.memory_space<vmem>>) attributes {dimension_semantics = [#tpu.dimension_semantics<parallel>, #tpu.dimension_semantics<arbitrary>, #tpu.dimension_semantics<arbitrary>], iteration_bounds = array<i64: 1, 1, 6>, scalar_prefetch = 0 : i64, scratch_operands = 1 : i64, tpu.core_type = #tpu.core_type<tc>, window_params = [{transform_indices = @transform_0, window_bounds = array<i64: 32, 384>}, {transform_indices = @transform_1, window_bounds = array<i64: 384, 512>}, {transform_indices = @transform_2, window_bounds = array<i64: 32, 512>}, {transform_indices = @transform_3, window_bounds = array<i64: 1, 512>}, {transform_indices = @transform_4, window_bounds = array<i64: 1, 512>}]} {
    %c0_i32 = arith.constant 0 : i32
    %0 = arith.cmpi eq, %arg2, %c0_i32 : i32
    %1 = arith.extui %0 : i1 to i32
    %c0_i32_0 = arith.constant 0 : i32
    %2 = arith.cmpi ne, %1, %c0_i32_0 : i32
    scf.if %2 {
      %cst_12 = arith.constant 0.000000e+00 : f32
      %17 = vector.broadcast %cst_12 : f32 to vector<32x512xf32>
      %c0_13 = arith.constant 0 : index
      %c0_14 = arith.constant 0 : index
      %18 = vector.load %arg8[%c0_13, %c0_14] : memref<32x512xf32, #tpu.memory_space<vmem>>, vector<32x512xf32>
      tpu.vector_store %arg8[%c0_13, %c0_14], %17 {strides = array<i32>} : memref<32x512xf32, #tpu.memory_space<vmem>>, vector<32x512xf32>,
    } else {
    }
    %c0 = arith.constant 0 : index
    %c0_1 = arith.constant 0 : index
    %3 = vector.load %arg8[%c0, %c0_1] : memref<32x512xf32, #tpu.memory_space<vmem>>, vector<32x512xf32>
    %c0_2 = arith.constant 0 : index
    %c0_3 = arith.constant 0 : index
    %4 = vector.load %arg3[%c0_2, %c0_3] : memref<32x384xbf16, #tpu.memory_space<vmem>>, vector<32x384xbf16>
    %c0_4 = arith.constant 0 : index
    %c0_5 = arith.constant 0 : index
    %5 = vector.load %arg4[%c0_4, %c0_5] : memref<384x512xbf16, #tpu.memory_space<vmem>>, vector<384x512xbf16>
    %cst = arith.constant dense<0.000000e+00> : vector<32x512xf32>
    %6 = tpu.matmul %4, %5, %cst {dimension_numbers = #tpu.dot_dimension_numbers<[1], [0], [0], [1], [0, 0, 1, 1], [], []>} : vector<32x384xbf16>, vector<384x512xbf16>, vector<32x512xf32> -> vector<32x512xf32>
    %7 = arith.addf %3, %6 : vector<32x512xf32>
    %c0_6 = arith.constant 0 : index
    %c0_7 = arith.constant 0 : index
    %8 = vector.load %arg8[%c0_6, %c0_7] : memref<32x512xf32, #tpu.memory_space<vmem>>, vector<32x512xf32>
    tpu.vector_store %arg8[%c0_6, %c0_7], %7 {strides = array<i32>} : memref<32x512xf32, #tpu.memory_space<vmem>>, vector<32x512xf32>,
    %c5_i32 = arith.constant 5 : i32
    %9 = arith.cmpi eq, %arg2, %c5_i32 : i32
    %c0_i32_8 = arith.constant 0 : i32
    %10 = arith.cmpi eq, %arg1, %c0_i32_8 : i32
    %11 = arith.andi %9, %10 : i1
    %12 = arith.extui %11 : i1 to i32
    %c0_i32_9 = arith.constant 0 : i32
    %13 = arith.cmpi ne, %12, %c0_i32_9 : i32
    scf.if %13 {
      %cst_12 = arith.constant 0.000000e+00 : f32
      %17 = vector.broadcast %cst_12 : f32 to vector<1x512xf32>
      %c0_13 = arith.constant 0 : index
      %c0_14 = arith.constant 0 : index
      %18 = vector.load %arg6[%c0_13, %c0_14] : memref<1x512xf32, #tpu.memory_space<vmem>>, vector<1x512xf32>
      tpu.vector_store %arg6[%c0_13, %c0_14], %17 {strides = array<i32>} : memref<1x512xf32, #tpu.memory_space<vmem>>, vector<1x512xf32>,
      %cst_15 = arith.constant 0.000000e+00 : f32
      %19 = vector.broadcast %cst_15 : f32 to vector<1x512xf32>
      %c0_16 = arith.constant 0 : index
      %c0_17 = arith.constant 0 : index
      %20 = vector.load %arg7[%c0_16, %c0_17] : memref<1x512xf32, #tpu.memory_space<vmem>>, vector<1x512xf32>
      tpu.vector_store %arg7[%c0_16, %c0_17], %19 {strides = array<i32>} : memref<1x512xf32, #tpu.memory_space<vmem>>, vector<1x512xf32>,
    } else {
    }
    %c5_i32_10 = arith.constant 5 : i32
    %14 = arith.cmpi eq, %arg2, %c5_i32_10 : i32
    %15 = arith.extui %14 : i1 to i32
    %c0_i32_11 = arith.constant 0 : i32
    %16 = arith.cmpi ne, %15, %c0_i32_11 : i32
    scf.if %16 {
      %c0_12 = arith.constant 0 : index
      %c0_13 = arith.constant 0 : index
      %17 = vector.load %arg8[%c0_12, %c0_13] : memref<32x512xf32, #tpu.memory_space<vmem>>, vector<32x512xf32>
      %c0_14 = arith.constant 0 : index
      %c0_15 = arith.constant 0 : index
      %18 = vector.load %arg5[%c0_14, %c0_15] : memref<32x512xf32, #tpu.memory_space<vmem>>, vector<32x512xf32>
      tpu.vector_store %arg5[%c0_14, %c0_15], %17 {strides = array<i32>} : memref<32x512xf32, #tpu.memory_space<vmem>>, vector<32x512xf32>,
      %c0_16 = arith.constant 0 : index
      %c0_17 = arith.constant 0 : index
      %19 = vector.load %arg6[%c0_16, %c0_17] : memref<1x512xf32, #tpu.memory_space<vmem>>, vector<1x512xf32>
      %cst_18 = arith.constant dense<0.000000e+00> : vector<512xf32>
      %20 = vector.multi_reduction <add>, %17, %cst_18 [0] : vector<32x512xf32> to vector<512xf32>
      %21 = vector.shape_cast %20 : vector<512xf32> to vector<1x512xf32>
      %22 = arith.addf %19, %21 : vector<1x512xf32>
      %c0_19 = arith.constant 0 : index
      %c0_20 = arith.constant 0 : index
      %23 = vector.load %arg6[%c0_19, %c0_20] : memref<1x512xf32, #tpu.memory_space<vmem>>, vector<1x512xf32>
      tpu.vector_store %arg6[%c0_19, %c0_20], %22 {strides = array<i32>} : memref<1x512xf32, #tpu.memory_space<vmem>>, vector<1x512xf32>,
      %c0_21 = arith.constant 0 : index
      %c0_22 = arith.constant 0 : index
      %24 = vector.load %arg7[%c0_21, %c0_22] : memref<1x512xf32, #tpu.memory_space<vmem>>, vector<1x512xf32>
      %25 = arith.mulf %17, %17 : vector<32x512xf32>
      %cst_23 = arith.constant dense<0.000000e+00> : vector<512xf32>
      %26 = vector.multi_reduction <add>, %25, %cst_23 [0] : vector<32x512xf32> to vector<512xf32>
      %27 = vector.shape_cast %26 : vector<512xf32> to vector<1x512xf32>
      %28 = arith.addf %24, %27 : vector<1x512xf32>
      %c0_24 = arith.constant 0 : index
      %c0_25 = arith.constant 0 : index
      %29 = vector.load %arg7[%c0_24, %c0_25] : memref<1x512xf32, #tpu.memory_space<vmem>>, vector<1x512xf32>
      tpu.vector_store %arg7[%c0_24, %c0_25], %28 {strides = array<i32>} : memref<1x512xf32, #tpu.memory_space<vmem>>, vector<1x512xf32>,
    } else {
    }
    return
  }
  func.func @transform_0(%arg0: i32, %arg1: i32, %arg2: i32) -> (i32, i32) {
    %c0_i32 = arith.constant 0 : i32
    return %arg1, %arg2 : i32, i32
  }
  func.func @transform_1(%arg0: i32, %arg1: i32, %arg2: i32) -> (i32, i32) {
    %c0_i32 = arith.constant 0 : i32
    return %arg2, %arg0 : i32, i32
  }
  func.func @transform_2(%arg0: i32, %arg1: i32, %arg2: i32) -> (i32, i32) {
    %c0_i32 = arith.constant 0 : i32
    return %arg1, %arg0 : i32, i32
  }
  func.func @transform_3(%arg0: i32, %arg1: i32, %arg2: i32) -> (i32, i32) {
    %c0_i32 = arith.constant 0 : i32
    %c0_i32_0 = arith.constant 0 : i32
    return %c0_i32, %arg0 : i32, i32
  }
  func.func @transform_4(%arg0: i32, %arg1: i32, %arg2: i32) -> (i32, i32) {
    %c0_i32 = arith.constant 0 : i32
    %c0_i32_0 = arith.constant 0 : i32
    return %c0_i32, %arg0 : i32, i32
  }
}

module attributes {stable_mosaic.version = 11 : i64} {
  func.func @_scale_relu_kernel(%arg0: i32, %arg1: memref<32x512xf32, #tpu.memory_space<vmem>>, %arg2: memref<1x512xf32, #tpu.memory_space<vmem>>, %arg3: memref<1x512xf32, #tpu.memory_space<vmem>>, %arg4: memref<32x512xf32, #tpu.memory_space<vmem>>) attributes {dimension_semantics = [#tpu.dimension_semantics<parallel>], iteration_bounds = array<i64: 1>, scalar_prefetch = 0 : i64, scratch_operands = 0 : i64, tpu.core_type = #tpu.core_type<tc>, window_params = [{transform_indices = @transform_0, window_bounds = array<i64: 32, 512>}, {pipeline_mode = #tpu.pipeline_mode<synchronous>, transform_indices = @transform_1, window_bounds = array<i64: 1, 512>}, {pipeline_mode = #tpu.pipeline_mode<synchronous>, transform_indices = @transform_2, window_bounds = array<i64: 1, 512>}, {transform_indices = @transform_3, window_bounds = array<i64: 32, 512>}]} {
    %c0 = arith.constant 0 : index
    %c0_0 = arith.constant 0 : index
    %0 = vector.load %arg1[%c0, %c0_0] : memref<32x512xf32, #tpu.memory_space<vmem>>, vector<32x512xf32>
    %c0_1 = arith.constant 0 : index
    %c0_2 = arith.constant 0 : index
    %1 = vector.load %arg2[%c0_1, %c0_2] : memref<1x512xf32, #tpu.memory_space<vmem>>, vector<1x512xf32>
    %2 = vector.broadcast %1 : vector<1x512xf32> to vector<32x512xf32>
    %3 = arith.mulf %0, %2 : vector<32x512xf32>
    %c0_3 = arith.constant 0 : index
    %c0_4 = arith.constant 0 : index
    %4 = vector.load %arg3[%c0_3, %c0_4] : memref<1x512xf32, #tpu.memory_space<vmem>>, vector<1x512xf32>
    %5 = vector.broadcast %4 : vector<1x512xf32> to vector<32x512xf32>
    %6 = arith.addf %3, %5 : vector<32x512xf32>
    %cst = arith.constant 0.000000e+00 : f32
    %7 = vector.broadcast %cst : f32 to vector<32x512xf32>
    %8 = arith.maximumf %6, %7 : vector<32x512xf32>
    %c0_5 = arith.constant 0 : index
    %c0_6 = arith.constant 0 : index
    %9 = vector.load %arg4[%c0_5, %c0_6] : memref<32x512xf32, #tpu.memory_space<vmem>>, vector<32x512xf32>
    tpu.vector_store %arg4[%c0_5, %c0_6], %8 {strides = array<i32>} : memref<32x512xf32, #tpu.memory_space<vmem>>, vector<32x512xf32>,
    return
  }
  func.func @transform_0(%arg0: i32) -> (i32, i32) {
    %c0_i32 = arith.constant 0 : i32
    %c0_i32_0 = arith.constant 0 : i32
    return %arg0, %c0_i32 : i32, i32
  }
  func.func @transform_1(%arg0: i32) -> (i32, i32) {
    %c0_i32 = arith.constant 0 : i32
    %c0_i32_0 = arith.constant 0 : i32
    %c0_i32_1 = arith.constant 0 : i32
    return %c0_i32, %c0_i32_0 : i32, i32
  }
  func.func @transform_2(%arg0: i32) -> (i32, i32) {
    %c0_i32 = arith.constant 0 : i32
    %c0_i32_0 = arith.constant 0 : i32
    %c0_i32_1 = arith.constant 0 : i32
    return %c0_i32, %c0_i32_0 : i32, i32
  }
  func.func @transform_3(%arg0: i32) -> (i32, i32) {
    %c0_i32 = arith.constant 0 : i32
    %c0_i32_0 = arith.constant 0 : i32
    return %arg0, %c0_i32 : i32, i32
  }
}

module attributes {stable_mosaic.version = 11 : i64} {
  func.func @_mm_bias_kernel(%arg0: i32, %arg1: i32, %arg2: i32, %arg3: memref<16x512xbf16, #tpu.memory_space<vmem>>, %arg4: memref<512x512xbf16, #tpu.memory_space<vmem>>, %arg5: memref<1x512xf32, #tpu.memory_space<vmem>>, %arg6: memref<16x512xf32, #tpu.memory_space<vmem>>, %arg7: memref<16x512xf32, #tpu.memory_space<vmem>>) attributes {dimension_semantics = [#tpu.dimension_semantics<parallel>, #tpu.dimension_semantics<parallel>, #tpu.dimension_semantics<arbitrary>], iteration_bounds = array<i64: 1, 1, 9>, scalar_prefetch = 0 : i64, scratch_operands = 1 : i64, tpu.core_type = #tpu.core_type<tc>, window_params = [{transform_indices = @transform_0, window_bounds = array<i64: 16, 512>}, {transform_indices = @transform_1, window_bounds = array<i64: 512, 512>}, {transform_indices = @transform_2, window_bounds = array<i64: 1, 512>}, {transform_indices = @transform_3, window_bounds = array<i64: 16, 512>}]} {
    %c0_i32 = arith.constant 0 : i32
    %0 = arith.cmpi eq, %arg2, %c0_i32 : i32
    %1 = arith.extui %0 : i1 to i32
    %c0_i32_0 = arith.constant 0 : i32
    %2 = arith.cmpi ne, %1, %c0_i32_0 : i32
    scf.if %2 {
      %cst_9 = arith.constant 0.000000e+00 : f32
      %12 = vector.broadcast %cst_9 : f32 to vector<16x512xf32>
      %c0_10 = arith.constant 0 : index
      %c0_11 = arith.constant 0 : index
      %13 = vector.load %arg7[%c0_10, %c0_11] : memref<16x512xf32, #tpu.memory_space<vmem>>, vector<16x512xf32>
      tpu.vector_store %arg7[%c0_10, %c0_11], %12 {strides = array<i32>} : memref<16x512xf32, #tpu.memory_space<vmem>>, vector<16x512xf32>,
    } else {
    }
    %c0 = arith.constant 0 : index
    %c0_1 = arith.constant 0 : index
    %3 = vector.load %arg7[%c0, %c0_1] : memref<16x512xf32, #tpu.memory_space<vmem>>, vector<16x512xf32>
    %c0_2 = arith.constant 0 : index
    %c0_3 = arith.constant 0 : index
    %4 = vector.load %arg3[%c0_2, %c0_3] : memref<16x512xbf16, #tpu.memory_space<vmem>>, vector<16x512xbf16>
    %c0_4 = arith.constant 0 : index
    %c0_5 = arith.constant 0 : index
    %5 = vector.load %arg4[%c0_4, %c0_5] : memref<512x512xbf16, #tpu.memory_space<vmem>>, vector<512x512xbf16>
    %cst = arith.constant dense<0.000000e+00> : vector<16x512xf32>
    %6 = tpu.matmul %4, %5, %cst {dimension_numbers = #tpu.dot_dimension_numbers<[1], [0], [0], [1], [0, 0, 1, 1], [], []>} : vector<16x512xbf16>, vector<512x512xbf16>, vector<16x512xf32> -> vector<16x512xf32>
    %7 = arith.addf %3, %6 : vector<16x512xf32>
    %c0_6 = arith.constant 0 : index
    %c0_7 = arith.constant 0 : index
    %8 = vector.load %arg7[%c0_6, %c0_7] : memref<16x512xf32, #tpu.memory_space<vmem>>, vector<16x512xf32>
    tpu.vector_store %arg7[%c0_6, %c0_7], %7 {strides = array<i32>} : memref<16x512xf32, #tpu.memory_space<vmem>>, vector<16x512xf32>,
    %c8_i32 = arith.constant 8 : i32
    %9 = arith.cmpi eq, %arg2, %c8_i32 : i32
    %10 = arith.extui %9 : i1 to i32
    %c0_i32_8 = arith.constant 0 : i32
    %11 = arith.cmpi ne, %10, %c0_i32_8 : i32
    scf.if %11 {
      %c0_9 = arith.constant 0 : index
      %c0_10 = arith.constant 0 : index
      %12 = vector.load %arg7[%c0_9, %c0_10] : memref<16x512xf32, #tpu.memory_space<vmem>>, vector<16x512xf32>
      %c0_11 = arith.constant 0 : index
      %c0_12 = arith.constant 0 : index
      %13 = vector.load %arg5[%c0_11, %c0_12] : memref<1x512xf32, #tpu.memory_space<vmem>>, vector<1x512xf32>
      %14 = vector.broadcast %13 : vector<1x512xf32> to vector<16x512xf32>
      %15 = arith.addf %12, %14 : vector<16x512xf32>
      %cst_13 = arith.constant 0.000000e+00 : f32
      %16 = vector.broadcast %cst_13 : f32 to vector<16x512xf32>
      %17 = arith.maximumf %15, %16 : vector<16x512xf32>
      %c0_14 = arith.constant 0 : index
      %c0_15 = arith.constant 0 : index
      %18 = vector.load %arg6[%c0_14, %c0_15] : memref<16x512xf32, #tpu.memory_space<vmem>>, vector<16x512xf32>
      tpu.vector_store %arg6[%c0_14, %c0_15], %17 {strides = array<i32>} : memref<16x512xf32, #tpu.memory_space<vmem>>, vector<16x512xf32>,
    } else {
    }
    return
  }
  func.func @transform_0(%arg0: i32, %arg1: i32, %arg2: i32) -> (i32, i32) {
    %c0_i32 = arith.constant 0 : i32
    return %arg0, %arg2 : i32, i32
  }
  func.func @transform_1(%arg0: i32, %arg1: i32, %arg2: i32) -> (i32, i32) {
    %c0_i32 = arith.constant 0 : i32
    return %arg2, %arg1 : i32, i32
  }
  func.func @transform_2(%arg0: i32, %arg1: i32, %arg2: i32) -> (i32, i32) {
    %c0_i32 = arith.constant 0 : i32
    %c0_i32_0 = arith.constant 0 : i32
    return %c0_i32, %arg1 : i32, i32
  }
  func.func @transform_3(%arg0: i32, %arg1: i32, %arg2: i32) -> (i32, i32) {
    %c0_i32 = arith.constant 0 : i32
    return %arg0, %arg1 : i32, i32
  }
}

module attributes {stable_mosaic.version = 11 : i64} {
  func.func @_mm_stats_kernel(%arg0: i32, %arg1: i32, %arg2: i32, %arg3: memref<16x512xbf16, #tpu.memory_space<vmem>>, %arg4: memref<512x512xbf16, #tpu.memory_space<vmem>>, %arg5: memref<16x512xf32, #tpu.memory_space<vmem>>, %arg6: memref<1x512xf32, #tpu.memory_space<vmem>>, %arg7: memref<1x512xf32, #tpu.memory_space<vmem>>, %arg8: memref<16x512xf32, #tpu.memory_space<vmem>>) attributes {dimension_semantics = [#tpu.dimension_semantics<parallel>, #tpu.dimension_semantics<arbitrary>, #tpu.dimension_semantics<arbitrary>], iteration_bounds = array<i64: 1, 1, 4>, scalar_prefetch = 0 : i64, scratch_operands = 1 : i64, tpu.core_type = #tpu.core_type<tc>, window_params = [{transform_indices = @transform_0, window_bounds = array<i64: 16, 512>}, {transform_indices = @transform_1, window_bounds = array<i64: 512, 512>}, {transform_indices = @transform_2, window_bounds = array<i64: 16, 512>}, {transform_indices = @transform_3, window_bounds = array<i64: 1, 512>}, {transform_indices = @transform_4, window_bounds = array<i64: 1, 512>}]} {
    %c0_i32 = arith.constant 0 : i32
    %0 = arith.cmpi eq, %arg2, %c0_i32 : i32
    %1 = arith.extui %0 : i1 to i32
    %c0_i32_0 = arith.constant 0 : i32
    %2 = arith.cmpi ne, %1, %c0_i32_0 : i32
    scf.if %2 {
      %cst_12 = arith.constant 0.000000e+00 : f32
      %17 = vector.broadcast %cst_12 : f32 to vector<16x512xf32>
      %c0_13 = arith.constant 0 : index
      %c0_14 = arith.constant 0 : index
      %18 = vector.load %arg8[%c0_13, %c0_14] : memref<16x512xf32, #tpu.memory_space<vmem>>, vector<16x512xf32>
      tpu.vector_store %arg8[%c0_13, %c0_14], %17 {strides = array<i32>} : memref<16x512xf32, #tpu.memory_space<vmem>>, vector<16x512xf32>,
    } else {
    }
    %c0 = arith.constant 0 : index
    %c0_1 = arith.constant 0 : index
    %3 = vector.load %arg8[%c0, %c0_1] : memref<16x512xf32, #tpu.memory_space<vmem>>, vector<16x512xf32>
    %c0_2 = arith.constant 0 : index
    %c0_3 = arith.constant 0 : index
    %4 = vector.load %arg3[%c0_2, %c0_3] : memref<16x512xbf16, #tpu.memory_space<vmem>>, vector<16x512xbf16>
    %c0_4 = arith.constant 0 : index
    %c0_5 = arith.constant 0 : index
    %5 = vector.load %arg4[%c0_4, %c0_5] : memref<512x512xbf16, #tpu.memory_space<vmem>>, vector<512x512xbf16>
    %cst = arith.constant dense<0.000000e+00> : vector<16x512xf32>
    %6 = tpu.matmul %4, %5, %cst {dimension_numbers = #tpu.dot_dimension_numbers<[1], [0], [0], [1], [0, 0, 1, 1], [], []>} : vector<16x512xbf16>, vector<512x512xbf16>, vector<16x512xf32> -> vector<16x512xf32>
    %7 = arith.addf %3, %6 : vector<16x512xf32>
    %c0_6 = arith.constant 0 : index
    %c0_7 = arith.constant 0 : index
    %8 = vector.load %arg8[%c0_6, %c0_7] : memref<16x512xf32, #tpu.memory_space<vmem>>, vector<16x512xf32>
    tpu.vector_store %arg8[%c0_6, %c0_7], %7 {strides = array<i32>} : memref<16x512xf32, #tpu.memory_space<vmem>>, vector<16x512xf32>,
    %c3_i32 = arith.constant 3 : i32
    %9 = arith.cmpi eq, %arg2, %c3_i32 : i32
    %c0_i32_8 = arith.constant 0 : i32
    %10 = arith.cmpi eq, %arg1, %c0_i32_8 : i32
    %11 = arith.andi %9, %10 : i1
    %12 = arith.extui %11 : i1 to i32
    %c0_i32_9 = arith.constant 0 : i32
    %13 = arith.cmpi ne, %12, %c0_i32_9 : i32
    scf.if %13 {
      %cst_12 = arith.constant 0.000000e+00 : f32
      %17 = vector.broadcast %cst_12 : f32 to vector<1x512xf32>
      %c0_13 = arith.constant 0 : index
      %c0_14 = arith.constant 0 : index
      %18 = vector.load %arg6[%c0_13, %c0_14] : memref<1x512xf32, #tpu.memory_space<vmem>>, vector<1x512xf32>
      tpu.vector_store %arg6[%c0_13, %c0_14], %17 {strides = array<i32>} : memref<1x512xf32, #tpu.memory_space<vmem>>, vector<1x512xf32>,
      %cst_15 = arith.constant 0.000000e+00 : f32
      %19 = vector.broadcast %cst_15 : f32 to vector<1x512xf32>
      %c0_16 = arith.constant 0 : index
      %c0_17 = arith.constant 0 : index
      %20 = vector.load %arg7[%c0_16, %c0_17] : memref<1x512xf32, #tpu.memory_space<vmem>>, vector<1x512xf32>
      tpu.vector_store %arg7[%c0_16, %c0_17], %19 {strides = array<i32>} : memref<1x512xf32, #tpu.memory_space<vmem>>, vector<1x512xf32>,
    } else {
    }
    %c3_i32_10 = arith.constant 3 : i32
    %14 = arith.cmpi eq, %arg2, %c3_i32_10 : i32
    %15 = arith.extui %14 : i1 to i32
    %c0_i32_11 = arith.constant 0 : i32
    %16 = arith.cmpi ne, %15, %c0_i32_11 : i32
    scf.if %16 {
      %c0_12 = arith.constant 0 : index
      %c0_13 = arith.constant 0 : index
      %17 = vector.load %arg8[%c0_12, %c0_13] : memref<16x512xf32, #tpu.memory_space<vmem>>, vector<16x512xf32>
      %c0_14 = arith.constant 0 : index
      %c0_15 = arith.constant 0 : index
      %18 = vector.load %arg5[%c0_14, %c0_15] : memref<16x512xf32, #tpu.memory_space<vmem>>, vector<16x512xf32>
      tpu.vector_store %arg5[%c0_14, %c0_15], %17 {strides = array<i32>} : memref<16x512xf32, #tpu.memory_space<vmem>>, vector<16x512xf32>,
      %c0_16 = arith.constant 0 : index
      %c0_17 = arith.constant 0 : index
      %19 = vector.load %arg6[%c0_16, %c0_17] : memref<1x512xf32, #tpu.memory_space<vmem>>, vector<1x512xf32>
      %cst_18 = arith.constant dense<0.000000e+00> : vector<512xf32>
      %20 = vector.multi_reduction <add>, %17, %cst_18 [0] : vector<16x512xf32> to vector<512xf32>
      %21 = vector.shape_cast %20 : vector<512xf32> to vector<1x512xf32>
      %22 = arith.addf %19, %21 : vector<1x512xf32>
      %c0_19 = arith.constant 0 : index
      %c0_20 = arith.constant 0 : index
      %23 = vector.load %arg6[%c0_19, %c0_20] : memref<1x512xf32, #tpu.memory_space<vmem>>, vector<1x512xf32>
      tpu.vector_store %arg6[%c0_19, %c0_20], %22 {strides = array<i32>} : memref<1x512xf32, #tpu.memory_space<vmem>>, vector<1x512xf32>,
      %c0_21 = arith.constant 0 : index
      %c0_22 = arith.constant 0 : index
      %24 = vector.load %arg7[%c0_21, %c0_22] : memref<1x512xf32, #tpu.memory_space<vmem>>, vector<1x512xf32>
      %25 = arith.mulf %17, %17 : vector<16x512xf32>
      %cst_23 = arith.constant dense<0.000000e+00> : vector<512xf32>
      %26 = vector.multi_reduction <add>, %25, %cst_23 [0] : vector<16x512xf32> to vector<512xf32>
      %27 = vector.shape_cast %26 : vector<512xf32> to vector<1x512xf32>
      %28 = arith.addf %24, %27 : vector<1x512xf32>
      %c0_24 = arith.constant 0 : index
      %c0_25 = arith.constant 0 : index
      %29 = vector.load %arg7[%c0_24, %c0_25] : memref<1x512xf32, #tpu.memory_space<vmem>>, vector<1x512xf32>
      tpu.vector_store %arg7[%c0_24, %c0_25], %28 {strides = array<i32>} : memref<1x512xf32, #tpu.memory_space<vmem>>, vector<1x512xf32>,
    } else {
    }
    return
  }
  func.func @transform_0(%arg0: i32, %arg1: i32, %arg2: i32) -> (i32, i32) {
    %c0_i32 = arith.constant 0 : i32
    return %arg1, %arg2 : i32, i32
  }
  func.func @transform_1(%arg0: i32, %arg1: i32, %arg2: i32) -> (i32, i32) {
    %c0_i32 = arith.constant 0 : i32
    return %arg2, %arg0 : i32, i32
  }
  func.func @transform_2(%arg0: i32, %arg1: i32, %arg2: i32) -> (i32, i32) {
    %c0_i32 = arith.constant 0 : i32
    return %arg1, %arg0 : i32, i32
  }
  func.func @transform_3(%arg0: i32, %arg1: i32, %arg2: i32) -> (i32, i32) {
    %c0_i32 = arith.constant 0 : i32
    %c0_i32_0 = arith.constant 0 : i32
    return %c0_i32, %arg0 : i32, i32
  }
  func.func @transform_4(%arg0: i32, %arg1: i32, %arg2: i32) -> (i32, i32) {
    %c0_i32 = arith.constant 0 : i32
    %c0_i32_0 = arith.constant 0 : i32
    return %c0_i32, %arg0 : i32, i32
  }
}

module attributes {stable_mosaic.version = 11 : i64} {
  func.func @_scale_relu_kernel(%arg0: i32, %arg1: memref<16x512xf32, #tpu.memory_space<vmem>>, %arg2: memref<1x512xf32, #tpu.memory_space<vmem>>, %arg3: memref<1x512xf32, #tpu.memory_space<vmem>>, %arg4: memref<16x512xf32, #tpu.memory_space<vmem>>) attributes {dimension_semantics = [#tpu.dimension_semantics<parallel>], iteration_bounds = array<i64: 1>, scalar_prefetch = 0 : i64, scratch_operands = 0 : i64, tpu.core_type = #tpu.core_type<tc>, window_params = [{transform_indices = @transform_0, window_bounds = array<i64: 16, 512>}, {pipeline_mode = #tpu.pipeline_mode<synchronous>, transform_indices = @transform_1, window_bounds = array<i64: 1, 512>}, {pipeline_mode = #tpu.pipeline_mode<synchronous>, transform_indices = @transform_2, window_bounds = array<i64: 1, 512>}, {transform_indices = @transform_3, window_bounds = array<i64: 16, 512>}]} {
    %c0 = arith.constant 0 : index
    %c0_0 = arith.constant 0 : index
    %0 = vector.load %arg1[%c0, %c0_0] : memref<16x512xf32, #tpu.memory_space<vmem>>, vector<16x512xf32>
    %c0_1 = arith.constant 0 : index
    %c0_2 = arith.constant 0 : index
    %1 = vector.load %arg2[%c0_1, %c0_2] : memref<1x512xf32, #tpu.memory_space<vmem>>, vector<1x512xf32>
    %2 = vector.broadcast %1 : vector<1x512xf32> to vector<16x512xf32>
    %3 = arith.mulf %0, %2 : vector<16x512xf32>
    %c0_3 = arith.constant 0 : index
    %c0_4 = arith.constant 0 : index
    %4 = vector.load %arg3[%c0_3, %c0_4] : memref<1x512xf32, #tpu.memory_space<vmem>>, vector<1x512xf32>
    %5 = vector.broadcast %4 : vector<1x512xf32> to vector<16x512xf32>
    %6 = arith.addf %3, %5 : vector<16x512xf32>
    %cst = arith.constant 0.000000e+00 : f32
    %7 = vector.broadcast %cst : f32 to vector<16x512xf32>
    %8 = arith.maximumf %6, %7 : vector<16x512xf32>
    %c0_5 = arith.constant 0 : index
    %c0_6 = arith.constant 0 : index
    %9 = vector.load %arg4[%c0_5, %c0_6] : memref<16x512xf32, #tpu.memory_space<vmem>>, vector<16x512xf32>
    tpu.vector_store %arg4[%c0_5, %c0_6], %8 {strides = array<i32>} : memref<16x512xf32, #tpu.memory_space<vmem>>, vector<16x512xf32>,
    return
  }
  func.func @transform_0(%arg0: i32) -> (i32, i32) {
    %c0_i32 = arith.constant 0 : i32
    %c0_i32_0 = arith.constant 0 : i32
    return %arg0, %c0_i32 : i32, i32
  }
  func.func @transform_1(%arg0: i32) -> (i32, i32) {
    %c0_i32 = arith.constant 0 : i32
    %c0_i32_0 = arith.constant 0 : i32
    %c0_i32_1 = arith.constant 0 : i32
    return %c0_i32, %c0_i32_0 : i32, i32
  }
  func.func @transform_2(%arg0: i32) -> (i32, i32) {
    %c0_i32 = arith.constant 0 : i32
    %c0_i32_0 = arith.constant 0 : i32
    %c0_i32_1 = arith.constant 0 : i32
    return %c0_i32, %c0_i32_0 : i32, i32
  }
  func.func @transform_3(%arg0: i32) -> (i32, i32) {
    %c0_i32 = arith.constant 0 : i32
    %c0_i32_0 = arith.constant 0 : i32
    return %arg0, %c0_i32 : i32, i32
  }
}

module attributes {stable_mosaic.version = 11 : i64} {
  func.func @_mm_bias_kernel(%arg0: i32, %arg1: i32, %arg2: i32, %arg3: memref<16x512xbf16, #tpu.memory_space<vmem>>, %arg4: memref<512x256xbf16, #tpu.memory_space<vmem>>, %arg5: memref<1x256xf32, #tpu.memory_space<vmem>>, %arg6: memref<16x256xf32, #tpu.memory_space<vmem>>, %arg7: memref<16x256xf32, #tpu.memory_space<vmem>>) attributes {dimension_semantics = [#tpu.dimension_semantics<parallel>, #tpu.dimension_semantics<parallel>, #tpu.dimension_semantics<arbitrary>], iteration_bounds = array<i64: 1, 1, 1>, scalar_prefetch = 0 : i64, scratch_operands = 1 : i64, tpu.core_type = #tpu.core_type<tc>, window_params = [{transform_indices = @transform_0, window_bounds = array<i64: 16, 512>}, {transform_indices = @transform_1, window_bounds = array<i64: 512, 256>}, {transform_indices = @transform_2, window_bounds = array<i64: 1, 256>}, {transform_indices = @transform_3, window_bounds = array<i64: 16, 256>}]} {
    %c0_i32 = arith.constant 0 : i32
    %0 = arith.cmpi eq, %arg2, %c0_i32 : i32
    %1 = arith.extui %0 : i1 to i32
    %c0_i32_0 = arith.constant 0 : i32
    %2 = arith.cmpi ne, %1, %c0_i32_0 : i32
    scf.if %2 {
      %cst_10 = arith.constant 0.000000e+00 : f32
      %12 = vector.broadcast %cst_10 : f32 to vector<16x256xf32>
      %c0_11 = arith.constant 0 : index
      %c0_12 = arith.constant 0 : index
      %13 = vector.load %arg7[%c0_11, %c0_12] : memref<16x256xf32, #tpu.memory_space<vmem>>, vector<16x256xf32>
      tpu.vector_store %arg7[%c0_11, %c0_12], %12 {strides = array<i32>} : memref<16x256xf32, #tpu.memory_space<vmem>>, vector<16x256xf32>,
    } else {
    }
    %c0 = arith.constant 0 : index
    %c0_1 = arith.constant 0 : index
    %3 = vector.load %arg7[%c0, %c0_1] : memref<16x256xf32, #tpu.memory_space<vmem>>, vector<16x256xf32>
    %c0_2 = arith.constant 0 : index
    %c0_3 = arith.constant 0 : index
    %4 = vector.load %arg3[%c0_2, %c0_3] : memref<16x512xbf16, #tpu.memory_space<vmem>>, vector<16x512xbf16>
    %c0_4 = arith.constant 0 : index
    %c0_5 = arith.constant 0 : index
    %5 = vector.load %arg4[%c0_4, %c0_5] : memref<512x256xbf16, #tpu.memory_space<vmem>>, vector<512x256xbf16>
    %cst = arith.constant dense<0.000000e+00> : vector<16x256xf32>
    %6 = tpu.matmul %4, %5, %cst {dimension_numbers = #tpu.dot_dimension_numbers<[1], [0], [0], [1], [0, 0, 1, 1], [], []>} : vector<16x512xbf16>, vector<512x256xbf16>, vector<16x256xf32> -> vector<16x256xf32>
    %7 = arith.addf %3, %6 : vector<16x256xf32>
    %c0_6 = arith.constant 0 : index
    %c0_7 = arith.constant 0 : index
    %8 = vector.load %arg7[%c0_6, %c0_7] : memref<16x256xf32, #tpu.memory_space<vmem>>, vector<16x256xf32>
    tpu.vector_store %arg7[%c0_6, %c0_7], %7 {strides = array<i32>} : memref<16x256xf32, #tpu.memory_space<vmem>>, vector<16x256xf32>,
    %c0_i32_8 = arith.constant 0 : i32
    %9 = arith.cmpi eq, %arg2, %c0_i32_8 : i32
    %10 = arith.extui %9 : i1 to i32
    %c0_i32_9 = arith.constant 0 : i32
    %11 = arith.cmpi ne, %10, %c0_i32_9 : i32
    scf.if %11 {
      %c0_10 = arith.constant 0 : index
      %c0_11 = arith.constant 0 : index
      %12 = vector.load %arg7[%c0_10, %c0_11] : memref<16x256xf32, #tpu.memory_space<vmem>>, vector<16x256xf32>
      %c0_12 = arith.constant 0 : index
      %c0_13 = arith.constant 0 : index
      %13 = vector.load %arg5[%c0_12, %c0_13] : memref<1x256xf32, #tpu.memory_space<vmem>>, vector<1x256xf32>
      %14 = vector.broadcast %13 : vector<1x256xf32> to vector<16x256xf32>
      %15 = arith.addf %12, %14 : vector<16x256xf32>
      %c0_14 = arith.constant 0 : index
      %c0_15 = arith.constant 0 : index
      %16 = vector.load %arg6[%c0_14, %c0_15] : memref<16x256xf32, #tpu.memory_space<vmem>>, vector<16x256xf32>
      tpu.vector_store %arg6[%c0_14, %c0_15], %15 {strides = array<i32>} : memref<16x256xf32, #tpu.memory_space<vmem>>, vector<16x256xf32>,
    } else {
    }
    return
  }
  func.func @transform_0(%arg0: i32, %arg1: i32, %arg2: i32) -> (i32, i32) {
    %c0_i32 = arith.constant 0 : i32
    return %arg0, %arg2 : i32, i32
  }
  func.func @transform_1(%arg0: i32, %arg1: i32, %arg2: i32) -> (i32, i32) {
    %c0_i32 = arith.constant 0 : i32
    return %arg2, %arg1 : i32, i32
  }
  func.func @transform_2(%arg0: i32, %arg1: i32, %arg2: i32) -> (i32, i32) {
    %c0_i32 = arith.constant 0 : i32
    %c0_i32_0 = arith.constant 0 : i32
    return %c0_i32, %arg1 : i32, i32
  }
  func.func @transform_3(%arg0: i32, %arg1: i32, %arg2: i32) -> (i32, i32) {
    %c0_i32 = arith.constant 0 : i32
    return %arg0, %arg1 : i32, i32
  }
}

module attributes {stable_mosaic.version = 11 : i64} {
  func.func @_bilstm_kernel(%arg0: i32, %arg1: memref<1x3x2x128xf32, #tpu.memory_space<vmem>>, %arg2: memref<1x32x128xbf16, #tpu.memory_space<vmem>>, %arg3: memref<1x3x2x32xf32, #tpu.memory_space<vmem>>) attributes {dimension_semantics = [#tpu.dimension_semantics<parallel>], iteration_bounds = array<i64: 2>, scalar_prefetch = 0 : i64, scratch_operands = 0 : i64, tpu.core_type = #tpu.core_type<tc>, window_params = [{transform_indices = @transform_0, window_bounds = array<i64: 1, 3, 2, 128>}, {transform_indices = @transform_1, window_bounds = array<i64: 1, 32, 128>}, {transform_indices = @transform_2, window_bounds = array<i64: 1, 3, 2, 32>}]} {
    %c0 = arith.constant 0 : index
    %c0_0 = arith.constant 0 : index
    %c0_1 = arith.constant 0 : index
    %0 = vector.load %arg2[%c0, %c0_0, %c0_1] : memref<1x32x128xbf16, #tpu.memory_space<vmem>>, vector<1x32x128xbf16>
    %1 = vector.shape_cast %0 : vector<1x32x128xbf16> to vector<32x128xbf16>
    %cst = arith.constant 0.000000e+00 : f32
    %2 = vector.broadcast %cst : f32 to vector<2x32xf32>
    %cst_2 = arith.constant 0.000000e+00 : f32
    %3 = vector.broadcast %cst_2 : f32 to vector<2x32xf32>
    %c0_3 = arith.constant 0 : index
    %c0_4 = arith.constant 0 : index
    %c0_5 = arith.constant 0 : index
    %c0_6 = arith.constant 0 : index
    %4 = vector.load %arg1[%c0_3, %c0_4, %c0_5, %c0_6] : memref<1x3x2x128xf32, #tpu.memory_space<vmem>>, vector<1x1x2x128xf32>
    %5 = vector.shape_cast %4 : vector<1x1x2x128xf32> to vector<2x128xf32>
    %6 = arith.truncf %2 : vector<2x32xf32> to vector<2x32xbf16>
    %cst_7 = arith.constant dense<0.000000e+00> : vector<2x128xf32>
    %7 = tpu.matmul %6, %1, %cst_7 {dimension_numbers = #tpu.dot_dimension_numbers<[1], [0], [0], [1], [0, 0, 1, 1], [], []>} : vector<2x32xbf16>, vector<32x128xbf16>, vector<2x128xf32> -> vector<2x128xf32>
    %8 = arith.addf %5, %7 : vector<2x128xf32>
    %9 = vector.extract_strided_slice %8 {offsets = [0, 0], sizes = [2, 32], strides = [1, 1]} : vector<2x128xf32> to vector<2x32xf32>
    %10 = arith.negf %9 : vector<2x32xf32>
    %11 = math.exp %10 : vector<2x32xf32>
    %cst_8 = arith.constant 1.000000e+00 : f32
    %12 = vector.broadcast %cst_8 : f32 to vector<2x32xf32>
    %13 = arith.addf %12, %11 : vector<2x32xf32>
    %14 = arith.divf %12, %13 : vector<2x32xf32>
    %15 = vector.extract_strided_slice %8 {offsets = [0, 32], sizes = [2, 32], strides = [1, 1]} : vector<2x128xf32> to vector<2x32xf32>
    %16 = arith.negf %15 : vector<2x32xf32>
    %17 = math.exp %16 : vector<2x32xf32>
    %cst_9 = arith.constant 1.000000e+00 : f32
    %18 = vector.broadcast %cst_9 : f32 to vector<2x32xf32>
    %19 = arith.addf %18, %17 : vector<2x32xf32>
    %20 = arith.divf %18, %19 : vector<2x32xf32>
    %21 = vector.extract_strided_slice %8 {offsets = [0, 64], sizes = [2, 32], strides = [1, 1]} : vector<2x128xf32> to vector<2x32xf32>
    %22 = math.tanh %21 : vector<2x32xf32>
    %23 = vector.extract_strided_slice %8 {offsets = [0, 96], sizes = [2, 32], strides = [1, 1]} : vector<2x128xf32> to vector<2x32xf32>
    %24 = arith.negf %23 : vector<2x32xf32>
    %25 = math.exp %24 : vector<2x32xf32>
    %cst_10 = arith.constant 1.000000e+00 : f32
    %26 = vector.broadcast %cst_10 : f32 to vector<2x32xf32>
    %27 = arith.addf %26, %25 : vector<2x32xf32>
    %28 = arith.divf %26, %27 : vector<2x32xf32>
    %29 = arith.mulf %20, %3 : vector<2x32xf32>
    %30 = arith.mulf %14, %22 : vector<2x32xf32>
    %31 = arith.addf %29, %30 : vector<2x32xf32>
    %32 = math.tanh %31 : vector<2x32xf32>
    %33 = arith.mulf %28, %32 : vector<2x32xf32>
    %c0_11 = arith.constant 0 : index
    %c0_12 = arith.constant 0 : index
    %c0_13 = arith.constant 0 : index
    %c0_14 = arith.constant 0 : index
    %34 = vector.load %arg3[%c0_11, %c0_12, %c0_13, %c0_14] : memref<1x3x2x32xf32, #tpu.memory_space<vmem>>, vector<1x1x2x32xf32>
    %35 = vector.shape_cast %34 : vector<1x1x2x32xf32> to vector<2x32xf32>
    %36 = vector.shape_cast %33 : vector<2x32xf32> to vector<1x1x2x32xf32>
    tpu.vector_store %arg3[%c0_11, %c0_12, %c0_13, %c0_14], %36 {strides = array<i32>} : memref<1x3x2x32xf32, #tpu.memory_space<vmem>>, vector<1x1x2x32xf32>,
    %c0_15 = arith.constant 0 : index
    %c1 = arith.constant 1 : index
    %c0_16 = arith.constant 0 : index
    %c0_17 = arith.constant 0 : index
    %37 = vector.load %arg1[%c0_15, %c1, %c0_16, %c0_17] : memref<1x3x2x128xf32, #tpu.memory_space<vmem>>, vector<1x1x2x128xf32>
    %38 = vector.shape_cast %37 : vector<1x1x2x128xf32> to vector<2x128xf32>
    %39 = arith.truncf %33 : vector<2x32xf32> to vector<2x32xbf16>
    %cst_18 = arith.constant dense<0.000000e+00> : vector<2x128xf32>
    %40 = tpu.matmul %39, %1, %cst_18 {dimension_numbers = #tpu.dot_dimension_numbers<[1], [0], [0], [1], [0, 0, 1, 1], [], []>} : vector<2x32xbf16>, vector<32x128xbf16>, vector<2x128xf32> -> vector<2x128xf32>
    %41 = arith.addf %38, %40 : vector<2x128xf32>
    %42 = vector.extract_strided_slice %41 {offsets = [0, 0], sizes = [2, 32], strides = [1, 1]} : vector<2x128xf32> to vector<2x32xf32>
    %43 = arith.negf %42 : vector<2x32xf32>
    %44 = math.exp %43 : vector<2x32xf32>
    %cst_19 = arith.constant 1.000000e+00 : f32
    %45 = vector.broadcast %cst_19 : f32 to vector<2x32xf32>
    %46 = arith.addf %45, %44 : vector<2x32xf32>
    %47 = arith.divf %45, %46 : vector<2x32xf32>
    %48 = vector.extract_strided_slice %41 {offsets = [0, 32], sizes = [2, 32], strides = [1, 1]} : vector<2x128xf32> to vector<2x32xf32>
    %49 = arith.negf %48 : vector<2x32xf32>
    %50 = math.exp %49 : vector<2x32xf32>
    %cst_20 = arith.constant 1.000000e+00 : f32
    %51 = vector.broadcast %cst_20 : f32 to vector<2x32xf32>
    %52 = arith.addf %51, %50 : vector<2x32xf32>
    %53 = arith.divf %51, %52 : vector<2x32xf32>
    %54 = vector.extract_strided_slice %41 {offsets = [0, 64], sizes = [2, 32], strides = [1, 1]} : vector<2x128xf32> to vector<2x32xf32>
    %55 = math.tanh %54 : vector<2x32xf32>
    %56 = vector.extract_strided_slice %41 {offsets = [0, 96], sizes = [2, 32], strides = [1, 1]} : vector<2x128xf32> to vector<2x32xf32>
    %57 = arith.negf %56 : vector<2x32xf32>
    %58 = math.exp %57 : vector<2x32xf32>
    %cst_21 = arith.constant 1.000000e+00 : f32
    %59 = vector.broadcast %cst_21 : f32 to vector<2x32xf32>
    %60 = arith.addf %59, %58 : vector<2x32xf32>
    %61 = arith.divf %59, %60 : vector<2x32xf32>
    %62 = arith.mulf %53, %31 : vector<2x32xf32>
    %63 = arith.mulf %47, %55 : vector<2x32xf32>
    %64 = arith.addf %62, %63 : vector<2x32xf32>
    %65 = math.tanh %64 : vector<2x32xf32>
    %66 = arith.mulf %61, %65 : vector<2x32xf32>
    %c0_22 = arith.constant 0 : index
    %c1_23 = arith.constant 1 : index
    %c0_24 = arith.constant 0 : index
    %c0_25 = arith.constant 0 : index
    %67 = vector.load %arg3[%c0_22, %c1_23, %c0_24, %c0_25] : memref<1x3x2x32xf32, #tpu.memory_space<vmem>>, vector<1x1x2x32xf32>
    %68 = vector.shape_cast %67 : vector<1x1x2x32xf32> to vector<2x32xf32>
    %69 = vector.shape_cast %66 : vector<2x32xf32> to vector<1x1x2x32xf32>
    tpu.vector_store %arg3[%c0_22, %c1_23, %c0_24, %c0_25], %69 {strides = array<i32>} : memref<1x3x2x32xf32, #tpu.memory_space<vmem>>, vector<1x1x2x32xf32>,
    %c0_26 = arith.constant 0 : index
    %c2 = arith.constant 2 : index
    %c0_27 = arith.constant 0 : index
    %c0_28 = arith.constant 0 : index
    %70 = vector.load %arg1[%c0_26, %c2, %c0_27, %c0_28] : memref<1x3x2x128xf32, #tpu.memory_space<vmem>>, vector<1x1x2x128xf32>
    %71 = vector.shape_cast %70 : vector<1x1x2x128xf32> to vector<2x128xf32>
    %72 = arith.truncf %66 : vector<2x32xf32> to vector<2x32xbf16>
    %cst_29 = arith.constant dense<0.000000e+00> : vector<2x128xf32>
    %73 = tpu.matmul %72, %1, %cst_29 {dimension_numbers = #tpu.dot_dimension_numbers<[1], [0], [0], [1], [0, 0, 1, 1], [], []>} : vector<2x32xbf16>, vector<32x128xbf16>, vector<2x128xf32> -> vector<2x128xf32>
    %74 = arith.addf %71, %73 : vector<2x128xf32>
    %75 = vector.extract_strided_slice %74 {offsets = [0, 0], sizes = [2, 32], strides = [1, 1]} : vector<2x128xf32> to vector<2x32xf32>
    %76 = arith.negf %75 : vector<2x32xf32>
    %77 = math.exp %76 : vector<2x32xf32>
    %cst_30 = arith.constant 1.000000e+00 : f32
    %78 = vector.broadcast %cst_30 : f32 to vector<2x32xf32>
    %79 = arith.addf %78, %77 : vector<2x32xf32>
    %80 = arith.divf %78, %79 : vector<2x32xf32>
    %81 = vector.extract_strided_slice %74 {offsets = [0, 32], sizes = [2, 32], strides = [1, 1]} : vector<2x128xf32> to vector<2x32xf32>
    %82 = arith.negf %81 : vector<2x32xf32>
    %83 = math.exp %82 : vector<2x32xf32>
    %cst_31 = arith.constant 1.000000e+00 : f32
    %84 = vector.broadcast %cst_31 : f32 to vector<2x32xf32>
    %85 = arith.addf %84, %83 : vector<2x32xf32>
    %86 = arith.divf %84, %85 : vector<2x32xf32>
    %87 = vector.extract_strided_slice %74 {offsets = [0, 64], sizes = [2, 32], strides = [1, 1]} : vector<2x128xf32> to vector<2x32xf32>
    %88 = math.tanh %87 : vector<2x32xf32>
    %89 = vector.extract_strided_slice %74 {offsets = [0, 96], sizes = [2, 32], strides = [1, 1]} : vector<2x128xf32> to vector<2x32xf32>
    %90 = arith.negf %89 : vector<2x32xf32>
    %91 = math.exp %90 : vector<2x32xf32>
    %cst_32 = arith.constant 1.000000e+00 : f32
    %92 = vector.broadcast %cst_32 : f32 to vector<2x32xf32>
    %93 = arith.addf %92, %91 : vector<2x32xf32>
    %94 = arith.divf %92, %93 : vector<2x32xf32>
    %95 = arith.mulf %86, %64 : vector<2x32xf32>
    %96 = arith.mulf %80, %88 : vector<2x32xf32>
    %97 = arith.addf %95, %96 : vector<2x32xf32>
    %98 = math.tanh %97 : vector<2x32xf32>
    %99 = arith.mulf %94, %98 : vector<2x32xf32>
    %c0_33 = arith.constant 0 : index
    %c2_34 = arith.constant 2 : index
    %c0_35 = arith.constant 0 : index
    %c0_36 = arith.constant 0 : index
    %100 = vector.load %arg3[%c0_33, %c2_34, %c0_35, %c0_36] : memref<1x3x2x32xf32, #tpu.memory_space<vmem>>, vector<1x1x2x32xf32>
    %101 = vector.shape_cast %100 : vector<1x1x2x32xf32> to vector<2x32xf32>
    %102 = vector.shape_cast %99 : vector<2x32xf32> to vector<1x1x2x32xf32>
    tpu.vector_store %arg3[%c0_33, %c2_34, %c0_35, %c0_36], %102 {strides = array<i32>} : memref<1x3x2x32xf32, #tpu.memory_space<vmem>>, vector<1x1x2x32xf32>,
    return
  }
  func.func @transform_0(%arg0: i32) -> (i32, i32, i32, i32) {
    %c0_i32 = arith.constant 0 : i32
    %c0_i32_0 = arith.constant 0 : i32
    %c0_i32_1 = arith.constant 0 : i32
    %c0_i32_2 = arith.constant 0 : i32
    return %arg0, %c0_i32, %c0_i32_0, %c0_i32_1 : i32, i32, i32, i32
  }
  func.func @transform_1(%arg0: i32) -> (i32, i32, i32) {
    %c0_i32 = arith.constant 0 : i32
    %c0_i32_0 = arith.constant 0 : i32
    %c0_i32_1 = arith.constant 0 : i32
    return %arg0, %c0_i32, %c0_i32_0 : i32, i32, i32
  }
  func.func @transform_2(%arg0: i32) -> (i32, i32, i32, i32) {
    %c0_i32 = arith.constant 0 : i32
    %c0_i32_0 = arith.constant 0 : i32
    %c0_i32_1 = arith.constant 0 : i32
    %c0_i32_2 = arith.constant 0 : i32
    return %arg0, %c0_i32, %c0_i32_0, %c0_i32_1 : i32, i32, i32, i32
  }
}

module attributes {stable_mosaic.version = 11 : i64} {
  func.func @_mm_bias_kernel(%arg0: i32, %arg1: i32, %arg2: i32, %arg3: memref<16x128xbf16, #tpu.memory_space<vmem>>, %arg4: memref<128x256xbf16, #tpu.memory_space<vmem>>, %arg5: memref<1x256xf32, #tpu.memory_space<vmem>>, %arg6: memref<16x256xf32, #tpu.memory_space<vmem>>, %arg7: memref<16x256xf32, #tpu.memory_space<vmem>>) attributes {dimension_semantics = [#tpu.dimension_semantics<parallel>, #tpu.dimension_semantics<parallel>, #tpu.dimension_semantics<arbitrary>], iteration_bounds = array<i64: 1, 1, 1>, scalar_prefetch = 0 : i64, scratch_operands = 1 : i64, tpu.core_type = #tpu.core_type<tc>, window_params = [{transform_indices = @transform_0, window_bounds = array<i64: 16, 128>}, {transform_indices = @transform_1, window_bounds = array<i64: 128, 256>}, {transform_indices = @transform_2, window_bounds = array<i64: 1, 256>}, {transform_indices = @transform_3, window_bounds = array<i64: 16, 256>}]} {
    %c0_i32 = arith.constant 0 : i32
    %0 = arith.cmpi eq, %arg2, %c0_i32 : i32
    %1 = arith.extui %0 : i1 to i32
    %c0_i32_0 = arith.constant 0 : i32
    %2 = arith.cmpi ne, %1, %c0_i32_0 : i32
    scf.if %2 {
      %cst_10 = arith.constant 0.000000e+00 : f32
      %12 = vector.broadcast %cst_10 : f32 to vector<16x256xf32>
      %c0_11 = arith.constant 0 : index
      %c0_12 = arith.constant 0 : index
      %13 = vector.load %arg7[%c0_11, %c0_12] : memref<16x256xf32, #tpu.memory_space<vmem>>, vector<16x256xf32>
      tpu.vector_store %arg7[%c0_11, %c0_12], %12 {strides = array<i32>} : memref<16x256xf32, #tpu.memory_space<vmem>>, vector<16x256xf32>,
    } else {
    }
    %c0 = arith.constant 0 : index
    %c0_1 = arith.constant 0 : index
    %3 = vector.load %arg7[%c0, %c0_1] : memref<16x256xf32, #tpu.memory_space<vmem>>, vector<16x256xf32>
    %c0_2 = arith.constant 0 : index
    %c0_3 = arith.constant 0 : index
    %4 = vector.load %arg3[%c0_2, %c0_3] : memref<16x128xbf16, #tpu.memory_space<vmem>>, vector<16x128xbf16>
    %c0_4 = arith.constant 0 : index
    %c0_5 = arith.constant 0 : index
    %5 = vector.load %arg4[%c0_4, %c0_5] : memref<128x256xbf16, #tpu.memory_space<vmem>>, vector<128x256xbf16>
    %cst = arith.constant dense<0.000000e+00> : vector<16x256xf32>
    %6 = tpu.matmul %4, %5, %cst {dimension_numbers = #tpu.dot_dimension_numbers<[1], [0], [0], [1], [0, 0, 1, 1], [], []>} : vector<16x128xbf16>, vector<128x256xbf16>, vector<16x256xf32> -> vector<16x256xf32>
    %7 = arith.addf %3, %6 : vector<16x256xf32>
    %c0_6 = arith.constant 0 : index
    %c0_7 = arith.constant 0 : index
    %8 = vector.load %arg7[%c0_6, %c0_7] : memref<16x256xf32, #tpu.memory_space<vmem>>, vector<16x256xf32>
    tpu.vector_store %arg7[%c0_6, %c0_7], %7 {strides = array<i32>} : memref<16x256xf32, #tpu.memory_space<vmem>>, vector<16x256xf32>,
    %c0_i32_8 = arith.constant 0 : i32
    %9 = arith.cmpi eq, %arg2, %c0_i32_8 : i32
    %10 = arith.extui %9 : i1 to i32
    %c0_i32_9 = arith.constant 0 : i32
    %11 = arith.cmpi ne, %10, %c0_i32_9 : i32
    scf.if %11 {
      %c0_10 = arith.constant 0 : index
      %c0_11 = arith.constant 0 : index
      %12 = vector.load %arg7[%c0_10, %c0_11] : memref<16x256xf32, #tpu.memory_space<vmem>>, vector<16x256xf32>
      %c0_12 = arith.constant 0 : index
      %c0_13 = arith.constant 0 : index
      %13 = vector.load %arg5[%c0_12, %c0_13] : memref<1x256xf32, #tpu.memory_space<vmem>>, vector<1x256xf32>
      %14 = vector.broadcast %13 : vector<1x256xf32> to vector<16x256xf32>
      %15 = arith.addf %12, %14 : vector<16x256xf32>
      %c0_14 = arith.constant 0 : index
      %c0_15 = arith.constant 0 : index
      %16 = vector.load %arg6[%c0_14, %c0_15] : memref<16x256xf32, #tpu.memory_space<vmem>>, vector<16x256xf32>
      tpu.vector_store %arg6[%c0_14, %c0_15], %15 {strides = array<i32>} : memref<16x256xf32, #tpu.memory_space<vmem>>, vector<16x256xf32>,
    } else {
    }
    return
  }
  func.func @transform_0(%arg0: i32, %arg1: i32, %arg2: i32) -> (i32, i32) {
    %c0_i32 = arith.constant 0 : i32
    return %arg0, %arg2 : i32, i32
  }
  func.func @transform_1(%arg0: i32, %arg1: i32, %arg2: i32) -> (i32, i32) {
    %c0_i32 = arith.constant 0 : i32
    return %arg2, %arg1 : i32, i32
  }
  func.func @transform_2(%arg0: i32, %arg1: i32, %arg2: i32) -> (i32, i32) {
    %c0_i32 = arith.constant 0 : i32
    %c0_i32_0 = arith.constant 0 : i32
    return %c0_i32, %arg1 : i32, i32
  }
  func.func @transform_3(%arg0: i32, %arg1: i32, %arg2: i32) -> (i32, i32) {
    %c0_i32 = arith.constant 0 : i32
    return %arg0, %arg1 : i32, i32
  }
}

module attributes {stable_mosaic.version = 11 : i64} {
  func.func @_mm_bias_kernel(%arg0: i32, %arg1: i32, %arg2: i32, %arg3: memref<16x128xbf16, #tpu.memory_space<vmem>>, %arg4: memref<128x128xbf16, #tpu.memory_space<vmem>>, %arg5: memref<1x128xf32, #tpu.memory_space<vmem>>, %arg6: memref<16x128xf32, #tpu.memory_space<vmem>>, %arg7: memref<16x128xf32, #tpu.memory_space<vmem>>) attributes {dimension_semantics = [#tpu.dimension_semantics<parallel>, #tpu.dimension_semantics<parallel>, #tpu.dimension_semantics<arbitrary>], iteration_bounds = array<i64: 1, 1, 1>, scalar_prefetch = 0 : i64, scratch_operands = 1 : i64, tpu.core_type = #tpu.core_type<tc>, window_params = [{transform_indices = @transform_0, window_bounds = array<i64: 16, 128>}, {transform_indices = @transform_1, window_bounds = array<i64: 128, 128>}, {transform_indices = @transform_2, window_bounds = array<i64: 1, 128>}, {transform_indices = @transform_3, window_bounds = array<i64: 16, 128>}]} {
    %c0_i32 = arith.constant 0 : i32
    %0 = arith.cmpi eq, %arg2, %c0_i32 : i32
    %1 = arith.extui %0 : i1 to i32
    %c0_i32_0 = arith.constant 0 : i32
    %2 = arith.cmpi ne, %1, %c0_i32_0 : i32
    scf.if %2 {
      %cst_10 = arith.constant 0.000000e+00 : f32
      %12 = vector.broadcast %cst_10 : f32 to vector<16x128xf32>
      %c0_11 = arith.constant 0 : index
      %c0_12 = arith.constant 0 : index
      %13 = vector.load %arg7[%c0_11, %c0_12] : memref<16x128xf32, #tpu.memory_space<vmem>>, vector<16x128xf32>
      tpu.vector_store %arg7[%c0_11, %c0_12], %12 {strides = array<i32>} : memref<16x128xf32, #tpu.memory_space<vmem>>, vector<16x128xf32>,
    } else {
    }
    %c0 = arith.constant 0 : index
    %c0_1 = arith.constant 0 : index
    %3 = vector.load %arg7[%c0, %c0_1] : memref<16x128xf32, #tpu.memory_space<vmem>>, vector<16x128xf32>
    %c0_2 = arith.constant 0 : index
    %c0_3 = arith.constant 0 : index
    %4 = vector.load %arg3[%c0_2, %c0_3] : memref<16x128xbf16, #tpu.memory_space<vmem>>, vector<16x128xbf16>
    %c0_4 = arith.constant 0 : index
    %c0_5 = arith.constant 0 : index
    %5 = vector.load %arg4[%c0_4, %c0_5] : memref<128x128xbf16, #tpu.memory_space<vmem>>, vector<128x128xbf16>
    %cst = arith.constant dense<0.000000e+00> : vector<16x128xf32>
    %6 = tpu.matmul %4, %5, %cst {dimension_numbers = #tpu.dot_dimension_numbers<[1], [0], [0], [1], [0, 0, 1, 1], [], []>} : vector<16x128xbf16>, vector<128x128xbf16>, vector<16x128xf32> -> vector<16x128xf32>
    %7 = arith.addf %3, %6 : vector<16x128xf32>
    %c0_6 = arith.constant 0 : index
    %c0_7 = arith.constant 0 : index
    %8 = vector.load %arg7[%c0_6, %c0_7] : memref<16x128xf32, #tpu.memory_space<vmem>>, vector<16x128xf32>
    tpu.vector_store %arg7[%c0_6, %c0_7], %7 {strides = array<i32>} : memref<16x128xf32, #tpu.memory_space<vmem>>, vector<16x128xf32>,
    %c0_i32_8 = arith.constant 0 : i32
    %9 = arith.cmpi eq, %arg2, %c0_i32_8 : i32
    %10 = arith.extui %9 : i1 to i32
    %c0_i32_9 = arith.constant 0 : i32
    %11 = arith.cmpi ne, %10, %c0_i32_9 : i32
    scf.if %11 {
      %c0_10 = arith.constant 0 : index
      %c0_11 = arith.constant 0 : index
      %12 = vector.load %arg7[%c0_10, %c0_11] : memref<16x128xf32, #tpu.memory_space<vmem>>, vector<16x128xf32>
      %c0_12 = arith.constant 0 : index
      %c0_13 = arith.constant 0 : index
      %13 = vector.load %arg5[%c0_12, %c0_13] : memref<1x128xf32, #tpu.memory_space<vmem>>, vector<1x128xf32>
      %14 = vector.broadcast %13 : vector<1x128xf32> to vector<16x128xf32>
      %15 = arith.addf %12, %14 : vector<16x128xf32>
      %c0_14 = arith.constant 0 : index
      %c0_15 = arith.constant 0 : index
      %16 = vector.load %arg6[%c0_14, %c0_15] : memref<16x128xf32, #tpu.memory_space<vmem>>, vector<16x128xf32>
      tpu.vector_store %arg6[%c0_14, %c0_15], %15 {strides = array<i32>} : memref<16x128xf32, #tpu.memory_space<vmem>>, vector<16x128xf32>,
    } else {
    }
    return
  }
  func.func @transform_0(%arg0: i32, %arg1: i32, %arg2: i32) -> (i32, i32) {
    %c0_i32 = arith.constant 0 : i32
    return %arg0, %arg2 : i32, i32
  }
  func.func @transform_1(%arg0: i32, %arg1: i32, %arg2: i32) -> (i32, i32) {
    %c0_i32 = arith.constant 0 : i32
    return %arg2, %arg1 : i32, i32
  }
  func.func @transform_2(%arg0: i32, %arg1: i32, %arg2: i32) -> (i32, i32) {
    %c0_i32 = arith.constant 0 : i32
    %c0_i32_0 = arith.constant 0 : i32
    return %c0_i32, %arg1 : i32, i32
  }
  func.func @transform_3(%arg0: i32, %arg1: i32, %arg2: i32) -> (i32, i32) {
    %c0_i32 = arith.constant 0 : i32
    return %arg0, %arg1 : i32, i32
  }
}

</mosaic_0001>

<llo_original>
// kernel: _lambda_.15
$region0: #{_lambda_.15}
  #allocation0 [shape = 'u32[]', space=smem, size = 0x4, offset = 0x4, fixed_abs, tag = 'smem constant byte address 0x4 - core index']
  #allocation1 [shape = 'u32[144,128]{1,0:T(1,128)}', space=vmem, size = 0x12000, scoped, tag = 'internal scratch']
  #allocation2 [shape = 'f32[256,128]{1,0:T(8,128)}', space=vmem, size = 0x20000, scoped, tag = 'scratch operand']
  %s0 = inlined_call_operand.vmem [shape: bf16[256,128], index: 0, kind: input, shape index: {}]
  %s1 = inlined_call_operand.vmem [shape: bf16[128,128], index: 1, kind: input, shape index: {}]
  %s2 = inlined_call_operand.vmem [shape: f32[1,128], index: 2, kind: input, shape index: {}]
  %s3 = inlined_call_operand.vmem [shape: f32[256,128], index: 3, kind: output, shape index: {}]
  %s4 = sld [smem:[#allocation0]]
  $region30: #{_lambda_.15} parent=0
    _
  %s6 = ssub.s32 1, %s4
  %s7 = scalar_select 0, %s6, %s4
  // Predicated region
  $region2: #{_lambda_.15} parent=0 // pred_check
    _
  $region3: #{_lambda_.15} parent=0 // pred_check_branch
    %9 = sbr.rel (0) target = $region5
  $region4: #{_lambda_.15} parent=0 // pred_region
    _
  $region5: #{_lambda_.15} parent=0 // pred_fallthru
    _
  // Predicated region
  $region6: #{_lambda_.15} parent=0 // pred_check
    _
  $region7: #{_lambda_.15} parent=0 // pred_check_branch
    %11 = sbr.rel (0) target = $region9
  $region8: #{_lambda_.15} parent=0 // pred_region
    _
  $region9: #{_lambda_.15} parent=0 // pred_fallthru
    _
  // Predicated region
  $region10: #{_lambda_.15} parent=0 // pred_check
    _
  $region11: #{_lambda_.15} parent=0 // pred_check_branch
    %13 = sbr.rel (0) target = $region13
  $region12: #{_lambda_.15} parent=0 // pred_region
    _
  $region13: #{_lambda_.15} parent=0 // pred_fallthru
    _
  %p15 = scmp.eq.s32.totalorder 0, 0
  // Predicated region
  $region14: #{_lambda_.15} parent=0 // pred_check
    %p16 = pneg %p15
  $region15: #{_lambda_.15} parent=0 // pred_check_branch
    %18 = sbr.rel (%p16) target = $region17
  $region16: #{_lambda_.15} parent=0 // pred_region
    %19 = vst [vmem:[#allocation2] sm:$0xff] 0.0
    %20 = vst [vmem:[#allocation2 + $0x8] sm:$0xff] 0.0
    %21 = vst [vmem:[#allocation2 + $0x10] sm:$0xff] 0.0
    %22 = vst [vmem:[#allocation2 + $0x18] sm:$0xff] 0.0
    %23 = vst [vmem:[#allocation2 + $0x20] sm:$0xff] 0.0
    %24 = vst [vmem:[#allocation2 + $0x28] sm:$0xff] 0.0
    %25 = vst [vmem:[#allocation2 + $0x30] sm:$0xff] 0.0
    %26 = vst [vmem:[#allocation2 + $0x38] sm:$0xff] 0.0
    %27 = vst [vmem:[#allocation2 + $0x40] sm:$0xff] 0.0
    %28 = vst [vmem:[#allocation2 + $0x48] sm:$0xff] 0.0
    %29 = vst [vmem:[#allocation2 + $0x50] sm:$0xff] 0.0
    %30 = vst [vmem:[#allocation2 + $0x58] sm:$0xff] 0.0
    %31 = vst [vmem:[#allocation2 + $0x60] sm:$0xff] 0.0
    %32 = vst [vmem:[#allocation2 + $0x68] sm:$0xff] 0.0
    %33 = vst [vmem:[#allocation2 + $0x70] sm:$0xff] 0.0
    %34 = vst [vmem:[#allocation2 + $0x78] sm:$0xff] 0.0
    %35 = vst [vmem:[#allocation2 + $0x80] sm:$0xff] 0.0
    %36 = vst [vmem:[#allocation2 + $0x88] sm:$0xff] 0.0
    %37 = vst [vmem:[#allocation2 + $0x90] sm:$0xff] 0.0
    %38 = vst [vmem:[#allocation2 + $0x98] sm:$0xff] 0.0
    %39 = vst [vmem:[#allocation2 + $0xa0] sm:$0xff] 0.0
    %40 = vst [vmem:[#allocation2 + $0xa8] sm:$0xff] 0.0
    %41 = vst [vmem:[#allocation2 + $0xb0] sm:$0xff] 0.0
    %42 = vst [vmem:[#allocation2 + $0xb8] sm:$0xff] 0.0
    %43 = vst [vmem:[#allocation2 + $0xc0] sm:$0xff] 0.0
    %44 = vst [vmem:[#allocation2 + $0xc8] sm:$0xff] 0.0
    %45 = vst [vmem:[#allocation2 + $0xd0] sm:$0xff] 0.0
    %46 = vst [vmem:[#allocation2 + $0xd8] sm:$0xff] 0.0
    %47 = vst [vmem:[#allocation2 + $0xe0] sm:$0xff] 0.0
    %48 = vst [vmem:[#allocation2 + $0xe8] sm:$0xff] 0.0
    %49 = vst [vmem:[#allocation2 + $0xf0] sm:$0xff] 0.0
    %50 = vst [vmem:[#allocation2 + $0xf8] sm:$0xff] 0.0
  $region17: #{_lambda_.15} parent=0 // pred_fallthru
    _
  %v51 = vld [vmem:[#allocation2] sm:$0xff]
  %v52 = vld [vmem:[#allocation2 + $0x8] sm:$0xff]
  %v53 = vld [vmem:[#allocation2 + $0x10] sm:$0xff]
  %v54 = vld [vmem:[#allocation2 + $0x18] sm:$0xff]
  %v55 = vld [vmem:[#allocation2 + $0x20] sm:$0xff]
  %v56 = vld [vmem:[#allocation2 + $0x28] sm:$0xff]
  %v57 = vld [vmem:[#allocation2 + $0x30] sm:$0xff]
  %v58 = vld [vmem:[#allocation2 + $0x38] sm:$0xff]
  %v59 = vld [vmem:[#allocation2 + $0x40] sm:$0xff]
  %v60 = vld [vmem:[#allocation2 + $0x48] sm:$0xff]
  %v61 = vld [vmem:[#allocation2 + $0x50] sm:$0xff]
  %v62 = vld [vmem:[#allocation2 + $0x58] sm:$0xff]
  %v63 = vld [vmem:[#allocation2 + $0x60] sm:$0xff]
  %v64 = vld [vmem:[#allocation2 + $0x68] sm:$0xff]
  %v65 = vld [vmem:[#allocation2 + $0x70] sm:$0xff]
  %v66 = vld [vmem:[#allocation2 + $0x78] sm:$0xff]
  %v67 = vld [vmem:[#allocation2 + $0x80] sm:$0xff]
  %v68 = vld [vmem:[#allocation2 + $0x88] sm:$0xff]
  %v69 = vld [vmem:[#allocation2 + $0x90] sm:$0xff]
  %v70 = vld [vmem:[#allocation2 + $0x98] sm:$0xff]
  %v71 = vld [vmem:[#allocation2 + $0xa0] sm:$0xff]
  %v72 = vld [vmem:[#allocation2 + $0xa8] sm:$0xff]
  %v73 = vld [vmem:[#allocation2 + $0xb0] sm:$0xff]
  %v74 = vld [vmem:[#allocation2 + $0xb8] sm:$0xff]
  %v75 = vld [vmem:[#allocation2 + $0xc0] sm:$0xff]
  %v76 = vld [vmem:[#allocation2 + $0xc8] sm:$0xff]
  %v77 = vld [vmem:[#allocation2 + $0xd0] sm:$0xff]
  %v78 = vld [vmem:[#allocation2 + $0xd8] sm:$0xff]
  %v79 = vld [vmem:[#allocation2 + $0xe0] sm:$0xff]
  %v80 = vld [vmem:[#allocation2 + $0xe8] sm:$0xff]
  %v81 = vld [vmem:[#allocation2 + $0xf0] sm:$0xff]
  %v82 = vld [vmem:[#allocation2 + $0xf8] sm:$0xff]
  %v83 = vld [vmem:[%s0] sm:$0xf]
  %v84 = vld [vmem:[%s0 + $0x4] sm:$0xf]
  %v85 = vld [vmem:[%s0 + $0x8] sm:$0xf]
  %v86 = vld [vmem:[%s0 + $0xc] sm:$0xf]
  %v87 = vld [vmem:[%s0 + $0x10] sm:$0xf]
  %v88 = vld [vmem:[%s0 + $0x14] sm:$0xf]
  %v89 = vld [vmem:[%s0 + $0x18] sm:$0xf]
  %v90 = vld [vmem:[%s0 + $0x1c] sm:$0xf]
  %v91 = vld [vmem:[%s0 + $0x20] sm:$0xf]
  %v92 = vld [vmem:[%s0 + $0x24] sm:$0xf]
  %v93 = vld [vmem:[%s0 + $0x28] sm:$0xf]
  %v94 = vld [vmem:[%s0 + $0x2c] sm:$0xf]
  %v95 = vld [vmem:[%s0 + $0x30] sm:$0xf]
  %v96 = vld [vmem:[%s0 + $0x34] sm:$0xf]
  %v97 = vld [vmem:[%s0 + $0x38] sm:$0xf]
  %v98 = vld [vmem:[%s0 + $0x3c] sm:$0xf]
  %v99 = vld [vmem:[%s0 + $0x40] sm:$0xf]
  %v100 = vld [vmem:[%s0 + $0x44] sm:$0xf]
  %v101 = vld [vmem:[%s0 + $0x48] sm:$0xf]
  %v102 = vld [vmem:[%s0 + $0x4c] sm:$0xf]
  %v103 = vld [vmem:[%s0 + $0x50] sm:$0xf]
  %v104 = vld [vmem:[%s0 + $0x54] sm:$0xf]
  %v105 = vld [vmem:[%s0 + $0x58] sm:$0xf]
  %v106 = vld [vmem:[%s0 + $0x5c] sm:$0xf]
  %v107 = vld [vmem:[%s0 + $0x60] sm:$0xf]
  %v108 = vld [vmem:[%s0 + $0x64] sm:$0xf]
  %v109 = vld [vmem:[%s0 + $0x68] sm:$0xf]
  %v110 = vld [vmem:[%s0 + $0x6c] sm:$0xf]
  %v111 = vld [vmem:[%s0 + $0x70] sm:$0xf]
  %v112 = vld [vmem:[%s0 + $0x74] sm:$0xf]
  %v113 = vld [vmem:[%s0 + $0x78] sm:$0xf]
  %v114 = vld [vmem:[%s0 + $0x7c] sm:$0xf]
  %v115 = vld [vmem:[%s1] sm:$0xf]
  %v116 = vld [vmem:[%s1 + $0x4] sm:$0xf]
  %v117 = vld [vmem:[%s1 + $0x8] sm:$0xf]
  %v118 = vld [vmem:[%s1 + $0xc] sm:$0xf]
  %v119 = vld [vmem:[%s1 + $0x10] sm:$0xf]
  %v120 = vld [vmem:[%s1 + $0x14] sm:$0xf]
  %v121 = vld [vmem:[%s1 + $0x18] sm:$0xf]
  %v122 = vld [vmem:[%s1 + $0x1c] sm:$0xf]
  %v123 = vld [vmem:[%s1 + $0x20] sm:$0xf]
  %v124 = vld [vmem:[%s1 + $0x24] sm:$0xf]
  %v125 = vld [vmem:[%s1 + $0x28] sm:$0xf]
  %v126 = vld [vmem:[%s1 + $0x2c] sm:$0xf]
  %v127 = vld [vmem:[%s1 + $0x30] sm:$0xf]
  %v128 = vld [vmem:[%s1 + $0x34] sm:$0xf]
  %v129 = vld [vmem:[%s1 + $0x38] sm:$0xf]
  %v130 = vld [vmem:[%s1 + $0x3c] sm:$0xf]
  %v163 = vunpack.c.l.b16 %v83
  %v164 = vunpack.c.l.b16 %v84
  %v165 = vunpack.c.l.b16 %v85
  %v166 = vunpack.c.l.b16 %v86
  %v167 = vunpack.c.l.b16 %v87
  %v168 = vunpack.c.l.b16 %v88
  %v169 = vunpack.c.l.b16 %v89
  %v170 = vunpack.c.l.b16 %v90
  %v171 = vunpack.c.l.b16 %v91
  %v172 = vunpack.c.l.b16 %v92
  %v173 = vunpack.c.l.b16 %v93
  %v174 = vunpack.c.l.b16 %v94
  %v175 = vunpack.c.l.b16 %v95
  %v176 = vunpack.c.l.b16 %v96
  %v177 = vunpack.c.l.b16 %v97
  %v178 = vunpack.c.l.b16 %v98
  %v179 = vunpack.c.l.b16 %v99
  %v180 = vunpack.c.l.b16 %v100
  %v181 = vunpack.c.l.b16 %v101
  %v182 = vunpack.c.l.b16 %v102
  %v183 = vunpack.c.l.b16 %v103
  %v184 = vunpack.c.l.b16 %v104
  %v185 = vunpack.c.l.b16 %v105
  %v186 = vunpack.c.l.b16 %v106
  %v187 = vunpack.c.l.b16 %v107
  %v188 = vunpack.c.l.b16 %v108
  %v189 = vunpack.c.l.b16 %v109
  %v190 = vunpack.c.l.b16 %v110
  %v191 = vunpack.c.l.b16 %v111
  %v192 = vunpack.c.l.b16 %v112
  %v193 = vunpack.c.l.b16 %v113
  %v194 = vunpack.c.l.b16 %v114
  %v195 = vpack.c.b16 %v164, %v163
  %v196 = vpack.c.b16 %v166, %v165
  %v197 = vpack.c.b16 %v168, %v167
  %v198 = vpack.c.b16 %v170, %v169
  %v199 = vpack.c.b16 %v172, %v171
  %v200 = vpack.c.b16 %v174, %v173
  %v201 = vpack.c.b16 %v176, %v175
  %v202 = vpack.c.b16 %v178, %v177
  %v203 = vpack.c.b16 %v180, %v179
  %v204 = vpack.c.b16 %v182, %v181
  %v205 = vpack.c.b16 %v184, %v183
  %v206 = vpack.c.b16 %v186, %v185
  %v207 = vpack.c.b16 %v188, %v187
  %v208 = vpack.c.b16 %v190, %v189
  %v209 = vpack.c.b16 %v192, %v191
  %v210 = vpack.c.b16 %v194, %v193
  %v243 = vunpack.c.l.b16 %v115
  %v244 = vunpack.c.l.b16 %v116
  %v245 = vunpack.c.l.b16 %v117
  %v246 = vunpack.c.l.b16 %v118
  %v247 = vunpack.c.l.b16 %v119
  %v248 = vunpack.c.l.b16 %v120
  %v249 = vunpack.c.l.b16 %v121
  %v250 = vunpack.c.l.b16 %v122
  %v251 = vunpack.c.l.b16 %v123
  %v252 = vunpack.c.l.b16 %v124
  %v253 = vunpack.c.l.b16 %v125
  %v254 = vunpack.c.l.b16 %v126
  %v255 = vunpack.c.l.b16 %v127
  %v256 = vunpack.c.l.b16 %v128
  %v257 = vunpack.c.l.b16 %v129
  %v258 = vunpack.c.l.b16 %v130
  %v259 = vpack.c.b16 %v244, %v243
  %v260 = vpack.c.b16 %v246, %v245
  %v261 = vpack.c.b16 %v248, %v247
  %v262 = vpack.c.b16 %v250, %v249
  %v263 = vpack.c.b16 %v252, %v251
  %v264 = vpack.c.b16 %v254, %v253
  %v265 = vpack.c.b16 %v256, %v255
  %v266 = vpack.c.b16 %v258, %v257
  %275 = vmatprep.subr.bf16.mxu0 0
  %276 = vmatpush1.bf16.msra.mxu0 %v259
  %277 = vmatprep.subr.bf16.mxu0 0
  %278 = vmatpush1.bf16.msra.mxu0 %v260
  %279 = vmatprep.subr.bf16.mxu0 0
  %280 = vmatpush1.bf16.msra.mxu0 %v261
  %281 = vmatprep.subr.bf16.mxu0 0
  %282 = vmatpush1.bf16.msra.mxu0 %v262
  %283 = vmatprep.subr.bf16.mxu0 0
  %284 = vmatpush1.bf16.msra.mxu0 %v263
  %285 = vmatprep.subr.bf16.mxu0 0
  %286 = vmatpush1.bf16.msra.mxu0 %v264
  %287 = vmatprep.subr.bf16.mxu0 0
  %288 = vmatpush1.bf16.msra.mxu0 %v265
  %289 = vmatprep.subr.bf16.mxu0 0
  %290 = vmatpush1.bf16.msra.mxu0 %v266
  %291 = vmatprep.subr.bf16.mxu0 0
  %292 = vmatpush1.bf16.msra.mxu0 0
  %293 = vmatprep.subr.bf16.mxu0 0
  %294 = vmatpush1.bf16.msra.mxu0 0
  %295 = vmatprep.subr.bf16.mxu0 0
  %296 = vmatpush1.bf16.msra.mxu0 0
  %297 = vmatprep.subr.bf16.mxu0 0
  %298 = vmatpush1.bf16.msra.mxu0 0
  %299 = vmatprep.subr.bf16.mxu0 0
  %300 = vmatpush1.bf16.msra.mxu0 0
  %301 = vmatprep.subr.bf16.mxu0 0
  %302 = vmatpush1.bf16.msra.mxu0 0
  %303 = vmatprep.subr.bf16.mxu0 0
  %304 = vmatpush1.bf16.msra.mxu0 0
  %305 = vmatprep.subr.bf16.mxu0 0
  %306 = vmatpush1.bf16.msra.mxu0 0
  %307 = vmatprep.mubr.bf16.mxu0 0
  %308 = vmatmul.mubr.bf16.gmra.mrb[0].mxu0 %v195
  %v309 = vpop.f32.mrb[0].mxu0
  %v310 = vadd.f32 0.0, %v309
  %v311 = vpop.f32.mrb[0].mxu0
  %v312 = vpop.f32.mrb[0].mxu0
  %v313 = vadd.f32 0.0, %v312
  %v314 = vpop.f32.mrb[0].mxu0
  %315 = vmatprep.mubr.bf16.mxu0 0
  %316 = vmatmul.mubr.bf16.gmra.mrb[0].mxu0 %v196
  %v317 = vpop.f32.mrb[0].mxu0
  %v318 = vadd.f32 0.0, %v317
  %v319 = vpop.f32.mrb[0].mxu0
  %v320 = vpop.f32.mrb[0].mxu0
  %v321 = vadd.f32 0.0, %v320
  %v322 = vpop.f32.mrb[0].mxu0
  %323 = vmatprep.mubr.bf16.mxu0 0
  %324 = vmatmul.mubr.bf16.gmra.mrb[0].mxu0 %v197
  %v325 = vpop.f32.mrb[0].mxu0
  %v326 = vadd.f32 0.0, %v325
  %v327 = vpop.f32.mrb[0].mxu0
  %v328 = vpop.f32.mrb[0].mxu0
  %v329 = vadd.f32 0.0, %v328
  %v330 = vpop.f32.mrb[0].mxu0
  %331 = vmatprep.mubr.bf16.mxu0 0
  %332 = vmatmul.mubr.bf16.gmra.mrb[0].mxu0 %v198
  %v333 = vpop.f32.mrb[0].mxu0
  %v334 = vadd.f32 0.0, %v333
  %v335 = vpop.f32.mrb[0].mxu0
  %v336 = vpop.f32.mrb[0].mxu0
  %v337 = vadd.f32 0.0, %v336
  %v338 = vpop.f32.mrb[0].mxu0
  %339 = vmatprep.mubr.bf16.mxu0 0
  %340 = vmatmul.mubr.bf16.gmra.mrb[0].mxu0 %v199
  %v341 = vpop.f32.mrb[0].mxu0
  %v342 = vadd.f32 0.0, %v341
  %v343 = vpop.f32.mrb[0].mxu0
  %v344 = vpop.f32.mrb[0].mxu0
  %v345 = vadd.f32 0.0, %v344
  %v346 = vpop.f32.mrb[0].mxu0
  %347 = vmatprep.mubr.bf16.mxu0 0
  %348 = vmatmul.mubr.bf16.gmra.mrb[0].mxu0 %v200
  %v349 = vpop.f32.mrb[0].mxu0
  %v350 = vadd.f32 0.0, %v349
  %v351 = vpop.f32.mrb[0].mxu0
  %v352 = vpop.f32.mrb[0].mxu0
  %v353 = vadd.f32 0.0, %v352
  %v354 = vpop.f32.mrb[0].mxu0
  %355 = vmatprep.mubr.bf16.mxu0 0
  %356 = vmatmul.mubr.bf16.gmra.mrb[0].mxu0 %v201
  %v357 = vpop.f32.mrb[0].mxu0
  %v358 = vadd.f32 0.0, %v357
  %v359 = vpop.f32.mrb[0].mxu0
  %v360 = vpop.f32.mrb[0].mxu0
  %v361 = vadd.f32 0.0, %v360
  %v362 = vpop.f32.mrb[0].mxu0
  %363 = vmatprep.mubr.bf16.mxu0 0
  %364 = vmatmul.mubr.bf16.gmra.mrb[0].mxu0 %v202
  %v365 = vpop.f32.mrb[0].mxu0
  %v366 = vadd.f32 0.0, %v365
  %v367 = vpop.f32.mrb[0].mxu0
  %v368 = vpop.f32.mrb[0].mxu0
  %v369 = vadd.f32 0.0, %v368
  %v370 = vpop.f32.mrb[0].mxu0
  %371 = vmatprep.mubr.bf16.mxu0 0
  %372 = vmatmul.mubr.bf16.gmra.mrb[0].mxu0 %v203
  %v373 = vpop.f32.mrb[0].mxu0
  %v374 = vadd.f32 0.0, %v373
  %v375 = vpop.f32.mrb[0].mxu0
  %v376 = vpop.f32.mrb[0].mxu0
  %v377 = vadd.f32 0.0, %v376
  %v378 = vpop.f32.mrb[0].mxu0
  %379 = vmatprep.mubr.bf16.mxu0 0
  %380 = vmatmul.mubr.bf16.gmra.mrb[0].mxu0 %v204
  %v381 = vpop.f32.mrb[0].mxu0
  %v382 = vadd.f32 0.0, %v381
  %v383 = vpop.f32.mrb[0].mxu0
  %v384 = vpop.f32.mrb[0].mxu0
  %v385 = vadd.f32 0.0, %v384
  %v386 = vpop.f32.mrb[0].mxu0
  %387 = vmatprep.mubr.bf16.mxu0 0
  %388 = vmatmul.mubr.bf16.gmra.mrb[0].mxu0 %v205
  %v389 = vpop.f32.mrb[0].mxu0
  %v390 = vadd.f32 0.0, %v389
  %v391 = vpop.f32.mrb[0].mxu0
  %v392 = vpop.f32.mrb[0].mxu0
  %v393 = vadd.f32 0.0, %v392
  %v394 = vpop.f32.mrb[0].mxu0
  %395 = vmatprep.mubr.bf16.mxu0 0
  %396 = vmatmul.mubr.bf16.gmra.mrb[0].mxu0 %v206
  %v397 = vpop.f32.mrb[0].mxu0
  %v398 = vadd.f32 0.0, %v397
  %v399 = vpop.f32.mrb[0].mxu0
  %v400 = vpop.f32.mrb[0].mxu0
  %v401 = vadd.f32 0.0, %v400
  %v402 = vpop.f32.mrb[0].mxu0
  %403 = vmatprep.mubr.bf16.mxu0 0
  %404 = vmatmul.mubr.bf16.gmra.mrb[0].mxu0 %v207
  %v405 = vpop.f32.mrb[0].mxu0
  %v406 = vadd.f32 0.0, %v405
  %v407 = vpop.f32.mrb[0].mxu0
  %v408 = vpop.f32.mrb[0].mxu0
  %v409 = vadd.f32 0.0, %v408
  %v410 = vpop.f32.mrb[0].mxu0
  %411 = vmatprep.mubr.bf16.mxu0 0
  %412 = vmatmul.mubr.bf16.gmra.mrb[0].mxu0 %v208
  %v413 = vpop.f32.mrb[0].mxu0
  %v414 = vadd.f32 0.0, %v413
  %v415 = vpop.f32.mrb[0].mxu0
  %v416 = vpop.f32.mrb[0].mxu0
  %v417 = vadd.f32 0.0, %v416
  %v418 = vpop.f32.mrb[0].mxu0
  %419 = vmatprep.mubr.bf16.mxu0 0
  %420 = vmatmul.mubr.bf16.gmra.mrb[0].mxu0 %v209
  %v421 = vpop.f32.mrb[0].mxu0
  %v422 = vadd.f32 0.0, %v421
  %v423 = vpop.f32.mrb[0].mxu0
  %v424 = vpop.f32.mrb[0].mxu0
  %v425 = vadd.f32 0.0, %v424
  %v426 = vpop.f32.mrb[0].mxu0
  %427 = vmatprep.mubr.bf16.mxu0 0
  %428 = vmatmul.mubr.bf16.gmra.mrb[0].mxu0 %v210
  %v429 = vpop.f32.mrb[0].mxu0
  %v430 = vadd.f32 0.0, %v429
  %v431 = vpop.f32.mrb[0].mxu0
  %v432 = vpop.f32.mrb[0].mxu0
  %v433 = vadd.f32 0.0, %v432
  %v434 = vpop.f32.mrb[0].mxu0
  %435 = vdwg.mxu0
  %v436 = vadd.f32 %v51, %v310
  %v437 = vadd.f32 %v52, %v313
  %v438 = vadd.f32 %v53, %v318
  %v439 = vadd.f32 %v54, %v321
  %v440 = vadd.f32 %v55, %v326
  %v441 = vadd.f32 %v56, %v329
  %v442 = vadd.f32 %v57, %v334
  %v443 = vadd.f32 %v58, %v337
  %v444 = vadd.f32 %v59, %v342
  %v445 = vadd.f32 %v60, %v345
  %v446 = vadd.f32 %v61, %v350
  %v447 = vadd.f32 %v62, %v353
  %v448 = vadd.f32 %v63, %v358
  %v449 = vadd.f32 %v64, %v361
  %v450 = vadd.f32 %v65, %v366
  %v451 = vadd.f32 %v66, %v369
  %v452 = vadd.f32 %v67, %v374
  %v453 = vadd.f32 %v68, %v377
  %v454 = vadd.f32 %v69, %v382
  %v455 = vadd.f32 %v70, %v385
  %v456 = vadd.f32 %v71, %v390
  %v457 = vadd.f32 %v72, %v393
  %v458 = vadd.f32 %v73, %v398
  %v459 = vadd.f32 %v74, %v401
  %v460 = vadd.f32 %v75, %v406
  %v461 = vadd.f32 %v76, %v409
  %v462 = vadd.f32 %v77, %v414
  %v463 = vadd.f32 %v78, %v417
  %v464 = vadd.f32 %v79, %v422
  %v465 = vadd.f32 %v80, %v425
  %v466 = vadd.f32 %v81, %v430
  %v467 = vadd.f32 %v82, %v433
  %468 = vst [vmem:[#allocation2] sm:$0xff] %v436
  %469 = vst [vmem:[#allocation2 + $0x8] sm:$0xff] %v437
  %470 = vst [vmem:[#allocation2 + $0x10] sm:$0xff] %v438
  %471 = vst [vmem:[#allocation2 + $0x18] sm:$0xff] %v439
  %472 = vst [vmem:[#allocation2 + $0x20] sm:$0xff] %v440
  %473 = vst [vmem:[#allocation2 + $0x28] sm:$0xff] %v441
  %474 = vst [vmem:[#allocation2 + $0x30] sm:$0xff] %v442
  %475 = vst [vmem:[#allocation2 + $0x38] sm:$0xff] %v443
  %476 = vst [vmem:[#allocation2 + $0x40] sm:$0xff] %v444
  %477 = vst [vmem:[#allocation2 + $0x48] sm:$0xff] %v445
  %478 = vst [vmem:[#allocation2 + $0x50] sm:$0xff] %v446
  %479 = vst [vmem:[#allocation2 + $0x58] sm:$0xff] %v447
  %480 = vst [vmem:[#allocation2 + $0x60] sm:$0xff] %v448
  %481 = vst [vmem:[#allocation2 + $0x68] sm:$0xff] %v449
  %482 = vst [vmem:[#allocation2 + $0x70] sm:$0xff] %v450
  %483 = vst [vmem:[#allocation2 + $0x78] sm:$0xff] %v451
  %484 = vst [vmem:[#allocation2 + $0x80] sm:$0xff] %v452
  %485 = vst [vmem:[#allocation2 + $0x88] sm:$0xff] %v453
  %486 = vst [vmem:[#allocation2 + $0x90] sm:$0xff] %v454
  %487 = vst [vmem:[#allocation2 + $0x98] sm:$0xff] %v455
  %488 = vst [vmem:[#allocation2 + $0xa0] sm:$0xff] %v456
  %489 = vst [vmem:[#allocation2 + $0xa8] sm:$0xff] %v457
  %490 = vst [vmem:[#allocation2 + $0xb0] sm:$0xff] %v458
  %491 = vst [vmem:[#allocation2 + $0xb8] sm:$0xff] %v459
  %492 = vst [vmem:[#allocation2 + $0xc0] sm:$0xff] %v460
  %493 = vst [vmem:[#allocation2 + $0xc8] sm:$0xff] %v461
  %494 = vst [vmem:[#allocation2 + $0xd0] sm:$0xff] %v462
  %495 = vst [vmem:[#allocation2 + $0xd8] sm:$0xff] %v463
  %496 = vst [vmem:[#allocation2 + $0xe0] sm:$0xff] %v464
  %497 = vst [vmem:[#allocation2 + $0xe8] sm:$0xff] %v465
  %498 = vst [vmem:[#allocation2 + $0xf0] sm:$0xff] %v466
  %499 = vst [vmem:[#allocation2 + $0xf8] sm:$0xff] %v467
  // Predicated region
  $region18: #{_lambda_.15} parent=0 // pred_check
    %p500 = pneg %p15
  $region19: #{_lambda_.15} parent=0 // pred_check_branch
    %502 = sbr.rel (%p500) target = $region21
  $region20: #{_lambda_.15} parent=0 // pred_region
    %v503 = vld [vmem:[#allocation2] sm:$0xff]
    %v504 = vld [vmem:[#allocation2 + $0x8] sm:$0xff]
    %v505 = vld [vmem:[#allocation2 + $0x10] sm:$0xff]
    %v506 = vld [vmem:[#allocation2 + $0x18] sm:$0xff]
    %v507 = vld [vmem:[#allocation2 + $0x20] sm:$0xff]
    %v508 = vld [vmem:[#allocation2 + $0x28] sm:$0xff]
    %v509 = vld [vmem:[#allocation2 + $0x30] sm:$0xff]
    %v510 = vld [vmem:[#allocation2 + $0x38] sm:$0xff]
    %v511 = vld [vmem:[#allocation2 + $0x40] sm:$0xff]
    %v512 = vld [vmem:[#allocation2 + $0x48] sm:$0xff]
    %v513 = vld [vmem:[#allocation2 + $0x50] sm:$0xff]
    %v514 = vld [vmem:[#allocation2 + $0x58] sm:$0xff]
    %v515 = vld [vmem:[#allocation2 + $0x60] sm:$0xff]
    %v516 = vld [vmem:[#allocation2 + $0x68] sm:$0xff]
    %v517 = vld [vmem:[#allocation2 + $0x70] sm:$0xff]
    %v518 = vld [vmem:[#allocation2 + $0x78] sm:$0xff]
    %v519 = vld [vmem:[#allocation2 + $0x80] sm:$0xff]
    %v520 = vld [vmem:[#allocation2 + $0x88] sm:$0xff]
    %v521 = vld [vmem:[#allocation2 + $0x90] sm:$0xff]
    %v522 = vld [vmem:[#allocation2 + $0x98] sm:$0xff]
    %v523 = vld [vmem:[#allocation2 + $0xa0] sm:$0xff]
    %v524 = vld [vmem:[#allocation2 + $0xa8] sm:$0xff]
    %v525 = vld [vmem:[#allocation2 + $0xb0] sm:$0xff]
    %v526 = vld [vmem:[#allocation2 + $0xb8] sm:$0xff]
    %v527 = vld [vmem:[#allocation2 + $0xc0] sm:$0xff]
    %v528 = vld [vmem:[#allocation2 + $0xc8] sm:$0xff]
    %v529 = vld [vmem:[#allocation2 + $0xd0] sm:$0xff]
    %v530 = vld [vmem:[#allocation2 + $0xd8] sm:$0xff]
    %v531 = vld [vmem:[#allocation2 + $0xe0] sm:$0xff]
    %v532 = vld [vmem:[#allocation2 + $0xe8] sm:$0xff]
    %v533 = vld [vmem:[#allocation2 + $0xf0] sm:$0xff]
    %v534 = vld [vmem:[#allocation2 + $0xf8] sm:$0xff]
    %v535 = vld [vmem:[%s2] sm:$0x1]
    %v537 = vlaneseq
    %v538 = vshrl.u32 %v537, 7
    %v539 = vsub.s32 0, %v538
    %v540 = vrot.slane %v535, %v539
    %v542 = vadd.f32 %v503, %v540
    %v543 = vadd.f32 %v504, %v540
    %v544 = vadd.f32 %v505, %v540
    %v545 = vadd.f32 %v506, %v540
    %v546 = vadd.f32 %v507, %v540
    %v547 = vadd.f32 %v508, %v540
    %v548 = vadd.f32 %v509, %v540
    %v549 = vadd.f32 %v510, %v540
    %v550 = vadd.f32 %v511, %v540
    %v551 = vadd.f32 %v512, %v540
    %v552 = vadd.f32 %v513, %v540
    %v553 = vadd.f32 %v514, %v540
    %v554 = vadd.f32 %v515, %v540
    %v555 = vadd.f32 %v516, %v540
    %v556 = vadd.f32 %v517, %v540
    %v557 = vadd.f32 %v518, %v540
    %v558 = vadd.f32 %v519, %v540
    %v559 = vadd.f32 %v520, %v540
    %v560 = vadd.f32 %v521, %v540
    %v561 = vadd.f32 %v522, %v540
    %v562 = vadd.f32 %v523, %v540
    %v563 = vadd.f32 %v524, %v540
    %v564 = vadd.f32 %v525, %v540
    %v565 = vadd.f32 %v526, %v540
    %v566 = vadd.f32 %v527, %v540
    %v567 = vadd.f32 %v528, %v540
    %v568 = vadd.f32 %v529, %v540
    %v569 = vadd.f32 %v530, %v540
    %v570 = vadd.f32 %v531, %v540
    %v571 = vadd.f32 %v532, %v540
    %v572 = vadd.f32 %v533, %v540
    %v573 = vadd.f32 %v534, %v540
    %v574 = vmax.f32 %v542, 0.0
    %v575 = vmax.f32 %v543, 0.0
    %v576 = vmax.f32 %v544, 0.0
    %v577 = vmax.f32 %v545, 0.0
    %v578 = vmax.f32 %v546, 0.0
    %v579 = vmax.f32 %v547, 0.0
    %v580 = vmax.f32 %v548, 0.0
    %v581 = vmax.f32 %v549, 0.0
    %v582 = vmax.f32 %v550, 0.0
    %v583 = vmax.f32 %v551, 0.0
    %v584 = vmax.f32 %v552, 0.0
    %v585 = vmax.f32 %v553, 0.0
    %v586 = vmax.f32 %v554, 0.0
    %v587 = vmax.f32 %v555, 0.0
    %v588 = vmax.f32 %v556, 0.0
    %v589 = vmax.f32 %v557, 0.0
    %v590 = vmax.f32 %v558, 0.0
    %v591 = vmax.f32 %v559, 0.0
    %v592 = vmax.f32 %v560, 0.0
    %v593 = vmax.f32 %v561, 0.0
    %v594 = vmax.f32 %v562, 0.0
    %v595 = vmax.f32 %v563, 0.0
    %v596 = vmax.f32 %v564, 0.0
    %v597 = vmax.f32 %v565, 0.0
    %v598 = vmax.f32 %v566, 0.0
    %v599 = vmax.f32 %v567, 0.0
    %v600 = vmax.f32 %v568, 0.0
    %v601 = vmax.f32 %v569, 0.0
    %v602 = vmax.f32 %v570, 0.0
    %v603 = vmax.f32 %v571, 0.0
    %v604 = vmax.f32 %v572, 0.0
    %v605 = vmax.f32 %v573, 0.0
    %606 = vst [vmem:[%s3] sm:$0xff] %v574
    %607 = vst [vmem:[%s3 + $0x8] sm:$0xff] %v575
    %608 = vst [vmem:[%s3 + $0x10] sm:$0xff] %v576
    %609 = vst [vmem:[%s3 + $0x18] sm:$0xff] %v577
    %610 = vst [vmem:[%s3 + $0x20] sm:$0xff] %v578
    %611 = vst [vmem:[%s3 + $0x28] sm:$0xff] %v579
    %612 = vst [vmem:[%s3 + $0x30] sm:$0xff] %v580
    %613 = vst [vmem:[%s3 + $0x38] sm:$0xff] %v581
    %614 = vst [vmem:[%s3 + $0x40] sm:$0xff] %v582
    %615 = vst [vmem:[%s3 + $0x48] sm:$0xff] %v583
    %616 = vst [vmem:[%s3 + $0x50] sm:$0xff] %v584
    %617 = vst [vmem:[%s3 + $0x58] sm:$0xff] %v585
    %618 = vst [vmem:[%s3 + $0x60] sm:$0xff] %v586
    %619 = vst [vmem:[%s3 + $0x68] sm:$0xff] %v587
    %620 = vst [vmem:[%s3 + $0x70] sm:$0xff] %v588
    %621 = vst [vmem:[%s3 + $0x78] sm:$0xff] %v589
    %622 = vst [vmem:[%s3 + $0x80] sm:$0xff] %v590
    %623 = vst [vmem:[%s3 + $0x88] sm:$0xff] %v591
    %624 = vst [vmem:[%s3 + $0x90] sm:$0xff] %v592
    %625 = vst [vmem:[%s3 + $0x98] sm:$0xff] %v593
    %626 = vst [vmem:[%s3 + $0xa0] sm:$0xff] %v594
    %627 = vst [vmem:[%s3 + $0xa8] sm:$0xff] %v595
    %628 = vst [vmem:[%s3 + $0xb0] sm:$0xff] %v596
    %629 = vst [vmem:[%s3 + $0xb8] sm:$0xff] %v597
    %630 = vst [vmem:[%s3 + $0xc0] sm:$0xff] %v598
    %631 = vst [vmem:[%s3 + $0xc8] sm:$0xff] %v599
    %632 = vst [vmem:[%s3 + $0xd0] sm:$0xff] %v600
    %633 = vst [vmem:[%s3 + $0xd8] sm:$0xff] %v601
    %634 = vst [vmem:[%s3 + $0xe0] sm:$0xff] %v602
    %635 = vst [vmem:[%s3 + $0xe8] sm:$0xff] %v603
    %636 = vst [vmem:[%s3 + $0xf0] sm:$0xff] %v604
    %637 = vst [vmem:[%s3 + $0xf8] sm:$0xff] %v605
  $region21: #{_lambda_.15} parent=0 // pred_fallthru
    _
  // Predicated region
  $region22: #{_lambda_.15} parent=0 // pred_check
    _
  $region23: #{_lambda_.15} parent=0 // pred_check_branch
    %639 = sbr.rel (0) target = $region25
  $region24: #{_lambda_.15} parent=0 // pred_region
    _
  $region25: #{_lambda_.15} parent=0 // pred_fallthru
    _
  // Predicated region
  $region26: #{_lambda_.15} parent=0 // pred_check
    _
  $region27: #{_lambda_.15} parent=0 // pred_check_branch
    %641 = sbr.rel (0) target = $region29
  $region28: #{_lambda_.15} parent=0 // pred_region
    _
  $region29: #{_lambda_.15} parent=0 // pred_fallthru
    _

// kernel: _lambda_.16
$region0: #{_lambda_.16}
  #allocation0 [shape = 'u32[]', space=smem, size = 0x4, offset = 0x4, fixed_abs, tag = 'smem constant byte address 0x4 - core index']
  #allocation1 [shape = 'u32[144,128]{1,0:T(1,128)}', space=vmem, size = 0x12000, scoped, tag = 'internal scratch']
  #allocation2 [shape = 'f32[64,128]{1,0:T(8,128)}', space=vmem, size = 0x8000, scoped, tag = 'scratch operand']
  %s0 = inlined_call_operand.vmem [shape: bf16[64,640], index: 0, kind: input, shape index: {}]
  %s1 = inlined_call_operand.vmem [shape: bf16[640,128], index: 1, kind: input, shape index: {}]
  %s2 = inlined_call_operand.vmem [shape: f32[1,128], index: 2, kind: input, shape index: {}]
  %s3 = inlined_call_operand.vmem [shape: f32[64,128], index: 3, kind: output, shape index: {}]
  %s4 = sld [smem:[#allocation0]]
  $region94: #{_lambda_.16} parent=0
    _
  %s6 = ssub.s32 1, %s4
  %s7 = scalar_select 0, %s6, %s4
  $region1: #{_lambda_.16} parent=0
    #allocation3 [shape = 'u8[32768]{0}', space=vmem, size = 0x8000, scoped, tag = 'input window, operand 0']
    loop: start=0, step=1, limit=7
    $region2: #{_lambda_.16} parent=1 // loop_pre_header
      _
    $region3: #{_lambda_.16} parent=1 // loop_header
      %s9 = sphi 0, %s13
      %p10 = scmp.ge.s32.totalorder %s9, 7
      %s16 = sphi 0, %s35
      %s17 = sphi 0, %s31
      %s18 = sphi 0, %s27
      %s19 = sphi 0, %s16
      %s20 = sphi 0, %s17
      %s21 = sphi 0, %s18
      %s22 = sphi 0, %s19
      %s23 = sphi 0, %s20
      %s24 = sphi 0, %s21
      %s40 = sphi 0, %s42
      %s43 = sphi 0, %s40
      %s44 = sphi 0, %s43
      %s60 = sphi 0, %s44
      %s68 = sphi 0, %s70
      %s71 = sphi 0, %s68
      %s72 = sphi 0, %s71
      %s88 = sphi 0, %s72
      %s94 = sphi 0, %s96
      %s97 = sphi 0, %s94
      %s98 = sphi 0, %s97
      %s114 = sphi 0, %s98
      %s122 = sphi 0, %s124
      %s125 = sphi 0, %s122
      %s126 = sphi 0, %s125
      %s142 = sphi 0, %s126
    $region4: #{_lambda_.16} parent=1 // loop_header_branch
      %12 = sbr.rel (%p10) target = $region8
    $region5: #{_lambda_.16} parent=1 // loop_body
      %s14 = ssub.s32 %s9, 1
      %s15 = ssub.s32 %s9, 2
      %s25 = sadd.s32 1, %s18
      %p26 = scmp.ge.s32.totalorder %s25, 5
      %s27 = scalar_select %p26, 0, %s25
      %s28 = sadd.s32 1, %s17
      %s29 = scalar_select %p26, %s28, %s17
      %p30 = scmp.ge.s32.totalorder %s29, 1
      %s31 = scalar_select %p30, 0, %s29
      %s32 = sadd.s32 1, %s16
      %s33 = scalar_select %p30, %s32, %s16
      %p34 = scmp.ge.s32.totalorder %s33, 1
      %s35 = scalar_select %p34, 0, %s33
      %s36 = ssub.s32 %s16, %s35
      %s37 = ssub.s32 %s18, %s27
      %s38 = sor.u32 %s36, %s37
      %p39 = scmp.eq.s32.totalorder %s38, 0
      %s41 = sadd.s32 %s40, 1
      %s42 = scalar_select %p39, %s40, %s41
      %p45 = pneg %p39
      %p46 = scmp.eq.s32.totalorder %s9, 4
      %p47 = por %p45, %p46
      %p48 = scmp.ne.s32.totalorder %s40, %s43
      %p49 = scmp.eq.s32.totalorder %s9, 0
      %p50 = por %p48, %p49
      %p51 = scmp.ne.s32.totalorder %s40, %s43
      %p52 = scmp.eq.s32.totalorder %s14, 4
      %p53 = por %p51, %p52
      %p54 = scmp.ne.s32.totalorder %s43, %s44
      %p55 = scmp.eq.s32.totalorder %s14, 0
      %p56 = por %p54, %p55
      %p57 = scmp.ne.s32.totalorder %s43, %s44
      %p58 = scmp.eq.s32.totalorder %s15, 4
      %p59 = por %p57, %p58
      %p61 = scmp.ne.s32.totalorder %s44, %s60
      %p62 = scmp.eq.s32.totalorder %s15, 0
      %p63 = por %p61, %p62
      %s64 = ssub.s32 %s18, %s27
      %s65 = ssub.s32 %s17, %s31
      %s66 = sor.u32 %s64, %s65
      %p67 = scmp.eq.s32.totalorder %s66, 0
      %s69 = sadd.s32 %s68, 1
      %s70 = scalar_select %p67, %s68, %s69
      %p73 = pneg %p67
      %p74 = scmp.eq.s32.totalorder %s9, 4
      %p75 = por %p73, %p74
      %p76 = scmp.ne.s32.totalorder %s68, %s71
      %p77 = scmp.eq.s32.totalorder %s9, 0
      %p78 = por %p76, %p77
      %p79 = scmp.ne.s32.totalorder %s68, %s71
      %p80 = scmp.eq.s32.totalorder %s14, 4
      %p81 = por %p79, %p80
      %p82 = scmp.ne.s32.totalorder %s71, %s72
      %p83 = scmp.eq.s32.totalorder %s14, 0
      %p84 = por %p82, %p83
      %p85 = scmp.ne.s32.totalorder %s71, %s72
      %p86 = scmp.eq.s32.totalorder %s15, 4
      %p87 = por %p85, %p86
      %p89 = scmp.ne.s32.totalorder %s72, %s88
      %p90 = scmp.eq.s32.totalorder %s15, 0
      %p91 = por %p89, %p90
      %s92 = ssub.s32 %s17, %s31
      %p93 = scmp.eq.s32.totalorder %s92, 0
      %s95 = sadd.s32 %s94, 1
      %s96 = scalar_select %p93, %s94, %s95
      %p99 = pneg %p93
      %p100 = scmp.eq.s32.totalorder %s9, 4
      %p101 = por %p99, %p100
      %p102 = scmp.ne.s32.totalorder %s94, %s97
      %p103 = scmp.eq.s32.totalorder %s9, 0
      %p104 = por %p102, %p103
      %p105 = scmp.ne.s32.totalorder %s94, %s97
      %p106 = scmp.eq.s32.totalorder %s14, 4
      %p107 = por %p105, %p106
      %p108 = scmp.ne.s32.totalorder %s97, %s98
      %p109 = scmp.eq.s32.totalorder %s14, 0
      %p110 = por %p108, %p109
      %p111 = scmp.ne.s32.totalorder %s97, %s98
      %p112 = scmp.eq.s32.totalorder %s15, 4
      %p113 = por %p111, %p112
      %p115 = scmp.ne.s32.totalorder %s98, %s114
      %p116 = scmp.eq.s32.totalorder %s15, 0
      %p117 = por %p115, %p116
      %s118 = ssub.s32 %s16, %s35
      %s119 = ssub.s32 %s17, %s31
      %s120 = sor.u32 %s118, %s119
      %p121 = scmp.eq.s32.totalorder %s120, 0
      %s123 = sadd.s32 %s122, 1
      %s124 = scalar_select %p121, %s122, %s123
      %p127 = pneg %p121
      %p128 = scmp.eq.s32.totalorder %s9, 4
      %p129 = por %p127, %p128
      %p130 = scmp.ne.s32.totalorder %s122, %s125
      %p131 = scmp.eq.s32.totalorder %s9, 0
      %p132 = por %p130, %p131
      %p133 = scmp.ne.s32.totalorder %s122, %s125
      %p134 = scmp.eq.s32.totalorder %s14, 4
      %p135 = por %p133, %p134
      %p136 = scmp.ne.s32.totalorder %s125, %s126
      %p137 = scmp.eq.s32.totalorder %s14, 0
      %p138 = por %p136, %p137
      %p139 = scmp.ne.s32.totalorder %s125, %s126
      %p140 = scmp.eq.s32.totalorder %s15, 4
      %p141 = por %p139, %p140
      %p143 = scmp.ne.s32.totalorder %s126, %s142
      %p144 = scmp.eq.s32.totalorder %s15, 0
      %p145 = por %p143, %p144
      %p146 = scmp.le.s32.totalorder 1, %s9
      %p147 = scmp.lt.s32.totalorder %s9, 6
      %p148 = pnand %p146, %p147
      %p149 = pneg %p148
      // Predicated region
      $region9: #{_lambda_.16} parent=5 // pred_check
        _
      $region10: #{_lambda_.16} parent=5 // pred_check_branch
        %151 = sbr.rel (%p148) target = $region12
      $region11: #{_lambda_.16} parent=5 // pred_region
        %s152 = ssub.s32 %s9, 1
        // Predicated region
        $region13: #{_lambda_.16} parent=11 // pred_check
          %p153 = pneg %p110
        $region14: #{_lambda_.16} parent=11 // pred_check_branch
          %155 = sbr.rel (%p153) target = $region16
        $region15: #{_lambda_.16} parent=11 // pred_region
          %p156 = scmp.lt.s32.totalorder %s20, 0
          %s157 = scalar_select %p156, %s20, 0
          %s158 = scalar_lea.vmem %s2, %s157
        $region16: #{_lambda_.16} parent=11 // pred_fallthru
          _
      $region12: #{_lambda_.16} parent=5 // pred_fallthru
        _
      %p159 = scmp.lt.s32.totalorder %s9, 5
      // Predicated region
      $region17: #{_lambda_.16} parent=5 // pred_check
        %p160 = pneg %p159
      $region18: #{_lambda_.16} parent=5 // pred_check_branch
        %162 = sbr.rel (%p160) target = $region20
      $region19: #{_lambda_.16} parent=5 // pred_region
        // Predicated region
        $region21: #{_lambda_.16} parent=19 // pred_check
          %p163 = pneg %p50
        $region22: #{_lambda_.16} parent=19 // pred_check_branch
          %165 = sbr.rel (%p163) target = $region24
        $region23: #{_lambda_.16} parent=19 // pred_region
          %s166 = sand.u32 %s40, 1
          %s167 = sand.u32 %s40, 1
          %s168 = smul.addr %s167, 32
          %s169 = scalar_lea.vmem [#allocation3], %s168
          %s170 = smul.u32 8, %s16
          %s171 = smul.addr %s170, 5
          %s172 = sadd.s32 %s18, %s171
          %s173 = smul.addr %s172, 4
          %s174 = scalar_lea.vmem %s0, %s173
          // Predicated region
          $region25: #{_lambda_.16} parent=23 // pred_check
            _
          $region26: #{_lambda_.16} parent=23 // pred_check_branch
            %176 = sbr.rel (0) target = $region28
          $region27: #{_lambda_.16} parent=23 // pred_region
            // Predicated region
            $region29: #{_lambda_.16} parent=27 // pred_check
              _
            $region30: #{_lambda_.16} parent=27 // pred_check_branch
              %178 = sbr.rel target = $region32
            $region31: #{_lambda_.16} parent=27 // pred_region
              // Predicated region
              $region44: #{_lambda_.16} parent=31 // pred_check
                _
              $region45: #{_lambda_.16} parent=31 // pred_check_branch
                %207 = sbr.rel (0) target = $region47
              $region46: #{_lambda_.16} parent=31 // pred_region
                loop: start=0, step=1, limit=1
                $region48: #{_lambda_.16} parent=46 // loop_pre_header
                  _
                $region49: #{_lambda_.16} parent=46 // loop_header
                  %s209 = sphi 0, %s213
                  %p210 = scmp.ge.s32.totalorder %s209, 1
                  %s214 = sphi %s174, %s174
                  %s215 = sphi %s169, %s169
                $region50: #{_lambda_.16} parent=46 // loop_header_branch
                  %212 = sbr.rel (%p210) target = $region54
                $region51: #{_lambda_.16} parent=46 // loop_body
                  _
                $region52: #{_lambda_.16} parent=46 // loop_footer
                  %s213 = sadd.s32 1, %s209
                $region53: #{_lambda_.16} parent=46 // loop_footer_branch
                  %208 = sbr.rel target = $region49
                $region54: #{_lambda_.16} parent=46 // loop_exit
                  _
                loop: start=0, step=1, limit=1
                $region55: #{_lambda_.16} parent=46 // loop_pre_header
                  _
                $region56: #{_lambda_.16} parent=46 // loop_header
                  %s218 = sphi 0, %s222
                  %p219 = scmp.ge.s32.totalorder %s218, 1
                  %s223 = sphi %s174, %s174
                  %s224 = sphi %s169, %s169
                $region57: #{_lambda_.16} parent=46 // loop_header_branch
                  %221 = sbr.rel (%p219) target = $region61
                $region58: #{_lambda_.16} parent=46 // loop_body
                  %v225 = vld [vmem:[%s223] sm:$0xf]
                  %226 = vst [vmem:[%s224] sm:$0xf] %v225
                  %v227 = vld [vmem:[%s223 + $0x14] sm:$0xf]
                  %228 = vst [vmem:[%s224 + $0x4] sm:$0xf] %v227
                  %v229 = vld [vmem:[%s223 + $0x28] sm:$0xf]
                  %230 = vst [vmem:[%s224 + $0x8] sm:$0xf] %v229
                  %v231 = vld [vmem:[%s223 + $0x3c] sm:$0xf]
                  %232 = vst [vmem:[%s224 + $0xc] sm:$0xf] %v231
                  %v233 = vld [vmem:[%s223 + $0x50] sm:$0xf]
                  %234 = vst [vmem:[%s224 + $0x10] sm:$0xf] %v233
                  %v235 = vld [vmem:[%s223 + $0x64] sm:$0xf]
                  %236 = vst [vmem:[%s224 + $0x14] sm:$0xf] %v235
                  %v237 = vld [vmem:[%s223 + $0x78] sm:$0xf]
                  %238 = vst [vmem:[%s224 + $0x18] sm:$0xf] %v237
                  %v239 = vld [vmem:[%s223 + $0x8c] sm:$0xf]
                  %240 = vst [vmem:[%s224 + $0x1c] sm:$0xf] %v239
                $region59: #{_lambda_.16} parent=46 // loop_footer
                  %s222 = sadd.s32 1, %s218
                $region60: #{_lambda_.16} parent=46 // loop_footer_branch
                  %217 = sbr.rel target = $region56
                $region61: #{_lambda_.16} parent=46 // loop_exit
                  _
              $region47: #{_lambda_.16} parent=31 // pred_fallthru
                _
            $region32: #{_lambda_.16} parent=27 // pred_fallthru
              _
            // Predicated region
            $region33: #{_lambda_.16} parent=27 // pred_check
              _
            $region34: #{_lambda_.16} parent=27 // pred_check_branch
              %180 = sbr.rel (0) target = $region36
            $region35: #{_lambda_.16} parent=27 // pred_region
              loop: start=0, step=1, limit=1
              $region37: #{_lambda_.16} parent=35 // loop_pre_header
                _
              $region38: #{_lambda_.16} parent=35 // loop_header
                %s183 = sphi 0, %s187
                %p184 = scmp.ge.s32.totalorder %s183, 1
                %s188 = sphi %s174, %s174
                %s189 = sphi %s169, %s169
              $region39: #{_lambda_.16} parent=35 // loop_header_branch
                %186 = sbr.rel (%p184) target = $region43
              $region40: #{_lambda_.16} parent=35 // loop_body
                %v190 = vld [vmem:[%s188] sm:$0xf]
                %191 = vst [vmem:[%s189] sm:$0xf] %v190
                %v192 = vld [vmem:[%s188 + $0x14] sm:$0xf]
                %193 = vst [vmem:[%s189 + $0x4] sm:$0xf] %v192
                %v194 = vld [vmem:[%s188 + $0x28] sm:$0xf]
                %195 = vst [vmem:[%s189 + $0x8] sm:$0xf] %v194
                %v196 = vld [vmem:[%s188 + $0x3c] sm:$0xf]
                %197 = vst [vmem:[%s189 + $0xc] sm:$0xf] %v196
                %v198 = vld [vmem:[%s188 + $0x50] sm:$0xf]
                %199 = vst [vmem:[%s189 + $0x10] sm:$0xf] %v198
                %v200 = vld [vmem:[%s188 + $0x64] sm:$0xf]
                %201 = vst [vmem:[%s189 + $0x14] sm:$0xf] %v200
                %v202 = vld [vmem:[%s188 + $0x78] sm:$0xf]
                %203 = vst [vmem:[%s189 + $0x18] sm:$0xf] %v202
                %v204 = vld [vmem:[%s188 + $0x8c] sm:$0xf]
                %205 = vst [vmem:[%s189 + $0x1c] sm:$0xf] %v204
              $region41: #{_lambda_.16} parent=35 // loop_footer
                %s187 = sadd.s32 1, %s183
              $region42: #{_lambda_.16} parent=35 // loop_footer_branch
                %182 = sbr.rel target = $region38
              $region43: #{_lambda_.16} parent=35 // loop_exit
                _
            $region36: #{_lambda_.16} parent=27 // pred_fallthru
              _
          $region28: #{_lambda_.16} parent=23 // pred_fallthru
            _
          %241 = vnop
        $region24: #{_lambda_.16} parent=19 // pred_fallthru
          _
        // Predicated region
        $region62: #{_lambda_.16} parent=19 // pred_check
          %p242 = pneg %p78
        $region63: #{_lambda_.16} parent=19 // pred_check_branch
          %244 = sbr.rel (%p242) target = $region65
        $region64: #{_lambda_.16} parent=19 // pred_region
          %s245 = smul.u32 16, %s18
          %p246 = scmp.lt.s32.totalorder %s245, 79
          %s247 = scalar_select %p246, %s245, 79
          %p248 = scmp.lt.s32.totalorder %s17, 0
          %s249 = scalar_select %p248, %s17, 0
          %s250 = sadd.s32 %s249, %s247
          %s251 = smul.addr %s250, 4
          %s252 = scalar_lea.vmem %s1, %s251
          %s253 = smul.u32 16, %s18
        $region65: #{_lambda_.16} parent=19 // pred_fallthru
          _
      $region20: #{_lambda_.16} parent=5 // pred_fallthru
        _
      %p254 = scmp.le.s32.totalorder 1, %s9
      %p255 = scmp.lt.s32.totalorder %s9, 6
      %p256 = pnand %p254, %p255
      %p257 = pneg %p256
      // Predicated region
      $region66: #{_lambda_.16} parent=5 // pred_check
        _
      $region67: #{_lambda_.16} parent=5 // pred_check_branch
        %259 = sbr.rel (%p256) target = $region69
      $region68: #{_lambda_.16} parent=5 // pred_region
        %s260 = ssub.s32 %s9, 1
        %s261 = sand.u32 %s43, 1
        %s262 = sand.u32 %s43, 1
        %s263 = smul.addr %s262, 32
        %s264 = scalar_lea.vmem [#allocation3], %s263
        // Predicated region
        $region70: #{_lambda_.16} parent=68 // pred_check
          %p265 = pneg %p56
        $region71: #{_lambda_.16} parent=68 // pred_check_branch
          %267 = sbr.rel (%p265) target = $region73
        $region72: #{_lambda_.16} parent=68 // pred_region
          _
        $region73: #{_lambda_.16} parent=68 // pred_fallthru
          _
        %s268 = sand.u32 %s43, 1
        %s269 = sand.u32 %s43, 1
        %s270 = smul.addr %s269, 32
        %s271 = scalar_lea.vmem [#allocation3], %s270
        %p272 = pneg %p56
        %p273 = pneg %p53
        %s274 = smul.u32 16, %s21
        %p275 = scmp.lt.s32.totalorder %s274, 79
        %s276 = scalar_select %p275, %s274, 79
        %p277 = scmp.lt.s32.totalorder %s20, 0
        %s278 = scalar_select %p277, %s20, 0
        %s279 = sadd.s32 %s278, %s276
        %s280 = smul.addr %s279, 4
        %s281 = scalar_lea.vmem %s1, %s280
        %p282 = pneg %p84
        %p283 = pneg %p81
        %p284 = scmp.lt.s32.totalorder %s20, 0
        %s285 = scalar_select %p284, %s20, 0
        %s286 = scalar_lea.vmem %s2, %s285
        %p287 = pneg %p110
        %p288 = pneg %p107
        %p289 = pneg %p138
        %p290 = pneg %p135
        %s291 = smul.u32 8, %s19
        %p292 = scmp.lt.s32.totalorder %s291, 7
        %s293 = scalar_select %p292, %s291, 7
        %p294 = scmp.lt.s32.totalorder %s20, 0
        %s295 = scalar_select %p294, %s20, 0
        %s296 = sadd.s32 %s295, %s293
        %s297 = smul.addr %s296, 8
        %s298 = scalar_lea.vmem %s3, %s297
        %s299 = smul.u32 8, %s19
        %s300 = smul.u32 16, %s21
        %p301 = scmp.lt.s32.totalorder %s300, 79
        %s302 = scalar_select %p301, %s300, 79
        %p303 = scmp.lt.s32.totalorder %s20, 0
        %s304 = scalar_select %p303, %s20, 0
        %s305 = sadd.s32 %s304, %s302
        %s306 = smul.addr %s305, 4
        %s307 = scalar_lea.vmem %s1, %s306
        %s308 = smul.u32 16, %s21
        %p309 = scmp.lt.s32.totalorder %s20, 0
        %s310 = scalar_select %p309, %s20, 0
        %s311 = scalar_lea.vmem %s2, %s310
        %s312 = smul.u32 8, %s19
        %p313 = scmp.lt.s32.totalorder %s312, 7
        %s314 = scalar_select %p313, %s312, 7
        %p315 = scmp.lt.s32.totalorder %s20, 0
        %s316 = scalar_select %p315, %s20, 0
        %s317 = sadd.s32 %s316, %s314
        %s318 = smul.addr %s317, 8
        %s319 = scalar_lea.vmem %s3, %s318
        %s320 = smul.u32 8, %s19
        %p322 = scmp.eq.s32.totalorder %s21, 0
        // Predicated region
        $region74: #{_lambda_.16} parent=68 // pred_check
          %p323 = pneg %p322
        $region75: #{_lambda_.16} parent=68 // pred_check_branch
          %325 = sbr.rel (%p323) target = $region77
        $region76: #{_lambda_.16} parent=68 // pred_region
          %326 = vst [vmem:[#allocation2] sm:$0xff] 0.0
          %327 = vst [vmem:[#allocation2 + $0x8] sm:$0xff] 0.0
          %328 = vst [vmem:[#allocation2 + $0x10] sm:$0xff] 0.0
          %329 = vst [vmem:[#allocation2 + $0x18] sm:$0xff] 0.0
          %330 = vst [vmem:[#allocation2 + $0x20] sm:$0xff] 0.0
          %331 = vst [vmem:[#allocation2 + $0x28] sm:$0xff] 0.0
          %332 = vst [vmem:[#allocation2 + $0x30] sm:$0xff] 0.0
          %333 = vst [vmem:[#allocation2 + $0x38] sm:$0xff] 0.0
        $region77: #{_lambda_.16} parent=68 // pred_fallthru
          _
        %v334 = vld [vmem:[#allocation2] sm:$0xff]
        %v335 = vld [vmem:[#allocation2 + $0x8] sm:$0xff]
        %v336 = vld [vmem:[#allocation2 + $0x10] sm:$0xff]
        %v337 = vld [vmem:[#allocation2 + $0x18] sm:$0xff]
        %v338 = vld [vmem:[#allocation2 + $0x20] sm:$0xff]
        %v339 = vld [vmem:[#allocation2 + $0x28] sm:$0xff]
        %v340 = vld [vmem:[#allocation2 + $0x30] sm:$0xff]
        %v341 = vld [vmem:[#allocation2 + $0x38] sm:$0xff]
        %v342 = vld [vmem:[%s264] sm:$0xf]
        %v343 = vld [vmem:[%s264 + $0x4] sm:$0xf]
        %v344 = vld [vmem:[%s264 + $0x8] sm:$0xf]
        %v345 = vld [vmem:[%s264 + $0xc] sm:$0xf]
        %v346 = vld [vmem:[%s264 + $0x10] sm:$0xf]
        %v347 = vld [vmem:[%s264 + $0x14] sm:$0xf]
        %v348 = vld [vmem:[%s264 + $0x18] sm:$0xf]
        %v349 = vld [vmem:[%s264 + $0x1c] sm:$0xf]
        %v350 = vld [vmem:[%s307] sm:$0xf]
        %v351 = vld [vmem:[%s307 + $0x4] sm:$0xf]
        %v352 = vld [vmem:[%s307 + $0x8] sm:$0xf]
        %v353 = vld [vmem:[%s307 + $0xc] sm:$0xf]
        %v354 = vld [vmem:[%s307 + $0x10] sm:$0xf]
        %v355 = vld [vmem:[%s307 + $0x14] sm:$0xf]
        %v356 = vld [vmem:[%s307 + $0x18] sm:$0xf]
        %v357 = vld [vmem:[%s307 + $0x1c] sm:$0xf]
        %v358 = vld [vmem:[%s307 + $0x20] sm:$0xf]
        %v359 = vld [vmem:[%s307 + $0x24] sm:$0xf]
        %v360 = vld [vmem:[%s307 + $0x28] sm:$0xf]
        %v361 = vld [vmem:[%s307 + $0x2c] sm:$0xf]
        %v362 = vld [vmem:[%s307 + $0x30] sm:$0xf]
        %v363 = vld [vmem:[%s307 + $0x34] sm:$0xf]
        %v364 = vld [vmem:[%s307 + $0x38] sm:$0xf]
        %v365 = vld [vmem:[%s307 + $0x3c] sm:$0xf]
        %v374 = vunpack.c.l.b16 %v342
        %v375 = vunpack.c.l.b16 %v343
        %v376 = vunpack.c.l.b16 %v344
        %v377 = vunpack.c.l.b16 %v345
        %v378 = vunpack.c.l.b16 %v346
        %v379 = vunpack.c.l.b16 %v347
        %v380 = vunpack.c.l.b16 %v348
        %v381 = vunpack.c.l.b16 %v349
        %v382 = vpack.c.b16 %v375, %v374
        %v383 = vpack.c.b16 %v377, %v376
        %v384 = vpack.c.b16 %v379, %v378
        %v385 = vpack.c.b16 %v381, %v380
        %v406 = vunpack.c.l.b16 %v350
        %v407 = vunpack.c.l.b16 %v351
        %v408 = vunpack.c.l.b16 %v352
        %v409 = vunpack.c.l.b16 %v353
        %v410 = vunpack.c.l.b16 %v354
        %v411 = vunpack.c.l.b16 %v355
        %v412 = vunpack.c.l.b16 %v356
        %v413 = vunpack.c.l.b16 %v357
        %v414 = vunpack.c.l.b16 %v358
        %v415 = vunpack.c.l.b16 %v359
        %v416 = vunpack.c.l.b16 %v360
        %v417 = vunpack.c.l.b16 %v361
        %v418 = vunpack.c.l.b16 %v362
        %v419 = vunpack.c.l.b16 %v363
        %v420 = vunpack.c.l.b16 %v364
        %v421 = vunpack.c.l.b16 %v365
        %v422 = vpack.c.b16 %v407, %v406
        %v423 = vpack.c.b16 %v409, %v408
        %v424 = vpack.c.b16 %v411, %v410
        %v425 = vpack.c.b16 %v413, %v412
        %v426 = vpack.c.b16 %v415, %v414
        %v427 = vpack.c.b16 %v417, %v416
        %v428 = vpack.c.b16 %v419, %v418
        %v429 = vpack.c.b16 %v421, %v420
        %438 = vmatprep.subr.bf16.mxu0 0
        %439 = vmatpush1.bf16.msra.mxu0 %v422
        %440 = vmatprep.subr.bf16.mxu0 0
        %441 = vmatpush1.bf16.msra.mxu0 %v423
        %442 = vmatprep.subr.bf16.mxu0 0
        %443 = vmatpush1.bf16.msra.mxu0 %v424
        %444 = vmatprep.subr.bf16.mxu0 0
        %445 = vmatpush1.bf16.msra.mxu0 %v425
        %446 = vmatprep.subr.bf16.mxu0 0
        %447 = vmatpush1.bf16.msra.mxu0 %v426
        %448 = vmatprep.subr.bf16.mxu0 0
        %449 = vmatpush1.bf16.msra.mxu0 %v427
        %450 = vmatprep.subr.bf16.mxu0 0
        %451 = vmatpush1.bf16.msra.mxu0 %v428
        %452 = vmatprep.subr.bf16.mxu0 0
        %453 = vmatpush1.bf16.msra.mxu0 %v429
        %454 = vmatprep.subr.bf16.mxu0 0
        %455 = vmatpush1.bf16.msra.mxu0 0
        %456 = vmatprep.subr.bf16.mxu0 0
        %457 = vmatpush1.bf16.msra.mxu0 0
        %458 = vmatprep.subr.bf16.mxu0 0
        %459 = vmatpush1.bf16.msra.mxu0 0
        %460 = vmatprep.subr.bf16.mxu0 0
        %461 = vmatpush1.bf16.msra.mxu0 0
        %462 = vmatprep.subr.bf16.mxu0 0
        %463 = vmatpush1.bf16.msra.mxu0 0
        %464 = vmatprep.subr.bf16.mxu0 0
        %465 = vmatpush1.bf16.msra.mxu0 0
        %466 = vmatprep.subr.bf16.mxu0 0
        %467 = vmatpush1.bf16.msra.mxu0 0
        %468 = vmatprep.subr.bf16.mxu0 0
        %469 = vmatpush1.bf16.msra.mxu0 0
        %470 = vmatprep.mubr.bf16.mxu0 0
        %471 = vmatmul.mubr.bf16.gmra.mrb[0].mxu0 %v382
        %v472 = vpop.f32.mrb[0].mxu0
        %v473 = vadd.f32 0.0, %v472
        %v474 = vpop.f32.mrb[0].mxu0
        %v475 = vpop.f32.mrb[0].mxu0
        %v476 = vadd.f32 0.0, %v475
        %v477 = vpop.f32.mrb[0].mxu0
        %478 = vmatprep.mubr.bf16.mxu0 0
        %479 = vmatmul.mubr.bf16.gmra.mrb[0].mxu0 %v383
        %v480 = vpop.f32.mrb[0].mxu0
        %v481 = vadd.f32 0.0, %v480
        %v482 = vpop.f32.mrb[0].mxu0
        %v483 = vpop.f32.mrb[0].mxu0
        %v484 = vadd.f32 0.0, %v483
        %v485 = vpop.f32.mrb[0].mxu0
        %486 = vmatprep.mubr.bf16.mxu0 0
        %487 = vmatmul.mubr.bf16.gmra.mrb[0].mxu0 %v384
        %v488 = vpop.f32.mrb[0].mxu0
        %v489 = vadd.f32 0.0, %v488
        %v490 = vpop.f32.mrb[0].mxu0
        %v491 = vpop.f32.mrb[0].mxu0
        %v492 = vadd.f32 0.0, %v491
        %v493 = vpop.f32.mrb[0].mxu0
        %494 = vmatprep.mubr.bf16.mxu0 0
        %495 = vmatmul.mubr.bf16.gmra.mrb[0].mxu0 %v385
        %v496 = vpop.f32.mrb[0].mxu0
        %v497 = vadd.f32 0.0, %v496
        %v498 = vpop.f32.mrb[0].mxu0
        %v499 = vpop.f32.mrb[0].mxu0
        %v500 = vadd.f32 0.0, %v499
        %v501 = vpop.f32.mrb[0].mxu0
        %502 = vdwg.mxu0
        %v503 = vadd.f32 %v334, %v473
        %v504 = vadd.f32 %v335, %v476
        %v505 = vadd.f32 %v336, %v481
        %v506 = vadd.f32 %v337, %v484
        %v507 = vadd.f32 %v338, %v489
        %v508 = vadd.f32 %v339, %v492
        %v509 = vadd.f32 %v340, %v497
        %v510 = vadd.f32 %v341, %v500
        %511 = vst [vmem:[#allocation2] sm:$0xff] %v503
        %512 = vst [vmem:[#allocation2 + $0x8] sm:$0xff] %v504
        %513 = vst [vmem:[#allocation2 + $0x10] sm:$0xff] %v505
        %514 = vst [vmem:[#allocation2 + $0x18] sm:$0xff] %v506
        %515 = vst [vmem:[#allocation2 + $0x20] sm:$0xff] %v507
        %516 = vst [vmem:[#allocation2 + $0x28] sm:$0xff] %v508
        %517 = vst [vmem:[#allocation2 + $0x30] sm:$0xff] %v509
        %518 = vst [vmem:[#allocation2 + $0x38] sm:$0xff] %v510
        %p519 = scmp.eq.s32.totalorder %s21, 4
        // Predicated region
        $region78: #{_lambda_.16} parent=68 // pred_check
          %p520 = pneg %p519
        $region79: #{_lambda_.16} parent=68 // pred_check_branch
          %522 = sbr.rel (%p520) target = $region81
        $region80: #{_lambda_.16} parent=68 // pred_region
          %v523 = vld [vmem:[#allocation2] sm:$0xff]
          %v524 = vld [vmem:[#allocation2 + $0x8] sm:$0xff]
          %v525 = vld [vmem:[#allocation2 + $0x10] sm:$0xff]
          %v526 = vld [vmem:[#allocation2 + $0x18] sm:$0xff]
          %v527 = vld [vmem:[#allocation2 + $0x20] sm:$0xff]
          %v528 = vld [vmem:[#allocation2 + $0x28] sm:$0xff]
          %v529 = vld [vmem:[#allocation2 + $0x30] sm:$0xff]
          %v530 = vld [vmem:[#allocation2 + $0x38] sm:$0xff]
          %v531 = vld [vmem:[%s311] sm:$0x1]
          %v533 = vlaneseq
          %v534 = vshrl.u32 %v533, 7
          %v535 = vsub.s32 0, %v534
          %v536 = vrot.slane %v531, %v535
          %v538 = vadd.f32 %v523, %v536
          %v539 = vadd.f32 %v524, %v536
          %v540 = vadd.f32 %v525, %v536
          %v541 = vadd.f32 %v526, %v536
          %v542 = vadd.f32 %v527, %v536
          %v543 = vadd.f32 %v528, %v536
          %v544 = vadd.f32 %v529, %v536
          %v545 = vadd.f32 %v530, %v536
          %v546 = vmax.f32 %v538, 0.0
          %v547 = vmax.f32 %v539, 0.0
          %v548 = vmax.f32 %v540, 0.0
          %v549 = vmax.f32 %v541, 0.0
          %v550 = vmax.f32 %v542, 0.0
          %v551 = vmax.f32 %v543, 0.0
          %v552 = vmax.f32 %v544, 0.0
          %v553 = vmax.f32 %v545, 0.0
          %554 = vst [vmem:[%s319] sm:$0xff] %v546
          %555 = vst [vmem:[%s319 + $0x8] sm:$0xff] %v547
          %556 = vst [vmem:[%s319 + $0x10] sm:$0xff] %v548
          %557 = vst [vmem:[%s319 + $0x18] sm:$0xff] %v549
          %558 = vst [vmem:[%s319 + $0x20] sm:$0xff] %v550
          %559 = vst [vmem:[%s319 + $0x28] sm:$0xff] %v551
          %560 = vst [vmem:[%s319 + $0x30] sm:$0xff] %v552
          %561 = vst [vmem:[%s319 + $0x38] sm:$0xff] %v553
        $region81: #{_lambda_.16} parent=68 // pred_fallthru
          _
        %s562 = smul.u32 8, %s19
        %p563 = scmp.lt.s32.totalorder %s562, 7
        %s564 = scalar_select %p563, %s562, 7
        %p565 = scmp.lt.s32.totalorder %s20, 0
        %s566 = scalar_select %p565, %s20, 0
        %s567 = sadd.s32 %s566, %s564
        %s568 = smul.addr %s567, 8
        %s569 = scalar_lea.vmem %s3, %s568
        // Predicated region
        $region82: #{_lambda_.16} parent=68 // pred_check
          %p570 = pneg %p135
        $region83: #{_lambda_.16} parent=68 // pred_check_branch
          %572 = sbr.rel (%p570) target = $region85
        $region84: #{_lambda_.16} parent=68 // pred_region
          %s573 = smul.u32 8, %s19
        $region85: #{_lambda_.16} parent=68 // pred_fallthru
          _
        // Predicated region
        $region86: #{_lambda_.16} parent=68 // pred_check
          %p574 = pneg %p135
        $region87: #{_lambda_.16} parent=68 // pred_check_branch
          %576 = sbr.rel (%p574) target = $region89
        $region88: #{_lambda_.16} parent=68 // pred_region
          %s577 = smul.u32 8, %s19
          %p578 = scmp.lt.s32.totalorder %s577, 7
          %s579 = scalar_select %p578, %s577, 7
          %p580 = scmp.lt.s32.totalorder %s20, 0
          %s581 = scalar_select %p580, %s20, 0
          %s582 = sadd.s32 %s581, %s579
          %s583 = smul.addr %s582, 8
          %s584 = scalar_lea.vmem %s3, %s583
        $region89: #{_lambda_.16} parent=68 // pred_fallthru
          _
      $region69: #{_lambda_.16} parent=5 // pred_fallthru
        _
      %p585 = scmp.le.s32.totalorder 2, %s9
      // Predicated region
      $region90: #{_lambda_.16} parent=5 // pred_check
        %p586 = pneg %p585
      $region91: #{_lambda_.16} parent=5 // pred_check_branch
        %588 = sbr.rel (%p586) target = $region93
      $region92: #{_lambda_.16} parent=5 // pred_region
        %s589 = ssub.s32 %s9, 2
      $region93: #{_lambda_.16} parent=5 // pred_fallthru
        _
    $region6: #{_lambda_.16} parent=1 // loop_footer
      %s13 = sadd.s32 1, %s9
    $region7: #{_lambda_.16} parent=1 // loop_footer_branch
      %8 = sbr.rel target = $region3
    $region8: #{_lambda_.16} parent=1 // loop_exit
      _

// kernel: _lambda_.18
$region0: #{_lambda_.18}
  #allocation0 [shape = 'u32[]', space=smem, size = 0x4, offset = 0x4, fixed_abs, tag = 'smem constant byte address 0x4 - core index']
  #allocation1 [shape = 'u32[144,128]{1,0:T(1,128)}', space=vmem, size = 0x12000, scoped, tag = 'internal scratch']
  %s0 = inlined_call_operand.vmem [shape: f32[64,256], index: 0, kind: input, shape index: {}]
  %s1 = inlined_call_operand.vmem [shape: f32[1,256], index: 1, kind: input, shape index: {}]
  %s2 = inlined_call_operand.vmem [shape: f32[1,256], index: 2, kind: input, shape index: {}]
  %s3 = inlined_call_operand.vmem [shape: f32[64,256], index: 3, kind: output, shape index: {}]
  %s4 = sld [smem:[#allocation0]]
  $region22: #{_lambda_.18} parent=0
    _
  %s6 = ssub.s32 1, %s4
  %s7 = scalar_select 0, %s6, %s4
  // Predicated region
  $region2: #{_lambda_.18} parent=0 // pred_check
    _
  $region3: #{_lambda_.18} parent=0 // pred_check_branch
    %9 = sbr.rel (0) target = $region5
  $region4: #{_lambda_.18} parent=0 // pred_region
    _
  $region5: #{_lambda_.18} parent=0 // pred_fallthru
    _
  // Predicated region
  $region6: #{_lambda_.18} parent=0 // pred_check
    _
  $region7: #{_lambda_.18} parent=0 // pred_check_branch
    %11 = sbr.rel (0) target = $region9
  $region8: #{_lambda_.18} parent=0 // pred_region
    _
  $region9: #{_lambda_.18} parent=0 // pred_fallthru
    _
  // Predicated region
  $region10: #{_lambda_.18} parent=0 // pred_check
    _
  $region11: #{_lambda_.18} parent=0 // pred_check_branch
    %13 = sbr.rel (0) target = $region13
  $region12: #{_lambda_.18} parent=0 // pred_region
    _
  $region13: #{_lambda_.18} parent=0 // pred_fallthru
    _
  %v14 = vld [vmem:[%s0] sm:$0xff]
  %v15 = vld [vmem:[%s0 + $0x8] sm:$0xff]
  %v16 = vld [vmem:[%s0 + $0x10] sm:$0xff]
  %v17 = vld [vmem:[%s0 + $0x18] sm:$0xff]
  %v18 = vld [vmem:[%s0 + $0x20] sm:$0xff]
  %v19 = vld [vmem:[%s0 + $0x28] sm:$0xff]
  %v20 = vld [vmem:[%s0 + $0x30] sm:$0xff]
  %v21 = vld [vmem:[%s0 + $0x38] sm:$0xff]
  %v22 = vld [vmem:[%s0 + $0x40] sm:$0xff]
  %v23 = vld [vmem:[%s0 + $0x48] sm:$0xff]
  %v24 = vld [vmem:[%s0 + $0x50] sm:$0xff]
  %v25 = vld [vmem:[%s0 + $0x58] sm:$0xff]
  %v26 = vld [vmem:[%s0 + $0x60] sm:$0xff]
  %v27 = vld [vmem:[%s0 + $0x68] sm:$0xff]
  %v28 = vld [vmem:[%s0 + $0x70] sm:$0xff]
  %v29 = vld [vmem:[%s0 + $0x78] sm:$0xff]
  %v30 = vld [vmem:[%s1] sm:$0x3]
  %v32 = vlaneseq
  %v33 = vshrl.u32 %v32, 7
  %v34 = vsub.s32 0, %v33
  %v35 = vrot.slane %v30, %v34
  %v36 = vlaneseq
  %v37 = vshrl.u32 %v36, 7
  %v38 = vsub.s32 1, %v37
  %v39 = vrot.slane %v30, %v38
  %v42 = vmul.f32 %v14, %v35
  %v43 = vmul.f32 %v15, %v39
  %v44 = vmul.f32 %v16, %v35
  %v45 = vmul.f32 %v17, %v39
  %v46 = vmul.f32 %v18, %v35
  %v47 = vmul.f32 %v19, %v39
  %v48 = vmul.f32 %v20, %v35
  %v49 = vmul.f32 %v21, %v39
  %v50 = vmul.f32 %v22, %v35
  %v51 = vmul.f32 %v23, %v39
  %v52 = vmul.f32 %v24, %v35
  %v53 = vmul.f32 %v25, %v39
  %v54 = vmul.f32 %v26, %v35
  %v55 = vmul.f32 %v27, %v39
  %v56 = vmul.f32 %v28, %v35
  %v57 = vmul.f32 %v29, %v39
  %v58 = vld [vmem:[%s2] sm:$0x3]
  %v60 = vlaneseq
  %v61 = vshrl.u32 %v60, 7
  %v62 = vsub.s32 0, %v61
  %v63 = vrot.slane %v58, %v62
  %v64 = vlaneseq
  %v65 = vshrl.u32 %v64, 7
  %v66 = vsub.s32 1, %v65
  %v67 = vrot.slane %v58, %v66
  %v70 = vadd.f32 %v42, %v63
  %v71 = vadd.f32 %v43, %v67
  %v72 = vadd.f32 %v44, %v63
  %v73 = vadd.f32 %v45, %v67
  %v74 = vadd.f32 %v46, %v63
  %v75 = vadd.f32 %v47, %v67
  %v76 = vadd.f32 %v48, %v63
  %v77 = vadd.f32 %v49, %v67
  %v78 = vadd.f32 %v50, %v63
  %v79 = vadd.f32 %v51, %v67
  %v80 = vadd.f32 %v52, %v63
  %v81 = vadd.f32 %v53, %v67
  %v82 = vadd.f32 %v54, %v63
  %v83 = vadd.f32 %v55, %v67
  %v84 = vadd.f32 %v56, %v63
  %v85 = vadd.f32 %v57, %v67
  %v86 = vmax.f32 %v70, 0.0
  %v87 = vmax.f32 %v71, 0.0
  %v88 = vmax.f32 %v72, 0.0
  %v89 = vmax.f32 %v73, 0.0
  %v90 = vmax.f32 %v74, 0.0
  %v91 = vmax.f32 %v75, 0.0
  %v92 = vmax.f32 %v76, 0.0
  %v93 = vmax.f32 %v77, 0.0
  %v94 = vmax.f32 %v78, 0.0
  %v95 = vmax.f32 %v79, 0.0
  %v96 = vmax.f32 %v80, 0.0
  %v97 = vmax.f32 %v81, 0.0
  %v98 = vmax.f32 %v82, 0.0
  %v99 = vmax.f32 %v83, 0.0
  %v100 = vmax.f32 %v84, 0.0
  %v101 = vmax.f32 %v85, 0.0
  %102 = vst [vmem:[%s3] sm:$0xff] %v86
  %103 = vst [vmem:[%s3 + $0x8] sm:$0xff] %v87
  %104 = vst [vmem:[%s3 + $0x10] sm:$0xff] %v88
  %105 = vst [vmem:[%s3 + $0x18] sm:$0xff] %v89
  %106 = vst [vmem:[%s3 + $0x20] sm:$0xff] %v90
  %107 = vst [vmem:[%s3 + $0x28] sm:$0xff] %v91
  %108 = vst [vmem:[%s3 + $0x30] sm:$0xff] %v92
  %109 = vst [vmem:[%s3 + $0x38] sm:$0xff] %v93
  %110 = vst [vmem:[%s3 + $0x40] sm:$0xff] %v94
  %111 = vst [vmem:[%s3 + $0x48] sm:$0xff] %v95
  %112 = vst [vmem:[%s3 + $0x50] sm:$0xff] %v96
  %113 = vst [vmem:[%s3 + $0x58] sm:$0xff] %v97
  %114 = vst [vmem:[%s3 + $0x60] sm:$0xff] %v98
  %115 = vst [vmem:[%s3 + $0x68] sm:$0xff] %v99
  %116 = vst [vmem:[%s3 + $0x70] sm:$0xff] %v100
  %117 = vst [vmem:[%s3 + $0x78] sm:$0xff] %v101
  // Predicated region
  $region14: #{_lambda_.18} parent=0 // pred_check
    _
  $region15: #{_lambda_.18} parent=0 // pred_check_branch
    %119 = sbr.rel (0) target = $region17
  $region16: #{_lambda_.18} parent=0 // pred_region
    _
  $region17: #{_lambda_.18} parent=0 // pred_fallthru
    _
  // Predicated region
  $region18: #{_lambda_.18} parent=0 // pred_check
    _
  $region19: #{_lambda_.18} parent=0 // pred_check_branch
    %121 = sbr.rel (0) target = $region21
  $region20: #{_lambda_.18} parent=0 // pred_region
    _
  $region21: #{_lambda_.18} parent=0 // pred_fallthru
    _

// kernel: _lambda_.17
$region0: #{_lambda_.17}
  #allocation0 [shape = 'u32[]', space=smem, size = 0x4, offset = 0x4, fixed_abs, tag = 'smem constant byte address 0x4 - core index']
  #allocation1 [shape = 'u32[144,128]{1,0:T(1,128)}', space=vmem, size = 0x12000, scoped, tag = 'internal scratch']
  #allocation2 [shape = 'f32[64,256]{1,0:T(8,128)}', space=vmem, size = 0x10000, scoped, tag = 'scratch operand']
  %s0 = inlined_call_operand.vmem [shape: bf16[64,1152], index: 0, kind: input, shape index: {}]
  %s1 = inlined_call_operand.vmem [shape: bf16[1152,256], index: 1, kind: input, shape index: {}]
  %s2 = inlined_call_operand.vmem [shape: f32[64,256], index: 2, kind: output, shape index: {0}]
  %s3 = inlined_call_operand.vmem [shape: f32[1,256], index: 3, kind: output, shape index: {1}]
  %s4 = inlined_call_operand.vmem [shape: f32[1,256], index: 4, kind: output, shape index: {2}]
  %5 = xla_tuple %s2, %s3, %s4
  %s6 = sld [smem:[#allocation0]]
  $region95: #{_lambda_.17} parent=0
    _
  %s8 = ssub.s32 1, %s6
  %s9 = scalar_select 0, %s8, %s6
  $region1: #{_lambda_.17} parent=0
    #allocation3 [shape = 'u8[98304]{0}', space=vmem, size = 0x18000, scoped, tag = 'input window, operand 0']
    loop: start=0, step=1, limit=5
    $region2: #{_lambda_.17} parent=1 // loop_pre_header
      _
    $region3: #{_lambda_.17} parent=1 // loop_header
      %s11 = sphi 0, %s15
      %p12 = scmp.ge.s32.totalorder %s11, 5
      %s18 = sphi 0, %s37
      %s19 = sphi 0, %s33
      %s20 = sphi 0, %s29
      %s21 = sphi 0, %s18
      %s22 = sphi 0, %s19
      %s23 = sphi 0, %s20
      %s24 = sphi 0, %s21
      %s25 = sphi 0, %s22
      %s26 = sphi 0, %s23
      %s42 = sphi 0, %s44
      %s45 = sphi 0, %s42
      %s46 = sphi 0, %s45
      %s62 = sphi 0, %s46
      %s70 = sphi 0, %s72
      %s73 = sphi 0, %s70
      %s74 = sphi 0, %s73
      %s90 = sphi 0, %s74
      %s98 = sphi 0, %s100
      %s101 = sphi 0, %s98
      %s102 = sphi 0, %s101
      %s118 = sphi 0, %s102
      %s124 = sphi 0, %s126
      %s127 = sphi 0, %s124
      %s128 = sphi 0, %s127
      %s144 = sphi 0, %s128
      %s150 = sphi 0, %s152
      %s153 = sphi 0, %s150
      %s154 = sphi 0, %s153
      %s170 = sphi 0, %s154
    $region4: #{_lambda_.17} parent=1 // loop_header_branch
      %14 = sbr.rel (%p12) target = $region8
    $region5: #{_lambda_.17} parent=1 // loop_body
      %s16 = ssub.s32 %s11, 1
      %s17 = ssub.s32 %s11, 2
      %s27 = sadd.s32 1, %s20
      %p28 = scmp.ge.s32.totalorder %s27, 3
      %s29 = scalar_select %p28, 0, %s27
      %s30 = sadd.s32 1, %s19
      %s31 = scalar_select %p28, %s30, %s19
      %p32 = scmp.ge.s32.totalorder %s31, 1
      %s33 = scalar_select %p32, 0, %s31
      %s34 = sadd.s32 1, %s18
      %s35 = scalar_select %p32, %s34, %s18
      %p36 = scmp.ge.s32.totalorder %s35, 1
      %s37 = scalar_select %p36, 0, %s35
      %s38 = ssub.s32 %s19, %s33
      %s39 = ssub.s32 %s20, %s29
      %s40 = sor.u32 %s38, %s39
      %p41 = scmp.eq.s32.totalorder %s40, 0
      %s43 = sadd.s32 %s42, 1
      %s44 = scalar_select %p41, %s42, %s43
      %p47 = pneg %p41
      %p48 = scmp.eq.s32.totalorder %s11, 2
      %p49 = por %p47, %p48
      %p50 = scmp.ne.s32.totalorder %s42, %s45
      %p51 = scmp.eq.s32.totalorder %s11, 0
      %p52 = por %p50, %p51
      %p53 = scmp.ne.s32.totalorder %s42, %s45
      %p54 = scmp.eq.s32.totalorder %s16, 2
      %p55 = por %p53, %p54
      %p56 = scmp.ne.s32.totalorder %s45, %s46
      %p57 = scmp.eq.s32.totalorder %s16, 0
      %p58 = por %p56, %p57
      %p59 = scmp.ne.s32.totalorder %s45, %s46
      %p60 = scmp.eq.s32.totalorder %s17, 2
      %p61 = por %p59, %p60
      %p63 = scmp.ne.s32.totalorder %s46, %s62
      %p64 = scmp.eq.s32.totalorder %s17, 0
      %p65 = por %p63, %p64
      %s66 = ssub.s32 %s20, %s29
      %s67 = ssub.s32 %s18, %s37
      %s68 = sor.u32 %s66, %s67
      %p69 = scmp.eq.s32.totalorder %s68, 0
      %s71 = sadd.s32 %s70, 1
      %s72 = scalar_select %p69, %s70, %s71
      %p75 = pneg %p69
      %p76 = scmp.eq.s32.totalorder %s11, 2
      %p77 = por %p75, %p76
      %p78 = scmp.ne.s32.totalorder %s70, %s73
      %p79 = scmp.eq.s32.totalorder %s11, 0
      %p80 = por %p78, %p79
      %p81 = scmp.ne.s32.totalorder %s70, %s73
      %p82 = scmp.eq.s32.totalorder %s16, 2
      %p83 = por %p81, %p82
      %p84 = scmp.ne.s32.totalorder %s73, %s74
      %p85 = scmp.eq.s32.totalorder %s16, 0
      %p86 = por %p84, %p85
      %p87 = scmp.ne.s32.totalorder %s73, %s74
      %p88 = scmp.eq.s32.totalorder %s17, 2
      %p89 = por %p87, %p88
      %p91 = scmp.ne.s32.totalorder %s74, %s90
      %p92 = scmp.eq.s32.totalorder %s17, 0
      %p93 = por %p91, %p92
      %s94 = ssub.s32 %s19, %s33
      %s95 = ssub.s32 %s18, %s37
      %s96 = sor.u32 %s94, %s95
      %p97 = scmp.eq.s32.totalorder %s96, 0
      %s99 = sadd.s32 %s98, 1
      %s100 = scalar_select %p97, %s98, %s99
      %p103 = pneg %p97
      %p104 = scmp.eq.s32.totalorder %s11, 2
      %p105 = por %p103, %p104
      %p106 = scmp.ne.s32.totalorder %s98, %s101
      %p107 = scmp.eq.s32.totalorder %s11, 0
      %p108 = por %p106, %p107
      %p109 = scmp.ne.s32.totalorder %s98, %s101
      %p110 = scmp.eq.s32.totalorder %s16, 2
      %p111 = por %p109, %p110
      %p112 = scmp.ne.s32.totalorder %s101, %s102
      %p113 = scmp.eq.s32.totalorder %s16, 0
      %p114 = por %p112, %p113
      %p115 = scmp.ne.s32.totalorder %s101, %s102
      %p116 = scmp.eq.s32.totalorder %s17, 2
      %p117 = por %p115, %p116
      %p119 = scmp.ne.s32.totalorder %s102, %s118
      %p120 = scmp.eq.s32.totalorder %s17, 0
      %p121 = por %p119, %p120
      %s122 = ssub.s32 %s18, %s37
      %p123 = scmp.eq.s32.totalorder %s122, 0
      %s125 = sadd.s32 %s124, 1
      %s126 = scalar_select %p123, %s124, %s125
      %p129 = pneg %p123
      %p130 = scmp.eq.s32.totalorder %s11, 2
      %p131 = por %p129, %p130
      %p132 = scmp.ne.s32.totalorder %s124, %s127
      %p133 = scmp.eq.s32.totalorder %s11, 0
      %p134 = por %p132, %p133
      %p135 = scmp.ne.s32.totalorder %s124, %s127
      %p136 = scmp.eq.s32.totalorder %s16, 2
      %p137 = por %p135, %p136
      %p138 = scmp.ne.s32.totalorder %s127, %s128
      %p139 = scmp.eq.s32.totalorder %s16, 0
      %p140 = por %p138, %p139
      %p141 = scmp.ne.s32.totalorder %s127, %s128
      %p142 = scmp.eq.s32.totalorder %s17, 2
      %p143 = por %p141, %p142
      %p145 = scmp.ne.s32.totalorder %s128, %s144
      %p146 = scmp.eq.s32.totalorder %s17, 0
      %p147 = por %p145, %p146
      %s148 = ssub.s32 %s18, %s37
      %p149 = scmp.eq.s32.totalorder %s148, 0
      %s151 = sadd.s32 %s150, 1
      %s152 = scalar_select %p149, %s150, %s151
      %p155 = pneg %p149
      %p156 = scmp.eq.s32.totalorder %s11, 2
      %p157 = por %p155, %p156
      %p158 = scmp.ne.s32.totalorder %s150, %s153
      %p159 = scmp.eq.s32.totalorder %s11, 0
      %p160 = por %p158, %p159
      %p161 = scmp.ne.s32.totalorder %s150, %s153
      %p162 = scmp.eq.s32.totalorder %s16, 2
      %p163 = por %p161, %p162
      %p164 = scmp.ne.s32.totalorder %s153, %s154
      %p165 = scmp.eq.s32.totalorder %s16, 0
      %p166 = por %p164, %p165
      %p167 = scmp.ne.s32.totalorder %s153, %s154
      %p168 = scmp.eq.s32.totalorder %s17, 2
      %p169 = por %p167, %p168
      %p171 = scmp.ne.s32.totalorder %s154, %s170
      %p172 = scmp.eq.s32.totalorder %s17, 0
      %p173 = por %p171, %p172
      %p174 = scmp.le.s32.totalorder 1, %s11
      %p175 = scmp.lt.s32.totalorder %s11, 4
      %p176 = pnand %p174, %p175
      %p177 = pneg %p176
      // Predicated region
      $region9: #{_lambda_.17} parent=5 // pred_check
        _
      $region10: #{_lambda_.17} parent=5 // pred_check_branch
        %179 = sbr.rel (%p176) target = $region12
      $region11: #{_lambda_.17} parent=5 // pred_region
        %s180 = ssub.s32 %s11, 1
      $region12: #{_lambda_.17} parent=5 // pred_fallthru
        _
      %p181 = scmp.lt.s32.totalorder %s11, 3
      // Predicated region
      $region13: #{_lambda_.17} parent=5 // pred_check
        %p182 = pneg %p181
      $region14: #{_lambda_.17} parent=5 // pred_check_branch
        %184 = sbr.rel (%p182) target = $region16
      $region15: #{_lambda_.17} parent=5 // pred_region
        // Predicated region
        $region17: #{_lambda_.17} parent=15 // pred_check
          %p185 = pneg %p52
        $region18: #{_lambda_.17} parent=15 // pred_check_branch
          %187 = sbr.rel (%p185) target = $region20
        $region19: #{_lambda_.17} parent=15 // pred_region
          %s188 = sand.u32 %s42, 1
          %s189 = sand.u32 %s42, 1
          %s190 = smul.addr %s189, 96
          %s191 = scalar_lea.vmem [#allocation3], %s190
          %s192 = smul.u32 8, %s19
          %s193 = smul.u32 3, %s20
          %s194 = smul.addr %s192, 9
          %s195 = sadd.s32 %s193, %s194
          %s196 = smul.addr %s195, 4
          %s197 = scalar_lea.vmem %s0, %s196
          // Predicated region
          $region21: #{_lambda_.17} parent=19 // pred_check
            _
          $region22: #{_lambda_.17} parent=19 // pred_check_branch
            %199 = sbr.rel (0) target = $region24
          $region23: #{_lambda_.17} parent=19 // pred_region
            // Predicated region
            $region25: #{_lambda_.17} parent=23 // pred_check
              _
            $region26: #{_lambda_.17} parent=23 // pred_check_branch
              %201 = sbr.rel (0) target = $region28
            $region27: #{_lambda_.17} parent=23 // pred_region
              %s202 = scalar_lea.vmem %s197, 8
              %s203 = scalar_lea.vmem %s191, 8 [#allocation3]
              loop: start=0, step=1, limit=1
              $region29: #{_lambda_.17} parent=27 // loop_pre_header
                _
              $region30: #{_lambda_.17} parent=27 // loop_header
                %s205 = sphi 0, %s209
                %p206 = scmp.ge.s32.totalorder %s205, 1
                %s210 = sphi %s197, %s197
                %s211 = sphi %s191, %s191
              $region31: #{_lambda_.17} parent=27 // loop_header_branch
                %208 = sbr.rel (%p206) target = $region35
              $region32: #{_lambda_.17} parent=27 // loop_body
                %v212 = vld [vmem:[%s210] sm:$0xff]
                %213 = vst [vmem:[%s211] sm:$0xff] %v212
                %v214 = vld [vmem:[%s210 + $0x24] sm:$0xff]
                %215 = vst [vmem:[%s211 + $0xc] sm:$0xff] %v214
                %v216 = vld [vmem:[%s210 + $0x48] sm:$0xff]
                %217 = vst [vmem:[%s211 + $0x18] sm:$0xff] %v216
                %v218 = vld [vmem:[%s210 + $0x6c] sm:$0xff]
                %219 = vst [vmem:[%s211 + $0x24] sm:$0xff] %v218
                %v220 = vld [vmem:[%s210 + $0x90] sm:$0xff]
                %221 = vst [vmem:[%s211 + $0x30] sm:$0xff] %v220
                %v222 = vld [vmem:[%s210 + $0xb4] sm:$0xff]
                %223 = vst [vmem:[%s211 + $0x3c] sm:$0xff] %v222
                %v224 = vld [vmem:[%s210 + $0xd8] sm:$0xff]
                %225 = vst [vmem:[%s211 + $0x48] sm:$0xff] %v224
                %v226 = vld [vmem:[%s210 + $0xfc] sm:$0xff]
                %227 = vst [vmem:[%s211 + $0x54] sm:$0xff] %v226
              $region33: #{_lambda_.17} parent=27 // loop_footer
                %s209 = sadd.s32 1, %s205
              $region34: #{_lambda_.17} parent=27 // loop_footer_branch
                %204 = sbr.rel target = $region30
              $region35: #{_lambda_.17} parent=27 // loop_exit
                _
              loop: start=0, step=1, limit=1
              $region36: #{_lambda_.17} parent=27 // loop_pre_header
                _
              $region37: #{_lambda_.17} parent=27 // loop_header
                %s230 = sphi 0, %s234
                %p231 = scmp.ge.s32.totalorder %s230, 1
                %s235 = sphi %s202, %s202
                %s236 = sphi %s203, %s203
              $region38: #{_lambda_.17} parent=27 // loop_header_branch
                %233 = sbr.rel (%p231) target = $region42
              $region39: #{_lambda_.17} parent=27 // loop_body
                %v237 = vld [vmem:[%s235] sm:$0xf]
                %238 = vst [vmem:[%s236] sm:$0xf] %v237
                %v239 = vld [vmem:[%s235 + $0x24] sm:$0xf]
                %240 = vst [vmem:[%s236 + $0xc] sm:$0xf] %v239
                %v241 = vld [vmem:[%s235 + $0x48] sm:$0xf]
                %242 = vst [vmem:[%s236 + $0x18] sm:$0xf] %v241
                %v243 = vld [vmem:[%s235 + $0x6c] sm:$0xf]
                %244 = vst [vmem:[%s236 + $0x24] sm:$0xf] %v243
                %v245 = vld [vmem:[%s235 + $0x90] sm:$0xf]
                %246 = vst [vmem:[%s236 + $0x30] sm:$0xf] %v245
                %v247 = vld [vmem:[%s235 + $0xb4] sm:$0xf]
                %248 = vst [vmem:[%s236 + $0x3c] sm:$0xf] %v247
                %v249 = vld [vmem:[%s235 + $0xd8] sm:$0xf]
                %250 = vst [vmem:[%s236 + $0x48] sm:$0xf] %v249
                %v251 = vld [vmem:[%s235 + $0xfc] sm:$0xf]
                %252 = vst [vmem:[%s236 + $0x54] sm:$0xf] %v251
              $region40: #{_lambda_.17} parent=27 // loop_footer
                %s234 = sadd.s32 1, %s230
              $region41: #{_lambda_.17} parent=27 // loop_footer_branch
                %229 = sbr.rel target = $region37
              $region42: #{_lambda_.17} parent=27 // loop_exit
                _
            $region28: #{_lambda_.17} parent=23 // pred_fallthru
              _
          $region24: #{_lambda_.17} parent=19 // pred_fallthru
            _
          %253 = vnop
        $region20: #{_lambda_.17} parent=15 // pred_fallthru
          _
        // Predicated region
        $region43: #{_lambda_.17} parent=15 // pred_check
          %p254 = pneg %p80
        $region44: #{_lambda_.17} parent=15 // pred_check_branch
          %256 = sbr.rel (%p254) target = $region46
        $region45: #{_lambda_.17} parent=15 // pred_region
          %s257 = smul.u32 48, %s20
          %s258 = smul.u32 2, %s18
          %p259 = scmp.lt.s32.totalorder %s257, 143
          %s260 = scalar_select %p259, %s257, 143
          %p261 = scmp.lt.s32.totalorder %s258, 1
          %s262 = scalar_select %p261, %s258, 1
          %s263 = smul.addr %s260, 2
          %s264 = sadd.s32 %s262, %s263
          %s265 = smul.addr %s264, 4
          %s266 = scalar_lea.vmem %s1, %s265
          %s267 = smul.u32 48, %s20
          %s268 = smul.u32 2, %s18
        $region46: #{_lambda_.17} parent=15 // pred_fallthru
          _
      $region16: #{_lambda_.17} parent=5 // pred_fallthru
        _
      %p269 = scmp.le.s32.totalorder 1, %s11
      %p270 = scmp.lt.s32.totalorder %s11, 4
      %p271 = pnand %p269, %p270
      %p272 = pneg %p271
      // Predicated region
      $region47: #{_lambda_.17} parent=5 // pred_check
        _
      $region48: #{_lambda_.17} parent=5 // pred_check_branch
        %274 = sbr.rel (%p271) target = $region50
      $region49: #{_lambda_.17} parent=5 // pred_region
        %s275 = ssub.s32 %s11, 1
        %s276 = sand.u32 %s45, 1
        %s277 = sand.u32 %s45, 1
        %s278 = smul.addr %s277, 96
        %s279 = scalar_lea.vmem [#allocation3], %s278
        // Predicated region
        $region51: #{_lambda_.17} parent=49 // pred_check
          %p280 = pneg %p58
        $region52: #{_lambda_.17} parent=49 // pred_check_branch
          %282 = sbr.rel (%p280) target = $region54
        $region53: #{_lambda_.17} parent=49 // pred_region
          _
        $region54: #{_lambda_.17} parent=49 // pred_fallthru
          _
        %s283 = sand.u32 %s45, 1
        %s284 = sand.u32 %s45, 1
        %s285 = smul.addr %s284, 96
        %s286 = scalar_lea.vmem [#allocation3], %s285
        %p287 = pneg %p58
        %p288 = pneg %p55
        %s289 = smul.u32 48, %s23
        %s290 = smul.u32 2, %s21
        %p291 = scmp.lt.s32.totalorder %s289, 143
        %s292 = scalar_select %p291, %s289, 143
        %p293 = scmp.lt.s32.totalorder %s290, 1
        %s294 = scalar_select %p293, %s290, 1
        %s295 = smul.addr %s292, 2
        %s296 = sadd.s32 %s294, %s295
        %s297 = smul.addr %s296, 4
        %s298 = scalar_lea.vmem %s1, %s297
        %p299 = pneg %p86
        %p300 = pneg %p83
        %p301 = pneg %p114
        %p302 = pneg %p111
        %s303 = smul.u32 8, %s22
        %s304 = smul.u32 2, %s21
        %p305 = scmp.lt.s32.totalorder %s303, 7
        %s306 = scalar_select %p305, %s303, 7
        %p307 = scmp.lt.s32.totalorder %s304, 1
        %s308 = scalar_select %p307, %s304, 1
        %s309 = smul.addr %s306, 2
        %s310 = sadd.s32 %s308, %s309
        %s311 = smul.addr %s310, 8
        %s312 = scalar_lea.vmem %s2, %s311
        %p313 = pneg %p140
        %p314 = pneg %p137
        %s315 = smul.u32 2, %s21
        %p316 = scmp.lt.s32.totalorder %s315, 1
        %s317 = scalar_select %p316, %s315, 1
        %s318 = scalar_lea.vmem %s3, %s317
        %p319 = pneg %p166
        %p320 = pneg %p163
        %s321 = smul.u32 2, %s21
        %p322 = scmp.lt.s32.totalorder %s321, 1
        %s323 = scalar_select %p322, %s321, 1
        %s324 = scalar_lea.vmem %s4, %s323
        %s325 = smul.u32 8, %s22
        %s326 = smul.u32 3, %s23
        %s327 = smul.u32 48, %s23
        %s328 = smul.u32 2, %s21
        %p329 = scmp.lt.s32.totalorder %s327, 143
        %s330 = scalar_select %p329, %s327, 143
        %p331 = scmp.lt.s32.totalorder %s328, 1
        %s332 = scalar_select %p331, %s328, 1
        %s333 = smul.addr %s330, 2
        %s334 = sadd.s32 %s332, %s333
        %s335 = smul.addr %s334, 4
        %s336 = scalar_lea.vmem %s1, %s335
        %s337 = smul.u32 48, %s23
        %s338 = smul.u32 2, %s21
        %s339 = smul.u32 8, %s22
        %s340 = smul.u32 2, %s21
        %p341 = scmp.lt.s32.totalorder %s339, 7
        %s342 = scalar_select %p341, %s339, 7
        %p343 = scmp.lt.s32.totalorder %s340, 1
        %s344 = scalar_select %p343, %s340, 1
        %s345 = smul.addr %s342, 2
        %s346 = sadd.s32 %s344, %s345
        %s347 = smul.addr %s346, 8
        %s348 = scalar_lea.vmem %s2, %s347
        %s349 = smul.u32 8, %s22
        %s350 = smul.u32 2, %s21
        %s351 = smul.u32 2, %s21
        %p352 = scmp.lt.s32.totalorder %s351, 1
        %s353 = scalar_select %p352, %s351, 1
        %s354 = scalar_lea.vmem %s3, %s353
        %s355 = smul.u32 2, %s21
        %s356 = smul.u32 2, %s21
        %p357 = scmp.lt.s32.totalorder %s356, 1
        %s358 = scalar_select %p357, %s356, 1
        %s359 = scalar_lea.vmem %s4, %s358
        %s360 = smul.u32 2, %s21
        %p362 = scmp.eq.s32.totalorder %s23, 0
        // Predicated region
        $region55: #{_lambda_.17} parent=49 // pred_check
          %p363 = pneg %p362
        $region56: #{_lambda_.17} parent=49 // pred_check_branch
          %365 = sbr.rel (%p363) target = $region58
        $region57: #{_lambda_.17} parent=49 // pred_region
          %366 = vst [vmem:[#allocation2] sm:$0xff] 0.0
          %367 = vst [vmem:[#allocation2 + $0x8] sm:$0xff] 0.0
          %368 = vst [vmem:[#allocation2 + $0x10] sm:$0xff] 0.0
          %369 = vst [vmem:[#allocation2 + $0x18] sm:$0xff] 0.0
          %370 = vst [vmem:[#allocation2 + $0x20] sm:$0xff] 0.0
          %371 = vst [vmem:[#allocation2 + $0x28] sm:$0xff] 0.0
          %372 = vst [vmem:[#allocation2 + $0x30] sm:$0xff] 0.0
          %373 = vst [vmem:[#allocation2 + $0x38] sm:$0xff] 0.0
          %374 = vst [vmem:[#allocation2 + $0x40] sm:$0xff] 0.0
          %375 = vst [vmem:[#allocation2 + $0x48] sm:$0xff] 0.0
          %376 = vst [vmem:[#allocation2 + $0x50] sm:$0xff] 0.0
          %377 = vst [vmem:[#allocation2 + $0x58] sm:$0xff] 0.0
          %378 = vst [vmem:[#allocation2 + $0x60] sm:$0xff] 0.0
          %379 = vst [vmem:[#allocation2 + $0x68] sm:$0xff] 0.0
          %380 = vst [vmem:[#allocation2 + $0x70] sm:$0xff] 0.0
          %381 = vst [vmem:[#allocation2 + $0x78] sm:$0xff] 0.0
        $region58: #{_lambda_.17} parent=49 // pred_fallthru
          _
        %v382 = vld [vmem:[#allocation2] sm:$0xff]
        %v383 = vld [vmem:[#allocation2 + $0x8] sm:$0xff]
        %v384 = vld [vmem:[#allocation2 + $0x10] sm:$0xff]
        %v385 = vld [vmem:[#allocation2 + $0x18] sm:$0xff]
        %v386 = vld [vmem:[#allocation2 + $0x20] sm:$0xff]
        %v387 = vld [vmem:[#allocation2 + $0x28] sm:$0xff]
        %v388 = vld [vmem:[#allocation2 + $0x30] sm:$0xff]
        %v389 = vld [vmem:[#allocation2 + $0x38] sm:$0xff]
        %v390 = vld [vmem:[#allocation2 + $0x40] sm:$0xff]
        %v391 = vld [vmem:[#allocation2 + $0x48] sm:$0xff]
        %v392 = vld [vmem:[#allocation2 + $0x50] sm:$0xff]
        %v393 = vld [vmem:[#allocation2 + $0x58] sm:$0xff]
        %v394 = vld [vmem:[#allocation2 + $0x60] sm:$0xff]
        %v395 = vld [vmem:[#allocation2 + $0x68] sm:$0xff]
        %v396 = vld [vmem:[#allocation2 + $0x70] sm:$0xff]
        %v397 = vld [vmem:[#allocation2 + $0x78] sm:$0xff]
        %v398 = vld [vmem:[%s279] sm:$0xff]
        %v399 = vld [vmem:[%s279 + $0x8] sm:$0xf]
        %v400 = vld [vmem:[%s279 + $0xc] sm:$0xff]
        %v401 = vld [vmem:[%s279 + $0x14] sm:$0xf]
        %v402 = vld [vmem:[%s279 + $0x18] sm:$0xff]
        %v403 = vld [vmem:[%s279 + $0x20] sm:$0xf]
        %v404 = vld [vmem:[%s279 + $0x24] sm:$0xff]
        %v405 = vld [vmem:[%s279 + $0x2c] sm:$0xf]
        %v406 = vld [vmem:[%s279 + $0x30] sm:$0xff]
        %v407 = vld [vmem:[%s279 + $0x38] sm:$0xf]
        %v408 = vld [vmem:[%s279 + $0x3c] sm:$0xff]
        %v409 = vld [vmem:[%s279 + $0x44] sm:$0xf]
        %v410 = vld [vmem:[%s279 + $0x48] sm:$0xff]
        %v411 = vld [vmem:[%s279 + $0x50] sm:$0xf]
        %v412 = vld [vmem:[%s279 + $0x54] sm:$0xff]
        %v413 = vld [vmem:[%s279 + $0x5c] sm:$0xf]
        %v414 = vld [vmem:[%s336] sm:$0xff]
        %v415 = vld [vmem:[%s336 + $0x8] sm:$0xff]
        %v416 = vld [vmem:[%s336 + $0x10] sm:$0xff]
        %v417 = vld [vmem:[%s336 + $0x18] sm:$0xff]
        %v418 = vld [vmem:[%s336 + $0x20] sm:$0xff]
        %v419 = vld [vmem:[%s336 + $0x28] sm:$0xff]
        %v420 = vld [vmem:[%s336 + $0x30] sm:$0xff]
        %v421 = vld [vmem:[%s336 + $0x38] sm:$0xff]
        %v422 = vld [vmem:[%s336 + $0x40] sm:$0xff]
        %v423 = vld [vmem:[%s336 + $0x48] sm:$0xff]
        %v424 = vld [vmem:[%s336 + $0x50] sm:$0xff]
        %v425 = vld [vmem:[%s336 + $0x58] sm:$0xff]
        %v426 = vld [vmem:[%s336 + $0x60] sm:$0xff]
        %v427 = vld [vmem:[%s336 + $0x68] sm:$0xff]
        %v428 = vld [vmem:[%s336 + $0x70] sm:$0xff]
        %v429 = vld [vmem:[%s336 + $0x78] sm:$0xff]
        %v430 = vld [vmem:[%s336 + $0x80] sm:$0xff]
        %v431 = vld [vmem:[%s336 + $0x88] sm:$0xff]
        %v432 = vld [vmem:[%s336 + $0x90] sm:$0xff]
        %v433 = vld [vmem:[%s336 + $0x98] sm:$0xff]
        %v434 = vld [vmem:[%s336 + $0xa0] sm:$0xff]
        %v435 = vld [vmem:[%s336 + $0xa8] sm:$0xff]
        %v436 = vld [vmem:[%s336 + $0xb0] sm:$0xff]
        %v437 = vld [vmem:[%s336 + $0xb8] sm:$0xff]
        %v438 = vld [vmem:[%s336 + $0xc0] sm:$0xff]
        %v439 = vld [vmem:[%s336 + $0xc8] sm:$0xff]
        %v440 = vld [vmem:[%s336 + $0xd0] sm:$0xff]
        %v441 = vld [vmem:[%s336 + $0xd8] sm:$0xff]
        %v442 = vld [vmem:[%s336 + $0xe0] sm:$0xff]
        %v443 = vld [vmem:[%s336 + $0xe8] sm:$0xff]
        %v444 = vld [vmem:[%s336 + $0xf0] sm:$0xff]
        %v445 = vld [vmem:[%s336 + $0xf8] sm:$0xff]
        %v446 = vld [vmem:[%s336 + $0x100] sm:$0xff]
        %v447 = vld [vmem:[%s336 + $0x108] sm:$0xff]
        %v448 = vld [vmem:[%s336 + $0x110] sm:$0xff]
        %v449 = vld [vmem:[%s336 + $0x118] sm:$0xff]
        %v450 = vld [vmem:[%s336 + $0x120] sm:$0xff]
        %v451 = vld [vmem:[%s336 + $0x128] sm:$0xff]
        %v452 = vld [vmem:[%s336 + $0x130] sm:$0xff]
        %v453 = vld [vmem:[%s336 + $0x138] sm:$0xff]
        %v454 = vld [vmem:[%s336 + $0x140] sm:$0xff]
        %v455 = vld [vmem:[%s336 + $0x148] sm:$0xff]
        %v456 = vld [vmem:[%s336 + $0x150] sm:$0xff]
        %v457 = vld [vmem:[%s336 + $0x158] sm:$0xff]
        %v458 = vld [vmem:[%s336 + $0x160] sm:$0xff]
        %v459 = vld [vmem:[%s336 + $0x168] sm:$0xff]
        %v460 = vld [vmem:[%s336 + $0x170] sm:$0xff]
        %v461 = vld [vmem:[%s336 + $0x178] sm:$0xff]
        %v478 = vunpack.c.l.b16 %v398
        %v479 = vunpack.c.h.b16 %v398
        %v480 = vunpack.c.l.b16 %v399
        %v481 = vunpack.c.l.b16 %v400
        %v482 = vunpack.c.h.b16 %v400
        %v483 = vunpack.c.l.b16 %v401
        %v484 = vunpack.c.l.b16 %v402
        %v485 = vunpack.c.h.b16 %v402
        %v486 = vunpack.c.l.b16 %v403
        %v487 = vunpack.c.l.b16 %v404
        %v488 = vunpack.c.h.b16 %v404
        %v489 = vunpack.c.l.b16 %v405
        %v490 = vunpack.c.l.b16 %v406
        %v491 = vunpack.c.h.b16 %v406
        %v492 = vunpack.c.l.b16 %v407
        %v493 = vunpack.c.l.b16 %v408
        %v494 = vunpack.c.h.b16 %v408
        %v495 = vunpack.c.l.b16 %v409
        %v496 = vunpack.c.l.b16 %v410
        %v497 = vunpack.c.h.b16 %v410
        %v498 = vunpack.c.l.b16 %v411
        %v499 = vunpack.c.l.b16 %v412
        %v500 = vunpack.c.h.b16 %v412
        %v501 = vunpack.c.l.b16 %v413
        %v502 = vpack.c.b16 %v481, %v478
        %v503 = vpack.c.b16 %v482, %v479
        %v504 = vpack.c.b16 %v483, %v480
        %v505 = vpack.c.b16 %v487, %v484
        %v506 = vpack.c.b16 %v488, %v485
        %v507 = vpack.c.b16 %v489, %v486
        %v508 = vpack.c.b16 %v493, %v490
        %v509 = vpack.c.b16 %v494, %v491
        %v510 = vpack.c.b16 %v495, %v492
        %v511 = vpack.c.b16 %v499, %v496
        %v512 = vpack.c.b16 %v500, %v497
        %v513 = vpack.c.b16 %v501, %v498
        %v574 = vunpack.c.l.b16 %v414
        %v575 = vunpack.c.h.b16 %v414
        %v576 = vunpack.c.l.b16 %v415
        %v577 = vunpack.c.h.b16 %v415
        %v578 = vunpack.c.l.b16 %v416
        %v579 = vunpack.c.h.b16 %v416
        %v580 = vunpack.c.l.b16 %v417
        %v581 = vunpack.c.h.b16 %v417
        %v582 = vunpack.c.l.b16 %v418
        %v583 = vunpack.c.h.b16 %v418
        %v584 = vunpack.c.l.b16 %v419
        %v585 = vunpack.c.h.b16 %v419
        %v586 = vunpack.c.l.b16 %v420
        %v587 = vunpack.c.h.b16 %v420
        %v588 = vunpack.c.l.b16 %v421
        %v589 = vunpack.c.h.b16 %v421
        %v590 = vunpack.c.l.b16 %v422
        %v591 = vunpack.c.h.b16 %v422
        %v592 = vunpack.c.l.b16 %v423
        %v593 = vunpack.c.h.b16 %v423
        %v594 = vunpack.c.l.b16 %v424
        %v595 = vunpack.c.h.b16 %v424
        %v596 = vunpack.c.l.b16 %v425
        %v597 = vunpack.c.h.b16 %v425
        %v598 = vunpack.c.l.b16 %v426
        %v599 = vunpack.c.h.b16 %v426
        %v600 = vunpack.c.l.b16 %v427
        %v601 = vunpack.c.h.b16 %v427
        %v602 = vunpack.c.l.b16 %v428
        %v603 = vunpack.c.h.b16 %v428
        %v604 = vunpack.c.l.b16 %v429
        %v605 = vunpack.c.h.b16 %v429
        %v606 = vunpack.c.l.b16 %v430
        %v607 = vunpack.c.h.b16 %v430
        %v608 = vunpack.c.l.b16 %v431
        %v609 = vunpack.c.h.b16 %v431
        %v610 = vunpack.c.l.b16 %v432
        %v611 = vunpack.c.h.b16 %v432
        %v612 = vunpack.c.l.b16 %v433
        %v613 = vunpack.c.h.b16 %v433
        %v614 = vunpack.c.l.b16 %v434
        %v615 = vunpack.c.h.b16 %v434
        %v616 = vunpack.c.l.b16 %v435
        %v617 = vunpack.c.h.b16 %v435
        %v618 = vunpack.c.l.b16 %v436
        %v619 = vunpack.c.h.b16 %v436
        %v620 = vunpack.c.l.b16 %v437
        %v621 = vunpack.c.h.b16 %v437
        %v622 = vunpack.c.l.b16 %v438
        %v623 = vunpack.c.h.b16 %v438
        %v624 = vunpack.c.l.b16 %v439
        %v625 = vunpack.c.h.b16 %v439
        %v626 = vunpack.c.l.b16 %v440
        %v627 = vunpack.c.h.b16 %v440
        %v628 = vunpack.c.l.b16 %v441
        %v629 = vunpack.c.h.b16 %v441
        %v630 = vunpack.c.l.b16 %v442
        %v631 = vunpack.c.h.b16 %v442
        %v632 = vunpack.c.l.b16 %v443
        %v633 = vunpack.c.h.b16 %v443
        %v634 = vunpack.c.l.b16 %v444
        %v635 = vunpack.c.h.b16 %v444
        %v636 = vunpack.c.l.b16 %v445
        %v637 = vunpack.c.h.b16 %v445
        %v638 = vunpack.c.l.b16 %v446
        %v639 = vunpack.c.h.b16 %v446
        %v640 = vunpack.c.l.b16 %v447
        %v641 = vunpack.c.h.b16 %v447
        %v642 = vunpack.c.l.b16 %v448
        %v643 = vunpack.c.h.b16 %v448
        %v644 = vunpack.c.l.b16 %v449
        %v645 = vunpack.c.h.b16 %v449
        %v646 = vunpack.c.l.b16 %v450
        %v647 = vunpack.c.h.b16 %v450
        %v648 = vunpack.c.l.b16 %v451
        %v649 = vunpack.c.h.b16 %v451
        %v650 = vunpack.c.l.b16 %v452
        %v651 = vunpack.c.h.b16 %v452
        %v652 = vunpack.c.l.b16 %v453
        %v653 = vunpack.c.h.b16 %v453
        %v654 = vunpack.c.l.b16 %v454
        %v655 = vunpack.c.h.b16 %v454
        %v656 = vunpack.c.l.b16 %v455
        %v657 = vunpack.c.h.b16 %v455
        %v658 = vunpack.c.l.b16 %v456
        %v659 = vunpack.c.h.b16 %v456
        %v660 = vunpack.c.l.b16 %v457
        %v661 = vunpack.c.h.b16 %v457
        %v662 = vunpack.c.l.b16 %v458
        %v663 = vunpack.c.h.b16 %v458
        %v664 = vunpack.c.l.b16 %v459
        %v665 = vunpack.c.h.b16 %v459
        %v666 = vunpack.c.l.b16 %v460
        %v667 = vunpack.c.h.b16 %v460
        %v668 = vunpack.c.l.b16 %v461
        %v669 = vunpack.c.h.b16 %v461
        %v670 = vpack.c.b16 %v576, %v574
        %v671 = vpack.c.b16 %v577, %v575
        %v672 = vpack.c.b16 %v580, %v578
        %v673 = vpack.c.b16 %v581, %v579
        %v674 = vpack.c.b16 %v584, %v582
        %v675 = vpack.c.b16 %v585, %v583
        %v676 = vpack.c.b16 %v588, %v586
        %v677 = vpack.c.b16 %v589, %v587
        %v678 = vpack.c.b16 %v592, %v590
        %v679 = vpack.c.b16 %v593, %v591
        %v680 = vpack.c.b16 %v596, %v594
        %v681 = vpack.c.b16 %v597, %v595
        %v682 = vpack.c.b16 %v600, %v598
        %v683 = vpack.c.b16 %v601, %v599
        %v684 = vpack.c.b16 %v604, %v602
        %v685 = vpack.c.b16 %v605, %v603
        %v686 = vpack.c.b16 %v608, %v606
        %v687 = vpack.c.b16 %v609, %v607
        %v688 = vpack.c.b16 %v612, %v610
        %v689 = vpack.c.b16 %v613, %v611
        %v690 = vpack.c.b16 %v616, %v614
        %v691 = vpack.c.b16 %v617, %v615
        %v692 = vpack.c.b16 %v620, %v618
        %v693 = vpack.c.b16 %v621, %v619
        %v694 = vpack.c.b16 %v624, %v622
        %v695 = vpack.c.b16 %v625, %v623
        %v696 = vpack.c.b16 %v628, %v626
        %v697 = vpack.c.b16 %v629, %v627
        %v698 = vpack.c.b16 %v632, %v630
        %v699 = vpack.c.b16 %v633, %v631
        %v700 = vpack.c.b16 %v636, %v634
        %v701 = vpack.c.b16 %v637, %v635
        %v702 = vpack.c.b16 %v640, %v638
        %v703 = vpack.c.b16 %v641, %v639
        %v704 = vpack.c.b16 %v644, %v642
        %v705 = vpack.c.b16 %v645, %v643
        %v706 = vpack.c.b16 %v648, %v646
        %v707 = vpack.c.b16 %v649, %v647
        %v708 = vpack.c.b16 %v652, %v650
        %v709 = vpack.c.b16 %v653, %v651
        %v710 = vpack.c.b16 %v656, %v654
        %v711 = vpack.c.b16 %v657, %v655
        %v712 = vpack.c.b16 %v660, %v658
        %v713 = vpack.c.b16 %v661, %v659
        %v714 = vpack.c.b16 %v664, %v662
        %v715 = vpack.c.b16 %v665, %v663
        %v716 = vpack.c.b16 %v668, %v666
        %v717 = vpack.c.b16 %v669, %v667
        %766 = vmatprep.subr.bf16.mxu0 %v671
        %767 = vmatpush1.bf16.msra.mxu0 %v670
        %768 = vmatprep.subr.bf16.mxu0 %v673
        %769 = vmatpush1.bf16.msra.mxu0 %v672
        %770 = vmatprep.subr.bf16.mxu0 %v675
        %771 = vmatpush1.bf16.msra.mxu0 %v674
        %772 = vmatprep.subr.bf16.mxu0 %v677
        %773 = vmatpush1.bf16.msra.mxu0 %v676
        %774 = vmatprep.subr.bf16.mxu0 %v679
        %775 = vmatpush1.bf16.msra.mxu0 %v678
        %776 = vmatprep.subr.bf16.mxu0 %v681
        %777 = vmatpush1.bf16.msra.mxu0 %v680
        %778 = vmatprep.subr.bf16.mxu0 %v683
        %779 = vmatpush1.bf16.msra.mxu0 %v682
        %780 = vmatprep.subr.bf16.mxu0 %v685
        %781 = vmatpush1.bf16.msra.mxu0 %v684
        %782 = vmatprep.subr.bf16.mxu0 %v687
        %783 = vmatpush1.bf16.msra.mxu0 %v686
        %784 = vmatprep.subr.bf16.mxu0 %v689
        %785 = vmatpush1.bf16.msra.mxu0 %v688
        %786 = vmatprep.subr.bf16.mxu0 %v691
        %787 = vmatpush1.bf16.msra.mxu0 %v690
        %788 = vmatprep.subr.bf16.mxu0 %v693
        %789 = vmatpush1.bf16.msra.mxu0 %v692
        %790 = vmatprep.subr.bf16.mxu0 %v695
        %791 = vmatpush1.bf16.msra.mxu0 %v694
        %792 = vmatprep.subr.bf16.mxu0 %v697
        %793 = vmatpush1.bf16.msra.mxu0 %v696
        %794 = vmatprep.subr.bf16.mxu0 %v699
        %795 = vmatpush1.bf16.msra.mxu0 %v698
        %796 = vmatprep.subr.bf16.mxu0 %v701
        %797 = vmatpush1.bf16.msra.mxu0 %v700
        %798 = vmatprep.mubr.bf16.mxu0 %v503
        %799 = vmatmul.mubr.bf16.gmra.mrb[0].mxu0 %v502
        %v800 = vpop.f32.mrb[0].mxu0
        %v801 = vadd.f32 0.0, %v800
        %v802 = vpop.f32.mrb[0].mxu0
        %v803 = vadd.f32 0.0, %v802
        %v804 = vpop.f32.mrb[0].mxu0
        %v805 = vadd.f32 0.0, %v804
        %v806 = vpop.f32.mrb[0].mxu0
        %v807 = vadd.f32 0.0, %v806
        %808 = vmatprep.mubr.bf16.mxu0 %v506
        %809 = vmatmul.mubr.bf16.gmra.mrb[0].mxu0 %v505
        %v810 = vpop.f32.mrb[0].mxu0
        %v811 = vadd.f32 0.0, %v810
        %v812 = vpop.f32.mrb[0].mxu0
        %v813 = vadd.f32 0.0, %v812
        %v814 = vpop.f32.mrb[0].mxu0
        %v815 = vadd.f32 0.0, %v814
        %v816 = vpop.f32.mrb[0].mxu0
        %v817 = vadd.f32 0.0, %v816
        %818 = vmatprep.mubr.bf16.mxu0 %v509
        %819 = vmatmul.mubr.bf16.gmra.mrb[0].mxu0 %v508
        %v820 = vpop.f32.mrb[0].mxu0
        %v821 = vadd.f32 0.0, %v820
        %v822 = vpop.f32.mrb[0].mxu0
        %v823 = vadd.f32 0.0, %v822
        %v824 = vpop.f32.mrb[0].mxu0
        %v825 = vadd.f32 0.0, %v824
        %v826 = vpop.f32.mrb[0].mxu0
        %v827 = vadd.f32 0.0, %v826
        %828 = vmatprep.mubr.bf16.mxu0 %v512
        %829 = vmatmul.mubr.bf16.gmra.mrb[0].mxu0 %v511
        %v830 = vpop.f32.mrb[0].mxu0
        %v831 = vadd.f32 0.0, %v830
        %v832 = vpop.f32.mrb[0].mxu0
        %v833 = vadd.f32 0.0, %v832
        %v834 = vpop.f32.mrb[0].mxu0
        %v835 = vadd.f32 0.0, %v834
        %v836 = vpop.f32.mrb[0].mxu0
        %v837 = vadd.f32 0.0, %v836
        %838 = vdwg.mxu0
        %839 = vmatprep.subr.bf16.mxu0 %v703
        %840 = vmatpush1.bf16.msra.mxu0 %v702
        %841 = vmatprep.subr.bf16.mxu0 %v705
        %842 = vmatpush1.bf16.msra.mxu0 %v704
        %843 = vmatprep.subr.bf16.mxu0 %v707
        %844 = vmatpush1.bf16.msra.mxu0 %v706
        %845 = vmatprep.subr.bf16.mxu0 %v709
        %846 = vmatpush1.bf16.msra.mxu0 %v708
        %847 = vmatprep.subr.bf16.mxu0 %v711
        %848 = vmatpush1.bf16.msra.mxu0 %v710
        %849 = vmatprep.subr.bf16.mxu0 %v713
        %850 = vmatpush1.bf16.msra.mxu0 %v712
        %851 = vmatprep.subr.bf16.mxu0 %v715
        %852 = vmatpush1.bf16.msra.mxu0 %v714
        %853 = vmatprep.subr.bf16.mxu0 %v717
        %854 = vmatpush1.bf16.msra.mxu0 %v716
        %855 = vmatprep.subr.bf16.mxu0 0
        %856 = vmatpush1.bf16.msra.mxu0 0
        %857 = vmatprep.subr.bf16.mxu0 0
        %858 = vmatpush1.bf16.msra.mxu0 0
        %859 = vmatprep.subr.bf16.mxu0 0
        %860 = vmatpush1.bf16.msra.mxu0 0
        %861 = vmatprep.subr.bf16.mxu0 0
        %862 = vmatpush1.bf16.msra.mxu0 0
        %863 = vmatprep.subr.bf16.mxu0 0
        %864 = vmatpush1.bf16.msra.mxu0 0
        %865 = vmatprep.subr.bf16.mxu0 0
        %866 = vmatpush1.bf16.msra.mxu0 0
        %867 = vmatprep.subr.bf16.mxu0 0
        %868 = vmatpush1.bf16.msra.mxu0 0
        %869 = vmatprep.subr.bf16.mxu0 0
        %870 = vmatpush1.bf16.msra.mxu0 0
        %871 = vmatprep.mubr.bf16.mxu0 0
        %872 = vmatmul.mubr.bf16.gmra.mrb[0].mxu0 %v504
        %v873 = vpop.f32.mrb[0].mxu0
        %v874 = vadd.f32 %v801, %v873
        %v875 = vpop.f32.mrb[0].mxu0
        %v876 = vadd.f32 %v803, %v875
        %v877 = vpop.f32.mrb[0].mxu0
        %v878 = vadd.f32 %v805, %v877
        %v879 = vpop.f32.mrb[0].mxu0
        %v880 = vadd.f32 %v807, %v879
        %881 = vmatprep.mubr.bf16.mxu0 0
        %882 = vmatmul.mubr.bf16.gmra.mrb[0].mxu0 %v507
        %v883 = vpop.f32.mrb[0].mxu0
        %v884 = vadd.f32 %v811, %v883
        %v885 = vpop.f32.mrb[0].mxu0
        %v886 = vadd.f32 %v813, %v885
        %v887 = vpop.f32.mrb[0].mxu0
        %v888 = vadd.f32 %v815, %v887
        %v889 = vpop.f32.mrb[0].mxu0
        %v890 = vadd.f32 %v817, %v889
        %891 = vmatprep.mubr.bf16.mxu0 0
        %892 = vmatmul.mubr.bf16.gmra.mrb[0].mxu0 %v510
        %v893 = vpop.f32.mrb[0].mxu0
        %v894 = vadd.f32 %v821, %v893
        %v895 = vpop.f32.mrb[0].mxu0
        %v896 = vadd.f32 %v823, %v895
        %v897 = vpop.f32.mrb[0].mxu0
        %v898 = vadd.f32 %v825, %v897
        %v899 = vpop.f32.mrb[0].mxu0
        %v900 = vadd.f32 %v827, %v899
        %901 = vmatprep.mubr.bf16.mxu0 0
        %902 = vmatmul.mubr.bf16.gmra.mrb[0].mxu0 %v513
        %v903 = vpop.f32.mrb[0].mxu0
        %v904 = vadd.f32 %v831, %v903
        %v905 = vpop.f32.mrb[0].mxu0
        %v906 = vadd.f32 %v833, %v905
        %v907 = vpop.f32.mrb[0].mxu0
        %v908 = vadd.f32 %v835, %v907
        %v909 = vpop.f32.mrb[0].mxu0
        %v910 = vadd.f32 %v837, %v909
        %911 = vdwg.mxu0
        %v912 = vadd.f32 %v382, %v874
        %v913 = vadd.f32 %v383, %v876
        %v914 = vadd.f32 %v384, %v878
        %v915 = vadd.f32 %v385, %v880
        %v916 = vadd.f32 %v386, %v884
        %v917 = vadd.f32 %v387, %v886
        %v918 = vadd.f32 %v388, %v888
        %v919 = vadd.f32 %v389, %v890
        %v920 = vadd.f32 %v390, %v894
        %v921 = vadd.f32 %v391, %v896
        %v922 = vadd.f32 %v392, %v898
        %v923 = vadd.f32 %v393, %v900
        %v924 = vadd.f32 %v394, %v904
        %v925 = vadd.f32 %v395, %v906
        %v926 = vadd.f32 %v396, %v908
        %v927 = vadd.f32 %v397, %v910
        %928 = vst [vmem:[#allocation2] sm:$0xff] %v912
        %929 = vst [vmem:[#allocation2 + $0x8] sm:$0xff] %v913
        %930 = vst [vmem:[#allocation2 + $0x10] sm:$0xff] %v914
        %931 = vst [vmem:[#allocation2 + $0x18] sm:$0xff] %v915
        %932 = vst [vmem:[#allocation2 + $0x20] sm:$0xff] %v916
        %933 = vst [vmem:[#allocation2 + $0x28] sm:$0xff] %v917
        %934 = vst [vmem:[#allocation2 + $0x30] sm:$0xff] %v918
        %935 = vst [vmem:[#allocation2 + $0x38] sm:$0xff] %v919
        %936 = vst [vmem:[#allocation2 + $0x40] sm:$0xff] %v920
        %937 = vst [vmem:[#allocation2 + $0x48] sm:$0xff] %v921
        %938 = vst [vmem:[#allocation2 + $0x50] sm:$0xff] %v922
        %939 = vst [vmem:[#allocation2 + $0x58] sm:$0xff] %v923
        %940 = vst [vmem:[#allocation2 + $0x60] sm:$0xff] %v924
        %941 = vst [vmem:[#allocation2 + $0x68] sm:$0xff] %v925
        %942 = vst [vmem:[#allocation2 + $0x70] sm:$0xff] %v926
        %943 = vst [vmem:[#allocation2 + $0x78] sm:$0xff] %v927
        %p944 = scmp.eq.s32.totalorder %s23, 2
        %p945 = scmp.eq.s32.totalorder %s22, 0
        %p946 = pnand %p944, %p945
        %p947 = pneg %p946
        // Predicated region
        $region59: #{_lambda_.17} parent=49 // pred_check
          _
        $region60: #{_lambda_.17} parent=49 // pred_check_branch
          %949 = sbr.rel (%p946) target = $region62
        $region61: #{_lambda_.17} parent=49 // pred_region
          %v950 = vlaneseq
          %vm951 = vcmp.ge.s32.totalorder %v950, 0
          %vm952 = vcmp.lt.s32.totalorder %v950, 256
          %vm953 = vmand %vm951, %vm952
          %954 = vst.msk [vmem:[%s354] sm:$0x3] %vm953, 0.0
          %955 = vst.msk [vmem:[%s359] sm:$0x3] %vm953, 0.0
        $region62: #{_lambda_.17} parent=49 // pred_fallthru
          _
        // Predicated region
        $region63: #{_lambda_.17} parent=49 // pred_check
          %p956 = pneg %p944
        $region64: #{_lambda_.17} parent=49 // pred_check_branch
          %958 = sbr.rel (%p956) target = $region66
        $region65: #{_lambda_.17} parent=49 // pred_region
          %v959 = vld [vmem:[#allocation2] sm:$0xff]
          %v960 = vld [vmem:[#allocation2 + $0x8] sm:$0xff]
          %v961 = vld [vmem:[#allocation2 + $0x10] sm:$0xff]
          %v962 = vld [vmem:[#allocation2 + $0x18] sm:$0xff]
          %v963 = vld [vmem:[#allocation2 + $0x20] sm:$0xff]
          %v964 = vld [vmem:[#allocation2 + $0x28] sm:$0xff]
          %v965 = vld [vmem:[#allocation2 + $0x30] sm:$0xff]
          %v966 = vld [vmem:[#allocation2 + $0x38] sm:$0xff]
          %v967 = vld [vmem:[#allocation2 + $0x40] sm:$0xff]
          %v968 = vld [vmem:[#allocation2 + $0x48] sm:$0xff]
          %v969 = vld [vmem:[#allocation2 + $0x50] sm:$0xff]
          %v970 = vld [vmem:[#allocation2 + $0x58] sm:$0xff]
          %v971 = vld [vmem:[#allocation2 + $0x60] sm:$0xff]
          %v972 = vld [vmem:[#allocation2 + $0x68] sm:$0xff]
          %v973 = vld [vmem:[#allocation2 + $0x70] sm:$0xff]
          %v974 = vld [vmem:[#allocation2 + $0x78] sm:$0xff]
          %975 = vst [vmem:[%s348] sm:$0xff] %v959
          %976 = vst [vmem:[%s348 + $0x8] sm:$0xff] %v960
          %977 = vst [vmem:[%s348 + $0x10] sm:$0xff] %v961
          %978 = vst [vmem:[%s348 + $0x18] sm:$0xff] %v962
          %979 = vst [vmem:[%s348 + $0x20] sm:$0xff] %v963
          %980 = vst [vmem:[%s348 + $0x28] sm:$0xff] %v964
          %981 = vst [vmem:[%s348 + $0x30] sm:$0xff] %v965
          %982 = vst [vmem:[%s348 + $0x38] sm:$0xff] %v966
          %983 = vst [vmem:[%s348 + $0x40] sm:$0xff] %v967
          %984 = vst [vmem:[%s348 + $0x48] sm:$0xff] %v968
          %985 = vst [vmem:[%s348 + $0x50] sm:$0xff] %v969
          %986 = vst [vmem:[%s348 + $0x58] sm:$0xff] %v970
          %987 = vst [vmem:[%s348 + $0x60] sm:$0xff] %v971
          %988 = vst [vmem:[%s348 + $0x68] sm:$0xff] %v972
          %989 = vst [vmem:[%s348 + $0x70] sm:$0xff] %v973
          %990 = vst [vmem:[%s348 + $0x78] sm:$0xff] %v974
          %v991 = vld [vmem:[%s354] sm:$0x3]
          %v992 = vadd.f32 %v959, %v961
          %v993 = vadd.f32 %v992, %v963
          %v994 = vadd.f32 %v993, %v965
          %v995 = vadd.f32 %v994, %v967
          %v996 = vadd.f32 %v995, %v969
          %v997 = vadd.f32 %v996, %v971
          %v998 = vadd.f32 %v997, %v973
          %v999 = vrot.slane %v998, 4
          %v1000 = vadd.f32 %v998, %v999
          %v1001 = vrot.slane %v1000, 2
          %v1002 = vadd.f32 %v1000, %v1001
          %v1003 = vrot.slane %v1002, 1
          %v1004 = vadd.f32 %v1002, %v1003
          %v1005 = vadd.f32 %v960, %v962
          %v1006 = vadd.f32 %v1005, %v964
          %v1007 = vadd.f32 %v1006, %v966
          %v1008 = vadd.f32 %v1007, %v968
          %v1009 = vadd.f32 %v1008, %v970
          %v1010 = vadd.f32 %v1009, %v972
          %v1011 = vadd.f32 %v1010, %v974
          %v1012 = vrot.slane %v1011, 4
          %v1013 = vadd.f32 %v1011, %v1012
          %v1014 = vrot.slane %v1013, 2
          %v1015 = vadd.f32 %v1013, %v1014
          %v1016 = vrot.slane %v1015, 1
          %v1017 = vadd.f32 %v1015, %v1016
          %v1020 = vcombine.low %v1004, %v1017
          %v1022 = vunpack.c.l.s4 1966171168
          %v1023 = vunpack.c.0.s8 %v1022
          %v1024 = vlaneseq
          %v1025 = vshrl.u32 %v1024, 7
          %v1026 = vsub.s32 %v1023, %v1025
          %v1027 = vrot.slane %v1020, %v1026
          %v1029 = vunpack.c.l.s4 1966171168
          %v1030 = vunpack.c.0.s8 %v1029
          %v1031 = vlaneseq
          %v1032 = vshrl.u32 %v1031, 7
          %v1033 = vsub.s32 %v1030, %v1032
          %v1034 = vrot.slane %v1027, %v1033
          %v1036 = vadd.f32 %v991, %v1034
          %v1037 = vlaneseq
          %vm1038 = vcmp.ge.s32.totalorder %v1037, 0
          %vm1039 = vcmp.lt.s32.totalorder %v1037, 256
          %vm1040 = vmand %vm1038, %vm1039
          %1041 = vst.msk [vmem:[%s354] sm:$0x3] %vm1040, %v1036
          %v1042 = vld [vmem:[%s359] sm:$0x3]
          %v1043 = vmul.f32 %v959, %v959
          %v1044 = vmul.f32 %v960, %v960
          %v1045 = vmul.f32 %v961, %v961
          %v1046 = vmul.f32 %v962, %v962
          %v1047 = vmul.f32 %v963, %v963
          %v1048 = vmul.f32 %v964, %v964
          %v1049 = vmul.f32 %v965, %v965
          %v1050 = vmul.f32 %v966, %v966
          %v1051 = vmul.f32 %v967, %v967
          %v1052 = vmul.f32 %v968, %v968
          %v1053 = vmul.f32 %v969, %v969
          %v1054 = vmul.f32 %v970, %v970
          %v1055 = vmul.f32 %v971, %v971
          %v1056 = vmul.f32 %v972, %v972
          %v1057 = vmul.f32 %v973, %v973
          %v1058 = vmul.f32 %v974, %v974
          %v1059 = vadd.f32 %v1043, %v1045
          %v1060 = vadd.f32 %v1059, %v1047
          %v1061 = vadd.f32 %v1060, %v1049
          %v1062 = vadd.f32 %v1061, %v1051
          %v1063 = vadd.f32 %v1062, %v1053
          %v1064 = vadd.f32 %v1063, %v1055
          %v1065 = vadd.f32 %v1064, %v1057
          %v1066 = vrot.slane %v1065, 4
          %v1067 = vadd.f32 %v1065, %v1066
          %v1068 = vrot.slane %v1067, 2
          %v1069 = vadd.f32 %v1067, %v1068
          %v1070 = vrot.slane %v1069, 1
          %v1071 = vadd.f32 %v1069, %v1070
          %v1072 = vadd.f32 %v1044, %v1046
          %v1073 = vadd.f32 %v1072, %v1048
          %v1074 = vadd.f32 %v1073, %v1050
          %v1075 = vadd.f32 %v1074, %v1052
          %v1076 = vadd.f32 %v1075, %v1054
          %v1077 = vadd.f32 %v1076, %v1056
          %v1078 = vadd.f32 %v1077, %v1058
          %v1079 = vrot.slane %v1078, 4
          %v1080 = vadd.f32 %v1078, %v1079
          %v1081 = vrot.slane %v1080, 2
          %v1082 = vadd.f32 %v1080, %v1081
          %v1083 = vrot.slane %v1082, 1
          %v1084 = vadd.f32 %v1082, %v1083
          %v1087 = vcombine.low %v1071, %v1084
          %v1089 = vunpack.c.l.s4 1966171168
          %v1090 = vunpack.c.0.s8 %v1089
          %v1091 = vlaneseq
          %v1092 = vshrl.u32 %v1091, 7
          %v1093 = vsub.s32 %v1090, %v1092
          %v1094 = vrot.slane %v1087, %v1093
          %v1096 = vunpack.c.l.s4 1966171168
          %v1097 = vunpack.c.0.s8 %v1096
          %v1098 = vlaneseq
          %v1099 = vshrl.u32 %v1098, 7
          %v1100 = vsub.s32 %v1097, %v1099
          %v1101 = vrot.slane %v1094, %v1100
          %v1103 = vadd.f32 %v1042, %v1101
          %1104 = vst.msk [vmem:[%s359] sm:$0x3] %vm1040, %v1103
        $region66: #{_lambda_.17} parent=49 // pred_fallthru
          _
        %s1105 = smul.u32 8, %s22
        %s1106 = smul.u32 2, %s21
        %p1107 = scmp.lt.s32.totalorder %s1105, 7
        %s1108 = scalar_select %p1107, %s1105, 7
        %p1109 = scmp.lt.s32.totalorder %s1106, 1
        %s1110 = scalar_select %p1109, %s1106, 1
        %s1111 = smul.addr %s1108, 2
        %s1112 = sadd.s32 %s1110, %s1111
        %s1113 = smul.addr %s1112, 8
        %s1114 = scalar_lea.vmem %s2, %s1113
        %s1115 = smul.u32 2, %s21
        %p1116 = scmp.lt.s32.totalorder %s1115, 1
        %s1117 = scalar_select %p1116, %s1115, 1
        %s1118 = scalar_lea.vmem %s3, %s1117
        %s1119 = smul.u32 2, %s21
        %p1120 = scmp.lt.s32.totalorder %s1119, 1
        %s1121 = scalar_select %p1120, %s1119, 1
        %s1122 = scalar_lea.vmem %s4, %s1121
        // Predicated region
        $region67: #{_lambda_.17} parent=49 // pred_check
          %p1123 = pneg %p111
        $region68: #{_lambda_.17} parent=49 // pred_check_branch
          %1125 = sbr.rel (%p1123) target = $region70
        $region69: #{_lambda_.17} parent=49 // pred_region
          %s1126 = smul.u32 8, %s22
          %s1127 = smul.u32 2, %s21
        $region70: #{_lambda_.17} parent=49 // pred_fallthru
          _
        // Predicated region
        $region71: #{_lambda_.17} parent=49 // pred_check
          %p1128 = pneg %p137
        $region72: #{_lambda_.17} parent=49 // pred_check_branch
          %1130 = sbr.rel (%p1128) target = $region74
        $region73: #{_lambda_.17} parent=49 // pred_region
          %s1131 = smul.u32 2, %s21
        $region74: #{_lambda_.17} parent=49 // pred_fallthru
          _
        // Predicated region
        $region75: #{_lambda_.17} parent=49 // pred_check
          %p1132 = pneg %p163
        $region76: #{_lambda_.17} parent=49 // pred_check_branch
          %1134 = sbr.rel (%p1132) target = $region78
        $region77: #{_lambda_.17} parent=49 // pred_region
          %s1135 = smul.u32 2, %s21
        $region78: #{_lambda_.17} parent=49 // pred_fallthru
          _
        // Predicated region
        $region79: #{_lambda_.17} parent=49 // pred_check
          %p1136 = pneg %p111
        $region80: #{_lambda_.17} parent=49 // pred_check_branch
          %1138 = sbr.rel (%p1136) target = $region82
        $region81: #{_lambda_.17} parent=49 // pred_region
          %s1139 = smul.u32 8, %s22
          %s1140 = smul.u32 2, %s21
          %p1141 = scmp.lt.s32.totalorder %s1139, 7
          %s1142 = scalar_select %p1141, %s1139, 7
          %p1143 = scmp.lt.s32.totalorder %s1140, 1
          %s1144 = scalar_select %p1143, %s1140, 1
          %s1145 = smul.addr %s1142, 2
          %s1146 = sadd.s32 %s1144, %s1145
          %s1147 = smul.addr %s1146, 8
          %s1148 = scalar_lea.vmem %s2, %s1147
        $region82: #{_lambda_.17} parent=49 // pred_fallthru
          _
        // Predicated region
        $region83: #{_lambda_.17} parent=49 // pred_check
          %p1149 = pneg %p137
        $region84: #{_lambda_.17} parent=49 // pred_check_branch
          %1151 = sbr.rel (%p1149) target = $region86
        $region85: #{_lambda_.17} parent=49 // pred_region
          %s1152 = smul.u32 2, %s21
          %p1153 = scmp.lt.s32.totalorder %s1152, 1
          %s1154 = scalar_select %p1153, %s1152, 1
          %s1155 = scalar_lea.vmem %s3, %s1154
        $region86: #{_lambda_.17} parent=49 // pred_fallthru
          _
        // Predicated region
        $region87: #{_lambda_.17} parent=49 // pred_check
          %p1156 = pneg %p163
        $region88: #{_lambda_.17} parent=49 // pred_check_branch
          %1158 = sbr.rel (%p1156) target = $region90
        $region89: #{_lambda_.17} parent=49 // pred_region
          %s1159 = smul.u32 2, %s21
          %p1160 = scmp.lt.s32.totalorder %s1159, 1
          %s1161 = scalar_select %p1160, %s1159, 1
          %s1162 = scalar_lea.vmem %s4, %s1161
        $region90: #{_lambda_.17} parent=49 // pred_fallthru
          _
      $region50: #{_lambda_.17} parent=5 // pred_fallthru
        _
      %p1163 = scmp.le.s32.totalorder 2, %s11
      // Predicated region
      $region91: #{_lambda_.17} parent=5 // pred_check
        %p1164 = pneg %p1163
      $region92: #{_lambda_.17} parent=5 // pred_check_branch
        %1166 = sbr.rel (%p1164) target = $region94
      $region93: #{_lambda_.17} parent=5 // pred_region
        %s1167 = ssub.s32 %s11, 2
      $region94: #{_lambda_.17} parent=5 // pred_fallthru
        _
    $region6: #{_lambda_.17} parent=1 // loop_footer
      %s15 = sadd.s32 1, %s11
    $region7: #{_lambda_.17} parent=1 // loop_footer_branch
      %10 = sbr.rel target = $region3
    $region8: #{_lambda_.17} parent=1 // loop_exit
      _

// kernel: _lambda_.19
$region0: #{_lambda_.19}
  #allocation0 [shape = 'u32[]', space=smem, size = 0x4, offset = 0x4, fixed_abs, tag = 'smem constant byte address 0x4 - core index']
  #allocation1 [shape = 'u32[144,128]{1,0:T(1,128)}', space=vmem, size = 0x12000, scoped, tag = 'internal scratch']
  #allocation2 [shape = 'f32[32,256]{1,0:T(8,128)}', space=vmem, size = 0x8000, scoped, tag = 'scratch operand']
  %s0 = inlined_call_operand.vmem [shape: bf16[32,2304], index: 0, kind: input, shape index: {}]
  %s1 = inlined_call_operand.vmem [shape: bf16[2304,256], index: 1, kind: input, shape index: {}]
  %s2 = inlined_call_operand.vmem [shape: f32[1,256], index: 2, kind: input, shape index: {}]
  %s3 = inlined_call_operand.vmem [shape: f32[32,256], index: 3, kind: output, shape index: {}]
  %s4 = sld [smem:[#allocation0]]
  $region79: #{_lambda_.19} parent=0
    _
  %s6 = ssub.s32 1, %s4
  %s7 = scalar_select 0, %s6, %s4
  $region1: #{_lambda_.19} parent=0
    #allocation3 [shape = 'u8[49152]{0}', space=vmem, size = 0xc000, scoped, tag = 'input window, operand 0']
    loop: start=0, step=1, limit=8
    $region2: #{_lambda_.19} parent=1 // loop_pre_header
      _
    $region3: #{_lambda_.19} parent=1 // loop_header
      %s9 = sphi 0, %s13
      %p10 = scmp.ge.s32.totalorder %s9, 8
      %s16 = sphi 0, %s35
      %s17 = sphi 0, %s31
      %s18 = sphi 0, %s27
      %s19 = sphi 0, %s16
      %s20 = sphi 0, %s17
      %s21 = sphi 0, %s18
      %s22 = sphi 0, %s19
      %s23 = sphi 0, %s20
      %s24 = sphi 0, %s21
      %s40 = sphi 0, %s42
      %s43 = sphi 0, %s40
      %s44 = sphi 0, %s43
      %s60 = sphi 0, %s44
      %s68 = sphi 0, %s70
      %s71 = sphi 0, %s68
      %s72 = sphi 0, %s71
      %s88 = sphi 0, %s72
      %s94 = sphi 0, %s96
      %s97 = sphi 0, %s94
      %s98 = sphi 0, %s97
      %s114 = sphi 0, %s98
      %s122 = sphi 0, %s124
      %s125 = sphi 0, %s122
      %s126 = sphi 0, %s125
      %s142 = sphi 0, %s126
    $region4: #{_lambda_.19} parent=1 // loop_header_branch
      %12 = sbr.rel (%p10) target = $region8
    $region5: #{_lambda_.19} parent=1 // loop_body
      %s14 = ssub.s32 %s9, 1
      %s15 = ssub.s32 %s9, 2
      %s25 = sadd.s32 1, %s18
      %p26 = scmp.ge.s32.totalorder %s25, 6
      %s27 = scalar_select %p26, 0, %s25
      %s28 = sadd.s32 1, %s17
      %s29 = scalar_select %p26, %s28, %s17
      %p30 = scmp.ge.s32.totalorder %s29, 1
      %s31 = scalar_select %p30, 0, %s29
      %s32 = sadd.s32 1, %s16
      %s33 = scalar_select %p30, %s32, %s16
      %p34 = scmp.ge.s32.totalorder %s33, 1
      %s35 = scalar_select %p34, 0, %s33
      %s36 = ssub.s32 %s16, %s35
      %s37 = ssub.s32 %s18, %s27
      %s38 = sor.u32 %s36, %s37
      %p39 = scmp.eq.s32.totalorder %s38, 0
      %s41 = sadd.s32 %s40, 1
      %s42 = scalar_select %p39, %s40, %s41
      %p45 = pneg %p39
      %p46 = scmp.eq.s32.totalorder %s9, 5
      %p47 = por %p45, %p46
      %p48 = scmp.ne.s32.totalorder %s40, %s43
      %p49 = scmp.eq.s32.totalorder %s9, 0
      %p50 = por %p48, %p49
      %p51 = scmp.ne.s32.totalorder %s40, %s43
      %p52 = scmp.eq.s32.totalorder %s14, 5
      %p53 = por %p51, %p52
      %p54 = scmp.ne.s32.totalorder %s43, %s44
      %p55 = scmp.eq.s32.totalorder %s14, 0
      %p56 = por %p54, %p55
      %p57 = scmp.ne.s32.totalorder %s43, %s44
      %p58 = scmp.eq.s32.totalorder %s15, 5
      %p59 = por %p57, %p58
      %p61 = scmp.ne.s32.totalorder %s44, %s60
      %p62 = scmp.eq.s32.totalorder %s15, 0
      %p63 = por %p61, %p62
      %s64 = ssub.s32 %s18, %s27
      %s65 = ssub.s32 %s17, %s31
      %s66 = sor.u32 %s64, %s65
      %p67 = scmp.eq.s32.totalorder %s66, 0
      %s69 = sadd.s32 %s68, 1
      %s70 = scalar_select %p67, %s68, %s69
      %p73 = pneg %p67
      %p74 = scmp.eq.s32.totalorder %s9, 5
      %p75 = por %p73, %p74
      %p76 = scmp.ne.s32.totalorder %s68, %s71
      %p77 = scmp.eq.s32.totalorder %s9, 0
      %p78 = por %p76, %p77
      %p79 = scmp.ne.s32.totalorder %s68, %s71
      %p80 = scmp.eq.s32.totalorder %s14, 5
      %p81 = por %p79, %p80
      %p82 = scmp.ne.s32.totalorder %s71, %s72
      %p83 = scmp.eq.s32.totalorder %s14, 0
      %p84 = por %p82, %p83
      %p85 = scmp.ne.s32.totalorder %s71, %s72
      %p86 = scmp.eq.s32.totalorder %s15, 5
      %p87 = por %p85, %p86
      %p89 = scmp.ne.s32.totalorder %s72, %s88
      %p90 = scmp.eq.s32.totalorder %s15, 0
      %p91 = por %p89, %p90
      %s92 = ssub.s32 %s17, %s31
      %p93 = scmp.eq.s32.totalorder %s92, 0
      %s95 = sadd.s32 %s94, 1
      %s96 = scalar_select %p93, %s94, %s95
      %p99 = pneg %p93
      %p100 = scmp.eq.s32.totalorder %s9, 5
      %p101 = por %p99, %p100
      %p102 = scmp.ne.s32.totalorder %s94, %s97
      %p103 = scmp.eq.s32.totalorder %s9, 0
      %p104 = por %p102, %p103
      %p105 = scmp.ne.s32.totalorder %s94, %s97
      %p106 = scmp.eq.s32.totalorder %s14, 5
      %p107 = por %p105, %p106
      %p108 = scmp.ne.s32.totalorder %s97, %s98
      %p109 = scmp.eq.s32.totalorder %s14, 0
      %p110 = por %p108, %p109
      %p111 = scmp.ne.s32.totalorder %s97, %s98
      %p112 = scmp.eq.s32.totalorder %s15, 5
      %p113 = por %p111, %p112
      %p115 = scmp.ne.s32.totalorder %s98, %s114
      %p116 = scmp.eq.s32.totalorder %s15, 0
      %p117 = por %p115, %p116
      %s118 = ssub.s32 %s16, %s35
      %s119 = ssub.s32 %s17, %s31
      %s120 = sor.u32 %s118, %s119
      %p121 = scmp.eq.s32.totalorder %s120, 0
      %s123 = sadd.s32 %s122, 1
      %s124 = scalar_select %p121, %s122, %s123
      %p127 = pneg %p121
      %p128 = scmp.eq.s32.totalorder %s9, 5
      %p129 = por %p127, %p128
      %p130 = scmp.ne.s32.totalorder %s122, %s125
      %p131 = scmp.eq.s32.totalorder %s9, 0
      %p132 = por %p130, %p131
      %p133 = scmp.ne.s32.totalorder %s122, %s125
      %p134 = scmp.eq.s32.totalorder %s14, 5
      %p135 = por %p133, %p134
      %p136 = scmp.ne.s32.totalorder %s125, %s126
      %p137 = scmp.eq.s32.totalorder %s14, 0
      %p138 = por %p136, %p137
      %p139 = scmp.ne.s32.totalorder %s125, %s126
      %p140 = scmp.eq.s32.totalorder %s15, 5
      %p141 = por %p139, %p140
      %p143 = scmp.ne.s32.totalorder %s126, %s142
      %p144 = scmp.eq.s32.totalorder %s15, 0
      %p145 = por %p143, %p144
      %p146 = scmp.le.s32.totalorder 1, %s9
      %p147 = scmp.lt.s32.totalorder %s9, 7
      %p148 = pnand %p146, %p147
      %p149 = pneg %p148
      // Predicated region
      $region9: #{_lambda_.19} parent=5 // pred_check
        _
      $region10: #{_lambda_.19} parent=5 // pred_check_branch
        %151 = sbr.rel (%p148) target = $region12
      $region11: #{_lambda_.19} parent=5 // pred_region
        %s152 = ssub.s32 %s9, 1
        // Predicated region
        $region13: #{_lambda_.19} parent=11 // pred_check
          %p153 = pneg %p110
        $region14: #{_lambda_.19} parent=11 // pred_check_branch
          %155 = sbr.rel (%p153) target = $region16
        $region15: #{_lambda_.19} parent=11 // pred_region
          %s156 = smul.u32 2, %s20
          %p157 = scmp.lt.s32.totalorder %s156, 1
          %s158 = scalar_select %p157, %s156, 1
          %s159 = scalar_lea.vmem %s2, %s158
          %s160 = smul.u32 2, %s20
        $region16: #{_lambda_.19} parent=11 // pred_fallthru
          _
      $region12: #{_lambda_.19} parent=5 // pred_fallthru
        _
      %p161 = scmp.lt.s32.totalorder %s9, 6
      // Predicated region
      $region17: #{_lambda_.19} parent=5 // pred_check
        %p162 = pneg %p161
      $region18: #{_lambda_.19} parent=5 // pred_check_branch
        %164 = sbr.rel (%p162) target = $region20
      $region19: #{_lambda_.19} parent=5 // pred_region
        // Predicated region
        $region21: #{_lambda_.19} parent=19 // pred_check
          %p165 = pneg %p50
        $region22: #{_lambda_.19} parent=19 // pred_check_branch
          %167 = sbr.rel (%p165) target = $region24
        $region23: #{_lambda_.19} parent=19 // pred_region
          %s168 = sand.u32 %s40, 1
          %s169 = sand.u32 %s40, 1
          %s170 = smul.addr %s169, 48
          %s171 = scalar_lea.vmem [#allocation3], %s170
          %s172 = smul.u32 4, %s16
          %s173 = smul.u32 3, %s18
          %s174 = smul.addr %s172, 18
          %s175 = sadd.s32 %s173, %s174
          %s176 = smul.addr %s175, 4
          %s177 = scalar_lea.vmem %s0, %s176
          // Predicated region
          $region25: #{_lambda_.19} parent=23 // pred_check
            _
          $region26: #{_lambda_.19} parent=23 // pred_check_branch
            %179 = sbr.rel (0) target = $region28
          $region27: #{_lambda_.19} parent=23 // pred_region
            // Predicated region
            $region29: #{_lambda_.19} parent=27 // pred_check
              _
            $region30: #{_lambda_.19} parent=27 // pred_check_branch
              %181 = sbr.rel (0) target = $region32
            $region31: #{_lambda_.19} parent=27 // pred_region
              %s182 = scalar_lea.vmem %s177, 8
              %s183 = scalar_lea.vmem %s171, 8 [#allocation3]
              loop: start=0, step=1, limit=1
              $region33: #{_lambda_.19} parent=31 // loop_pre_header
                _
              $region34: #{_lambda_.19} parent=31 // loop_header
                %s185 = sphi 0, %s189
                %p186 = scmp.ge.s32.totalorder %s185, 1
                %s190 = sphi %s177, %s177
                %s191 = sphi %s171, %s171
              $region35: #{_lambda_.19} parent=31 // loop_header_branch
                %188 = sbr.rel (%p186) target = $region39
              $region36: #{_lambda_.19} parent=31 // loop_body
                %v192 = vld [vmem:[%s190] sm:$0xff]
                %193 = vst [vmem:[%s191] sm:$0xff] %v192
                %v194 = vld [vmem:[%s190 + $0x48] sm:$0xff]
                %195 = vst [vmem:[%s191 + $0xc] sm:$0xff] %v194
                %v196 = vld [vmem:[%s190 + $0x90] sm:$0xff]
                %197 = vst [vmem:[%s191 + $0x18] sm:$0xff] %v196
                %v198 = vld [vmem:[%s190 + $0xd8] sm:$0xff]
                %199 = vst [vmem:[%s191 + $0x24] sm:$0xff] %v198
              $region37: #{_lambda_.19} parent=31 // loop_footer
                %s189 = sadd.s32 1, %s185
              $region38: #{_lambda_.19} parent=31 // loop_footer_branch
                %184 = sbr.rel target = $region34
              $region39: #{_lambda_.19} parent=31 // loop_exit
                _
              loop: start=0, step=1, limit=1
              $region40: #{_lambda_.19} parent=31 // loop_pre_header
                _
              $region41: #{_lambda_.19} parent=31 // loop_header
                %s202 = sphi 0, %s206
                %p203 = scmp.ge.s32.totalorder %s202, 1
                %s207 = sphi %s182, %s182
                %s208 = sphi %s183, %s183
              $region42: #{_lambda_.19} parent=31 // loop_header_branch
                %205 = sbr.rel (%p203) target = $region46
              $region43: #{_lambda_.19} parent=31 // loop_body
                %v209 = vld [vmem:[%s207] sm:$0xf]
                %210 = vst [vmem:[%s208] sm:$0xf] %v209
                %v211 = vld [vmem:[%s207 + $0x48] sm:$0xf]
                %212 = vst [vmem:[%s208 + $0xc] sm:$0xf] %v211
                %v213 = vld [vmem:[%s207 + $0x90] sm:$0xf]
                %214 = vst [vmem:[%s208 + $0x18] sm:$0xf] %v213
                %v215 = vld [vmem:[%s207 + $0xd8] sm:$0xf]
                %216 = vst [vmem:[%s208 + $0x24] sm:$0xf] %v215
              $region44: #{_lambda_.19} parent=31 // loop_footer
                %s206 = sadd.s32 1, %s202
              $region45: #{_lambda_.19} parent=31 // loop_footer_branch
                %201 = sbr.rel target = $region41
              $region46: #{_lambda_.19} parent=31 // loop_exit
                _
            $region32: #{_lambda_.19} parent=27 // pred_fallthru
              _
          $region28: #{_lambda_.19} parent=23 // pred_fallthru
            _
          %217 = vnop
        $region24: #{_lambda_.19} parent=19 // pred_fallthru
          _
        // Predicated region
        $region47: #{_lambda_.19} parent=19 // pred_check
          %p218 = pneg %p78
        $region48: #{_lambda_.19} parent=19 // pred_check_branch
          %220 = sbr.rel (%p218) target = $region50
        $region49: #{_lambda_.19} parent=19 // pred_region
          %s221 = smul.u32 48, %s18
          %s222 = smul.u32 2, %s17
          %p223 = scmp.lt.s32.totalorder %s221, 287
          %s224 = scalar_select %p223, %s221, 287
          %p225 = scmp.lt.s32.totalorder %s222, 1
          %s226 = scalar_select %p225, %s222, 1
          %s227 = smul.addr %s224, 2
          %s228 = sadd.s32 %s226, %s227
          %s229 = smul.addr %s228, 4
          %s230 = scalar_lea.vmem %s1, %s229
          %s231 = smul.u32 48, %s18
          %s232 = smul.u32 2, %s17
        $region50: #{_lambda_.19} parent=19 // pred_fallthru
          _
      $region20: #{_lambda_.19} parent=5 // pred_fallthru
        _
      %p233 = scmp.le.s32.totalorder 1, %s9
      %p234 = scmp.lt.s32.totalorder %s9, 7
      %p235 = pnand %p233, %p234
      %p236 = pneg %p235
      // Predicated region
      $region51: #{_lambda_.19} parent=5 // pred_check
        _
      $region52: #{_lambda_.19} parent=5 // pred_check_branch
        %238 = sbr.rel (%p235) target = $region54
      $region53: #{_lambda_.19} parent=5 // pred_region
        %s239 = ssub.s32 %s9, 1
        %s240 = sand.u32 %s43, 1
        %s241 = sand.u32 %s43, 1
        %s242 = smul.addr %s241, 48
        %s243 = scalar_lea.vmem [#allocation3], %s242
        // Predicated region
        $region55: #{_lambda_.19} parent=53 // pred_check
          %p244 = pneg %p56
        $region56: #{_lambda_.19} parent=53 // pred_check_branch
          %246 = sbr.rel (%p244) target = $region58
        $region57: #{_lambda_.19} parent=53 // pred_region
          _
        $region58: #{_lambda_.19} parent=53 // pred_fallthru
          _
        %s247 = sand.u32 %s43, 1
        %s248 = sand.u32 %s43, 1
        %s249 = smul.addr %s248, 48
        %s250 = scalar_lea.vmem [#allocation3], %s249
        %p251 = pneg %p56
        %p252 = pneg %p53
        %s253 = smul.u32 48, %s21
        %s254 = smul.u32 2, %s20
        %p255 = scmp.lt.s32.totalorder %s253, 287
        %s256 = scalar_select %p255, %s253, 287
        %p257 = scmp.lt.s32.totalorder %s254, 1
        %s258 = scalar_select %p257, %s254, 1
        %s259 = smul.addr %s256, 2
        %s260 = sadd.s32 %s258, %s259
        %s261 = smul.addr %s260, 4
        %s262 = scalar_lea.vmem %s1, %s261
        %p263 = pneg %p84
        %p264 = pneg %p81
        %s265 = smul.u32 2, %s20
        %p266 = scmp.lt.s32.totalorder %s265, 1
        %s267 = scalar_select %p266, %s265, 1
        %s268 = scalar_lea.vmem %s2, %s267
        %p269 = pneg %p110
        %p270 = pneg %p107
        %p271 = pneg %p138
        %p272 = pneg %p135
        %s273 = smul.u32 4, %s19
        %s274 = smul.u32 2, %s20
        %p275 = scmp.lt.s32.totalorder %s273, 3
        %s276 = scalar_select %p275, %s273, 3
        %p277 = scmp.lt.s32.totalorder %s274, 1
        %s278 = scalar_select %p277, %s274, 1
        %s279 = smul.addr %s276, 2
        %s280 = sadd.s32 %s278, %s279
        %s281 = smul.addr %s280, 8
        %s282 = scalar_lea.vmem %s3, %s281
        %s283 = smul.u32 4, %s19
        %s284 = smul.u32 3, %s21
        %s285 = smul.u32 48, %s21
        %s286 = smul.u32 2, %s20
        %p287 = scmp.lt.s32.totalorder %s285, 287
        %s288 = scalar_select %p287, %s285, 287
        %p289 = scmp.lt.s32.totalorder %s286, 1
        %s290 = scalar_select %p289, %s286, 1
        %s291 = smul.addr %s288, 2
        %s292 = sadd.s32 %s290, %s291
        %s293 = smul.addr %s292, 4
        %s294 = scalar_lea.vmem %s1, %s293
        %s295 = smul.u32 48, %s21
        %s296 = smul.u32 2, %s20
        %s297 = smul.u32 2, %s20
        %p298 = scmp.lt.s32.totalorder %s297, 1
        %s299 = scalar_select %p298, %s297, 1
        %s300 = scalar_lea.vmem %s2, %s299
        %s301 = smul.u32 2, %s20
        %s302 = smul.u32 4, %s19
        %s303 = smul.u32 2, %s20
        %p304 = scmp.lt.s32.totalorder %s302, 3
        %s305 = scalar_select %p304, %s302, 3
        %p306 = scmp.lt.s32.totalorder %s303, 1
        %s307 = scalar_select %p306, %s303, 1
        %s308 = smul.addr %s305, 2
        %s309 = sadd.s32 %s307, %s308
        %s310 = smul.addr %s309, 8
        %s311 = scalar_lea.vmem %s3, %s310
        %s312 = smul.u32 4, %s19
        %s313 = smul.u32 2, %s20
        %p315 = scmp.eq.s32.totalorder %s21, 0
        // Predicated region
        $region59: #{_lambda_.19} parent=53 // pred_check
          %p316 = pneg %p315
        $region60: #{_lambda_.19} parent=53 // pred_check_branch
          %318 = sbr.rel (%p316) target = $region62
        $region61: #{_lambda_.19} parent=53 // pred_region
          %319 = vst [vmem:[#allocation2] sm:$0xff] 0.0
          %320 = vst [vmem:[#allocation2 + $0x8] sm:$0xff] 0.0
          %321 = vst [vmem:[#allocation2 + $0x10] sm:$0xff] 0.0
          %322 = vst [vmem:[#allocation2 + $0x18] sm:$0xff] 0.0
          %323 = vst [vmem:[#allocation2 + $0x20] sm:$0xff] 0.0
          %324 = vst [vmem:[#allocation2 + $0x28] sm:$0xff] 0.0
          %325 = vst [vmem:[#allocation2 + $0x30] sm:$0xff] 0.0
          %326 = vst [vmem:[#allocation2 + $0x38] sm:$0xff] 0.0
        $region62: #{_lambda_.19} parent=53 // pred_fallthru
          _
        %v327 = vld [vmem:[#allocation2] sm:$0xff]
        %v328 = vld [vmem:[#allocation2 + $0x8] sm:$0xff]
        %v329 = vld [vmem:[#allocation2 + $0x10] sm:$0xff]
        %v330 = vld [vmem:[#allocation2 + $0x18] sm:$0xff]
        %v331 = vld [vmem:[#allocation2 + $0x20] sm:$0xff]
        %v332 = vld [vmem:[#allocation2 + $0x28] sm:$0xff]
        %v333 = vld [vmem:[#allocation2 + $0x30] sm:$0xff]
        %v334 = vld [vmem:[#allocation2 + $0x38] sm:$0xff]
        %v335 = vld [vmem:[%s243] sm:$0xff]
        %v336 = vld [vmem:[%s243 + $0x8] sm:$0xf]
        %v337 = vld [vmem:[%s243 + $0xc] sm:$0xff]
        %v338 = vld [vmem:[%s243 + $0x14] sm:$0xf]
        %v339 = vld [vmem:[%s243 + $0x18] sm:$0xff]
        %v340 = vld [vmem:[%s243 + $0x20] sm:$0xf]
        %v341 = vld [vmem:[%s243 + $0x24] sm:$0xff]
        %v342 = vld [vmem:[%s243 + $0x2c] sm:$0xf]
        %v343 = vld [vmem:[%s294] sm:$0xff]
        %v344 = vld [vmem:[%s294 + $0x8] sm:$0xff]
        %v345 = vld [vmem:[%s294 + $0x10] sm:$0xff]
        %v346 = vld [vmem:[%s294 + $0x18] sm:$0xff]
        %v347 = vld [vmem:[%s294 + $0x20] sm:$0xff]
        %v348 = vld [vmem:[%s294 + $0x28] sm:$0xff]
        %v349 = vld [vmem:[%s294 + $0x30] sm:$0xff]
        %v350 = vld [vmem:[%s294 + $0x38] sm:$0xff]
        %v351 = vld [vmem:[%s294 + $0x40] sm:$0xff]
        %v352 = vld [vmem:[%s294 + $0x48] sm:$0xff]
        %v353 = vld [vmem:[%s294 + $0x50] sm:$0xff]
        %v354 = vld [vmem:[%s294 + $0x58] sm:$0xff]
        %v355 = vld [vmem:[%s294 + $0x60] sm:$0xff]
        %v356 = vld [vmem:[%s294 + $0x68] sm:$0xff]
        %v357 = vld [vmem:[%s294 + $0x70] sm:$0xff]
        %v358 = vld [vmem:[%s294 + $0x78] sm:$0xff]
        %v359 = vld [vmem:[%s294 + $0x80] sm:$0xff]
        %v360 = vld [vmem:[%s294 + $0x88] sm:$0xff]
        %v361 = vld [vmem:[%s294 + $0x90] sm:$0xff]
        %v362 = vld [vmem:[%s294 + $0x98] sm:$0xff]
        %v363 = vld [vmem:[%s294 + $0xa0] sm:$0xff]
        %v364 = vld [vmem:[%s294 + $0xa8] sm:$0xff]
        %v365 = vld [vmem:[%s294 + $0xb0] sm:$0xff]
        %v366 = vld [vmem:[%s294 + $0xb8] sm:$0xff]
        %v367 = vld [vmem:[%s294 + $0xc0] sm:$0xff]
        %v368 = vld [vmem:[%s294 + $0xc8] sm:$0xff]
        %v369 = vld [vmem:[%s294 + $0xd0] sm:$0xff]
        %v370 = vld [vmem:[%s294 + $0xd8] sm:$0xff]
        %v371 = vld [vmem:[%s294 + $0xe0] sm:$0xff]
        %v372 = vld [vmem:[%s294 + $0xe8] sm:$0xff]
        %v373 = vld [vmem:[%s294 + $0xf0] sm:$0xff]
        %v374 = vld [vmem:[%s294 + $0xf8] sm:$0xff]
        %v375 = vld [vmem:[%s294 + $0x100] sm:$0xff]
        %v376 = vld [vmem:[%s294 + $0x108] sm:$0xff]
        %v377 = vld [vmem:[%s294 + $0x110] sm:$0xff]
        %v378 = vld [vmem:[%s294 + $0x118] sm:$0xff]
        %v379 = vld [vmem:[%s294 + $0x120] sm:$0xff]
        %v380 = vld [vmem:[%s294 + $0x128] sm:$0xff]
        %v381 = vld [vmem:[%s294 + $0x130] sm:$0xff]
        %v382 = vld [vmem:[%s294 + $0x138] sm:$0xff]
        %v383 = vld [vmem:[%s294 + $0x140] sm:$0xff]
        %v384 = vld [vmem:[%s294 + $0x148] sm:$0xff]
        %v385 = vld [vmem:[%s294 + $0x150] sm:$0xff]
        %v386 = vld [vmem:[%s294 + $0x158] sm:$0xff]
        %v387 = vld [vmem:[%s294 + $0x160] sm:$0xff]
        %v388 = vld [vmem:[%s294 + $0x168] sm:$0xff]
        %v389 = vld [vmem:[%s294 + $0x170] sm:$0xff]
        %v390 = vld [vmem:[%s294 + $0x178] sm:$0xff]
        %v399 = vunpack.c.l.b16 %v335
        %v400 = vunpack.c.h.b16 %v335
        %v401 = vunpack.c.l.b16 %v336
        %v402 = vunpack.c.l.b16 %v337
        %v403 = vunpack.c.h.b16 %v337
        %v404 = vunpack.c.l.b16 %v338
        %v405 = vunpack.c.l.b16 %v339
        %v406 = vunpack.c.h.b16 %v339
        %v407 = vunpack.c.l.b16 %v340
        %v408 = vunpack.c.l.b16 %v341
        %v409 = vunpack.c.h.b16 %v341
        %v410 = vunpack.c.l.b16 %v342
        %v411 = vpack.c.b16 %v402, %v399
        %v412 = vpack.c.b16 %v403, %v400
        %v413 = vpack.c.b16 %v404, %v401
        %v414 = vpack.c.b16 %v408, %v405
        %v415 = vpack.c.b16 %v409, %v406
        %v416 = vpack.c.b16 %v410, %v407
        %v471 = vunpack.c.l.b16 %v343
        %v472 = vunpack.c.h.b16 %v343
        %v473 = vunpack.c.l.b16 %v344
        %v474 = vunpack.c.h.b16 %v344
        %v475 = vunpack.c.l.b16 %v345
        %v476 = vunpack.c.h.b16 %v345
        %v477 = vunpack.c.l.b16 %v346
        %v478 = vunpack.c.h.b16 %v346
        %v479 = vunpack.c.l.b16 %v347
        %v480 = vunpack.c.h.b16 %v347
        %v481 = vunpack.c.l.b16 %v348
        %v482 = vunpack.c.h.b16 %v348
        %v483 = vunpack.c.l.b16 %v349
        %v484 = vunpack.c.h.b16 %v349
        %v485 = vunpack.c.l.b16 %v350
        %v486 = vunpack.c.h.b16 %v350
        %v487 = vunpack.c.l.b16 %v351
        %v488 = vunpack.c.h.b16 %v351
        %v489 = vunpack.c.l.b16 %v352
        %v490 = vunpack.c.h.b16 %v352
        %v491 = vunpack.c.l.b16 %v353
        %v492 = vunpack.c.h.b16 %v353
        %v493 = vunpack.c.l.b16 %v354
        %v494 = vunpack.c.h.b16 %v354
        %v495 = vunpack.c.l.b16 %v355
        %v496 = vunpack.c.h.b16 %v355
        %v497 = vunpack.c.l.b16 %v356
        %v498 = vunpack.c.h.b16 %v356
        %v499 = vunpack.c.l.b16 %v357
        %v500 = vunpack.c.h.b16 %v357
        %v501 = vunpack.c.l.b16 %v358
        %v502 = vunpack.c.h.b16 %v358
        %v503 = vunpack.c.l.b16 %v359
        %v504 = vunpack.c.h.b16 %v359
        %v505 = vunpack.c.l.b16 %v360
        %v506 = vunpack.c.h.b16 %v360
        %v507 = vunpack.c.l.b16 %v361
        %v508 = vunpack.c.h.b16 %v361
        %v509 = vunpack.c.l.b16 %v362
        %v510 = vunpack.c.h.b16 %v362
        %v511 = vunpack.c.l.b16 %v363
        %v512 = vunpack.c.h.b16 %v363
        %v513 = vunpack.c.l.b16 %v364
        %v514 = vunpack.c.h.b16 %v364
        %v515 = vunpack.c.l.b16 %v365
        %v516 = vunpack.c.h.b16 %v365
        %v517 = vunpack.c.l.b16 %v366
        %v518 = vunpack.c.h.b16 %v366
        %v519 = vunpack.c.l.b16 %v367
        %v520 = vunpack.c.h.b16 %v367
        %v521 = vunpack.c.l.b16 %v368
        %v522 = vunpack.c.h.b16 %v368
        %v523 = vunpack.c.l.b16 %v369
        %v524 = vunpack.c.h.b16 %v369
        %v525 = vunpack.c.l.b16 %v370
        %v526 = vunpack.c.h.b16 %v370
        %v527 = vunpack.c.l.b16 %v371
        %v528 = vunpack.c.h.b16 %v371
        %v529 = vunpack.c.l.b16 %v372
        %v530 = vunpack.c.h.b16 %v372
        %v531 = vunpack.c.l.b16 %v373
        %v532 = vunpack.c.h.b16 %v373
        %v533 = vunpack.c.l.b16 %v374
        %v534 = vunpack.c.h.b16 %v374
        %v535 = vunpack.c.l.b16 %v375
        %v536 = vunpack.c.h.b16 %v375
        %v537 = vunpack.c.l.b16 %v376
        %v538 = vunpack.c.h.b16 %v376
        %v539 = vunpack.c.l.b16 %v377
        %v540 = vunpack.c.h.b16 %v377
        %v541 = vunpack.c.l.b16 %v378
        %v542 = vunpack.c.h.b16 %v378
        %v543 = vunpack.c.l.b16 %v379
        %v544 = vunpack.c.h.b16 %v379
        %v545 = vunpack.c.l.b16 %v380
        %v546 = vunpack.c.h.b16 %v380
        %v547 = vunpack.c.l.b16 %v381
        %v548 = vunpack.c.h.b16 %v381
        %v549 = vunpack.c.l.b16 %v382
        %v550 = vunpack.c.h.b16 %v382
        %v551 = vunpack.c.l.b16 %v383
        %v552 = vunpack.c.h.b16 %v383
        %v553 = vunpack.c.l.b16 %v384
        %v554 = vunpack.c.h.b16 %v384
        %v555 = vunpack.c.l.b16 %v385
        %v556 = vunpack.c.h.b16 %v385
        %v557 = vunpack.c.l.b16 %v386
        %v558 = vunpack.c.h.b16 %v386
        %v559 = vunpack.c.l.b16 %v387
        %v560 = vunpack.c.h.b16 %v387
        %v561 = vunpack.c.l.b16 %v388
        %v562 = vunpack.c.h.b16 %v388
        %v563 = vunpack.c.l.b16 %v389
        %v564 = vunpack.c.h.b16 %v389
        %v565 = vunpack.c.l.b16 %v390
        %v566 = vunpack.c.h.b16 %v390
        %v567 = vpack.c.b16 %v473, %v471
        %v568 = vpack.c.b16 %v474, %v472
        %v569 = vpack.c.b16 %v477, %v475
        %v570 = vpack.c.b16 %v478, %v476
        %v571 = vpack.c.b16 %v481, %v479
        %v572 = vpack.c.b16 %v482, %v480
        %v573 = vpack.c.b16 %v485, %v483
        %v574 = vpack.c.b16 %v486, %v484
        %v575 = vpack.c.b16 %v489, %v487
        %v576 = vpack.c.b16 %v490, %v488
        %v577 = vpack.c.b16 %v493, %v491
        %v578 = vpack.c.b16 %v494, %v492
        %v579 = vpack.c.b16 %v497, %v495
        %v580 = vpack.c.b16 %v498, %v496
        %v581 = vpack.c.b16 %v501, %v499
        %v582 = vpack.c.b16 %v502, %v500
        %v583 = vpack.c.b16 %v505, %v503
        %v584 = vpack.c.b16 %v506, %v504
        %v585 = vpack.c.b16 %v509, %v507
        %v586 = vpack.c.b16 %v510, %v508
        %v587 = vpack.c.b16 %v513, %v511
        %v588 = vpack.c.b16 %v514, %v512
        %v589 = vpack.c.b16 %v517, %v515
        %v590 = vpack.c.b16 %v518, %v516
        %v591 = vpack.c.b16 %v521, %v519
        %v592 = vpack.c.b16 %v522, %v520
        %v593 = vpack.c.b16 %v525, %v523
        %v594 = vpack.c.b16 %v526, %v524
        %v595 = vpack.c.b16 %v529, %v527
        %v596 = vpack.c.b16 %v530, %v528
        %v597 = vpack.c.b16 %v533, %v531
        %v598 = vpack.c.b16 %v534, %v532
        %v599 = vpack.c.b16 %v537, %v535
        %v600 = vpack.c.b16 %v538, %v536
        %v601 = vpack.c.b16 %v541, %v539
        %v602 = vpack.c.b16 %v542, %v540
        %v603 = vpack.c.b16 %v545, %v543
        %v604 = vpack.c.b16 %v546, %v544
        %v605 = vpack.c.b16 %v549, %v547
        %v606 = vpack.c.b16 %v550, %v548
        %v607 = vpack.c.b16 %v553, %v551
        %v608 = vpack.c.b16 %v554, %v552
        %v609 = vpack.c.b16 %v557, %v555
        %v610 = vpack.c.b16 %v558, %v556
        %v611 = vpack.c.b16 %v561, %v559
        %v612 = vpack.c.b16 %v562, %v560
        %v613 = vpack.c.b16 %v565, %v563
        %v614 = vpack.c.b16 %v566, %v564
        %663 = vmatprep.subr.bf16.mxu0 %v568
        %664 = vmatpush1.bf16.msra.mxu0 %v567
        %665 = vmatprep.subr.bf16.mxu0 %v570
        %666 = vmatpush1.bf16.msra.mxu0 %v569
        %667 = vmatprep.subr.bf16.mxu0 %v572
        %668 = vmatpush1.bf16.msra.mxu0 %v571
        %669 = vmatprep.subr.bf16.mxu0 %v574
        %670 = vmatpush1.bf16.msra.mxu0 %v573
        %671 = vmatprep.subr.bf16.mxu0 %v576
        %672 = vmatpush1.bf16.msra.mxu0 %v575
        %673 = vmatprep.subr.bf16.mxu0 %v578
        %674 = vmatpush1.bf16.msra.mxu0 %v577
        %675 = vmatprep.subr.bf16.mxu0 %v580
        %676 = vmatpush1.bf16.msra.mxu0 %v579
        %677 = vmatprep.subr.bf16.mxu0 %v582
        %678 = vmatpush1.bf16.msra.mxu0 %v581
        %679 = vmatprep.subr.bf16.mxu0 %v584
        %680 = vmatpush1.bf16.msra.mxu0 %v583
        %681 = vmatprep.subr.bf16.mxu0 %v586
        %682 = vmatpush1.bf16.msra.mxu0 %v585
        %683 = vmatprep.subr.bf16.mxu0 %v588
        %684 = vmatpush1.bf16.msra.mxu0 %v587
        %685 = vmatprep.subr.bf16.mxu0 %v590
        %686 = vmatpush1.bf16.msra.mxu0 %v589
        %687 = vmatprep.subr.bf16.mxu0 %v592
        %688 = vmatpush1.bf16.msra.mxu0 %v591
        %689 = vmatprep.subr.bf16.mxu0 %v594
        %690 = vmatpush1.bf16.msra.mxu0 %v593
        %691 = vmatprep.subr.bf16.mxu0 %v596
        %692 = vmatpush1.bf16.msra.mxu0 %v595
        %693 = vmatprep.subr.bf16.mxu0 %v598
        %694 = vmatpush1.bf16.msra.mxu0 %v597
        %695 = vmatprep.mubr.bf16.mxu0 %v412
        %696 = vmatmul.mubr.bf16.gmra.mrb[0].mxu0 %v411
        %v697 = vpop.f32.mrb[0].mxu0
        %v698 = vadd.f32 0.0, %v697
        %v699 = vpop.f32.mrb[0].mxu0
        %v700 = vadd.f32 0.0, %v699
        %v701 = vpop.f32.mrb[0].mxu0
        %v702 = vadd.f32 0.0, %v701
        %v703 = vpop.f32.mrb[0].mxu0
        %v704 = vadd.f32 0.0, %v703
        %705 = vmatprep.mubr.bf16.mxu0 %v415
        %706 = vmatmul.mubr.bf16.gmra.mrb[0].mxu0 %v414
        %v707 = vpop.f32.mrb[0].mxu0
        %v708 = vadd.f32 0.0, %v707
        %v709 = vpop.f32.mrb[0].mxu0
        %v710 = vadd.f32 0.0, %v709
        %v711 = vpop.f32.mrb[0].mxu0
        %v712 = vadd.f32 0.0, %v711
        %v713 = vpop.f32.mrb[0].mxu0
        %v714 = vadd.f32 0.0, %v713
        %715 = vdwg.mxu0
        %716 = vmatprep.subr.bf16.mxu0 %v600
        %717 = vmatpush1.bf16.msra.mxu0 %v599
        %718 = vmatprep.subr.bf16.mxu0 %v602
        %719 = vmatpush1.bf16.msra.mxu0 %v601
        %720 = vmatprep.subr.bf16.mxu0 %v604
        %721 = vmatpush1.bf16.msra.mxu0 %v603
        %722 = vmatprep.subr.bf16.mxu0 %v606
        %723 = vmatpush1.bf16.msra.mxu0 %v605
        %724 = vmatprep.subr.bf16.mxu0 %v608
        %725 = vmatpush1.bf16.msra.mxu0 %v607
        %726 = vmatprep.subr.bf16.mxu0 %v610
        %727 = vmatpush1.bf16.msra.mxu0 %v609
        %728 = vmatprep.subr.bf16.mxu0 %v612
        %729 = vmatpush1.bf16.msra.mxu0 %v611
        %730 = vmatprep.subr.bf16.mxu0 %v614
        %731 = vmatpush1.bf16.msra.mxu0 %v613
        %732 = vmatprep.subr.bf16.mxu0 0
        %733 = vmatpush1.bf16.msra.mxu0 0
        %734 = vmatprep.subr.bf16.mxu0 0
        %735 = vmatpush1.bf16.msra.mxu0 0
        %736 = vmatprep.subr.bf16.mxu0 0
        %737 = vmatpush1.bf16.msra.mxu0 0
        %738 = vmatprep.subr.bf16.mxu0 0
        %739 = vmatpush1.bf16.msra.mxu0 0
        %740 = vmatprep.subr.bf16.mxu0 0
        %741 = vmatpush1.bf16.msra.mxu0 0
        %742 = vmatprep.subr.bf16.mxu0 0
        %743 = vmatpush1.bf16.msra.mxu0 0
        %744 = vmatprep.subr.bf16.mxu0 0
        %745 = vmatpush1.bf16.msra.mxu0 0
        %746 = vmatprep.subr.bf16.mxu0 0
        %747 = vmatpush1.bf16.msra.mxu0 0
        %748 = vmatprep.mubr.bf16.mxu0 0
        %749 = vmatmul.mubr.bf16.gmra.mrb[0].mxu0 %v413
        %v750 = vpop.f32.mrb[0].mxu0
        %v751 = vadd.f32 %v698, %v750
        %v752 = vpop.f32.mrb[0].mxu0
        %v753 = vadd.f32 %v700, %v752
        %v754 = vpop.f32.mrb[0].mxu0
        %v755 = vadd.f32 %v702, %v754
        %v756 = vpop.f32.mrb[0].mxu0
        %v757 = vadd.f32 %v704, %v756
        %758 = vmatprep.mubr.bf16.mxu0 0
        %759 = vmatmul.mubr.bf16.gmra.mrb[0].mxu0 %v416
        %v760 = vpop.f32.mrb[0].mxu0
        %v761 = vadd.f32 %v708, %v760
        %v762 = vpop.f32.mrb[0].mxu0
        %v763 = vadd.f32 %v710, %v762
        %v764 = vpop.f32.mrb[0].mxu0
        %v765 = vadd.f32 %v712, %v764
        %v766 = vpop.f32.mrb[0].mxu0
        %v767 = vadd.f32 %v714, %v766
        %768 = vdwg.mxu0
        %v769 = vadd.f32 %v327, %v751
        %v770 = vadd.f32 %v328, %v753
        %v771 = vadd.f32 %v329, %v755
        %v772 = vadd.f32 %v330, %v757
        %v773 = vadd.f32 %v331, %v761
        %v774 = vadd.f32 %v332, %v763
        %v775 = vadd.f32 %v333, %v765
        %v776 = vadd.f32 %v334, %v767
        %777 = vst [vmem:[#allocation2] sm:$0xff] %v769
        %778 = vst [vmem:[#allocation2 + $0x8] sm:$0xff] %v770
        %779 = vst [vmem:[#allocation2 + $0x10] sm:$0xff] %v771
        %780 = vst [vmem:[#allocation2 + $0x18] sm:$0xff] %v772
        %781 = vst [vmem:[#allocation2 + $0x20] sm:$0xff] %v773
        %782 = vst [vmem:[#allocation2 + $0x28] sm:$0xff] %v774
        %783 = vst [vmem:[#allocation2 + $0x30] sm:$0xff] %v775
        %784 = vst [vmem:[#allocation2 + $0x38] sm:$0xff] %v776
        %p785 = scmp.eq.s32.totalorder %s21, 5
        // Predicated region
        $region63: #{_lambda_.19} parent=53 // pred_check
          %p786 = pneg %p785
        $region64: #{_lambda_.19} parent=53 // pred_check_branch
          %788 = sbr.rel (%p786) target = $region66
        $region65: #{_lambda_.19} parent=53 // pred_region
          %v789 = vld [vmem:[#allocation2] sm:$0xff]
          %v790 = vld [vmem:[#allocation2 + $0x8] sm:$0xff]
          %v791 = vld [vmem:[#allocation2 + $0x10] sm:$0xff]
          %v792 = vld [vmem:[#allocation2 + $0x18] sm:$0xff]
          %v793 = vld [vmem:[#allocation2 + $0x20] sm:$0xff]
          %v794 = vld [vmem:[#allocation2 + $0x28] sm:$0xff]
          %v795 = vld [vmem:[#allocation2 + $0x30] sm:$0xff]
          %v796 = vld [vmem:[#allocation2 + $0x38] sm:$0xff]
          %v797 = vld [vmem:[%s300] sm:$0x3]
          %v799 = vlaneseq
          %v800 = vshrl.u32 %v799, 7
          %v801 = vsub.s32 0, %v800
          %v802 = vrot.slane %v797, %v801
          %v803 = vlaneseq
          %v804 = vshrl.u32 %v803, 7
          %v805 = vsub.s32 1, %v804
          %v806 = vrot.slane %v797, %v805
          %v809 = vadd.f32 %v789, %v802
          %v810 = vadd.f32 %v790, %v806
          %v811 = vadd.f32 %v791, %v802
          %v812 = vadd.f32 %v792, %v806
          %v813 = vadd.f32 %v793, %v802
          %v814 = vadd.f32 %v794, %v806
          %v815 = vadd.f32 %v795, %v802
          %v816 = vadd.f32 %v796, %v806
          %v817 = vmax.f32 %v809, 0.0
          %v818 = vmax.f32 %v810, 0.0
          %v819 = vmax.f32 %v811, 0.0
          %v820 = vmax.f32 %v812, 0.0
          %v821 = vmax.f32 %v813, 0.0
          %v822 = vmax.f32 %v814, 0.0
          %v823 = vmax.f32 %v815, 0.0
          %v824 = vmax.f32 %v816, 0.0
          %825 = vst [vmem:[%s311] sm:$0xff] %v817
          %826 = vst [vmem:[%s311 + $0x8] sm:$0xff] %v818
          %827 = vst [vmem:[%s311 + $0x10] sm:$0xff] %v819
          %828 = vst [vmem:[%s311 + $0x18] sm:$0xff] %v820
          %829 = vst [vmem:[%s311 + $0x20] sm:$0xff] %v821
          %830 = vst [vmem:[%s311 + $0x28] sm:$0xff] %v822
          %831 = vst [vmem:[%s311 + $0x30] sm:$0xff] %v823
          %832 = vst [vmem:[%s311 + $0x38] sm:$0xff] %v824
        $region66: #{_lambda_.19} parent=53 // pred_fallthru
          _
        %s833 = smul.u32 4, %s19
        %s834 = smul.u32 2, %s20
        %p835 = scmp.lt.s32.totalorder %s833, 3
        %s836 = scalar_select %p835, %s833, 3
        %p837 = scmp.lt.s32.totalorder %s834, 1
        %s838 = scalar_select %p837, %s834, 1
        %s839 = smul.addr %s836, 2
        %s840 = sadd.s32 %s838, %s839
        %s841 = smul.addr %s840, 8
        %s842 = scalar_lea.vmem %s3, %s841
        // Predicated region
        $region67: #{_lambda_.19} parent=53 // pred_check
          %p843 = pneg %p135
        $region68: #{_lambda_.19} parent=53 // pred_check_branch
          %845 = sbr.rel (%p843) target = $region70
        $region69: #{_lambda_.19} parent=53 // pred_region
          %s846 = smul.u32 4, %s19
          %s847 = smul.u32 2, %s20
        $region70: #{_lambda_.19} parent=53 // pred_fallthru
          _
        // Predicated region
        $region71: #{_lambda_.19} parent=53 // pred_check
          %p848 = pneg %p135
        $region72: #{_lambda_.19} parent=53 // pred_check_branch
          %850 = sbr.rel (%p848) target = $region74
        $region73: #{_lambda_.19} parent=53 // pred_region
          %s851 = smul.u32 4, %s19
          %s852 = smul.u32 2, %s20
          %p853 = scmp.lt.s32.totalorder %s851, 3
          %s854 = scalar_select %p853, %s851, 3
          %p855 = scmp.lt.s32.totalorder %s852, 1
          %s856 = scalar_select %p855, %s852, 1
          %s857 = smul.addr %s854, 2
          %s858 = sadd.s32 %s856, %s857
          %s859 = smul.addr %s858, 8
          %s860 = scalar_lea.vmem %s3, %s859
        $region74: #{_lambda_.19} parent=53 // pred_fallthru
          _
      $region54: #{_lambda_.19} parent=5 // pred_fallthru
        _
      %p861 = scmp.le.s32.totalorder 2, %s9
      // Predicated region
      $region75: #{_lambda_.19} parent=5 // pred_check
        %p862 = pneg %p861
      $region76: #{_lambda_.19} parent=5 // pred_check_branch
        %864 = sbr.rel (%p862) target = $region78
      $region77: #{_lambda_.19} parent=5 // pred_region
        %s865 = ssub.s32 %s9, 2
      $region78: #{_lambda_.19} parent=5 // pred_fallthru
        _
    $region6: #{_lambda_.19} parent=1 // loop_footer
      %s13 = sadd.s32 1, %s9
    $region7: #{_lambda_.19} parent=1 // loop_footer_branch
      %8 = sbr.rel target = $region3
    $region8: #{_lambda_.19} parent=1 // loop_exit
      _

// kernel: _lambda_.21
$region0: #{_lambda_.21}
  #allocation0 [shape = 'u32[]', space=smem, size = 0x4, offset = 0x4, fixed_abs, tag = 'smem constant byte address 0x4 - core index']
  #allocation1 [shape = 'u32[144,128]{1,0:T(1,128)}', space=vmem, size = 0x12000, scoped, tag = 'internal scratch']
  %s0 = inlined_call_operand.vmem [shape: f32[32,512], index: 0, kind: input, shape index: {}]
  %s1 = inlined_call_operand.vmem [shape: f32[1,512], index: 1, kind: input, shape index: {}]
  %s2 = inlined_call_operand.vmem [shape: f32[1,512], index: 2, kind: input, shape index: {}]
  %s3 = inlined_call_operand.vmem [shape: f32[32,512], index: 3, kind: output, shape index: {}]
  %s4 = sld [smem:[#allocation0]]
  $region22: #{_lambda_.21} parent=0
    _
  %s6 = ssub.s32 1, %s4
  %s7 = scalar_select 0, %s6, %s4
  // Predicated region
  $region2: #{_lambda_.21} parent=0 // pred_check
    _
  $region3: #{_lambda_.21} parent=0 // pred_check_branch
    %9 = sbr.rel (0) target = $region5
  $region4: #{_lambda_.21} parent=0 // pred_region
    _
  $region5: #{_lambda_.21} parent=0 // pred_fallthru
    _
  // Predicated region
  $region6: #{_lambda_.21} parent=0 // pred_check
    _
  $region7: #{_lambda_.21} parent=0 // pred_check_branch
    %11 = sbr.rel (0) target = $region9
  $region8: #{_lambda_.21} parent=0 // pred_region
    _
  $region9: #{_lambda_.21} parent=0 // pred_fallthru
    _
  // Predicated region
  $region10: #{_lambda_.21} parent=0 // pred_check
    _
  $region11: #{_lambda_.21} parent=0 // pred_check_branch
    %13 = sbr.rel (0) target = $region13
  $region12: #{_lambda_.21} parent=0 // pred_region
    _
  $region13: #{_lambda_.21} parent=0 // pred_fallthru
    _
  %v14 = vld [vmem:[%s0] sm:$0xff]
  %v15 = vld [vmem:[%s0 + $0x8] sm:$0xff]
  %v16 = vld [vmem:[%s0 + $0x10] sm:$0xff]
  %v17 = vld [vmem:[%s0 + $0x18] sm:$0xff]
  %v18 = vld [vmem:[%s0 + $0x20] sm:$0xff]
  %v19 = vld [vmem:[%s0 + $0x28] sm:$0xff]
  %v20 = vld [vmem:[%s0 + $0x30] sm:$0xff]
  %v21 = vld [vmem:[%s0 + $0x38] sm:$0xff]
  %v22 = vld [vmem:[%s0 + $0x40] sm:$0xff]
  %v23 = vld [vmem:[%s0 + $0x48] sm:$0xff]
  %v24 = vld [vmem:[%s0 + $0x50] sm:$0xff]
  %v25 = vld [vmem:[%s0 + $0x58] sm:$0xff]
  %v26 = vld [vmem:[%s0 + $0x60] sm:$0xff]
  %v27 = vld [vmem:[%s0 + $0x68] sm:$0xff]
  %v28 = vld [vmem:[%s0 + $0x70] sm:$0xff]
  %v29 = vld [vmem:[%s0 + $0x78] sm:$0xff]
  %v30 = vld [vmem:[%s1] sm:$0xf]
  %v32 = vlaneseq
  %v33 = vshrl.u32 %v32, 7
  %v34 = vsub.s32 0, %v33
  %v35 = vrot.slane %v30, %v34
  %v36 = vlaneseq
  %v37 = vshrl.u32 %v36, 7
  %v38 = vsub.s32 1, %v37
  %v39 = vrot.slane %v30, %v38
  %v40 = vlaneseq
  %v41 = vshrl.u32 %v40, 7
  %v42 = vsub.s32 2, %v41
  %v43 = vrot.slane %v30, %v42
  %v44 = vlaneseq
  %v45 = vshrl.u32 %v44, 7
  %v46 = vsub.s32 3, %v45
  %v47 = vrot.slane %v30, %v46
  %v52 = vmul.f32 %v14, %v35
  %v53 = vmul.f32 %v15, %v39
  %v54 = vmul.f32 %v16, %v43
  %v55 = vmul.f32 %v17, %v47
  %v56 = vmul.f32 %v18, %v35
  %v57 = vmul.f32 %v19, %v39
  %v58 = vmul.f32 %v20, %v43
  %v59 = vmul.f32 %v21, %v47
  %v60 = vmul.f32 %v22, %v35
  %v61 = vmul.f32 %v23, %v39
  %v62 = vmul.f32 %v24, %v43
  %v63 = vmul.f32 %v25, %v47
  %v64 = vmul.f32 %v26, %v35
  %v65 = vmul.f32 %v27, %v39
  %v66 = vmul.f32 %v28, %v43
  %v67 = vmul.f32 %v29, %v47
  %v68 = vld [vmem:[%s2] sm:$0xf]
  %v70 = vlaneseq
  %v71 = vshrl.u32 %v70, 7
  %v72 = vsub.s32 0, %v71
  %v73 = vrot.slane %v68, %v72
  %v74 = vlaneseq
  %v75 = vshrl.u32 %v74, 7
  %v76 = vsub.s32 1, %v75
  %v77 = vrot.slane %v68, %v76
  %v78 = vlaneseq
  %v79 = vshrl.u32 %v78, 7
  %v80 = vsub.s32 2, %v79
  %v81 = vrot.slane %v68, %v80
  %v82 = vlaneseq
  %v83 = vshrl.u32 %v82, 7
  %v84 = vsub.s32 3, %v83
  %v85 = vrot.slane %v68, %v84
  %v90 = vadd.f32 %v52, %v73
  %v91 = vadd.f32 %v53, %v77
  %v92 = vadd.f32 %v54, %v81
  %v93 = vadd.f32 %v55, %v85
  %v94 = vadd.f32 %v56, %v73
  %v95 = vadd.f32 %v57, %v77
  %v96 = vadd.f32 %v58, %v81
  %v97 = vadd.f32 %v59, %v85
  %v98 = vadd.f32 %v60, %v73
  %v99 = vadd.f32 %v61, %v77
  %v100 = vadd.f32 %v62, %v81
  %v101 = vadd.f32 %v63, %v85
  %v102 = vadd.f32 %v64, %v73
  %v103 = vadd.f32 %v65, %v77
  %v104 = vadd.f32 %v66, %v81
  %v105 = vadd.f32 %v67, %v85
  %v106 = vmax.f32 %v90, 0.0
  %v107 = vmax.f32 %v91, 0.0
  %v108 = vmax.f32 %v92, 0.0
  %v109 = vmax.f32 %v93, 0.0
  %v110 = vmax.f32 %v94, 0.0
  %v111 = vmax.f32 %v95, 0.0
  %v112 = vmax.f32 %v96, 0.0
  %v113 = vmax.f32 %v97, 0.0
  %v114 = vmax.f32 %v98, 0.0
  %v115 = vmax.f32 %v99, 0.0
  %v116 = vmax.f32 %v100, 0.0
  %v117 = vmax.f32 %v101, 0.0
  %v118 = vmax.f32 %v102, 0.0
  %v119 = vmax.f32 %v103, 0.0
  %v120 = vmax.f32 %v104, 0.0
  %v121 = vmax.f32 %v105, 0.0
  %122 = vst [vmem:[%s3] sm:$0xff] %v106
  %123 = vst [vmem:[%s3 + $0x8] sm:$0xff] %v107
  %124 = vst [vmem:[%s3 + $0x10] sm:$0xff] %v108
  %125 = vst [vmem:[%s3 + $0x18] sm:$0xff] %v109
  %126 = vst [vmem:[%s3 + $0x20] sm:$0xff] %v110
  %127 = vst [vmem:[%s3 + $0x28] sm:$0xff] %v111
  %128 = vst [vmem:[%s3 + $0x30] sm:$0xff] %v112
  %129 = vst [vmem:[%s3 + $0x38] sm:$0xff] %v113
  %130 = vst [vmem:[%s3 + $0x40] sm:$0xff] %v114
  %131 = vst [vmem:[%s3 + $0x48] sm:$0xff] %v115
  %132 = vst [vmem:[%s3 + $0x50] sm:$0xff] %v116
  %133 = vst [vmem:[%s3 + $0x58] sm:$0xff] %v117
  %134 = vst [vmem:[%s3 + $0x60] sm:$0xff] %v118
  %135 = vst [vmem:[%s3 + $0x68] sm:$0xff] %v119
  %136 = vst [vmem:[%s3 + $0x70] sm:$0xff] %v120
  %137 = vst [vmem:[%s3 + $0x78] sm:$0xff] %v121
  // Predicated region
  $region14: #{_lambda_.21} parent=0 // pred_check
    _
  $region15: #{_lambda_.21} parent=0 // pred_check_branch
    %139 = sbr.rel (0) target = $region17
  $region16: #{_lambda_.21} parent=0 // pred_region
    _
  $region17: #{_lambda_.21} parent=0 // pred_fallthru
    _
  // Predicated region
  $region18: #{_lambda_.21} parent=0 // pred_check
    _
  $region19: #{_lambda_.21} parent=0 // pred_check_branch
    %141 = sbr.rel (0) target = $region21
  $region20: #{_lambda_.21} parent=0 // pred_region
    _
  $region21: #{_lambda_.21} parent=0 // pred_fallthru
    _

// kernel: _lambda_.20
$region0: #{_lambda_.20}
  #allocation0 [shape = 'u32[]', space=smem, size = 0x4, offset = 0x4, fixed_abs, tag = 'smem constant byte address 0x4 - core index']
  #allocation1 [shape = 'u32[144,128]{1,0:T(1,128)}', space=vmem, size = 0x12000, scoped, tag = 'internal scratch']
  #allocation2 [shape = 'f32[32,512]{1,0:T(8,128)}', space=vmem, size = 0x10000, scoped, tag = 'scratch operand']
  %s0 = inlined_call_operand.vmem [shape: bf16[32,2304], index: 0, kind: input, shape index: {}]
  %s1 = inlined_call_operand.vmem [shape: bf16[2304,512], index: 1, kind: input, shape index: {}]
  %s2 = inlined_call_operand.vmem [shape: f32[32,512], index: 2, kind: output, shape index: {0}]
  %s3 = inlined_call_operand.vmem [shape: f32[1,512], index: 3, kind: output, shape index: {1}]
  %s4 = inlined_call_operand.vmem [shape: f32[1,512], index: 4, kind: output, shape index: {2}]
  %5 = xla_tuple %s2, %s3, %s4
  %s6 = sld [smem:[#allocation0]]
  $region95: #{_lambda_.20} parent=0
    _
  %s8 = ssub.s32 1, %s6
  %s9 = scalar_select 0, %s8, %s6
  $region1: #{_lambda_.20} parent=0
    #allocation3 [shape = 'u8[49152]{0}', space=vmem, size = 0xc000, scoped, tag = 'input window, operand 0']
    loop: start=0, step=1, limit=8
    $region2: #{_lambda_.20} parent=1 // loop_pre_header
      _
    $region3: #{_lambda_.20} parent=1 // loop_header
      %s11 = sphi 0, %s15
      %p12 = scmp.ge.s32.totalorder %s11, 8
      %s18 = sphi 0, %s37
      %s19 = sphi 0, %s33
      %s20 = sphi 0, %s29
      %s21 = sphi 0, %s18
      %s22 = sphi 0, %s19
      %s23 = sphi 0, %s20
      %s24 = sphi 0, %s21
      %s25 = sphi 0, %s22
      %s26 = sphi 0, %s23
      %s42 = sphi 0, %s44
      %s45 = sphi 0, %s42
      %s46 = sphi 0, %s45
      %s62 = sphi 0, %s46
      %s70 = sphi 0, %s72
      %s73 = sphi 0, %s70
      %s74 = sphi 0, %s73
      %s90 = sphi 0, %s74
      %s98 = sphi 0, %s100
      %s101 = sphi 0, %s98
      %s102 = sphi 0, %s101
      %s118 = sphi 0, %s102
      %s124 = sphi 0, %s126
      %s127 = sphi 0, %s124
      %s128 = sphi 0, %s127
      %s144 = sphi 0, %s128
      %s150 = sphi 0, %s152
      %s153 = sphi 0, %s150
      %s154 = sphi 0, %s153
      %s170 = sphi 0, %s154
    $region4: #{_lambda_.20} parent=1 // loop_header_branch
      %14 = sbr.rel (%p12) target = $region8
    $region5: #{_lambda_.20} parent=1 // loop_body
      %s16 = ssub.s32 %s11, 1
      %s17 = ssub.s32 %s11, 2
      %s27 = sadd.s32 1, %s20
      %p28 = scmp.ge.s32.totalorder %s27, 6
      %s29 = scalar_select %p28, 0, %s27
      %s30 = sadd.s32 1, %s19
      %s31 = scalar_select %p28, %s30, %s19
      %p32 = scmp.ge.s32.totalorder %s31, 1
      %s33 = scalar_select %p32, 0, %s31
      %s34 = sadd.s32 1, %s18
      %s35 = scalar_select %p32, %s34, %s18
      %p36 = scmp.ge.s32.totalorder %s35, 1
      %s37 = scalar_select %p36, 0, %s35
      %s38 = ssub.s32 %s19, %s33
      %s39 = ssub.s32 %s20, %s29
      %s40 = sor.u32 %s38, %s39
      %p41 = scmp.eq.s32.totalorder %s40, 0
      %s43 = sadd.s32 %s42, 1
      %s44 = scalar_select %p41, %s42, %s43
      %p47 = pneg %p41
      %p48 = scmp.eq.s32.totalorder %s11, 5
      %p49 = por %p47, %p48
      %p50 = scmp.ne.s32.totalorder %s42, %s45
      %p51 = scmp.eq.s32.totalorder %s11, 0
      %p52 = por %p50, %p51
      %p53 = scmp.ne.s32.totalorder %s42, %s45
      %p54 = scmp.eq.s32.totalorder %s16, 5
      %p55 = por %p53, %p54
      %p56 = scmp.ne.s32.totalorder %s45, %s46
      %p57 = scmp.eq.s32.totalorder %s16, 0
      %p58 = por %p56, %p57
      %p59 = scmp.ne.s32.totalorder %s45, %s46
      %p60 = scmp.eq.s32.totalorder %s17, 5
      %p61 = por %p59, %p60
      %p63 = scmp.ne.s32.totalorder %s46, %s62
      %p64 = scmp.eq.s32.totalorder %s17, 0
      %p65 = por %p63, %p64
      %s66 = ssub.s32 %s20, %s29
      %s67 = ssub.s32 %s18, %s37
      %s68 = sor.u32 %s66, %s67
      %p69 = scmp.eq.s32.totalorder %s68, 0
      %s71 = sadd.s32 %s70, 1
      %s72 = scalar_select %p69, %s70, %s71
      %p75 = pneg %p69
      %p76 = scmp.eq.s32.totalorder %s11, 5
      %p77 = por %p75, %p76
      %p78 = scmp.ne.s32.totalorder %s70, %s73
      %p79 = scmp.eq.s32.totalorder %s11, 0
      %p80 = por %p78, %p79
      %p81 = scmp.ne.s32.totalorder %s70, %s73
      %p82 = scmp.eq.s32.totalorder %s16, 5
      %p83 = por %p81, %p82
      %p84 = scmp.ne.s32.totalorder %s73, %s74
      %p85 = scmp.eq.s32.totalorder %s16, 0
      %p86 = por %p84, %p85
      %p87 = scmp.ne.s32.totalorder %s73, %s74
      %p88 = scmp.eq.s32.totalorder %s17, 5
      %p89 = por %p87, %p88
      %p91 = scmp.ne.s32.totalorder %s74, %s90
      %p92 = scmp.eq.s32.totalorder %s17, 0
      %p93 = por %p91, %p92
      %s94 = ssub.s32 %s19, %s33
      %s95 = ssub.s32 %s18, %s37
      %s96 = sor.u32 %s94, %s95
      %p97 = scmp.eq.s32.totalorder %s96, 0
      %s99 = sadd.s32 %s98, 1
      %s100 = scalar_select %p97, %s98, %s99
      %p103 = pneg %p97
      %p104 = scmp.eq.s32.totalorder %s11, 5
      %p105 = por %p103, %p104
      %p106 = scmp.ne.s32.totalorder %s98, %s101
      %p107 = scmp.eq.s32.totalorder %s11, 0
      %p108 = por %p106, %p107
      %p109 = scmp.ne.s32.totalorder %s98, %s101
      %p110 = scmp.eq.s32.totalorder %s16, 5
      %p111 = por %p109, %p110
      %p112 = scmp.ne.s32.totalorder %s101, %s102
      %p113 = scmp.eq.s32.totalorder %s16, 0
      %p114 = por %p112, %p113
      %p115 = scmp.ne.s32.totalorder %s101, %s102
      %p116 = scmp.eq.s32.totalorder %s17, 5
      %p117 = por %p115, %p116
      %p119 = scmp.ne.s32.totalorder %s102, %s118
      %p120 = scmp.eq.s32.totalorder %s17, 0
      %p121 = por %p119, %p120
      %s122 = ssub.s32 %s18, %s37
      %p123 = scmp.eq.s32.totalorder %s122, 0
      %s125 = sadd.s32 %s124, 1
      %s126 = scalar_select %p123, %s124, %s125
      %p129 = pneg %p123
      %p130 = scmp.eq.s32.totalorder %s11, 5
      %p131 = por %p129, %p130
      %p132 = scmp.ne.s32.totalorder %s124, %s127
      %p133 = scmp.eq.s32.totalorder %s11, 0
      %p134 = por %p132, %p133
      %p135 = scmp.ne.s32.totalorder %s124, %s127
      %p136 = scmp.eq.s32.totalorder %s16, 5
      %p137 = por %p135, %p136
      %p138 = scmp.ne.s32.totalorder %s127, %s128
      %p139 = scmp.eq.s32.totalorder %s16, 0
      %p140 = por %p138, %p139
      %p141 = scmp.ne.s32.totalorder %s127, %s128
      %p142 = scmp.eq.s32.totalorder %s17, 5
      %p143 = por %p141, %p142
      %p145 = scmp.ne.s32.totalorder %s128, %s144
      %p146 = scmp.eq.s32.totalorder %s17, 0
      %p147 = por %p145, %p146
      %s148 = ssub.s32 %s18, %s37
      %p149 = scmp.eq.s32.totalorder %s148, 0
      %s151 = sadd.s32 %s150, 1
      %s152 = scalar_select %p149, %s150, %s151
      %p155 = pneg %p149
      %p156 = scmp.eq.s32.totalorder %s11, 5
      %p157 = por %p155, %p156
      %p158 = scmp.ne.s32.totalorder %s150, %s153
      %p159 = scmp.eq.s32.totalorder %s11, 0
      %p160 = por %p158, %p159
      %p161 = scmp.ne.s32.totalorder %s150, %s153
      %p162 = scmp.eq.s32.totalorder %s16, 5
      %p163 = por %p161, %p162
      %p164 = scmp.ne.s32.totalorder %s153, %s154
      %p165 = scmp.eq.s32.totalorder %s16, 0
      %p166 = por %p164, %p165
      %p167 = scmp.ne.s32.totalorder %s153, %s154
      %p168 = scmp.eq.s32.totalorder %s17, 5
      %p169 = por %p167, %p168
      %p171 = scmp.ne.s32.totalorder %s154, %s170
      %p172 = scmp.eq.s32.totalorder %s17, 0
      %p173 = por %p171, %p172
      %p174 = scmp.le.s32.totalorder 1, %s11
      %p175 = scmp.lt.s32.totalorder %s11, 7
      %p176 = pnand %p174, %p175
      %p177 = pneg %p176
      // Predicated region
      $region9: #{_lambda_.20} parent=5 // pred_check
        _
      $region10: #{_lambda_.20} parent=5 // pred_check_branch
        %179 = sbr.rel (%p176) target = $region12
      $region11: #{_lambda_.20} parent=5 // pred_region
        %s180 = ssub.s32 %s11, 1
      $region12: #{_lambda_.20} parent=5 // pred_fallthru
        _
      %p181 = scmp.lt.s32.totalorder %s11, 6
      // Predicated region
      $region13: #{_lambda_.20} parent=5 // pred_check
        %p182 = pneg %p181
      $region14: #{_lambda_.20} parent=5 // pred_check_branch
        %184 = sbr.rel (%p182) target = $region16
      $region15: #{_lambda_.20} parent=5 // pred_region
        // Predicated region
        $region17: #{_lambda_.20} parent=15 // pred_check
          %p185 = pneg %p52
        $region18: #{_lambda_.20} parent=15 // pred_check_branch
          %187 = sbr.rel (%p185) target = $region20
        $region19: #{_lambda_.20} parent=15 // pred_region
          %s188 = sand.u32 %s42, 1
          %s189 = sand.u32 %s42, 1
          %s190 = smul.addr %s189, 48
          %s191 = scalar_lea.vmem [#allocation3], %s190
          %s192 = smul.u32 4, %s19
          %s193 = smul.u32 3, %s20
          %s194 = smul.addr %s192, 18
          %s195 = sadd.s32 %s193, %s194
          %s196 = smul.addr %s195, 4
          %s197 = scalar_lea.vmem %s0, %s196
          // Predicated region
          $region21: #{_lambda_.20} parent=19 // pred_check
            _
          $region22: #{_lambda_.20} parent=19 // pred_check_branch
            %199 = sbr.rel (0) target = $region24
          $region23: #{_lambda_.20} parent=19 // pred_region
            // Predicated region
            $region25: #{_lambda_.20} parent=23 // pred_check
              _
            $region26: #{_lambda_.20} parent=23 // pred_check_branch
              %201 = sbr.rel (0) target = $region28
            $region27: #{_lambda_.20} parent=23 // pred_region
              %s202 = scalar_lea.vmem %s197, 8
              %s203 = scalar_lea.vmem %s191, 8 [#allocation3]
              loop: start=0, step=1, limit=1
              $region29: #{_lambda_.20} parent=27 // loop_pre_header
                _
              $region30: #{_lambda_.20} parent=27 // loop_header
                %s205 = sphi 0, %s209
                %p206 = scmp.ge.s32.totalorder %s205, 1
                %s210 = sphi %s197, %s197
                %s211 = sphi %s191, %s191
              $region31: #{_lambda_.20} parent=27 // loop_header_branch
                %208 = sbr.rel (%p206) target = $region35
              $region32: #{_lambda_.20} parent=27 // loop_body
                %v212 = vld [vmem:[%s210] sm:$0xff]
                %213 = vst [vmem:[%s211] sm:$0xff] %v212
                %v214 = vld [vmem:[%s210 + $0x48] sm:$0xff]
                %215 = vst [vmem:[%s211 + $0xc] sm:$0xff] %v214
                %v216 = vld [vmem:[%s210 + $0x90] sm:$0xff]
                %217 = vst [vmem:[%s211 + $0x18] sm:$0xff] %v216
                %v218 = vld [vmem:[%s210 + $0xd8] sm:$0xff]
                %219 = vst [vmem:[%s211 + $0x24] sm:$0xff] %v218
              $region33: #{_lambda_.20} parent=27 // loop_footer
                %s209 = sadd.s32 1, %s205
              $region34: #{_lambda_.20} parent=27 // loop_footer_branch
                %204 = sbr.rel target = $region30
              $region35: #{_lambda_.20} parent=27 // loop_exit
                _
              loop: start=0, step=1, limit=1
              $region36: #{_lambda_.20} parent=27 // loop_pre_header
                _
              $region37: #{_lambda_.20} parent=27 // loop_header
                %s222 = sphi 0, %s226
                %p223 = scmp.ge.s32.totalorder %s222, 1
                %s227 = sphi %s202, %s202
                %s228 = sphi %s203, %s203
              $region38: #{_lambda_.20} parent=27 // loop_header_branch
                %225 = sbr.rel (%p223) target = $region42
              $region39: #{_lambda_.20} parent=27 // loop_body
                %v229 = vld [vmem:[%s227] sm:$0xf]
                %230 = vst [vmem:[%s228] sm:$0xf] %v229
                %v231 = vld [vmem:[%s227 + $0x48] sm:$0xf]
                %232 = vst [vmem:[%s228 + $0xc] sm:$0xf] %v231
                %v233 = vld [vmem:[%s227 + $0x90] sm:$0xf]
                %234 = vst [vmem:[%s228 + $0x18] sm:$0xf] %v233
                %v235 = vld [vmem:[%s227 + $0xd8] sm:$0xf]
                %236 = vst [vmem:[%s228 + $0x24] sm:$0xf] %v235
              $region40: #{_lambda_.20} parent=27 // loop_footer
                %s226 = sadd.s32 1, %s222
              $region41: #{_lambda_.20} parent=27 // loop_footer_branch
                %221 = sbr.rel target = $region37
              $region42: #{_lambda_.20} parent=27 // loop_exit
                _
            $region28: #{_lambda_.20} parent=23 // pred_fallthru
              _
          $region24: #{_lambda_.20} parent=19 // pred_fallthru
            _
          %237 = vnop
        $region20: #{_lambda_.20} parent=15 // pred_fallthru
          _
        // Predicated region
        $region43: #{_lambda_.20} parent=15 // pred_check
          %p238 = pneg %p80
        $region44: #{_lambda_.20} parent=15 // pred_check_branch
          %240 = sbr.rel (%p238) target = $region46
        $region45: #{_lambda_.20} parent=15 // pred_region
          %s241 = smul.u32 48, %s20
          %s242 = smul.u32 4, %s18
          %p243 = scmp.lt.s32.totalorder %s241, 287
          %s244 = scalar_select %p243, %s241, 287
          %p245 = scmp.lt.s32.totalorder %s242, 3
          %s246 = scalar_select %p245, %s242, 3
          %s247 = smul.addr %s244, 4
          %s248 = sadd.s32 %s246, %s247
          %s249 = smul.addr %s248, 4
          %s250 = scalar_lea.vmem %s1, %s249
          %s251 = smul.u32 48, %s20
          %s252 = smul.u32 4, %s18
        $region46: #{_lambda_.20} parent=15 // pred_fallthru
          _
      $region16: #{_lambda_.20} parent=5 // pred_fallthru
        _
      %p253 = scmp.le.s32.totalorder 1, %s11
      %p254 = scmp.lt.s32.totalorder %s11, 7
      %p255 = pnand %p253, %p254
      %p256 = pneg %p255
      // Predicated region
      $region47: #{_lambda_.20} parent=5 // pred_check
        _
      $region48: #{_lambda_.20} parent=5 // pred_check_branch
        %258 = sbr.rel (%p255) target = $region50
      $region49: #{_lambda_.20} parent=5 // pred_region
        %s259 = ssub.s32 %s11, 1
        %s260 = sand.u32 %s45, 1
        %s261 = sand.u32 %s45, 1
        %s262 = smul.addr %s261, 48
        %s263 = scalar_lea.vmem [#allocation3], %s262
        // Predicated region
        $region51: #{_lambda_.20} parent=49 // pred_check
          %p264 = pneg %p58
        $region52: #{_lambda_.20} parent=49 // pred_check_branch
          %266 = sbr.rel (%p264) target = $region54
        $region53: #{_lambda_.20} parent=49 // pred_region
          _
        $region54: #{_lambda_.20} parent=49 // pred_fallthru
          _
        %s267 = sand.u32 %s45, 1
        %s268 = sand.u32 %s45, 1
        %s269 = smul.addr %s268, 48
        %s270 = scalar_lea.vmem [#allocation3], %s269
        %p271 = pneg %p58
        %p272 = pneg %p55
        %s273 = smul.u32 48, %s23
        %s274 = smul.u32 4, %s21
        %p275 = scmp.lt.s32.totalorder %s273, 287
        %s276 = scalar_select %p275, %s273, 287
        %p277 = scmp.lt.s32.totalorder %s274, 3
        %s278 = scalar_select %p277, %s274, 3
        %s279 = smul.addr %s276, 4
        %s280 = sadd.s32 %s278, %s279
        %s281 = smul.addr %s280, 4
        %s282 = scalar_lea.vmem %s1, %s281
        %p283 = pneg %p86
        %p284 = pneg %p83
        %p285 = pneg %p114
        %p286 = pneg %p111
        %s287 = smul.u32 4, %s22
        %s288 = smul.u32 4, %s21
        %p289 = scmp.lt.s32.totalorder %s287, 3
        %s290 = scalar_select %p289, %s287, 3
        %p291 = scmp.lt.s32.totalorder %s288, 3
        %s292 = scalar_select %p291, %s288, 3
        %s293 = smul.addr %s290, 4
        %s294 = sadd.s32 %s292, %s293
        %s295 = smul.addr %s294, 8
        %s296 = scalar_lea.vmem %s2, %s295
        %p297 = pneg %p140
        %p298 = pneg %p137
        %s299 = smul.u32 4, %s21
        %p300 = scmp.lt.s32.totalorder %s299, 3
        %s301 = scalar_select %p300, %s299, 3
        %s302 = scalar_lea.vmem %s3, %s301
        %p303 = pneg %p166
        %p304 = pneg %p163
        %s305 = smul.u32 4, %s21
        %p306 = scmp.lt.s32.totalorder %s305, 3
        %s307 = scalar_select %p306, %s305, 3
        %s308 = scalar_lea.vmem %s4, %s307
        %s309 = smul.u32 4, %s22
        %s310 = smul.u32 3, %s23
        %s311 = smul.u32 48, %s23
        %s312 = smul.u32 4, %s21
        %p313 = scmp.lt.s32.totalorder %s311, 287
        %s314 = scalar_select %p313, %s311, 287
        %p315 = scmp.lt.s32.totalorder %s312, 3
        %s316 = scalar_select %p315, %s312, 3
        %s317 = smul.addr %s314, 4
        %s318 = sadd.s32 %s316, %s317
        %s319 = smul.addr %s318, 4
        %s320 = scalar_lea.vmem %s1, %s319
        %s321 = smul.u32 48, %s23
        %s322 = smul.u32 4, %s21
        %s323 = smul.u32 4, %s22
        %s324 = smul.u32 4, %s21
        %p325 = scmp.lt.s32.totalorder %s323, 3
        %s326 = scalar_select %p325, %s323, 3
        %p327 = scmp.lt.s32.totalorder %s324, 3
        %s328 = scalar_select %p327, %s324, 3
        %s329 = smul.addr %s326, 4
        %s330 = sadd.s32 %s328, %s329
        %s331 = smul.addr %s330, 8
        %s332 = scalar_lea.vmem %s2, %s331
        %s333 = smul.u32 4, %s22
        %s334 = smul.u32 4, %s21
        %s335 = smul.u32 4, %s21
        %p336 = scmp.lt.s32.totalorder %s335, 3
        %s337 = scalar_select %p336, %s335, 3
        %s338 = scalar_lea.vmem %s3, %s337
        %s339 = smul.u32 4, %s21
        %s340 = smul.u32 4, %s21
        %p341 = scmp.lt.s32.totalorder %s340, 3
        %s342 = scalar_select %p341, %s340, 3
        %s343 = scalar_lea.vmem %s4, %s342
        %s344 = smul.u32 4, %s21
        %p346 = scmp.eq.s32.totalorder %s23, 0
        // Predicated region
        $region55: #{_lambda_.20} parent=49 // pred_check
          %p347 = pneg %p346
        $region56: #{_lambda_.20} parent=49 // pred_check_branch
          %349 = sbr.rel (%p347) target = $region58
        $region57: #{_lambda_.20} parent=49 // pred_region
          %350 = vst [vmem:[#allocation2] sm:$0xff] 0.0
          %351 = vst [vmem:[#allocation2 + $0x8] sm:$0xff] 0.0
          %352 = vst [vmem:[#allocation2 + $0x10] sm:$0xff] 0.0
          %353 = vst [vmem:[#allocation2 + $0x18] sm:$0xff] 0.0
          %354 = vst [vmem:[#allocation2 + $0x20] sm:$0xff] 0.0
          %355 = vst [vmem:[#allocation2 + $0x28] sm:$0xff] 0.0
          %356 = vst [vmem:[#allocation2 + $0x30] sm:$0xff] 0.0
          %357 = vst [vmem:[#allocation2 + $0x38] sm:$0xff] 0.0
          %358 = vst [vmem:[#allocation2 + $0x40] sm:$0xff] 0.0
          %359 = vst [vmem:[#allocation2 + $0x48] sm:$0xff] 0.0
          %360 = vst [vmem:[#allocation2 + $0x50] sm:$0xff] 0.0
          %361 = vst [vmem:[#allocation2 + $0x58] sm:$0xff] 0.0
          %362 = vst [vmem:[#allocation2 + $0x60] sm:$0xff] 0.0
          %363 = vst [vmem:[#allocation2 + $0x68] sm:$0xff] 0.0
          %364 = vst [vmem:[#allocation2 + $0x70] sm:$0xff] 0.0
          %365 = vst [vmem:[#allocation2 + $0x78] sm:$0xff] 0.0
        $region58: #{_lambda_.20} parent=49 // pred_fallthru
          _
        %v366 = vld [vmem:[#allocation2] sm:$0xff]
        %v367 = vld [vmem:[#allocation2 + $0x8] sm:$0xff]
        %v368 = vld [vmem:[#allocation2 + $0x10] sm:$0xff]
        %v369 = vld [vmem:[#allocation2 + $0x18] sm:$0xff]
        %v370 = vld [vmem:[#allocation2 + $0x20] sm:$0xff]
        %v371 = vld [vmem:[#allocation2 + $0x28] sm:$0xff]
        %v372 = vld [vmem:[#allocation2 + $0x30] sm:$0xff]
        %v373 = vld [vmem:[#allocation2 + $0x38] sm:$0xff]
        %v374 = vld [vmem:[#allocation2 + $0x40] sm:$0xff]
        %v375 = vld [vmem:[#allocation2 + $0x48] sm:$0xff]
        %v376 = vld [vmem:[#allocation2 + $0x50] sm:$0xff]
        %v377 = vld [vmem:[#allocation2 + $0x58] sm:$0xff]
        %v378 = vld [vmem:[#allocation2 + $0x60] sm:$0xff]
        %v379 = vld [vmem:[#allocation2 + $0x68] sm:$0xff]
        %v380 = vld [vmem:[#allocation2 + $0x70] sm:$0xff]
        %v381 = vld [vmem:[#allocation2 + $0x78] sm:$0xff]
        %v382 = vld [vmem:[%s263] sm:$0xff]
        %v383 = vld [vmem:[%s263 + $0x8] sm:$0xf]
        %v384 = vld [vmem:[%s263 + $0xc] sm:$0xff]
        %v385 = vld [vmem:[%s263 + $0x14] sm:$0xf]
        %v386 = vld [vmem:[%s263 + $0x18] sm:$0xff]
        %v387 = vld [vmem:[%s263 + $0x20] sm:$0xf]
        %v388 = vld [vmem:[%s263 + $0x24] sm:$0xff]
        %v389 = vld [vmem:[%s263 + $0x2c] sm:$0xf]
        %v390 = vld [vmem:[%s320] sm:$0xff]
        %v391 = vld [vmem:[%s320 + $0x8] sm:$0xff]
        %v392 = vld [vmem:[%s320 + $0x10] sm:$0xff]
        %v393 = vld [vmem:[%s320 + $0x18] sm:$0xff]
        %v394 = vld [vmem:[%s320 + $0x20] sm:$0xff]
        %v395 = vld [vmem:[%s320 + $0x28] sm:$0xff]
        %v396 = vld [vmem:[%s320 + $0x30] sm:$0xff]
        %v397 = vld [vmem:[%s320 + $0x38] sm:$0xff]
        %v398 = vld [vmem:[%s320 + $0x40] sm:$0xff]
        %v399 = vld [vmem:[%s320 + $0x48] sm:$0xff]
        %v400 = vld [vmem:[%s320 + $0x50] sm:$0xff]
        %v401 = vld [vmem:[%s320 + $0x58] sm:$0xff]
        %v402 = vld [vmem:[%s320 + $0x60] sm:$0xff]
        %v403 = vld [vmem:[%s320 + $0x68] sm:$0xff]
        %v404 = vld [vmem:[%s320 + $0x70] sm:$0xff]
        %v405 = vld [vmem:[%s320 + $0x78] sm:$0xff]
        %v406 = vld [vmem:[%s320 + $0x80] sm:$0xff]
        %v407 = vld [vmem:[%s320 + $0x88] sm:$0xff]
        %v408 = vld [vmem:[%s320 + $0x90] sm:$0xff]
        %v409 = vld [vmem:[%s320 + $0x98] sm:$0xff]
        %v410 = vld [vmem:[%s320 + $0xa0] sm:$0xff]
        %v411 = vld [vmem:[%s320 + $0xa8] sm:$0xff]
        %v412 = vld [vmem:[%s320 + $0xb0] sm:$0xff]
        %v413 = vld [vmem:[%s320 + $0xb8] sm:$0xff]
        %v414 = vld [vmem:[%s320 + $0xc0] sm:$0xff]
        %v415 = vld [vmem:[%s320 + $0xc8] sm:$0xff]
        %v416 = vld [vmem:[%s320 + $0xd0] sm:$0xff]
        %v417 = vld [vmem:[%s320 + $0xd8] sm:$0xff]
        %v418 = vld [vmem:[%s320 + $0xe0] sm:$0xff]
        %v419 = vld [vmem:[%s320 + $0xe8] sm:$0xff]
        %v420 = vld [vmem:[%s320 + $0xf0] sm:$0xff]
        %v421 = vld [vmem:[%s320 + $0xf8] sm:$0xff]
        %v422 = vld [vmem:[%s320 + $0x100] sm:$0xff]
        %v423 = vld [vmem:[%s320 + $0x108] sm:$0xff]
        %v424 = vld [vmem:[%s320 + $0x110] sm:$0xff]
        %v425 = vld [vmem:[%s320 + $0x118] sm:$0xff]
        %v426 = vld [vmem:[%s320 + $0x120] sm:$0xff]
        %v427 = vld [vmem:[%s320 + $0x128] sm:$0xff]
        %v428 = vld [vmem:[%s320 + $0x130] sm:$0xff]
        %v429 = vld [vmem:[%s320 + $0x138] sm:$0xff]
        %v430 = vld [vmem:[%s320 + $0x140] sm:$0xff]
        %v431 = vld [vmem:[%s320 + $0x148] sm:$0xff]
        %v432 = vld [vmem:[%s320 + $0x150] sm:$0xff]
        %v433 = vld [vmem:[%s320 + $0x158] sm:$0xff]
        %v434 = vld [vmem:[%s320 + $0x160] sm:$0xff]
        %v435 = vld [vmem:[%s320 + $0x168] sm:$0xff]
        %v436 = vld [vmem:[%s320 + $0x170] sm:$0xff]
        %v437 = vld [vmem:[%s320 + $0x178] sm:$0xff]
        %v438 = vld [vmem:[%s320 + $0x180] sm:$0xff]
        %v439 = vld [vmem:[%s320 + $0x188] sm:$0xff]
        %v440 = vld [vmem:[%s320 + $0x190] sm:$0xff]
        %v441 = vld [vmem:[%s320 + $0x198] sm:$0xff]
        %v442 = vld [vmem:[%s320 + $0x1a0] sm:$0xff]
        %v443 = vld [vmem:[%s320 + $0x1a8] sm:$0xff]
        %v444 = vld [vmem:[%s320 + $0x1b0] sm:$0xff]
        %v445 = vld [vmem:[%s320 + $0x1b8] sm:$0xff]
        %v446 = vld [vmem:[%s320 + $0x1c0] sm:$0xff]
        %v447 = vld [vmem:[%s320 + $0x1c8] sm:$0xff]
        %v448 = vld [vmem:[%s320 + $0x1d0] sm:$0xff]
        %v449 = vld [vmem:[%s320 + $0x1d8] sm:$0xff]
        %v450 = vld [vmem:[%s320 + $0x1e0] sm:$0xff]
        %v451 = vld [vmem:[%s320 + $0x1e8] sm:$0xff]
        %v452 = vld [vmem:[%s320 + $0x1f0] sm:$0xff]
        %v453 = vld [vmem:[%s320 + $0x1f8] sm:$0xff]
        %v454 = vld [vmem:[%s320 + $0x200] sm:$0xff]
        %v455 = vld [vmem:[%s320 + $0x208] sm:$0xff]
        %v456 = vld [vmem:[%s320 + $0x210] sm:$0xff]
        %v457 = vld [vmem:[%s320 + $0x218] sm:$0xff]
        %v458 = vld [vmem:[%s320 + $0x220] sm:$0xff]
        %v459 = vld [vmem:[%s320 + $0x228] sm:$0xff]
        %v460 = vld [vmem:[%s320 + $0x230] sm:$0xff]
        %v461 = vld [vmem:[%s320 + $0x238] sm:$0xff]
        %v462 = vld [vmem:[%s320 + $0x240] sm:$0xff]
        %v463 = vld [vmem:[%s320 + $0x248] sm:$0xff]
        %v464 = vld [vmem:[%s320 + $0x250] sm:$0xff]
        %v465 = vld [vmem:[%s320 + $0x258] sm:$0xff]
        %v466 = vld [vmem:[%s320 + $0x260] sm:$0xff]
        %v467 = vld [vmem:[%s320 + $0x268] sm:$0xff]
        %v468 = vld [vmem:[%s320 + $0x270] sm:$0xff]
        %v469 = vld [vmem:[%s320 + $0x278] sm:$0xff]
        %v470 = vld [vmem:[%s320 + $0x280] sm:$0xff]
        %v471 = vld [vmem:[%s320 + $0x288] sm:$0xff]
        %v472 = vld [vmem:[%s320 + $0x290] sm:$0xff]
        %v473 = vld [vmem:[%s320 + $0x298] sm:$0xff]
        %v474 = vld [vmem:[%s320 + $0x2a0] sm:$0xff]
        %v475 = vld [vmem:[%s320 + $0x2a8] sm:$0xff]
        %v476 = vld [vmem:[%s320 + $0x2b0] sm:$0xff]
        %v477 = vld [vmem:[%s320 + $0x2b8] sm:$0xff]
        %v478 = vld [vmem:[%s320 + $0x2c0] sm:$0xff]
        %v479 = vld [vmem:[%s320 + $0x2c8] sm:$0xff]
        %v480 = vld [vmem:[%s320 + $0x2d0] sm:$0xff]
        %v481 = vld [vmem:[%s320 + $0x2d8] sm:$0xff]
        %v482 = vld [vmem:[%s320 + $0x2e0] sm:$0xff]
        %v483 = vld [vmem:[%s320 + $0x2e8] sm:$0xff]
        %v484 = vld [vmem:[%s320 + $0x2f0] sm:$0xff]
        %v485 = vld [vmem:[%s320 + $0x2f8] sm:$0xff]
        %v494 = vunpack.c.l.b16 %v382
        %v495 = vunpack.c.h.b16 %v382
        %v496 = vunpack.c.l.b16 %v383
        %v497 = vunpack.c.l.b16 %v384
        %v498 = vunpack.c.h.b16 %v384
        %v499 = vunpack.c.l.b16 %v385
        %v500 = vunpack.c.l.b16 %v386
        %v501 = vunpack.c.h.b16 %v386
        %v502 = vunpack.c.l.b16 %v387
        %v503 = vunpack.c.l.b16 %v388
        %v504 = vunpack.c.h.b16 %v388
        %v505 = vunpack.c.l.b16 %v389
        %v506 = vpack.c.b16 %v497, %v494
        %v507 = vpack.c.b16 %v498, %v495
        %v508 = vpack.c.b16 %v499, %v496
        %v509 = vpack.c.b16 %v503, %v500
        %v510 = vpack.c.b16 %v504, %v501
        %v511 = vpack.c.b16 %v505, %v502
        %v614 = vunpack.c.l.b16 %v390
        %v615 = vunpack.c.h.b16 %v390
        %v616 = vunpack.c.l.b16 %v391
        %v617 = vunpack.c.h.b16 %v391
        %v618 = vunpack.c.l.b16 %v392
        %v619 = vunpack.c.h.b16 %v392
        %v620 = vunpack.c.l.b16 %v393
        %v621 = vunpack.c.h.b16 %v393
        %v622 = vunpack.c.l.b16 %v394
        %v623 = vunpack.c.h.b16 %v394
        %v624 = vunpack.c.l.b16 %v395
        %v625 = vunpack.c.h.b16 %v395
        %v626 = vunpack.c.l.b16 %v396
        %v627 = vunpack.c.h.b16 %v396
        %v628 = vunpack.c.l.b16 %v397
        %v629 = vunpack.c.h.b16 %v397
        %v630 = vunpack.c.l.b16 %v398
        %v631 = vunpack.c.h.b16 %v398
        %v632 = vunpack.c.l.b16 %v399
        %v633 = vunpack.c.h.b16 %v399
        %v634 = vunpack.c.l.b16 %v400
        %v635 = vunpack.c.h.b16 %v400
        %v636 = vunpack.c.l.b16 %v401
        %v637 = vunpack.c.h.b16 %v401
        %v638 = vunpack.c.l.b16 %v402
        %v639 = vunpack.c.h.b16 %v402
        %v640 = vunpack.c.l.b16 %v403
        %v641 = vunpack.c.h.b16 %v403
        %v642 = vunpack.c.l.b16 %v404
        %v643 = vunpack.c.h.b16 %v404
        %v644 = vunpack.c.l.b16 %v405
        %v645 = vunpack.c.h.b16 %v405
        %v646 = vunpack.c.l.b16 %v406
        %v647 = vunpack.c.h.b16 %v406
        %v648 = vunpack.c.l.b16 %v407
        %v649 = vunpack.c.h.b16 %v407
        %v650 = vunpack.c.l.b16 %v408
        %v651 = vunpack.c.h.b16 %v408
        %v652 = vunpack.c.l.b16 %v409
        %v653 = vunpack.c.h.b16 %v409
        %v654 = vunpack.c.l.b16 %v410
        %v655 = vunpack.c.h.b16 %v410
        %v656 = vunpack.c.l.b16 %v411
        %v657 = vunpack.c.h.b16 %v411
        %v658 = vunpack.c.l.b16 %v412
        %v659 = vunpack.c.h.b16 %v412
        %v660 = vunpack.c.l.b16 %v413
        %v661 = vunpack.c.h.b16 %v413
        %v662 = vunpack.c.l.b16 %v414
        %v663 = vunpack.c.h.b16 %v414
        %v664 = vunpack.c.l.b16 %v415
        %v665 = vunpack.c.h.b16 %v415
        %v666 = vunpack.c.l.b16 %v416
        %v667 = vunpack.c.h.b16 %v416
        %v668 = vunpack.c.l.b16 %v417
        %v669 = vunpack.c.h.b16 %v417
        %v670 = vunpack.c.l.b16 %v418
        %v671 = vunpack.c.h.b16 %v418
        %v672 = vunpack.c.l.b16 %v419
        %v673 = vunpack.c.h.b16 %v419
        %v674 = vunpack.c.l.b16 %v420
        %v675 = vunpack.c.h.b16 %v420
        %v676 = vunpack.c.l.b16 %v421
        %v677 = vunpack.c.h.b16 %v421
        %v678 = vunpack.c.l.b16 %v422
        %v679 = vunpack.c.h.b16 %v422
        %v680 = vunpack.c.l.b16 %v423
        %v681 = vunpack.c.h.b16 %v423
        %v682 = vunpack.c.l.b16 %v424
        %v683 = vunpack.c.h.b16 %v424
        %v684 = vunpack.c.l.b16 %v425
        %v685 = vunpack.c.h.b16 %v425
        %v686 = vunpack.c.l.b16 %v426
        %v687 = vunpack.c.h.b16 %v426
        %v688 = vunpack.c.l.b16 %v427
        %v689 = vunpack.c.h.b16 %v427
        %v690 = vunpack.c.l.b16 %v428
        %v691 = vunpack.c.h.b16 %v428
        %v692 = vunpack.c.l.b16 %v429
        %v693 = vunpack.c.h.b16 %v429
        %v694 = vunpack.c.l.b16 %v430
        %v695 = vunpack.c.h.b16 %v430
        %v696 = vunpack.c.l.b16 %v431
        %v697 = vunpack.c.h.b16 %v431
        %v698 = vunpack.c.l.b16 %v432
        %v699 = vunpack.c.h.b16 %v432
        %v700 = vunpack.c.l.b16 %v433
        %v701 = vunpack.c.h.b16 %v433
        %v702 = vunpack.c.l.b16 %v434
        %v703 = vunpack.c.h.b16 %v434
        %v704 = vunpack.c.l.b16 %v435
        %v705 = vunpack.c.h.b16 %v435
        %v706 = vunpack.c.l.b16 %v436
        %v707 = vunpack.c.h.b16 %v436
        %v708 = vunpack.c.l.b16 %v437
        %v709 = vunpack.c.h.b16 %v437
        %v710 = vunpack.c.l.b16 %v438
        %v711 = vunpack.c.h.b16 %v438
        %v712 = vunpack.c.l.b16 %v439
        %v713 = vunpack.c.h.b16 %v439
        %v714 = vunpack.c.l.b16 %v440
        %v715 = vunpack.c.h.b16 %v440
        %v716 = vunpack.c.l.b16 %v441
        %v717 = vunpack.c.h.b16 %v441
        %v718 = vunpack.c.l.b16 %v442
        %v719 = vunpack.c.h.b16 %v442
        %v720 = vunpack.c.l.b16 %v443
        %v721 = vunpack.c.h.b16 %v443
        %v722 = vunpack.c.l.b16 %v444
        %v723 = vunpack.c.h.b16 %v444
        %v724 = vunpack.c.l.b16 %v445
        %v725 = vunpack.c.h.b16 %v445
        %v726 = vunpack.c.l.b16 %v446
        %v727 = vunpack.c.h.b16 %v446
        %v728 = vunpack.c.l.b16 %v447
        %v729 = vunpack.c.h.b16 %v447
        %v730 = vunpack.c.l.b16 %v448
        %v731 = vunpack.c.h.b16 %v448
        %v732 = vunpack.c.l.b16 %v449
        %v733 = vunpack.c.h.b16 %v449
        %v734 = vunpack.c.l.b16 %v450
        %v735 = vunpack.c.h.b16 %v450
        %v736 = vunpack.c.l.b16 %v451
        %v737 = vunpack.c.h.b16 %v451
        %v738 = vunpack.c.l.b16 %v452
        %v739 = vunpack.c.h.b16 %v452
        %v740 = vunpack.c.l.b16 %v453
        %v741 = vunpack.c.h.b16 %v453
        %v742 = vunpack.c.l.b16 %v454
        %v743 = vunpack.c.h.b16 %v454
        %v744 = vunpack.c.l.b16 %v455
        %v745 = vunpack.c.h.b16 %v455
        %v746 = vunpack.c.l.b16 %v456
        %v747 = vunpack.c.h.b16 %v456
        %v748 = vunpack.c.l.b16 %v457
        %v749 = vunpack.c.h.b16 %v457
        %v750 = vunpack.c.l.b16 %v458
        %v751 = vunpack.c.h.b16 %v458
        %v752 = vunpack.c.l.b16 %v459
        %v753 = vunpack.c.h.b16 %v459
        %v754 = vunpack.c.l.b16 %v460
        %v755 = vunpack.c.h.b16 %v460
        %v756 = vunpack.c.l.b16 %v461
        %v757 = vunpack.c.h.b16 %v461
        %v758 = vunpack.c.l.b16 %v462
        %v759 = vunpack.c.h.b16 %v462
        %v760 = vunpack.c.l.b16 %v463
        %v761 = vunpack.c.h.b16 %v463
        %v762 = vunpack.c.l.b16 %v464
        %v763 = vunpack.c.h.b16 %v464
        %v764 = vunpack.c.l.b16 %v465
        %v765 = vunpack.c.h.b16 %v465
        %v766 = vunpack.c.l.b16 %v466
        %v767 = vunpack.c.h.b16 %v466
        %v768 = vunpack.c.l.b16 %v467
        %v769 = vunpack.c.h.b16 %v467
        %v770 = vunpack.c.l.b16 %v468
        %v771 = vunpack.c.h.b16 %v468
        %v772 = vunpack.c.l.b16 %v469
        %v773 = vunpack.c.h.b16 %v469
        %v774 = vunpack.c.l.b16 %v470
        %v775 = vunpack.c.h.b16 %v470
        %v776 = vunpack.c.l.b16 %v471
        %v777 = vunpack.c.h.b16 %v471
        %v778 = vunpack.c.l.b16 %v472
        %v779 = vunpack.c.h.b16 %v472
        %v780 = vunpack.c.l.b16 %v473
        %v781 = vunpack.c.h.b16 %v473
        %v782 = vunpack.c.l.b16 %v474
        %v783 = vunpack.c.h.b16 %v474
        %v784 = vunpack.c.l.b16 %v475
        %v785 = vunpack.c.h.b16 %v475
        %v786 = vunpack.c.l.b16 %v476
        %v787 = vunpack.c.h.b16 %v476
        %v788 = vunpack.c.l.b16 %v477
        %v789 = vunpack.c.h.b16 %v477
        %v790 = vunpack.c.l.b16 %v478
        %v791 = vunpack.c.h.b16 %v478
        %v792 = vunpack.c.l.b16 %v479
        %v793 = vunpack.c.h.b16 %v479
        %v794 = vunpack.c.l.b16 %v480
        %v795 = vunpack.c.h.b16 %v480
        %v796 = vunpack.c.l.b16 %v481
        %v797 = vunpack.c.h.b16 %v481
        %v798 = vunpack.c.l.b16 %v482
        %v799 = vunpack.c.h.b16 %v482
        %v800 = vunpack.c.l.b16 %v483
        %v801 = vunpack.c.h.b16 %v483
        %v802 = vunpack.c.l.b16 %v484
        %v803 = vunpack.c.h.b16 %v484
        %v804 = vunpack.c.l.b16 %v485
        %v805 = vunpack.c.h.b16 %v485
        %v806 = vpack.c.b16 %v618, %v614
        %v807 = vpack.c.b16 %v619, %v615
        %v808 = vpack.c.b16 %v620, %v616
        %v809 = vpack.c.b16 %v621, %v617
        %v810 = vpack.c.b16 %v626, %v622
        %v811 = vpack.c.b16 %v627, %v623
        %v812 = vpack.c.b16 %v628, %v624
        %v813 = vpack.c.b16 %v629, %v625
        %v814 = vpack.c.b16 %v634, %v630
        %v815 = vpack.c.b16 %v635, %v631
        %v816 = vpack.c.b16 %v636, %v632
        %v817 = vpack.c.b16 %v637, %v633
        %v818 = vpack.c.b16 %v642, %v638
        %v819 = vpack.c.b16 %v643, %v639
        %v820 = vpack.c.b16 %v644, %v640
        %v821 = vpack.c.b16 %v645, %v641
        %v822 = vpack.c.b16 %v650, %v646
        %v823 = vpack.c.b16 %v651, %v647
        %v824 = vpack.c.b16 %v652, %v648
        %v825 = vpack.c.b16 %v653, %v649
        %v826 = vpack.c.b16 %v658, %v654
        %v827 = vpack.c.b16 %v659, %v655
        %v828 = vpack.c.b16 %v660, %v656
        %v829 = vpack.c.b16 %v661, %v657
        %v830 = vpack.c.b16 %v666, %v662
        %v831 = vpack.c.b16 %v667, %v663
        %v832 = vpack.c.b16 %v668, %v664
        %v833 = vpack.c.b16 %v669, %v665
        %v834 = vpack.c.b16 %v674, %v670
        %v835 = vpack.c.b16 %v675, %v671
        %v836 = vpack.c.b16 %v676, %v672
        %v837 = vpack.c.b16 %v677, %v673
        %v838 = vpack.c.b16 %v682, %v678
        %v839 = vpack.c.b16 %v683, %v679
        %v840 = vpack.c.b16 %v684, %v680
        %v841 = vpack.c.b16 %v685, %v681
        %v842 = vpack.c.b16 %v690, %v686
        %v843 = vpack.c.b16 %v691, %v687
        %v844 = vpack.c.b16 %v692, %v688
        %v845 = vpack.c.b16 %v693, %v689
        %v846 = vpack.c.b16 %v698, %v694
        %v847 = vpack.c.b16 %v699, %v695
        %v848 = vpack.c.b16 %v700, %v696
        %v849 = vpack.c.b16 %v701, %v697
        %v850 = vpack.c.b16 %v706, %v702
        %v851 = vpack.c.b16 %v707, %v703
        %v852 = vpack.c.b16 %v708, %v704
        %v853 = vpack.c.b16 %v709, %v705
        %v854 = vpack.c.b16 %v714, %v710
        %v855 = vpack.c.b16 %v715, %v711
        %v856 = vpack.c.b16 %v716, %v712
        %v857 = vpack.c.b16 %v717, %v713
        %v858 = vpack.c.b16 %v722, %v718
        %v859 = vpack.c.b16 %v723, %v719
        %v860 = vpack.c.b16 %v724, %v720
        %v861 = vpack.c.b16 %v725, %v721
        %v862 = vpack.c.b16 %v730, %v726
        %v863 = vpack.c.b16 %v731, %v727
        %v864 = vpack.c.b16 %v732, %v728
        %v865 = vpack.c.b16 %v733, %v729
        %v866 = vpack.c.b16 %v738, %v734
        %v867 = vpack.c.b16 %v739, %v735
        %v868 = vpack.c.b16 %v740, %v736
        %v869 = vpack.c.b16 %v741, %v737
        %v870 = vpack.c.b16 %v746, %v742
        %v871 = vpack.c.b16 %v747, %v743
        %v872 = vpack.c.b16 %v748, %v744
        %v873 = vpack.c.b16 %v749, %v745
        %v874 = vpack.c.b16 %v754, %v750
        %v875 = vpack.c.b16 %v755, %v751
        %v876 = vpack.c.b16 %v756, %v752
        %v877 = vpack.c.b16 %v757, %v753
        %v878 = vpack.c.b16 %v762, %v758
        %v879 = vpack.c.b16 %v763, %v759
        %v880 = vpack.c.b16 %v764, %v760
        %v881 = vpack.c.b16 %v765, %v761
        %v882 = vpack.c.b16 %v770, %v766
        %v883 = vpack.c.b16 %v771, %v767
        %v884 = vpack.c.b16 %v772, %v768
        %v885 = vpack.c.b16 %v773, %v769
        %v886 = vpack.c.b16 %v778, %v774
        %v887 = vpack.c.b16 %v779, %v775
        %v888 = vpack.c.b16 %v780, %v776
        %v889 = vpack.c.b16 %v781, %v777
        %v890 = vpack.c.b16 %v786, %v782
        %v891 = vpack.c.b16 %v787, %v783
        %v892 = vpack.c.b16 %v788, %v784
        %v893 = vpack.c.b16 %v789, %v785
        %v894 = vpack.c.b16 %v794, %v790
        %v895 = vpack.c.b16 %v795, %v791
        %v896 = vpack.c.b16 %v796, %v792
        %v897 = vpack.c.b16 %v797, %v793
        %v898 = vpack.c.b16 %v802, %v798
        %v899 = vpack.c.b16 %v803, %v799
        %v900 = vpack.c.b16 %v804, %v800
        %v901 = vpack.c.b16 %v805, %v801
        %998 = vmatprep.subr.bf16.mxu0 %v807
        %999 = vmatpush1.bf16.msra.mxu0 %v806
        %1000 = vmatprep.subr.bf16.mxu0 %v811
        %1001 = vmatpush1.bf16.msra.mxu0 %v810
        %1002 = vmatprep.subr.bf16.mxu0 %v815
        %1003 = vmatpush1.bf16.msra.mxu0 %v814
        %1004 = vmatprep.subr.bf16.mxu0 %v819
        %1005 = vmatpush1.bf16.msra.mxu0 %v818
        %1006 = vmatprep.subr.bf16.mxu0 %v823
        %1007 = vmatpush1.bf16.msra.mxu0 %v822
        %1008 = vmatprep.subr.bf16.mxu0 %v827
        %1009 = vmatpush1.bf16.msra.mxu0 %v826
        %1010 = vmatprep.subr.bf16.mxu0 %v831
        %1011 = vmatpush1.bf16.msra.mxu0 %v830
        %1012 = vmatprep.subr.bf16.mxu0 %v835
        %1013 = vmatpush1.bf16.msra.mxu0 %v834
        %1014 = vmatprep.subr.bf16.mxu0 %v839
        %1015 = vmatpush1.bf16.msra.mxu0 %v838
        %1016 = vmatprep.subr.bf16.mxu0 %v843
        %1017 = vmatpush1.bf16.msra.mxu0 %v842
        %1018 = vmatprep.subr.bf16.mxu0 %v847
        %1019 = vmatpush1.bf16.msra.mxu0 %v846
        %1020 = vmatprep.subr.bf16.mxu0 %v851
        %1021 = vmatpush1.bf16.msra.mxu0 %v850
        %1022 = vmatprep.subr.bf16.mxu0 %v855
        %1023 = vmatpush1.bf16.msra.mxu0 %v854
        %1024 = vmatprep.subr.bf16.mxu0 %v859
        %1025 = vmatpush1.bf16.msra.mxu0 %v858
        %1026 = vmatprep.subr.bf16.mxu0 %v863
        %1027 = vmatpush1.bf16.msra.mxu0 %v862
        %1028 = vmatprep.subr.bf16.mxu0 %v867
        %1029 = vmatpush1.bf16.msra.mxu0 %v866
        %1030 = vmatprep.mubr.bf16.mxu0 %v507
        %1031 = vmatmul.mubr.bf16.gmra.mrb[0].mxu0 %v506
        %v1032 = vpop.f32.mrb[0].mxu0
        %v1033 = vadd.f32 0.0, %v1032
        %v1034 = vpop.f32.mrb[0].mxu0
        %v1035 = vadd.f32 0.0, %v1034
        %v1036 = vpop.f32.mrb[0].mxu0
        %v1037 = vadd.f32 0.0, %v1036
        %v1038 = vpop.f32.mrb[0].mxu0
        %v1039 = vadd.f32 0.0, %v1038
        %1040 = vmatprep.mubr.bf16.mxu0 %v510
        %1041 = vmatmul.mubr.bf16.gmra.mrb[0].mxu0 %v509
        %v1042 = vpop.f32.mrb[0].mxu0
        %v1043 = vadd.f32 0.0, %v1042
        %v1044 = vpop.f32.mrb[0].mxu0
        %v1045 = vadd.f32 0.0, %v1044
        %v1046 = vpop.f32.mrb[0].mxu0
        %v1047 = vadd.f32 0.0, %v1046
        %v1048 = vpop.f32.mrb[0].mxu0
        %v1049 = vadd.f32 0.0, %v1048
        %1050 = vdwg.mxu0
        %1051 = vmatprep.subr.bf16.mxu0 %v871
        %1052 = vmatpush1.bf16.msra.mxu0 %v870
        %1053 = vmatprep.subr.bf16.mxu0 %v875
        %1054 = vmatpush1.bf16.msra.mxu0 %v874
        %1055 = vmatprep.subr.bf16.mxu0 %v879
        %1056 = vmatpush1.bf16.msra.mxu0 %v878
        %1057 = vmatprep.subr.bf16.mxu0 %v883
        %1058 = vmatpush1.bf16.msra.mxu0 %v882
        %1059 = vmatprep.subr.bf16.mxu0 %v887
        %1060 = vmatpush1.bf16.msra.mxu0 %v886
        %1061 = vmatprep.subr.bf16.mxu0 %v891
        %1062 = vmatpush1.bf16.msra.mxu0 %v890
        %1063 = vmatprep.subr.bf16.mxu0 %v895
        %1064 = vmatpush1.bf16.msra.mxu0 %v894
        %1065 = vmatprep.subr.bf16.mxu0 %v899
        %1066 = vmatpush1.bf16.msra.mxu0 %v898
        %1067 = vmatprep.subr.bf16.mxu0 0
        %1068 = vmatpush1.bf16.msra.mxu0 0
        %1069 = vmatprep.subr.bf16.mxu0 0
        %1070 = vmatpush1.bf16.msra.mxu0 0
        %1071 = vmatprep.subr.bf16.mxu0 0
        %1072 = vmatpush1.bf16.msra.mxu0 0
        %1073 = vmatprep.subr.bf16.mxu0 0
        %1074 = vmatpush1.bf16.msra.mxu0 0
        %1075 = vmatprep.subr.bf16.mxu0 0
        %1076 = vmatpush1.bf16.msra.mxu0 0
        %1077 = vmatprep.subr.bf16.mxu0 0
        %1078 = vmatpush1.bf16.msra.mxu0 0
        %1079 = vmatprep.subr.bf16.mxu0 0
        %1080 = vmatpush1.bf16.msra.mxu0 0
        %1081 = vmatprep.subr.bf16.mxu0 0
        %1082 = vmatpush1.bf16.msra.mxu0 0
        %1083 = vmatprep.mubr.bf16.mxu0 0
        %1084 = vmatmul.mubr.bf16.gmra.mrb[0].mxu0 %v508
        %v1085 = vpop.f32.mrb[0].mxu0
        %v1086 = vadd.f32 %v1033, %v1085
        %v1087 = vpop.f32.mrb[0].mxu0
        %v1088 = vadd.f32 %v1035, %v1087
        %v1089 = vpop.f32.mrb[0].mxu0
        %v1090 = vadd.f32 %v1037, %v1089
        %v1091 = vpop.f32.mrb[0].mxu0
        %v1092 = vadd.f32 %v1039, %v1091
        %1093 = vmatprep.mubr.bf16.mxu0 0
        %1094 = vmatmul.mubr.bf16.gmra.mrb[0].mxu0 %v511
        %v1095 = vpop.f32.mrb[0].mxu0
        %v1096 = vadd.f32 %v1043, %v1095
        %v1097 = vpop.f32.mrb[0].mxu0
        %v1098 = vadd.f32 %v1045, %v1097
        %v1099 = vpop.f32.mrb[0].mxu0
        %v1100 = vadd.f32 %v1047, %v1099
        %v1101 = vpop.f32.mrb[0].mxu0
        %v1102 = vadd.f32 %v1049, %v1101
        %1103 = vdwg.mxu0
        %1104 = vmatprep.subr.bf16.mxu0 %v809
        %1105 = vmatpush1.bf16.msra.mxu0 %v808
        %1106 = vmatprep.subr.bf16.mxu0 %v813
        %1107 = vmatpush1.bf16.msra.mxu0 %v812
        %1108 = vmatprep.subr.bf16.mxu0 %v817
        %1109 = vmatpush1.bf16.msra.mxu0 %v816
        %1110 = vmatprep.subr.bf16.mxu0 %v821
        %1111 = vmatpush1.bf16.msra.mxu0 %v820
        %1112 = vmatprep.subr.bf16.mxu0 %v825
        %1113 = vmatpush1.bf16.msra.mxu0 %v824
        %1114 = vmatprep.subr.bf16.mxu0 %v829
        %1115 = vmatpush1.bf16.msra.mxu0 %v828
        %1116 = vmatprep.subr.bf16.mxu0 %v833
        %1117 = vmatpush1.bf16.msra.mxu0 %v832
        %1118 = vmatprep.subr.bf16.mxu0 %v837
        %1119 = vmatpush1.bf16.msra.mxu0 %v836
        %1120 = vmatprep.subr.bf16.mxu0 %v841
        %1121 = vmatpush1.bf16.msra.mxu0 %v840
        %1122 = vmatprep.subr.bf16.mxu0 %v845
        %1123 = vmatpush1.bf16.msra.mxu0 %v844
        %1124 = vmatprep.subr.bf16.mxu0 %v849
        %1125 = vmatpush1.bf16.msra.mxu0 %v848
        %1126 = vmatprep.subr.bf16.mxu0 %v853
        %1127 = vmatpush1.bf16.msra.mxu0 %v852
        %1128 = vmatprep.subr.bf16.mxu0 %v857
        %1129 = vmatpush1.bf16.msra.mxu0 %v856
        %1130 = vmatprep.subr.bf16.mxu0 %v861
        %1131 = vmatpush1.bf16.msra.mxu0 %v860
        %1132 = vmatprep.subr.bf16.mxu0 %v865
        %1133 = vmatpush1.bf16.msra.mxu0 %v864
        %1134 = vmatprep.subr.bf16.mxu0 %v869
        %1135 = vmatpush1.bf16.msra.mxu0 %v868
        %1136 = vmatprep.mubr.bf16.mxu0 %v507
        %1137 = vmatmul.mubr.bf16.gmra.mrb[0].mxu0 %v506
        %v1138 = vpop.f32.mrb[0].mxu0
        %v1139 = vadd.f32 0.0, %v1138
        %v1140 = vpop.f32.mrb[0].mxu0
        %v1141 = vadd.f32 0.0, %v1140
        %v1142 = vpop.f32.mrb[0].mxu0
        %v1143 = vadd.f32 0.0, %v1142
        %v1144 = vpop.f32.mrb[0].mxu0
        %v1145 = vadd.f32 0.0, %v1144
        %1146 = vmatprep.mubr.bf16.mxu0 %v510
        %1147 = vmatmul.mubr.bf16.gmra.mrb[0].mxu0 %v509
        %v1148 = vpop.f32.mrb[0].mxu0
        %v1149 = vadd.f32 0.0, %v1148
        %v1150 = vpop.f32.mrb[0].mxu0
        %v1151 = vadd.f32 0.0, %v1150
        %v1152 = vpop.f32.mrb[0].mxu0
        %v1153 = vadd.f32 0.0, %v1152
        %v1154 = vpop.f32.mrb[0].mxu0
        %v1155 = vadd.f32 0.0, %v1154
        %1156 = vdwg.mxu0
        %1157 = vmatprep.subr.bf16.mxu0 %v873
        %1158 = vmatpush1.bf16.msra.mxu0 %v872
        %1159 = vmatprep.subr.bf16.mxu0 %v877
        %1160 = vmatpush1.bf16.msra.mxu0 %v876
        %1161 = vmatprep.subr.bf16.mxu0 %v881
        %1162 = vmatpush1.bf16.msra.mxu0 %v880
        %1163 = vmatprep.subr.bf16.mxu0 %v885
        %1164 = vmatpush1.bf16.msra.mxu0 %v884
        %1165 = vmatprep.subr.bf16.mxu0 %v889
        %1166 = vmatpush1.bf16.msra.mxu0 %v888
        %1167 = vmatprep.subr.bf16.mxu0 %v893
        %1168 = vmatpush1.bf16.msra.mxu0 %v892
        %1169 = vmatprep.subr.bf16.mxu0 %v897
        %1170 = vmatpush1.bf16.msra.mxu0 %v896
        %1171 = vmatprep.subr.bf16.mxu0 %v901
        %1172 = vmatpush1.bf16.msra.mxu0 %v900
        %1173 = vmatprep.subr.bf16.mxu0 0
        %1174 = vmatpush1.bf16.msra.mxu0 0
        %1175 = vmatprep.subr.bf16.mxu0 0
        %1176 = vmatpush1.bf16.msra.mxu0 0
        %1177 = vmatprep.subr.bf16.mxu0 0
        %1178 = vmatpush1.bf16.msra.mxu0 0
        %1179 = vmatprep.subr.bf16.mxu0 0
        %1180 = vmatpush1.bf16.msra.mxu0 0
        %1181 = vmatprep.subr.bf16.mxu0 0
        %1182 = vmatpush1.bf16.msra.mxu0 0
        %1183 = vmatprep.subr.bf16.mxu0 0
        %1184 = vmatpush1.bf16.msra.mxu0 0
        %1185 = vmatprep.subr.bf16.mxu0 0
        %1186 = vmatpush1.bf16.msra.mxu0 0
        %1187 = vmatprep.subr.bf16.mxu0 0
        %1188 = vmatpush1.bf16.msra.mxu0 0
        %1189 = vmatprep.mubr.bf16.mxu0 0
        %1190 = vmatmul.mubr.bf16.gmra.mrb[0].mxu0 %v508
        %v1191 = vpop.f32.mrb[0].mxu0
        %v1192 = vadd.f32 %v1139, %v1191
        %v1193 = vpop.f32.mrb[0].mxu0
        %v1194 = vadd.f32 %v1141, %v1193
        %v1195 = vpop.f32.mrb[0].mxu0
        %v1196 = vadd.f32 %v1143, %v1195
        %v1197 = vpop.f32.mrb[0].mxu0
        %v1198 = vadd.f32 %v1145, %v1197
        %1199 = vmatprep.mubr.bf16.mxu0 0
        %1200 = vmatmul.mubr.bf16.gmra.mrb[0].mxu0 %v511
        %v1201 = vpop.f32.mrb[0].mxu0
        %v1202 = vadd.f32 %v1149, %v1201
        %v1203 = vpop.f32.mrb[0].mxu0
        %v1204 = vadd.f32 %v1151, %v1203
        %v1205 = vpop.f32.mrb[0].mxu0
        %v1206 = vadd.f32 %v1153, %v1205
        %v1207 = vpop.f32.mrb[0].mxu0
        %v1208 = vadd.f32 %v1155, %v1207
        %1209 = vdwg.mxu0
        %v1210 = vadd.f32 %v366, %v1086
        %v1211 = vadd.f32 %v367, %v1088
        %v1212 = vadd.f32 %v368, %v1192
        %v1213 = vadd.f32 %v369, %v1194
        %v1214 = vadd.f32 %v370, %v1090
        %v1215 = vadd.f32 %v371, %v1092
        %v1216 = vadd.f32 %v372, %v1196
        %v1217 = vadd.f32 %v373, %v1198
        %v1218 = vadd.f32 %v374, %v1096
        %v1219 = vadd.f32 %v375, %v1098
        %v1220 = vadd.f32 %v376, %v1202
        %v1221 = vadd.f32 %v377, %v1204
        %v1222 = vadd.f32 %v378, %v1100
        %v1223 = vadd.f32 %v379, %v1102
        %v1224 = vadd.f32 %v380, %v1206
        %v1225 = vadd.f32 %v381, %v1208
        %1226 = vst [vmem:[#allocation2] sm:$0xff] %v1210
        %1227 = vst [vmem:[#allocation2 + $0x8] sm:$0xff] %v1211
        %1228 = vst [vmem:[#allocation2 + $0x10] sm:$0xff] %v1212
        %1229 = vst [vmem:[#allocation2 + $0x18] sm:$0xff] %v1213
        %1230 = vst [vmem:[#allocation2 + $0x20] sm:$0xff] %v1214
        %1231 = vst [vmem:[#allocation2 + $0x28] sm:$0xff] %v1215
        %1232 = vst [vmem:[#allocation2 + $0x30] sm:$0xff] %v1216
        %1233 = vst [vmem:[#allocation2 + $0x38] sm:$0xff] %v1217
        %1234 = vst [vmem:[#allocation2 + $0x40] sm:$0xff] %v1218
        %1235 = vst [vmem:[#allocation2 + $0x48] sm:$0xff] %v1219
        %1236 = vst [vmem:[#allocation2 + $0x50] sm:$0xff] %v1220
        %1237 = vst [vmem:[#allocation2 + $0x58] sm:$0xff] %v1221
        %1238 = vst [vmem:[#allocation2 + $0x60] sm:$0xff] %v1222
        %1239 = vst [vmem:[#allocation2 + $0x68] sm:$0xff] %v1223
        %1240 = vst [vmem:[#allocation2 + $0x70] sm:$0xff] %v1224
        %1241 = vst [vmem:[#allocation2 + $0x78] sm:$0xff] %v1225
        %p1242 = scmp.eq.s32.totalorder %s23, 5
        %p1243 = scmp.eq.s32.totalorder %s22, 0
        %p1244 = pnand %p1242, %p1243
        %p1245 = pneg %p1244
        // Predicated region
        $region59: #{_lambda_.20} parent=49 // pred_check
          _
        $region60: #{_lambda_.20} parent=49 // pred_check_branch
          %1247 = sbr.rel (%p1244) target = $region62
        $region61: #{_lambda_.20} parent=49 // pred_region
          %v1248 = vlaneseq
          %vm1249 = vcmp.ge.s32.totalorder %v1248, 0
          %vm1250 = vcmp.lt.s32.totalorder %v1248, 512
          %vm1251 = vmand %vm1249, %vm1250
          %1252 = vst.msk [vmem:[%s338] sm:$0xf] %vm1251, 0.0
          %1253 = vst.msk [vmem:[%s343] sm:$0xf] %vm1251, 0.0
        $region62: #{_lambda_.20} parent=49 // pred_fallthru
          _
        // Predicated region
        $region63: #{_lambda_.20} parent=49 // pred_check
          %p1254 = pneg %p1242
        $region64: #{_lambda_.20} parent=49 // pred_check_branch
          %1256 = sbr.rel (%p1254) target = $region66
        $region65: #{_lambda_.20} parent=49 // pred_region
          %v1257 = vld [vmem:[#allocation2] sm:$0xff]
          %v1258 = vld [vmem:[#allocation2 + $0x8] sm:$0xff]
          %v1259 = vld [vmem:[#allocation2 + $0x10] sm:$0xff]
          %v1260 = vld [vmem:[#allocation2 + $0x18] sm:$0xff]
          %v1261 = vld [vmem:[#allocation2 + $0x20] sm:$0xff]
          %v1262 = vld [vmem:[#allocation2 + $0x28] sm:$0xff]
          %v1263 = vld [vmem:[#allocation2 + $0x30] sm:$0xff]
          %v1264 = vld [vmem:[#allocation2 + $0x38] sm:$0xff]
          %v1265 = vld [vmem:[#allocation2 + $0x40] sm:$0xff]
          %v1266 = vld [vmem:[#allocation2 + $0x48] sm:$0xff]
          %v1267 = vld [vmem:[#allocation2 + $0x50] sm:$0xff]
          %v1268 = vld [vmem:[#allocation2 + $0x58] sm:$0xff]
          %v1269 = vld [vmem:[#allocation2 + $0x60] sm:$0xff]
          %v1270 = vld [vmem:[#allocation2 + $0x68] sm:$0xff]
          %v1271 = vld [vmem:[#allocation2 + $0x70] sm:$0xff]
          %v1272 = vld [vmem:[#allocation2 + $0x78] sm:$0xff]
          %1273 = vst [vmem:[%s332] sm:$0xff] %v1257
          %1274 = vst [vmem:[%s332 + $0x8] sm:$0xff] %v1258
          %1275 = vst [vmem:[%s332 + $0x10] sm:$0xff] %v1259
          %1276 = vst [vmem:[%s332 + $0x18] sm:$0xff] %v1260
          %1277 = vst [vmem:[%s332 + $0x20] sm:$0xff] %v1261
          %1278 = vst [vmem:[%s332 + $0x28] sm:$0xff] %v1262
          %1279 = vst [vmem:[%s332 + $0x30] sm:$0xff] %v1263
          %1280 = vst [vmem:[%s332 + $0x38] sm:$0xff] %v1264
          %1281 = vst [vmem:[%s332 + $0x40] sm:$0xff] %v1265
          %1282 = vst [vmem:[%s332 + $0x48] sm:$0xff] %v1266
          %1283 = vst [vmem:[%s332 + $0x50] sm:$0xff] %v1267
          %1284 = vst [vmem:[%s332 + $0x58] sm:$0xff] %v1268
          %1285 = vst [vmem:[%s332 + $0x60] sm:$0xff] %v1269
          %1286 = vst [vmem:[%s332 + $0x68] sm:$0xff] %v1270
          %1287 = vst [vmem:[%s332 + $0x70] sm:$0xff] %v1271
          %1288 = vst [vmem:[%s332 + $0x78] sm:$0xff] %v1272
          %v1289 = vld [vmem:[%s338] sm:$0xf]
          %v1290 = vadd.f32 %v1257, %v1261
          %v1291 = vadd.f32 %v1290, %v1265
          %v1292 = vadd.f32 %v1291, %v1269
          %v1293 = vrot.slane %v1292, 4
          %v1294 = vadd.f32 %v1292, %v1293
          %v1295 = vrot.slane %v1294, 2
          %v1296 = vadd.f32 %v1294, %v1295
          %v1297 = vrot.slane %v1296, 1
          %v1298 = vadd.f32 %v1296, %v1297
          %v1299 = vadd.f32 %v1258, %v1262
          %v1300 = vadd.f32 %v1299, %v1266
          %v1301 = vadd.f32 %v1300, %v1270
          %v1302 = vrot.slane %v1301, 4
          %v1303 = vadd.f32 %v1301, %v1302
          %v1304 = vrot.slane %v1303, 2
          %v1305 = vadd.f32 %v1303, %v1304
          %v1306 = vrot.slane %v1305, 1
          %v1307 = vadd.f32 %v1305, %v1306
          %v1308 = vadd.f32 %v1259, %v1263
          %v1309 = vadd.f32 %v1308, %v1267
          %v1310 = vadd.f32 %v1309, %v1271
          %v1311 = vrot.slane %v1310, 4
          %v1312 = vadd.f32 %v1310, %v1311
          %v1313 = vrot.slane %v1312, 2
          %v1314 = vadd.f32 %v1312, %v1313
          %v1315 = vrot.slane %v1314, 1
          %v1316 = vadd.f32 %v1314, %v1315
          %v1317 = vadd.f32 %v1260, %v1264
          %v1318 = vadd.f32 %v1317, %v1268
          %v1319 = vadd.f32 %v1318, %v1272
          %v1320 = vrot.slane %v1319, 4
          %v1321 = vadd.f32 %v1319, %v1320
          %v1322 = vrot.slane %v1321, 2
          %v1323 = vadd.f32 %v1321, %v1322
          %v1324 = vrot.slane %v1323, 1
          %v1325 = vadd.f32 %v1323, %v1324
          %v1330 = vcombine.low %v1298, %v1307
          %v1331 = vcombine.low %v1316, %v1325
          %v1333 = vunpack.c.l.s4 1966171168
          %v1334 = vunpack.c.0.s8 %v1333
          %v1335 = vlaneseq
          %v1336 = vshrl.u32 %v1335, 7
          %v1337 = vsub.s32 %v1334, %v1336
          %v1338 = vrot.slane %v1330, %v1337
          %v1340 = vunpack.c.l.s4 1966171168
          %v1341 = vunpack.c.0.s8 %v1340
          %v1342 = vlaneseq
          %v1343 = vshrl.u32 %v1342, 7
          %v1344 = vsub.s32 %v1341, %v1343
          %v1345 = vrot.slane %v1331, %v1344
          %v1346 = vcombine.low %v1338, %v1345
          %v1348 = vunpack.c.l.s4 1966171168
          %v1349 = vunpack.c.0.s8 %v1348
          %v1350 = vlaneseq
          %v1351 = vshrl.u32 %v1350, 7
          %v1352 = vsub.s32 %v1349, %v1351
          %v1353 = vrot.slane %v1346, %v1352
          %v1355 = vadd.f32 %v1289, %v1353
          %v1356 = vlaneseq
          %vm1357 = vcmp.ge.s32.totalorder %v1356, 0
          %vm1358 = vcmp.lt.s32.totalorder %v1356, 512
          %vm1359 = vmand %vm1357, %vm1358
          %1360 = vst.msk [vmem:[%s338] sm:$0xf] %vm1359, %v1355
          %v1361 = vld [vmem:[%s343] sm:$0xf]
          %v1362 = vmul.f32 %v1257, %v1257
          %v1363 = vmul.f32 %v1258, %v1258
          %v1364 = vmul.f32 %v1259, %v1259
          %v1365 = vmul.f32 %v1260, %v1260
          %v1366 = vmul.f32 %v1261, %v1261
          %v1367 = vmul.f32 %v1262, %v1262
          %v1368 = vmul.f32 %v1263, %v1263
          %v1369 = vmul.f32 %v1264, %v1264
          %v1370 = vmul.f32 %v1265, %v1265
          %v1371 = vmul.f32 %v1266, %v1266
          %v1372 = vmul.f32 %v1267, %v1267
          %v1373 = vmul.f32 %v1268, %v1268
          %v1374 = vmul.f32 %v1269, %v1269
          %v1375 = vmul.f32 %v1270, %v1270
          %v1376 = vmul.f32 %v1271, %v1271
          %v1377 = vmul.f32 %v1272, %v1272
          %v1378 = vadd.f32 %v1362, %v1366
          %v1379 = vadd.f32 %v1378, %v1370
          %v1380 = vadd.f32 %v1379, %v1374
          %v1381 = vrot.slane %v1380, 4
          %v1382 = vadd.f32 %v1380, %v1381
          %v1383 = vrot.slane %v1382, 2
          %v1384 = vadd.f32 %v1382, %v1383
          %v1385 = vrot.slane %v1384, 1
          %v1386 = vadd.f32 %v1384, %v1385
          %v1387 = vadd.f32 %v1363, %v1367
          %v1388 = vadd.f32 %v1387, %v1371
          %v1389 = vadd.f32 %v1388, %v1375
          %v1390 = vrot.slane %v1389, 4
          %v1391 = vadd.f32 %v1389, %v1390
          %v1392 = vrot.slane %v1391, 2
          %v1393 = vadd.f32 %v1391, %v1392
          %v1394 = vrot.slane %v1393, 1
          %v1395 = vadd.f32 %v1393, %v1394
          %v1396 = vadd.f32 %v1364, %v1368
          %v1397 = vadd.f32 %v1396, %v1372
          %v1398 = vadd.f32 %v1397, %v1376
          %v1399 = vrot.slane %v1398, 4
          %v1400 = vadd.f32 %v1398, %v1399
          %v1401 = vrot.slane %v1400, 2
          %v1402 = vadd.f32 %v1400, %v1401
          %v1403 = vrot.slane %v1402, 1
          %v1404 = vadd.f32 %v1402, %v1403
          %v1405 = vadd.f32 %v1365, %v1369
          %v1406 = vadd.f32 %v1405, %v1373
          %v1407 = vadd.f32 %v1406, %v1377
          %v1408 = vrot.slane %v1407, 4
          %v1409 = vadd.f32 %v1407, %v1408
          %v1410 = vrot.slane %v1409, 2
          %v1411 = vadd.f32 %v1409, %v1410
          %v1412 = vrot.slane %v1411, 1
          %v1413 = vadd.f32 %v1411, %v1412
          %v1418 = vcombine.low %v1386, %v1395
          %v1419 = vcombine.low %v1404, %v1413
          %v1421 = vunpack.c.l.s4 1966171168
          %v1422 = vunpack.c.0.s8 %v1421
          %v1423 = vlaneseq
          %v1424 = vshrl.u32 %v1423, 7
          %v1425 = vsub.s32 %v1422, %v1424
          %v1426 = vrot.slane %v1418, %v1425
          %v1428 = vunpack.c.l.s4 1966171168
          %v1429 = vunpack.c.0.s8 %v1428
          %v1430 = vlaneseq
          %v1431 = vshrl.u32 %v1430, 7
          %v1432 = vsub.s32 %v1429, %v1431
          %v1433 = vrot.slane %v1419, %v1432
          %v1434 = vcombine.low %v1426, %v1433
          %v1436 = vunpack.c.l.s4 1966171168
          %v1437 = vunpack.c.0.s8 %v1436
          %v1438 = vlaneseq
          %v1439 = vshrl.u32 %v1438, 7
          %v1440 = vsub.s32 %v1437, %v1439
          %v1441 = vrot.slane %v1434, %v1440
          %v1443 = vadd.f32 %v1361, %v1441
          %1444 = vst.msk [vmem:[%s343] sm:$0xf] %vm1359, %v1443
        $region66: #{_lambda_.20} parent=49 // pred_fallthru
          _
        %s1445 = smul.u32 4, %s22
        %s1446 = smul.u32 4, %s21
        %p1447 = scmp.lt.s32.totalorder %s1445, 3
        %s1448 = scalar_select %p1447, %s1445, 3
        %p1449 = scmp.lt.s32.totalorder %s1446, 3
        %s1450 = scalar_select %p1449, %s1446, 3
        %s1451 = smul.addr %s1448, 4
        %s1452 = sadd.s32 %s1450, %s1451
        %s1453 = smul.addr %s1452, 8
        %s1454 = scalar_lea.vmem %s2, %s1453
        %s1455 = smul.u32 4, %s21
        %p1456 = scmp.lt.s32.totalorder %s1455, 3
        %s1457 = scalar_select %p1456, %s1455, 3
        %s1458 = scalar_lea.vmem %s3, %s1457
        %s1459 = smul.u32 4, %s21
        %p1460 = scmp.lt.s32.totalorder %s1459, 3
        %s1461 = scalar_select %p1460, %s1459, 3
        %s1462 = scalar_lea.vmem %s4, %s1461
        // Predicated region
        $region67: #{_lambda_.20} parent=49 // pred_check
          %p1463 = pneg %p111
        $region68: #{_lambda_.20} parent=49 // pred_check_branch
          %1465 = sbr.rel (%p1463) target = $region70
        $region69: #{_lambda_.20} parent=49 // pred_region
          %s1466 = smul.u32 4, %s22
          %s1467 = smul.u32 4, %s21
        $region70: #{_lambda_.20} parent=49 // pred_fallthru
          _
        // Predicated region
        $region71: #{_lambda_.20} parent=49 // pred_check
          %p1468 = pneg %p137
        $region72: #{_lambda_.20} parent=49 // pred_check_branch
          %1470 = sbr.rel (%p1468) target = $region74
        $region73: #{_lambda_.20} parent=49 // pred_region
          %s1471 = smul.u32 4, %s21
        $region74: #{_lambda_.20} parent=49 // pred_fallthru
          _
        // Predicated region
        $region75: #{_lambda_.20} parent=49 // pred_check
          %p1472 = pneg %p163
        $region76: #{_lambda_.20} parent=49 // pred_check_branch
          %1474 = sbr.rel (%p1472) target = $region78
        $region77: #{_lambda_.20} parent=49 // pred_region
          %s1475 = smul.u32 4, %s21
        $region78: #{_lambda_.20} parent=49 // pred_fallthru
          _
        // Predicated region
        $region79: #{_lambda_.20} parent=49 // pred_check
          %p1476 = pneg %p111
        $region80: #{_lambda_.20} parent=49 // pred_check_branch
          %1478 = sbr.rel (%p1476) target = $region82
        $region81: #{_lambda_.20} parent=49 // pred_region
          %s1479 = smul.u32 4, %s22
          %s1480 = smul.u32 4, %s21
          %p1481 = scmp.lt.s32.totalorder %s1479, 3
          %s1482 = scalar_select %p1481, %s1479, 3
          %p1483 = scmp.lt.s32.totalorder %s1480, 3
          %s1484 = scalar_select %p1483, %s1480, 3
          %s1485 = smul.addr %s1482, 4
          %s1486 = sadd.s32 %s1484, %s1485
          %s1487 = smul.addr %s1486, 8
          %s1488 = scalar_lea.vmem %s2, %s1487
        $region82: #{_lambda_.20} parent=49 // pred_fallthru
          _
        // Predicated region
        $region83: #{_lambda_.20} parent=49 // pred_check
          %p1489 = pneg %p137
        $region84: #{_lambda_.20} parent=49 // pred_check_branch
          %1491 = sbr.rel (%p1489) target = $region86
        $region85: #{_lambda_.20} parent=49 // pred_region
          %s1492 = smul.u32 4, %s21
          %p1493 = scmp.lt.s32.totalorder %s1492, 3
          %s1494 = scalar_select %p1493, %s1492, 3
          %s1495 = scalar_lea.vmem %s3, %s1494
        $region86: #{_lambda_.20} parent=49 // pred_fallthru
          _
        // Predicated region
        $region87: #{_lambda_.20} parent=49 // pred_check
          %p1496 = pneg %p163
        $region88: #{_lambda_.20} parent=49 // pred_check_branch
          %1498 = sbr.rel (%p1496) target = $region90
        $region89: #{_lambda_.20} parent=49 // pred_region
          %s1499 = smul.u32 4, %s21
          %p1500 = scmp.lt.s32.totalorder %s1499, 3
          %s1501 = scalar_select %p1500, %s1499, 3
          %s1502 = scalar_lea.vmem %s4, %s1501
        $region90: #{_lambda_.20} parent=49 // pred_fallthru
          _
      $region50: #{_lambda_.20} parent=5 // pred_fallthru
        _
      %p1503 = scmp.le.s32.totalorder 2, %s11
      // Predicated region
      $region91: #{_lambda_.20} parent=5 // pred_check
        %p1504 = pneg %p1503
      $region92: #{_lambda_.20} parent=5 // pred_check_branch
        %1506 = sbr.rel (%p1504) target = $region94
      $region93: #{_lambda_.20} parent=5 // pred_region
        %s1507 = ssub.s32 %s11, 2
      $region94: #{_lambda_.20} parent=5 // pred_fallthru
        _
    $region6: #{_lambda_.20} parent=1 // loop_footer
      %s15 = sadd.s32 1, %s11
    $region7: #{_lambda_.20} parent=1 // loop_footer_branch
      %10 = sbr.rel target = $region3
    $region8: #{_lambda_.20} parent=1 // loop_exit
      _

// kernel: _lambda_.22
$region0: #{_lambda_.22}
  #allocation0 [shape = 'u32[]', space=smem, size = 0x4, offset = 0x4, fixed_abs, tag = 'smem constant byte address 0x4 - core index']
  #allocation1 [shape = 'u32[144,128]{1,0:T(1,128)}', space=vmem, size = 0x12000, scoped, tag = 'internal scratch']
  #allocation2 [shape = 'f32[16,512]{1,0:T(8,128)}', space=vmem, size = 0x8000, scoped, tag = 'scratch operand']
  %s0 = inlined_call_operand.vmem [shape: bf16[16,4608], index: 0, kind: input, shape index: {}]
  %s1 = inlined_call_operand.vmem [shape: bf16[4608,512], index: 1, kind: input, shape index: {}]
  %s2 = inlined_call_operand.vmem [shape: f32[1,512], index: 2, kind: input, shape index: {}]
  %s3 = inlined_call_operand.vmem [shape: f32[16,512], index: 3, kind: output, shape index: {}]
  %s4 = sld [smem:[#allocation0]]
  $region76: #{_lambda_.22} parent=0
    _
  %s6 = ssub.s32 1, %s4
  %s7 = scalar_select 0, %s6, %s4
  $region1: #{_lambda_.22} parent=0
    #allocation3 [shape = 'u8[32768]{0}', space=vmem, size = 0x8000, scoped, tag = 'input window, operand 0']
    loop: start=0, step=1, limit=11
    $region2: #{_lambda_.22} parent=1 // loop_pre_header
      _
    $region3: #{_lambda_.22} parent=1 // loop_header
      %s9 = sphi 0, %s13
      %p10 = scmp.ge.s32.totalorder %s9, 11
      %s16 = sphi 0, %s35
      %s17 = sphi 0, %s31
      %s18 = sphi 0, %s27
      %s19 = sphi 0, %s16
      %s20 = sphi 0, %s17
      %s21 = sphi 0, %s18
      %s22 = sphi 0, %s19
      %s23 = sphi 0, %s20
      %s24 = sphi 0, %s21
      %s40 = sphi 0, %s42
      %s43 = sphi 0, %s40
      %s44 = sphi 0, %s43
      %s60 = sphi 0, %s44
      %s68 = sphi 0, %s70
      %s71 = sphi 0, %s68
      %s72 = sphi 0, %s71
      %s88 = sphi 0, %s72
      %s94 = sphi 0, %s96
      %s97 = sphi 0, %s94
      %s98 = sphi 0, %s97
      %s114 = sphi 0, %s98
      %s122 = sphi 0, %s124
      %s125 = sphi 0, %s122
      %s126 = sphi 0, %s125
      %s142 = sphi 0, %s126
    $region4: #{_lambda_.22} parent=1 // loop_header_branch
      %12 = sbr.rel (%p10) target = $region8
    $region5: #{_lambda_.22} parent=1 // loop_body
      %s14 = ssub.s32 %s9, 1
      %s15 = ssub.s32 %s9, 2
      %s25 = sadd.s32 1, %s18
      %p26 = scmp.ge.s32.totalorder %s25, 9
      %s27 = scalar_select %p26, 0, %s25
      %s28 = sadd.s32 1, %s17
      %s29 = scalar_select %p26, %s28, %s17
      %p30 = scmp.ge.s32.totalorder %s29, 1
      %s31 = scalar_select %p30, 0, %s29
      %s32 = sadd.s32 1, %s16
      %s33 = scalar_select %p30, %s32, %s16
      %p34 = scmp.ge.s32.totalorder %s33, 1
      %s35 = scalar_select %p34, 0, %s33
      %s36 = ssub.s32 %s16, %s35
      %s37 = ssub.s32 %s18, %s27
      %s38 = sor.u32 %s36, %s37
      %p39 = scmp.eq.s32.totalorder %s38, 0
      %s41 = sadd.s32 %s40, 1
      %s42 = scalar_select %p39, %s40, %s41
      %p45 = pneg %p39
      %p46 = scmp.eq.s32.totalorder %s9, 8
      %p47 = por %p45, %p46
      %p48 = scmp.ne.s32.totalorder %s40, %s43
      %p49 = scmp.eq.s32.totalorder %s9, 0
      %p50 = por %p48, %p49
      %p51 = scmp.ne.s32.totalorder %s40, %s43
      %p52 = scmp.eq.s32.totalorder %s14, 8
      %p53 = por %p51, %p52
      %p54 = scmp.ne.s32.totalorder %s43, %s44
      %p55 = scmp.eq.s32.totalorder %s14, 0
      %p56 = por %p54, %p55
      %p57 = scmp.ne.s32.totalorder %s43, %s44
      %p58 = scmp.eq.s32.totalorder %s15, 8
      %p59 = por %p57, %p58
      %p61 = scmp.ne.s32.totalorder %s44, %s60
      %p62 = scmp.eq.s32.totalorder %s15, 0
      %p63 = por %p61, %p62
      %s64 = ssub.s32 %s18, %s27
      %s65 = ssub.s32 %s17, %s31
      %s66 = sor.u32 %s64, %s65
      %p67 = scmp.eq.s32.totalorder %s66, 0
      %s69 = sadd.s32 %s68, 1
      %s70 = scalar_select %p67, %s68, %s69
      %p73 = pneg %p67
      %p74 = scmp.eq.s32.totalorder %s9, 8
      %p75 = por %p73, %p74
      %p76 = scmp.ne.s32.totalorder %s68, %s71
      %p77 = scmp.eq.s32.totalorder %s9, 0
      %p78 = por %p76, %p77
      %p79 = scmp.ne.s32.totalorder %s68, %s71
      %p80 = scmp.eq.s32.totalorder %s14, 8
      %p81 = por %p79, %p80
      %p82 = scmp.ne.s32.totalorder %s71, %s72
      %p83 = scmp.eq.s32.totalorder %s14, 0
      %p84 = por %p82, %p83
      %p85 = scmp.ne.s32.totalorder %s71, %s72
      %p86 = scmp.eq.s32.totalorder %s15, 8
      %p87 = por %p85, %p86
      %p89 = scmp.ne.s32.totalorder %s72, %s88
      %p90 = scmp.eq.s32.totalorder %s15, 0
      %p91 = por %p89, %p90
      %s92 = ssub.s32 %s17, %s31
      %p93 = scmp.eq.s32.totalorder %s92, 0
      %s95 = sadd.s32 %s94, 1
      %s96 = scalar_select %p93, %s94, %s95
      %p99 = pneg %p93
      %p100 = scmp.eq.s32.totalorder %s9, 8
      %p101 = por %p99, %p100
      %p102 = scmp.ne.s32.totalorder %s94, %s97
      %p103 = scmp.eq.s32.totalorder %s9, 0
      %p104 = por %p102, %p103
      %p105 = scmp.ne.s32.totalorder %s94, %s97
      %p106 = scmp.eq.s32.totalorder %s14, 8
      %p107 = por %p105, %p106
      %p108 = scmp.ne.s32.totalorder %s97, %s98
      %p109 = scmp.eq.s32.totalorder %s14, 0
      %p110 = por %p108, %p109
      %p111 = scmp.ne.s32.totalorder %s97, %s98
      %p112 = scmp.eq.s32.totalorder %s15, 8
      %p113 = por %p111, %p112
      %p115 = scmp.ne.s32.totalorder %s98, %s114
      %p116 = scmp.eq.s32.totalorder %s15, 0
      %p117 = por %p115, %p116
      %s118 = ssub.s32 %s16, %s35
      %s119 = ssub.s32 %s17, %s31
      %s120 = sor.u32 %s118, %s119
      %p121 = scmp.eq.s32.totalorder %s120, 0
      %s123 = sadd.s32 %s122, 1
      %s124 = scalar_select %p121, %s122, %s123
      %p127 = pneg %p121
      %p128 = scmp.eq.s32.totalorder %s9, 8
      %p129 = por %p127, %p128
      %p130 = scmp.ne.s32.totalorder %s122, %s125
      %p131 = scmp.eq.s32.totalorder %s9, 0
      %p132 = por %p130, %p131
      %p133 = scmp.ne.s32.totalorder %s122, %s125
      %p134 = scmp.eq.s32.totalorder %s14, 8
      %p135 = por %p133, %p134
      %p136 = scmp.ne.s32.totalorder %s125, %s126
      %p137 = scmp.eq.s32.totalorder %s14, 0
      %p138 = por %p136, %p137
      %p139 = scmp.ne.s32.totalorder %s125, %s126
      %p140 = scmp.eq.s32.totalorder %s15, 8
      %p141 = por %p139, %p140
      %p143 = scmp.ne.s32.totalorder %s126, %s142
      %p144 = scmp.eq.s32.totalorder %s15, 0
      %p145 = por %p143, %p144
      %p146 = scmp.le.s32.totalorder 1, %s9
      %p147 = scmp.lt.s32.totalorder %s9, 10
      %p148 = pnand %p146, %p147
      %p149 = pneg %p148
      // Predicated region
      $region9: #{_lambda_.22} parent=5 // pred_check
        _
      $region10: #{_lambda_.22} parent=5 // pred_check_branch
        %151 = sbr.rel (%p148) target = $region12
      $region11: #{_lambda_.22} parent=5 // pred_region
        %s152 = ssub.s32 %s9, 1
        // Predicated region
        $region13: #{_lambda_.22} parent=11 // pred_check
          %p153 = pneg %p110
        $region14: #{_lambda_.22} parent=11 // pred_check_branch
          %155 = sbr.rel (%p153) target = $region16
        $region15: #{_lambda_.22} parent=11 // pred_region
          %s156 = smul.u32 4, %s20
          %p157 = scmp.lt.s32.totalorder %s156, 3
          %s158 = scalar_select %p157, %s156, 3
          %s159 = scalar_lea.vmem %s2, %s158
          %s160 = smul.u32 4, %s20
        $region16: #{_lambda_.22} parent=11 // pred_fallthru
          _
      $region12: #{_lambda_.22} parent=5 // pred_fallthru
        _
      %p161 = scmp.lt.s32.totalorder %s9, 9
      // Predicated region
      $region17: #{_lambda_.22} parent=5 // pred_check
        %p162 = pneg %p161
      $region18: #{_lambda_.22} parent=5 // pred_check_branch
        %164 = sbr.rel (%p162) target = $region20
      $region19: #{_lambda_.22} parent=5 // pred_region
        // Predicated region
        $region21: #{_lambda_.22} parent=19 // pred_check
          %p165 = pneg %p50
        $region22: #{_lambda_.22} parent=19 // pred_check_branch
          %167 = sbr.rel (%p165) target = $region24
        $region23: #{_lambda_.22} parent=19 // pred_region
          %s168 = sand.u32 %s40, 1
          %s169 = sand.u32 %s40, 1
          %s170 = smul.addr %s169, 32
          %s171 = scalar_lea.vmem [#allocation3], %s170
          %s172 = smul.u32 2, %s16
          %s173 = smul.u32 4, %s18
          %s174 = smul.addr %s172, 36
          %s175 = sadd.s32 %s173, %s174
          %s176 = smul.addr %s175, 4
          %s177 = scalar_lea.vmem %s0, %s176
          // Predicated region
          $region25: #{_lambda_.22} parent=23 // pred_check
            _
          $region26: #{_lambda_.22} parent=23 // pred_check_branch
            %179 = sbr.rel (0) target = $region28
          $region27: #{_lambda_.22} parent=23 // pred_region
            // Predicated region
            $region29: #{_lambda_.22} parent=27 // pred_check
              _
            $region30: #{_lambda_.22} parent=27 // pred_check_branch
              %181 = sbr.rel (0) target = $region32
            $region31: #{_lambda_.22} parent=27 // pred_region
              loop: start=0, step=1, limit=1
              $region33: #{_lambda_.22} parent=31 // loop_pre_header
                _
              $region34: #{_lambda_.22} parent=31 // loop_header
                %s183 = sphi 0, %s187
                %p184 = scmp.ge.s32.totalorder %s183, 1
                %s188 = sphi %s177, %s177
                %s189 = sphi %s171, %s171
              $region35: #{_lambda_.22} parent=31 // loop_header_branch
                %186 = sbr.rel (%p184) target = $region39
              $region36: #{_lambda_.22} parent=31 // loop_body
                %v190 = vld [vmem:[%s188] sm:$0xff]
                %191 = vst [vmem:[%s189] sm:$0xff] %v190
                %v192 = vld [vmem:[%s188 + $0x8] sm:$0xff]
                %193 = vst [vmem:[%s189 + $0x8] sm:$0xff] %v192
                %v194 = vld [vmem:[%s188 + $0x90] sm:$0xff]
                %195 = vst [vmem:[%s189 + $0x10] sm:$0xff] %v194
                %v196 = vld [vmem:[%s188 + $0x98] sm:$0xff]
                %197 = vst [vmem:[%s189 + $0x18] sm:$0xff] %v196
              $region37: #{_lambda_.22} parent=31 // loop_footer
                %s187 = sadd.s32 1, %s183
              $region38: #{_lambda_.22} parent=31 // loop_footer_branch
                %182 = sbr.rel target = $region34
              $region39: #{_lambda_.22} parent=31 // loop_exit
                _
            $region32: #{_lambda_.22} parent=27 // pred_fallthru
              _
            // Predicated region
            $region40: #{_lambda_.22} parent=27 // pred_check
              _
            $region41: #{_lambda_.22} parent=27 // pred_check_branch
              %199 = sbr.rel target = $region43
            $region42: #{_lambda_.22} parent=27 // pred_region
              _
            $region43: #{_lambda_.22} parent=27 // pred_fallthru
              _
          $region28: #{_lambda_.22} parent=23 // pred_fallthru
            _
          %200 = vnop
        $region24: #{_lambda_.22} parent=19 // pred_fallthru
          _
        // Predicated region
        $region44: #{_lambda_.22} parent=19 // pred_check
          %p201 = pneg %p78
        $region45: #{_lambda_.22} parent=19 // pred_check_branch
          %203 = sbr.rel (%p201) target = $region47
        $region46: #{_lambda_.22} parent=19 // pred_region
          %s204 = smul.u32 64, %s18
          %s205 = smul.u32 4, %s17
          %p206 = scmp.lt.s32.totalorder %s204, 575
          %s207 = scalar_select %p206, %s204, 575
          %p208 = scmp.lt.s32.totalorder %s205, 3
          %s209 = scalar_select %p208, %s205, 3
          %s210 = smul.addr %s207, 4
          %s211 = sadd.s32 %s209, %s210
          %s212 = smul.addr %s211, 4
          %s213 = scalar_lea.vmem %s1, %s212
          %s214 = smul.u32 64, %s18
          %s215 = smul.u32 4, %s17
        $region47: #{_lambda_.22} parent=19 // pred_fallthru
          _
      $region20: #{_lambda_.22} parent=5 // pred_fallthru
        _
      %p216 = scmp.le.s32.totalorder 1, %s9
      %p217 = scmp.lt.s32.totalorder %s9, 10
      %p218 = pnand %p216, %p217
      %p219 = pneg %p218
      // Predicated region
      $region48: #{_lambda_.22} parent=5 // pred_check
        _
      $region49: #{_lambda_.22} parent=5 // pred_check_branch
        %221 = sbr.rel (%p218) target = $region51
      $region50: #{_lambda_.22} parent=5 // pred_region
        %s222 = ssub.s32 %s9, 1
        %s223 = sand.u32 %s43, 1
        %s224 = sand.u32 %s43, 1
        %s225 = smul.addr %s224, 32
        %s226 = scalar_lea.vmem [#allocation3], %s225
        // Predicated region
        $region52: #{_lambda_.22} parent=50 // pred_check
          %p227 = pneg %p56
        $region53: #{_lambda_.22} parent=50 // pred_check_branch
          %229 = sbr.rel (%p227) target = $region55
        $region54: #{_lambda_.22} parent=50 // pred_region
          _
        $region55: #{_lambda_.22} parent=50 // pred_fallthru
          _
        %s230 = sand.u32 %s43, 1
        %s231 = sand.u32 %s43, 1
        %s232 = smul.addr %s231, 32
        %s233 = scalar_lea.vmem [#allocation3], %s232
        %p234 = pneg %p56
        %p235 = pneg %p53
        %s236 = smul.u32 64, %s21
        %s237 = smul.u32 4, %s20
        %p238 = scmp.lt.s32.totalorder %s236, 575
        %s239 = scalar_select %p238, %s236, 575
        %p240 = scmp.lt.s32.totalorder %s237, 3
        %s241 = scalar_select %p240, %s237, 3
        %s242 = smul.addr %s239, 4
        %s243 = sadd.s32 %s241, %s242
        %s244 = smul.addr %s243, 4
        %s245 = scalar_lea.vmem %s1, %s244
        %p246 = pneg %p84
        %p247 = pneg %p81
        %s248 = smul.u32 4, %s20
        %p249 = scmp.lt.s32.totalorder %s248, 3
        %s250 = scalar_select %p249, %s248, 3
        %s251 = scalar_lea.vmem %s2, %s250
        %p252 = pneg %p110
        %p253 = pneg %p107
        %p254 = pneg %p138
        %p255 = pneg %p135
        %s256 = smul.u32 2, %s19
        %s257 = smul.u32 4, %s20
        %p258 = scmp.lt.s32.totalorder %s256, 1
        %s259 = scalar_select %p258, %s256, 1
        %p260 = scmp.lt.s32.totalorder %s257, 3
        %s261 = scalar_select %p260, %s257, 3
        %s262 = smul.addr %s259, 4
        %s263 = sadd.s32 %s261, %s262
        %s264 = smul.addr %s263, 8
        %s265 = scalar_lea.vmem %s3, %s264
        %s266 = smul.u32 2, %s19
        %s267 = smul.u32 4, %s21
        %s268 = smul.u32 64, %s21
        %s269 = smul.u32 4, %s20
        %p270 = scmp.lt.s32.totalorder %s268, 575
        %s271 = scalar_select %p270, %s268, 575
        %p272 = scmp.lt.s32.totalorder %s269, 3
        %s273 = scalar_select %p272, %s269, 3
        %s274 = smul.addr %s271, 4
        %s275 = sadd.s32 %s273, %s274
        %s276 = smul.addr %s275, 4
        %s277 = scalar_lea.vmem %s1, %s276
        %s278 = smul.u32 64, %s21
        %s279 = smul.u32 4, %s20
        %s280 = smul.u32 4, %s20
        %p281 = scmp.lt.s32.totalorder %s280, 3
        %s282 = scalar_select %p281, %s280, 3
        %s283 = scalar_lea.vmem %s2, %s282
        %s284 = smul.u32 4, %s20
        %s285 = smul.u32 2, %s19
        %s286 = smul.u32 4, %s20
        %p287 = scmp.lt.s32.totalorder %s285, 1
        %s288 = scalar_select %p287, %s285, 1
        %p289 = scmp.lt.s32.totalorder %s286, 3
        %s290 = scalar_select %p289, %s286, 3
        %s291 = smul.addr %s288, 4
        %s292 = sadd.s32 %s290, %s291
        %s293 = smul.addr %s292, 8
        %s294 = scalar_lea.vmem %s3, %s293
        %s295 = smul.u32 2, %s19
        %s296 = smul.u32 4, %s20
        %p297 = scmp.eq.s32.totalorder %s21, 0
        // Predicated region
        $region56: #{_lambda_.22} parent=50 // pred_check
          %p298 = pneg %p297
        $region57: #{_lambda_.22} parent=50 // pred_check_branch
          %300 = sbr.rel (%p298) target = $region59
        $region58: #{_lambda_.22} parent=50 // pred_region
          %301 = vst [vmem:[#allocation2] sm:$0xff] 0.0
          %302 = vst [vmem:[#allocation2 + $0x8] sm:$0xff] 0.0
          %303 = vst [vmem:[#allocation2 + $0x10] sm:$0xff] 0.0
          %304 = vst [vmem:[#allocation2 + $0x18] sm:$0xff] 0.0
          %305 = vst [vmem:[#allocation2 + $0x20] sm:$0xff] 0.0
          %306 = vst [vmem:[#allocation2 + $0x28] sm:$0xff] 0.0
          %307 = vst [vmem:[#allocation2 + $0x30] sm:$0xff] 0.0
          %308 = vst [vmem:[#allocation2 + $0x38] sm:$0xff] 0.0
        $region59: #{_lambda_.22} parent=50 // pred_fallthru
          _
        %v309 = vld [vmem:[#allocation2] sm:$0xff]
        %v310 = vld [vmem:[#allocation2 + $0x8] sm:$0xff]
        %v311 = vld [vmem:[#allocation2 + $0x10] sm:$0xff]
        %v312 = vld [vmem:[#allocation2 + $0x18] sm:$0xff]
        %v313 = vld [vmem:[#allocation2 + $0x20] sm:$0xff]
        %v314 = vld [vmem:[#allocation2 + $0x28] sm:$0xff]
        %v315 = vld [vmem:[#allocation2 + $0x30] sm:$0xff]
        %v316 = vld [vmem:[#allocation2 + $0x38] sm:$0xff]
        %v317 = vld [vmem:[%s226] sm:$0xff]
        %v318 = vld [vmem:[%s226 + $0x8] sm:$0xff]
        %v319 = vld [vmem:[%s226 + $0x10] sm:$0xff]
        %v320 = vld [vmem:[%s226 + $0x18] sm:$0xff]
        %v321 = vld [vmem:[%s277] sm:$0xff]
        %v322 = vld [vmem:[%s277 + $0x8] sm:$0xff]
        %v323 = vld [vmem:[%s277 + $0x10] sm:$0xff]
        %v324 = vld [vmem:[%s277 + $0x18] sm:$0xff]
        %v325 = vld [vmem:[%s277 + $0x20] sm:$0xff]
        %v326 = vld [vmem:[%s277 + $0x28] sm:$0xff]
        %v327 = vld [vmem:[%s277 + $0x30] sm:$0xff]
        %v328 = vld [vmem:[%s277 + $0x38] sm:$0xff]
        %v329 = vld [vmem:[%s277 + $0x40] sm:$0xff]
        %v330 = vld [vmem:[%s277 + $0x48] sm:$0xff]
        %v331 = vld [vmem:[%s277 + $0x50] sm:$0xff]
        %v332 = vld [vmem:[%s277 + $0x58] sm:$0xff]
        %v333 = vld [vmem:[%s277 + $0x60] sm:$0xff]
        %v334 = vld [vmem:[%s277 + $0x68] sm:$0xff]
        %v335 = vld [vmem:[%s277 + $0x70] sm:$0xff]
        %v336 = vld [vmem:[%s277 + $0x78] sm:$0xff]
        %v337 = vld [vmem:[%s277 + $0x80] sm:$0xff]
        %v338 = vld [vmem:[%s277 + $0x88] sm:$0xff]
        %v339 = vld [vmem:[%s277 + $0x90] sm:$0xff]
        %v340 = vld [vmem:[%s277 + $0x98] sm:$0xff]
        %v341 = vld [vmem:[%s277 + $0xa0] sm:$0xff]
        %v342 = vld [vmem:[%s277 + $0xa8] sm:$0xff]
        %v343 = vld [vmem:[%s277 + $0xb0] sm:$0xff]
        %v344 = vld [vmem:[%s277 + $0xb8] sm:$0xff]
        %v345 = vld [vmem:[%s277 + $0xc0] sm:$0xff]
        %v346 = vld [vmem:[%s277 + $0xc8] sm:$0xff]
        %v347 = vld [vmem:[%s277 + $0xd0] sm:$0xff]
        %v348 = vld [vmem:[%s277 + $0xd8] sm:$0xff]
        %v349 = vld [vmem:[%s277 + $0xe0] sm:$0xff]
        %v350 = vld [vmem:[%s277 + $0xe8] sm:$0xff]
        %v351 = vld [vmem:[%s277 + $0xf0] sm:$0xff]
        %v352 = vld [vmem:[%s277 + $0xf8] sm:$0xff]
        %v353 = vld [vmem:[%s277 + $0x100] sm:$0xff]
        %v354 = vld [vmem:[%s277 + $0x108] sm:$0xff]
        %v355 = vld [vmem:[%s277 + $0x110] sm:$0xff]
        %v356 = vld [vmem:[%s277 + $0x118] sm:$0xff]
        %v357 = vld [vmem:[%s277 + $0x120] sm:$0xff]
        %v358 = vld [vmem:[%s277 + $0x128] sm:$0xff]
        %v359 = vld [vmem:[%s277 + $0x130] sm:$0xff]
        %v360 = vld [vmem:[%s277 + $0x138] sm:$0xff]
        %v361 = vld [vmem:[%s277 + $0x140] sm:$0xff]
        %v362 = vld [vmem:[%s277 + $0x148] sm:$0xff]
        %v363 = vld [vmem:[%s277 + $0x150] sm:$0xff]
        %v364 = vld [vmem:[%s277 + $0x158] sm:$0xff]
        %v365 = vld [vmem:[%s277 + $0x160] sm:$0xff]
        %v366 = vld [vmem:[%s277 + $0x168] sm:$0xff]
        %v367 = vld [vmem:[%s277 + $0x170] sm:$0xff]
        %v368 = vld [vmem:[%s277 + $0x178] sm:$0xff]
        %v369 = vld [vmem:[%s277 + $0x180] sm:$0xff]
        %v370 = vld [vmem:[%s277 + $0x188] sm:$0xff]
        %v371 = vld [vmem:[%s277 + $0x190] sm:$0xff]
        %v372 = vld [vmem:[%s277 + $0x198] sm:$0xff]
        %v373 = vld [vmem:[%s277 + $0x1a0] sm:$0xff]
        %v374 = vld [vmem:[%s277 + $0x1a8] sm:$0xff]
        %v375 = vld [vmem:[%s277 + $0x1b0] sm:$0xff]
        %v376 = vld [vmem:[%s277 + $0x1b8] sm:$0xff]
        %v377 = vld [vmem:[%s277 + $0x1c0] sm:$0xff]
        %v378 = vld [vmem:[%s277 + $0x1c8] sm:$0xff]
        %v379 = vld [vmem:[%s277 + $0x1d0] sm:$0xff]
        %v380 = vld [vmem:[%s277 + $0x1d8] sm:$0xff]
        %v381 = vld [vmem:[%s277 + $0x1e0] sm:$0xff]
        %v382 = vld [vmem:[%s277 + $0x1e8] sm:$0xff]
        %v383 = vld [vmem:[%s277 + $0x1f0] sm:$0xff]
        %v384 = vld [vmem:[%s277 + $0x1f8] sm:$0xff]
        %v385 = vld [vmem:[%s277 + $0x200] sm:$0xff]
        %v386 = vld [vmem:[%s277 + $0x208] sm:$0xff]
        %v387 = vld [vmem:[%s277 + $0x210] sm:$0xff]
        %v388 = vld [vmem:[%s277 + $0x218] sm:$0xff]
        %v389 = vld [vmem:[%s277 + $0x220] sm:$0xff]
        %v390 = vld [vmem:[%s277 + $0x228] sm:$0xff]
        %v391 = vld [vmem:[%s277 + $0x230] sm:$0xff]
        %v392 = vld [vmem:[%s277 + $0x238] sm:$0xff]
        %v393 = vld [vmem:[%s277 + $0x240] sm:$0xff]
        %v394 = vld [vmem:[%s277 + $0x248] sm:$0xff]
        %v395 = vld [vmem:[%s277 + $0x250] sm:$0xff]
        %v396 = vld [vmem:[%s277 + $0x258] sm:$0xff]
        %v397 = vld [vmem:[%s277 + $0x260] sm:$0xff]
        %v398 = vld [vmem:[%s277 + $0x268] sm:$0xff]
        %v399 = vld [vmem:[%s277 + $0x270] sm:$0xff]
        %v400 = vld [vmem:[%s277 + $0x278] sm:$0xff]
        %v401 = vld [vmem:[%s277 + $0x280] sm:$0xff]
        %v402 = vld [vmem:[%s277 + $0x288] sm:$0xff]
        %v403 = vld [vmem:[%s277 + $0x290] sm:$0xff]
        %v404 = vld [vmem:[%s277 + $0x298] sm:$0xff]
        %v405 = vld [vmem:[%s277 + $0x2a0] sm:$0xff]
        %v406 = vld [vmem:[%s277 + $0x2a8] sm:$0xff]
        %v407 = vld [vmem:[%s277 + $0x2b0] sm:$0xff]
        %v408 = vld [vmem:[%s277 + $0x2b8] sm:$0xff]
        %v409 = vld [vmem:[%s277 + $0x2c0] sm:$0xff]
        %v410 = vld [vmem:[%s277 + $0x2c8] sm:$0xff]
        %v411 = vld [vmem:[%s277 + $0x2d0] sm:$0xff]
        %v412 = vld [vmem:[%s277 + $0x2d8] sm:$0xff]
        %v413 = vld [vmem:[%s277 + $0x2e0] sm:$0xff]
        %v414 = vld [vmem:[%s277 + $0x2e8] sm:$0xff]
        %v415 = vld [vmem:[%s277 + $0x2f0] sm:$0xff]
        %v416 = vld [vmem:[%s277 + $0x2f8] sm:$0xff]
        %v417 = vld [vmem:[%s277 + $0x300] sm:$0xff]
        %v418 = vld [vmem:[%s277 + $0x308] sm:$0xff]
        %v419 = vld [vmem:[%s277 + $0x310] sm:$0xff]
        %v420 = vld [vmem:[%s277 + $0x318] sm:$0xff]
        %v421 = vld [vmem:[%s277 + $0x320] sm:$0xff]
        %v422 = vld [vmem:[%s277 + $0x328] sm:$0xff]
        %v423 = vld [vmem:[%s277 + $0x330] sm:$0xff]
        %v424 = vld [vmem:[%s277 + $0x338] sm:$0xff]
        %v425 = vld [vmem:[%s277 + $0x340] sm:$0xff]
        %v426 = vld [vmem:[%s277 + $0x348] sm:$0xff]
        %v427 = vld [vmem:[%s277 + $0x350] sm:$0xff]
        %v428 = vld [vmem:[%s277 + $0x358] sm:$0xff]
        %v429 = vld [vmem:[%s277 + $0x360] sm:$0xff]
        %v430 = vld [vmem:[%s277 + $0x368] sm:$0xff]
        %v431 = vld [vmem:[%s277 + $0x370] sm:$0xff]
        %v432 = vld [vmem:[%s277 + $0x378] sm:$0xff]
        %v433 = vld [vmem:[%s277 + $0x380] sm:$0xff]
        %v434 = vld [vmem:[%s277 + $0x388] sm:$0xff]
        %v435 = vld [vmem:[%s277 + $0x390] sm:$0xff]
        %v436 = vld [vmem:[%s277 + $0x398] sm:$0xff]
        %v437 = vld [vmem:[%s277 + $0x3a0] sm:$0xff]
        %v438 = vld [vmem:[%s277 + $0x3a8] sm:$0xff]
        %v439 = vld [vmem:[%s277 + $0x3b0] sm:$0xff]
        %v440 = vld [vmem:[%s277 + $0x3b8] sm:$0xff]
        %v441 = vld [vmem:[%s277 + $0x3c0] sm:$0xff]
        %v442 = vld [vmem:[%s277 + $0x3c8] sm:$0xff]
        %v443 = vld [vmem:[%s277 + $0x3d0] sm:$0xff]
        %v444 = vld [vmem:[%s277 + $0x3d8] sm:$0xff]
        %v445 = vld [vmem:[%s277 + $0x3e0] sm:$0xff]
        %v446 = vld [vmem:[%s277 + $0x3e8] sm:$0xff]
        %v447 = vld [vmem:[%s277 + $0x3f0] sm:$0xff]
        %v448 = vld [vmem:[%s277 + $0x3f8] sm:$0xff]
        %v453 = vunpack.c.l.b16 %v317
        %v454 = vunpack.c.h.b16 %v317
        %v455 = vunpack.c.l.b16 %v318
        %v456 = vunpack.c.h.b16 %v318
        %v457 = vunpack.c.l.b16 %v319
        %v458 = vunpack.c.h.b16 %v319
        %v459 = vunpack.c.l.b16 %v320
        %v460 = vunpack.c.h.b16 %v320
        %v461 = vpack.c.b16 %v457, %v453
        %v462 = vpack.c.b16 %v458, %v454
        %v463 = vpack.c.b16 %v459, %v455
        %v464 = vpack.c.b16 %v460, %v456
        %v597 = vunpack.c.l.b16 %v321
        %v598 = vunpack.c.h.b16 %v321
        %v599 = vunpack.c.l.b16 %v322
        %v600 = vunpack.c.h.b16 %v322
        %v601 = vunpack.c.l.b16 %v323
        %v602 = vunpack.c.h.b16 %v323
        %v603 = vunpack.c.l.b16 %v324
        %v604 = vunpack.c.h.b16 %v324
        %v605 = vunpack.c.l.b16 %v325
        %v606 = vunpack.c.h.b16 %v325
        %v607 = vunpack.c.l.b16 %v326
        %v608 = vunpack.c.h.b16 %v326
        %v609 = vunpack.c.l.b16 %v327
        %v610 = vunpack.c.h.b16 %v327
        %v611 = vunpack.c.l.b16 %v328
        %v612 = vunpack.c.h.b16 %v328
        %v613 = vunpack.c.l.b16 %v329
        %v614 = vunpack.c.h.b16 %v329
        %v615 = vunpack.c.l.b16 %v330
        %v616 = vunpack.c.h.b16 %v330
        %v617 = vunpack.c.l.b16 %v331
        %v618 = vunpack.c.h.b16 %v331
        %v619 = vunpack.c.l.b16 %v332
        %v620 = vunpack.c.h.b16 %v332
        %v621 = vunpack.c.l.b16 %v333
        %v622 = vunpack.c.h.b16 %v333
        %v623 = vunpack.c.l.b16 %v334
        %v624 = vunpack.c.h.b16 %v334
        %v625 = vunpack.c.l.b16 %v335
        %v626 = vunpack.c.h.b16 %v335
        %v627 = vunpack.c.l.b16 %v336
        %v628 = vunpack.c.h.b16 %v336
        %v629 = vunpack.c.l.b16 %v337
        %v630 = vunpack.c.h.b16 %v337
        %v631 = vunpack.c.l.b16 %v338
        %v632 = vunpack.c.h.b16 %v338
        %v633 = vunpack.c.l.b16 %v339
        %v634 = vunpack.c.h.b16 %v339
        %v635 = vunpack.c.l.b16 %v340
        %v636 = vunpack.c.h.b16 %v340
        %v637 = vunpack.c.l.b16 %v341
        %v638 = vunpack.c.h.b16 %v341
        %v639 = vunpack.c.l.b16 %v342
        %v640 = vunpack.c.h.b16 %v342
        %v641 = vunpack.c.l.b16 %v343
        %v642 = vunpack.c.h.b16 %v343
        %v643 = vunpack.c.l.b16 %v344
        %v644 = vunpack.c.h.b16 %v344
        %v645 = vunpack.c.l.b16 %v345
        %v646 = vunpack.c.h.b16 %v345
        %v647 = vunpack.c.l.b16 %v346
        %v648 = vunpack.c.h.b16 %v346
        %v649 = vunpack.c.l.b16 %v347
        %v650 = vunpack.c.h.b16 %v347
        %v651 = vunpack.c.l.b16 %v348
        %v652 = vunpack.c.h.b16 %v348
        %v653 = vunpack.c.l.b16 %v349
        %v654 = vunpack.c.h.b16 %v349
        %v655 = vunpack.c.l.b16 %v350
        %v656 = vunpack.c.h.b16 %v350
        %v657 = vunpack.c.l.b16 %v351
        %v658 = vunpack.c.h.b16 %v351
        %v659 = vunpack.c.l.b16 %v352
        %v660 = vunpack.c.h.b16 %v352
        %v661 = vunpack.c.l.b16 %v353
        %v662 = vunpack.c.h.b16 %v353
        %v663 = vunpack.c.l.b16 %v354
        %v664 = vunpack.c.h.b16 %v354
        %v665 = vunpack.c.l.b16 %v355
        %v666 = vunpack.c.h.b16 %v355
        %v667 = vunpack.c.l.b16 %v356
        %v668 = vunpack.c.h.b16 %v356
        %v669 = vunpack.c.l.b16 %v357
        %v670 = vunpack.c.h.b16 %v357
        %v671 = vunpack.c.l.b16 %v358
        %v672 = vunpack.c.h.b16 %v358
        %v673 = vunpack.c.l.b16 %v359
        %v674 = vunpack.c.h.b16 %v359
        %v675 = vunpack.c.l.b16 %v360
        %v676 = vunpack.c.h.b16 %v360
        %v677 = vunpack.c.l.b16 %v361
        %v678 = vunpack.c.h.b16 %v361
        %v679 = vunpack.c.l.b16 %v362
        %v680 = vunpack.c.h.b16 %v362
        %v681 = vunpack.c.l.b16 %v363
        %v682 = vunpack.c.h.b16 %v363
        %v683 = vunpack.c.l.b16 %v364
        %v684 = vunpack.c.h.b16 %v364
        %v685 = vunpack.c.l.b16 %v365
        %v686 = vunpack.c.h.b16 %v365
        %v687 = vunpack.c.l.b16 %v366
        %v688 = vunpack.c.h.b16 %v366
        %v689 = vunpack.c.l.b16 %v367
        %v690 = vunpack.c.h.b16 %v367
        %v691 = vunpack.c.l.b16 %v368
        %v692 = vunpack.c.h.b16 %v368
        %v693 = vunpack.c.l.b16 %v369
        %v694 = vunpack.c.h.b16 %v369
        %v695 = vunpack.c.l.b16 %v370
        %v696 = vunpack.c.h.b16 %v370
        %v697 = vunpack.c.l.b16 %v371
        %v698 = vunpack.c.h.b16 %v371
        %v699 = vunpack.c.l.b16 %v372
        %v700 = vunpack.c.h.b16 %v372
        %v701 = vunpack.c.l.b16 %v373
        %v702 = vunpack.c.h.b16 %v373
        %v703 = vunpack.c.l.b16 %v374
        %v704 = vunpack.c.h.b16 %v374
        %v705 = vunpack.c.l.b16 %v375
        %v706 = vunpack.c.h.b16 %v375
        %v707 = vunpack.c.l.b16 %v376
        %v708 = vunpack.c.h.b16 %v376
        %v709 = vunpack.c.l.b16 %v377
        %v710 = vunpack.c.h.b16 %v377
        %v711 = vunpack.c.l.b16 %v378
        %v712 = vunpack.c.h.b16 %v378
        %v713 = vunpack.c.l.b16 %v379
        %v714 = vunpack.c.h.b16 %v379
        %v715 = vunpack.c.l.b16 %v380
        %v716 = vunpack.c.h.b16 %v380
        %v717 = vunpack.c.l.b16 %v381
        %v718 = vunpack.c.h.b16 %v381
        %v719 = vunpack.c.l.b16 %v382
        %v720 = vunpack.c.h.b16 %v382
        %v721 = vunpack.c.l.b16 %v383
        %v722 = vunpack.c.h.b16 %v383
        %v723 = vunpack.c.l.b16 %v384
        %v724 = vunpack.c.h.b16 %v384
        %v725 = vunpack.c.l.b16 %v385
        %v726 = vunpack.c.h.b16 %v385
        %v727 = vunpack.c.l.b16 %v386
        %v728 = vunpack.c.h.b16 %v386
        %v729 = vunpack.c.l.b16 %v387
        %v730 = vunpack.c.h.b16 %v387
        %v731 = vunpack.c.l.b16 %v388
        %v732 = vunpack.c.h.b16 %v388
        %v733 = vunpack.c.l.b16 %v389
        %v734 = vunpack.c.h.b16 %v389
        %v735 = vunpack.c.l.b16 %v390
        %v736 = vunpack.c.h.b16 %v390
        %v737 = vunpack.c.l.b16 %v391
        %v738 = vunpack.c.h.b16 %v391
        %v739 = vunpack.c.l.b16 %v392
        %v740 = vunpack.c.h.b16 %v392
        %v741 = vunpack.c.l.b16 %v393
        %v742 = vunpack.c.h.b16 %v393
        %v743 = vunpack.c.l.b16 %v394
        %v744 = vunpack.c.h.b16 %v394
        %v745 = vunpack.c.l.b16 %v395
        %v746 = vunpack.c.h.b16 %v395
        %v747 = vunpack.c.l.b16 %v396
        %v748 = vunpack.c.h.b16 %v396
        %v749 = vunpack.c.l.b16 %v397
        %v750 = vunpack.c.h.b16 %v397
        %v751 = vunpack.c.l.b16 %v398
        %v752 = vunpack.c.h.b16 %v398
        %v753 = vunpack.c.l.b16 %v399
        %v754 = vunpack.c.h.b16 %v399
        %v755 = vunpack.c.l.b16 %v400
        %v756 = vunpack.c.h.b16 %v400
        %v757 = vunpack.c.l.b16 %v401
        %v758 = vunpack.c.h.b16 %v401
        %v759 = vunpack.c.l.b16 %v402
        %v760 = vunpack.c.h.b16 %v402
        %v761 = vunpack.c.l.b16 %v403
        %v762 = vunpack.c.h.b16 %v403
        %v763 = vunpack.c.l.b16 %v404
        %v764 = vunpack.c.h.b16 %v404
        %v765 = vunpack.c.l.b16 %v405
        %v766 = vunpack.c.h.b16 %v405
        %v767 = vunpack.c.l.b16 %v406
        %v768 = vunpack.c.h.b16 %v406
        %v769 = vunpack.c.l.b16 %v407
        %v770 = vunpack.c.h.b16 %v407
        %v771 = vunpack.c.l.b16 %v408
        %v772 = vunpack.c.h.b16 %v408
        %v773 = vunpack.c.l.b16 %v409
        %v774 = vunpack.c.h.b16 %v409
        %v775 = vunpack.c.l.b16 %v410
        %v776 = vunpack.c.h.b16 %v410
        %v777 = vunpack.c.l.b16 %v411
        %v778 = vunpack.c.h.b16 %v411
        %v779 = vunpack.c.l.b16 %v412
        %v780 = vunpack.c.h.b16 %v412
        %v781 = vunpack.c.l.b16 %v413
        %v782 = vunpack.c.h.b16 %v413
        %v783 = vunpack.c.l.b16 %v414
        %v784 = vunpack.c.h.b16 %v414
        %v785 = vunpack.c.l.b16 %v415
        %v786 = vunpack.c.h.b16 %v415
        %v787 = vunpack.c.l.b16 %v416
        %v788 = vunpack.c.h.b16 %v416
        %v789 = vunpack.c.l.b16 %v417
        %v790 = vunpack.c.h.b16 %v417
        %v791 = vunpack.c.l.b16 %v418
        %v792 = vunpack.c.h.b16 %v418
        %v793 = vunpack.c.l.b16 %v419
        %v794 = vunpack.c.h.b16 %v419
        %v795 = vunpack.c.l.b16 %v420
        %v796 = vunpack.c.h.b16 %v420
        %v797 = vunpack.c.l.b16 %v421
        %v798 = vunpack.c.h.b16 %v421
        %v799 = vunpack.c.l.b16 %v422
        %v800 = vunpack.c.h.b16 %v422
        %v801 = vunpack.c.l.b16 %v423
        %v802 = vunpack.c.h.b16 %v423
        %v803 = vunpack.c.l.b16 %v424
        %v804 = vunpack.c.h.b16 %v424
        %v805 = vunpack.c.l.b16 %v425
        %v806 = vunpack.c.h.b16 %v425
        %v807 = vunpack.c.l.b16 %v426
        %v808 = vunpack.c.h.b16 %v426
        %v809 = vunpack.c.l.b16 %v427
        %v810 = vunpack.c.h.b16 %v427
        %v811 = vunpack.c.l.b16 %v428
        %v812 = vunpack.c.h.b16 %v428
        %v813 = vunpack.c.l.b16 %v429
        %v814 = vunpack.c.h.b16 %v429
        %v815 = vunpack.c.l.b16 %v430
        %v816 = vunpack.c.h.b16 %v430
        %v817 = vunpack.c.l.b16 %v431
        %v818 = vunpack.c.h.b16 %v431
        %v819 = vunpack.c.l.b16 %v432
        %v820 = vunpack.c.h.b16 %v432
        %v821 = vunpack.c.l.b16 %v433
        %v822 = vunpack.c.h.b16 %v433
        %v823 = vunpack.c.l.b16 %v434
        %v824 = vunpack.c.h.b16 %v434
        %v825 = vunpack.c.l.b16 %v435
        %v826 = vunpack.c.h.b16 %v435
        %v827 = vunpack.c.l.b16 %v436
        %v828 = vunpack.c.h.b16 %v436
        %v829 = vunpack.c.l.b16 %v437
        %v830 = vunpack.c.h.b16 %v437
        %v831 = vunpack.c.l.b16 %v438
        %v832 = vunpack.c.h.b16 %v438
        %v833 = vunpack.c.l.b16 %v439
        %v834 = vunpack.c.h.b16 %v439
        %v835 = vunpack.c.l.b16 %v440
        %v836 = vunpack.c.h.b16 %v440
        %v837 = vunpack.c.l.b16 %v441
        %v838 = vunpack.c.h.b16 %v441
        %v839 = vunpack.c.l.b16 %v442
        %v840 = vunpack.c.h.b16 %v442
        %v841 = vunpack.c.l.b16 %v443
        %v842 = vunpack.c.h.b16 %v443
        %v843 = vunpack.c.l.b16 %v444
        %v844 = vunpack.c.h.b16 %v444
        %v845 = vunpack.c.l.b16 %v445
        %v846 = vunpack.c.h.b16 %v445
        %v847 = vunpack.c.l.b16 %v446
        %v848 = vunpack.c.h.b16 %v446
        %v849 = vunpack.c.l.b16 %v447
        %v850 = vunpack.c.h.b16 %v447
        %v851 = vunpack.c.l.b16 %v448
        %v852 = vunpack.c.h.b16 %v448
        %v853 = vpack.c.b16 %v601, %v597
        %v854 = vpack.c.b16 %v602, %v598
        %v855 = vpack.c.b16 %v603, %v599
        %v856 = vpack.c.b16 %v604, %v600
        %v857 = vpack.c.b16 %v609, %v605
        %v858 = vpack.c.b16 %v610, %v606
        %v859 = vpack.c.b16 %v611, %v607
        %v860 = vpack.c.b16 %v612, %v608
        %v861 = vpack.c.b16 %v617, %v613
        %v862 = vpack.c.b16 %v618, %v614
        %v863 = vpack.c.b16 %v619, %v615
        %v864 = vpack.c.b16 %v620, %v616
        %v865 = vpack.c.b16 %v625, %v621
        %v866 = vpack.c.b16 %v626, %v622
        %v867 = vpack.c.b16 %v627, %v623
        %v868 = vpack.c.b16 %v628, %v624
        %v869 = vpack.c.b16 %v633, %v629
        %v870 = vpack.c.b16 %v634, %v630
        %v871 = vpack.c.b16 %v635, %v631
        %v872 = vpack.c.b16 %v636, %v632
        %v873 = vpack.c.b16 %v641, %v637
        %v874 = vpack.c.b16 %v642, %v638
        %v875 = vpack.c.b16 %v643, %v639
        %v876 = vpack.c.b16 %v644, %v640
        %v877 = vpack.c.b16 %v649, %v645
        %v878 = vpack.c.b16 %v650, %v646
        %v879 = vpack.c.b16 %v651, %v647
        %v880 = vpack.c.b16 %v652, %v648
        %v881 = vpack.c.b16 %v657, %v653
        %v882 = vpack.c.b16 %v658, %v654
        %v883 = vpack.c.b16 %v659, %v655
        %v884 = vpack.c.b16 %v660, %v656
        %v885 = vpack.c.b16 %v665, %v661
        %v886 = vpack.c.b16 %v666, %v662
        %v887 = vpack.c.b16 %v667, %v663
        %v888 = vpack.c.b16 %v668, %v664
        %v889 = vpack.c.b16 %v673, %v669
        %v890 = vpack.c.b16 %v674, %v670
        %v891 = vpack.c.b16 %v675, %v671
        %v892 = vpack.c.b16 %v676, %v672
        %v893 = vpack.c.b16 %v681, %v677
        %v894 = vpack.c.b16 %v682, %v678
        %v895 = vpack.c.b16 %v683, %v679
        %v896 = vpack.c.b16 %v684, %v680
        %v897 = vpack.c.b16 %v689, %v685
        %v898 = vpack.c.b16 %v690, %v686
        %v899 = vpack.c.b16 %v691, %v687
        %v900 = vpack.c.b16 %v692, %v688
        %v901 = vpack.c.b16 %v697, %v693
        %v902 = vpack.c.b16 %v698, %v694
        %v903 = vpack.c.b16 %v699, %v695
        %v904 = vpack.c.b16 %v700, %v696
        %v905 = vpack.c.b16 %v705, %v701
        %v906 = vpack.c.b16 %v706, %v702
        %v907 = vpack.c.b16 %v707, %v703
        %v908 = vpack.c.b16 %v708, %v704
        %v909 = vpack.c.b16 %v713, %v709
        %v910 = vpack.c.b16 %v714, %v710
        %v911 = vpack.c.b16 %v715, %v711
        %v912 = vpack.c.b16 %v716, %v712
        %v913 = vpack.c.b16 %v721, %v717
        %v914 = vpack.c.b16 %v722, %v718
        %v915 = vpack.c.b16 %v723, %v719
        %v916 = vpack.c.b16 %v724, %v720
        %v917 = vpack.c.b16 %v729, %v725
        %v918 = vpack.c.b16 %v730, %v726
        %v919 = vpack.c.b16 %v731, %v727
        %v920 = vpack.c.b16 %v732, %v728
        %v921 = vpack.c.b16 %v737, %v733
        %v922 = vpack.c.b16 %v738, %v734
        %v923 = vpack.c.b16 %v739, %v735
        %v924 = vpack.c.b16 %v740, %v736
        %v925 = vpack.c.b16 %v745, %v741
        %v926 = vpack.c.b16 %v746, %v742
        %v927 = vpack.c.b16 %v747, %v743
        %v928 = vpack.c.b16 %v748, %v744
        %v929 = vpack.c.b16 %v753, %v749
        %v930 = vpack.c.b16 %v754, %v750
        %v931 = vpack.c.b16 %v755, %v751
        %v932 = vpack.c.b16 %v756, %v752
        %v933 = vpack.c.b16 %v761, %v757
        %v934 = vpack.c.b16 %v762, %v758
        %v935 = vpack.c.b16 %v763, %v759
        %v936 = vpack.c.b16 %v764, %v760
        %v937 = vpack.c.b16 %v769, %v765
        %v938 = vpack.c.b16 %v770, %v766
        %v939 = vpack.c.b16 %v771, %v767
        %v940 = vpack.c.b16 %v772, %v768
        %v941 = vpack.c.b16 %v777, %v773
        %v942 = vpack.c.b16 %v778, %v774
        %v943 = vpack.c.b16 %v779, %v775
        %v944 = vpack.c.b16 %v780, %v776
        %v945 = vpack.c.b16 %v785, %v781
        %v946 = vpack.c.b16 %v786, %v782
        %v947 = vpack.c.b16 %v787, %v783
        %v948 = vpack.c.b16 %v788, %v784
        %v949 = vpack.c.b16 %v793, %v789
        %v950 = vpack.c.b16 %v794, %v790
        %v951 = vpack.c.b16 %v795, %v791
        %v952 = vpack.c.b16 %v796, %v792
        %v953 = vpack.c.b16 %v801, %v797
        %v954 = vpack.c.b16 %v802, %v798
        %v955 = vpack.c.b16 %v803, %v799
        %v956 = vpack.c.b16 %v804, %v800
        %v957 = vpack.c.b16 %v809, %v805
        %v958 = vpack.c.b16 %v810, %v806
        %v959 = vpack.c.b16 %v811, %v807
        %v960 = vpack.c.b16 %v812, %v808
        %v961 = vpack.c.b16 %v817, %v813
        %v962 = vpack.c.b16 %v818, %v814
        %v963 = vpack.c.b16 %v819, %v815
        %v964 = vpack.c.b16 %v820, %v816
        %v965 = vpack.c.b16 %v825, %v821
        %v966 = vpack.c.b16 %v826, %v822
        %v967 = vpack.c.b16 %v827, %v823
        %v968 = vpack.c.b16 %v828, %v824
        %v969 = vpack.c.b16 %v833, %v829
        %v970 = vpack.c.b16 %v834, %v830
        %v971 = vpack.c.b16 %v835, %v831
        %v972 = vpack.c.b16 %v836, %v832
        %v973 = vpack.c.b16 %v841, %v837
        %v974 = vpack.c.b16 %v842, %v838
        %v975 = vpack.c.b16 %v843, %v839
        %v976 = vpack.c.b16 %v844, %v840
        %v977 = vpack.c.b16 %v849, %v845
        %v978 = vpack.c.b16 %v850, %v846
        %v979 = vpack.c.b16 %v851, %v847
        %v980 = vpack.c.b16 %v852, %v848
        %1109 = vmatprep.subr.bf16.mxu0 %v854
        %1110 = vmatpush1.bf16.msra.mxu0 %v853
        %1111 = vmatprep.subr.bf16.mxu0 %v858
        %1112 = vmatpush1.bf16.msra.mxu0 %v857
        %1113 = vmatprep.subr.bf16.mxu0 %v862
        %1114 = vmatpush1.bf16.msra.mxu0 %v861
        %1115 = vmatprep.subr.bf16.mxu0 %v866
        %1116 = vmatpush1.bf16.msra.mxu0 %v865
        %1117 = vmatprep.subr.bf16.mxu0 %v870
        %1118 = vmatpush1.bf16.msra.mxu0 %v869
        %1119 = vmatprep.subr.bf16.mxu0 %v874
        %1120 = vmatpush1.bf16.msra.mxu0 %v873
        %1121 = vmatprep.subr.bf16.mxu0 %v878
        %1122 = vmatpush1.bf16.msra.mxu0 %v877
        %1123 = vmatprep.subr.bf16.mxu0 %v882
        %1124 = vmatpush1.bf16.msra.mxu0 %v881
        %1125 = vmatprep.subr.bf16.mxu0 %v886
        %1126 = vmatpush1.bf16.msra.mxu0 %v885
        %1127 = vmatprep.subr.bf16.mxu0 %v890
        %1128 = vmatpush1.bf16.msra.mxu0 %v889
        %1129 = vmatprep.subr.bf16.mxu0 %v894
        %1130 = vmatpush1.bf16.msra.mxu0 %v893
        %1131 = vmatprep.subr.bf16.mxu0 %v898
        %1132 = vmatpush1.bf16.msra.mxu0 %v897
        %1133 = vmatprep.subr.bf16.mxu0 %v902
        %1134 = vmatpush1.bf16.msra.mxu0 %v901
        %1135 = vmatprep.subr.bf16.mxu0 %v906
        %1136 = vmatpush1.bf16.msra.mxu0 %v905
        %1137 = vmatprep.subr.bf16.mxu0 %v910
        %1138 = vmatpush1.bf16.msra.mxu0 %v909
        %1139 = vmatprep.subr.bf16.mxu0 %v914
        %1140 = vmatpush1.bf16.msra.mxu0 %v913
        %1141 = vmatprep.mubr.bf16.mxu0 %v462
        %1142 = vmatmul.mubr.bf16.gmra.mrb[0].mxu0 %v461
        %v1143 = vpop.f32.mrb[0].mxu0
        %v1144 = vadd.f32 0.0, %v1143
        %v1145 = vpop.f32.mrb[0].mxu0
        %v1146 = vadd.f32 0.0, %v1145
        %v1147 = vpop.f32.mrb[0].mxu0
        %v1148 = vadd.f32 0.0, %v1147
        %v1149 = vpop.f32.mrb[0].mxu0
        %v1150 = vadd.f32 0.0, %v1149
        %1151 = vdwg.mxu0
        %1152 = vmatprep.subr.bf16.mxu0 %v918
        %1153 = vmatpush1.bf16.msra.mxu0 %v917
        %1154 = vmatprep.subr.bf16.mxu0 %v922
        %1155 = vmatpush1.bf16.msra.mxu0 %v921
        %1156 = vmatprep.subr.bf16.mxu0 %v926
        %1157 = vmatpush1.bf16.msra.mxu0 %v925
        %1158 = vmatprep.subr.bf16.mxu0 %v930
        %1159 = vmatpush1.bf16.msra.mxu0 %v929
        %1160 = vmatprep.subr.bf16.mxu0 %v934
        %1161 = vmatpush1.bf16.msra.mxu0 %v933
        %1162 = vmatprep.subr.bf16.mxu0 %v938
        %1163 = vmatpush1.bf16.msra.mxu0 %v937
        %1164 = vmatprep.subr.bf16.mxu0 %v942
        %1165 = vmatpush1.bf16.msra.mxu0 %v941
        %1166 = vmatprep.subr.bf16.mxu0 %v946
        %1167 = vmatpush1.bf16.msra.mxu0 %v945
        %1168 = vmatprep.subr.bf16.mxu0 %v950
        %1169 = vmatpush1.bf16.msra.mxu0 %v949
        %1170 = vmatprep.subr.bf16.mxu0 %v954
        %1171 = vmatpush1.bf16.msra.mxu0 %v953
        %1172 = vmatprep.subr.bf16.mxu0 %v958
        %1173 = vmatpush1.bf16.msra.mxu0 %v957
        %1174 = vmatprep.subr.bf16.mxu0 %v962
        %1175 = vmatpush1.bf16.msra.mxu0 %v961
        %1176 = vmatprep.subr.bf16.mxu0 %v966
        %1177 = vmatpush1.bf16.msra.mxu0 %v965
        %1178 = vmatprep.subr.bf16.mxu0 %v970
        %1179 = vmatpush1.bf16.msra.mxu0 %v969
        %1180 = vmatprep.subr.bf16.mxu0 %v974
        %1181 = vmatpush1.bf16.msra.mxu0 %v973
        %1182 = vmatprep.subr.bf16.mxu0 %v978
        %1183 = vmatpush1.bf16.msra.mxu0 %v977
        %1184 = vmatprep.mubr.bf16.mxu0 %v464
        %1185 = vmatmul.mubr.bf16.gmra.mrb[0].mxu0 %v463
        %v1186 = vpop.f32.mrb[0].mxu0
        %v1187 = vadd.f32 %v1144, %v1186
        %v1188 = vpop.f32.mrb[0].mxu0
        %v1189 = vadd.f32 %v1146, %v1188
        %v1190 = vpop.f32.mrb[0].mxu0
        %v1191 = vadd.f32 %v1148, %v1190
        %v1192 = vpop.f32.mrb[0].mxu0
        %v1193 = vadd.f32 %v1150, %v1192
        %1194 = vdwg.mxu0
        %1195 = vmatprep.subr.bf16.mxu0 %v856
        %1196 = vmatpush1.bf16.msra.mxu0 %v855
        %1197 = vmatprep.subr.bf16.mxu0 %v860
        %1198 = vmatpush1.bf16.msra.mxu0 %v859
        %1199 = vmatprep.subr.bf16.mxu0 %v864
        %1200 = vmatpush1.bf16.msra.mxu0 %v863
        %1201 = vmatprep.subr.bf16.mxu0 %v868
        %1202 = vmatpush1.bf16.msra.mxu0 %v867
        %1203 = vmatprep.subr.bf16.mxu0 %v872
        %1204 = vmatpush1.bf16.msra.mxu0 %v871
        %1205 = vmatprep.subr.bf16.mxu0 %v876
        %1206 = vmatpush1.bf16.msra.mxu0 %v875
        %1207 = vmatprep.subr.bf16.mxu0 %v880
        %1208 = vmatpush1.bf16.msra.mxu0 %v879
        %1209 = vmatprep.subr.bf16.mxu0 %v884
        %1210 = vmatpush1.bf16.msra.mxu0 %v883
        %1211 = vmatprep.subr.bf16.mxu0 %v888
        %1212 = vmatpush1.bf16.msra.mxu0 %v887
        %1213 = vmatprep.subr.bf16.mxu0 %v892
        %1214 = vmatpush1.bf16.msra.mxu0 %v891
        %1215 = vmatprep.subr.bf16.mxu0 %v896
        %1216 = vmatpush1.bf16.msra.mxu0 %v895
        %1217 = vmatprep.subr.bf16.mxu0 %v900
        %1218 = vmatpush1.bf16.msra.mxu0 %v899
        %1219 = vmatprep.subr.bf16.mxu0 %v904
        %1220 = vmatpush1.bf16.msra.mxu0 %v903
        %1221 = vmatprep.subr.bf16.mxu0 %v908
        %1222 = vmatpush1.bf16.msra.mxu0 %v907
        %1223 = vmatprep.subr.bf16.mxu0 %v912
        %1224 = vmatpush1.bf16.msra.mxu0 %v911
        %1225 = vmatprep.subr.bf16.mxu0 %v916
        %1226 = vmatpush1.bf16.msra.mxu0 %v915
        %1227 = vmatprep.mubr.bf16.mxu0 %v462
        %1228 = vmatmul.mubr.bf16.gmra.mrb[0].mxu0 %v461
        %v1229 = vpop.f32.mrb[0].mxu0
        %v1230 = vadd.f32 0.0, %v1229
        %v1231 = vpop.f32.mrb[0].mxu0
        %v1232 = vadd.f32 0.0, %v1231
        %v1233 = vpop.f32.mrb[0].mxu0
        %v1234 = vadd.f32 0.0, %v1233
        %v1235 = vpop.f32.mrb[0].mxu0
        %v1236 = vadd.f32 0.0, %v1235
        %1237 = vdwg.mxu0
        %1238 = vmatprep.subr.bf16.mxu0 %v920
        %1239 = vmatpush1.bf16.msra.mxu0 %v919
        %1240 = vmatprep.subr.bf16.mxu0 %v924
        %1241 = vmatpush1.bf16.msra.mxu0 %v923
        %1242 = vmatprep.subr.bf16.mxu0 %v928
        %1243 = vmatpush1.bf16.msra.mxu0 %v927
        %1244 = vmatprep.subr.bf16.mxu0 %v932
        %1245 = vmatpush1.bf16.msra.mxu0 %v931
        %1246 = vmatprep.subr.bf16.mxu0 %v936
        %1247 = vmatpush1.bf16.msra.mxu0 %v935
        %1248 = vmatprep.subr.bf16.mxu0 %v940
        %1249 = vmatpush1.bf16.msra.mxu0 %v939
        %1250 = vmatprep.subr.bf16.mxu0 %v944
        %1251 = vmatpush1.bf16.msra.mxu0 %v943
        %1252 = vmatprep.subr.bf16.mxu0 %v948
        %1253 = vmatpush1.bf16.msra.mxu0 %v947
        %1254 = vmatprep.subr.bf16.mxu0 %v952
        %1255 = vmatpush1.bf16.msra.mxu0 %v951
        %1256 = vmatprep.subr.bf16.mxu0 %v956
        %1257 = vmatpush1.bf16.msra.mxu0 %v955
        %1258 = vmatprep.subr.bf16.mxu0 %v960
        %1259 = vmatpush1.bf16.msra.mxu0 %v959
        %1260 = vmatprep.subr.bf16.mxu0 %v964
        %1261 = vmatpush1.bf16.msra.mxu0 %v963
        %1262 = vmatprep.subr.bf16.mxu0 %v968
        %1263 = vmatpush1.bf16.msra.mxu0 %v967
        %1264 = vmatprep.subr.bf16.mxu0 %v972
        %1265 = vmatpush1.bf16.msra.mxu0 %v971
        %1266 = vmatprep.subr.bf16.mxu0 %v976
        %1267 = vmatpush1.bf16.msra.mxu0 %v975
        %1268 = vmatprep.subr.bf16.mxu0 %v980
        %1269 = vmatpush1.bf16.msra.mxu0 %v979
        %1270 = vmatprep.mubr.bf16.mxu0 %v464
        %1271 = vmatmul.mubr.bf16.gmra.mrb[0].mxu0 %v463
        %v1272 = vpop.f32.mrb[0].mxu0
        %v1273 = vadd.f32 %v1230, %v1272
        %v1274 = vpop.f32.mrb[0].mxu0
        %v1275 = vadd.f32 %v1232, %v1274
        %v1276 = vpop.f32.mrb[0].mxu0
        %v1277 = vadd.f32 %v1234, %v1276
        %v1278 = vpop.f32.mrb[0].mxu0
        %v1279 = vadd.f32 %v1236, %v1278
        %1280 = vdwg.mxu0
        %v1281 = vadd.f32 %v309, %v1187
        %v1282 = vadd.f32 %v310, %v1189
        %v1283 = vadd.f32 %v311, %v1273
        %v1284 = vadd.f32 %v312, %v1275
        %v1285 = vadd.f32 %v313, %v1191
        %v1286 = vadd.f32 %v314, %v1193
        %v1287 = vadd.f32 %v315, %v1277
        %v1288 = vadd.f32 %v316, %v1279
        %1289 = vst [vmem:[#allocation2] sm:$0xff] %v1281
        %1290 = vst [vmem:[#allocation2 + $0x8] sm:$0xff] %v1282
        %1291 = vst [vmem:[#allocation2 + $0x10] sm:$0xff] %v1283
        %1292 = vst [vmem:[#allocation2 + $0x18] sm:$0xff] %v1284
        %1293 = vst [vmem:[#allocation2 + $0x20] sm:$0xff] %v1285
        %1294 = vst [vmem:[#allocation2 + $0x28] sm:$0xff] %v1286
        %1295 = vst [vmem:[#allocation2 + $0x30] sm:$0xff] %v1287
        %1296 = vst [vmem:[#allocation2 + $0x38] sm:$0xff] %v1288
        %p1297 = scmp.eq.s32.totalorder %s21, 8
        // Predicated region
        $region60: #{_lambda_.22} parent=50 // pred_check
          %p1298 = pneg %p1297
        $region61: #{_lambda_.22} parent=50 // pred_check_branch
          %1300 = sbr.rel (%p1298) target = $region63
        $region62: #{_lambda_.22} parent=50 // pred_region
          %v1301 = vld [vmem:[#allocation2] sm:$0xff]
          %v1302 = vld [vmem:[#allocation2 + $0x8] sm:$0xff]
          %v1303 = vld [vmem:[#allocation2 + $0x10] sm:$0xff]
          %v1304 = vld [vmem:[#allocation2 + $0x18] sm:$0xff]
          %v1305 = vld [vmem:[#allocation2 + $0x20] sm:$0xff]
          %v1306 = vld [vmem:[#allocation2 + $0x28] sm:$0xff]
          %v1307 = vld [vmem:[#allocation2 + $0x30] sm:$0xff]
          %v1308 = vld [vmem:[#allocation2 + $0x38] sm:$0xff]
          %v1309 = vld [vmem:[%s283] sm:$0xf]
          %v1311 = vlaneseq
          %v1312 = vshrl.u32 %v1311, 7
          %v1313 = vsub.s32 0, %v1312
          %v1314 = vrot.slane %v1309, %v1313
          %v1315 = vlaneseq
          %v1316 = vshrl.u32 %v1315, 7
          %v1317 = vsub.s32 1, %v1316
          %v1318 = vrot.slane %v1309, %v1317
          %v1319 = vlaneseq
          %v1320 = vshrl.u32 %v1319, 7
          %v1321 = vsub.s32 2, %v1320
          %v1322 = vrot.slane %v1309, %v1321
          %v1323 = vlaneseq
          %v1324 = vshrl.u32 %v1323, 7
          %v1325 = vsub.s32 3, %v1324
          %v1326 = vrot.slane %v1309, %v1325
          %v1331 = vadd.f32 %v1301, %v1314
          %v1332 = vadd.f32 %v1302, %v1318
          %v1333 = vadd.f32 %v1303, %v1322
          %v1334 = vadd.f32 %v1304, %v1326
          %v1335 = vadd.f32 %v1305, %v1314
          %v1336 = vadd.f32 %v1306, %v1318
          %v1337 = vadd.f32 %v1307, %v1322
          %v1338 = vadd.f32 %v1308, %v1326
          %v1339 = vmax.f32 %v1331, 0.0
          %v1340 = vmax.f32 %v1332, 0.0
          %v1341 = vmax.f32 %v1333, 0.0
          %v1342 = vmax.f32 %v1334, 0.0
          %v1343 = vmax.f32 %v1335, 0.0
          %v1344 = vmax.f32 %v1336, 0.0
          %v1345 = vmax.f32 %v1337, 0.0
          %v1346 = vmax.f32 %v1338, 0.0
          %1347 = vst [vmem:[%s294] sm:$0xff] %v1339
          %1348 = vst [vmem:[%s294 + $0x8] sm:$0xff] %v1340
          %1349 = vst [vmem:[%s294 + $0x10] sm:$0xff] %v1341
          %1350 = vst [vmem:[%s294 + $0x18] sm:$0xff] %v1342
          %1351 = vst [vmem:[%s294 + $0x20] sm:$0xff] %v1343
          %1352 = vst [vmem:[%s294 + $0x28] sm:$0xff] %v1344
          %1353 = vst [vmem:[%s294 + $0x30] sm:$0xff] %v1345
          %1354 = vst [vmem:[%s294 + $0x38] sm:$0xff] %v1346
        $region63: #{_lambda_.22} parent=50 // pred_fallthru
          _
        %s1355 = smul.u32 2, %s19
        %s1356 = smul.u32 4, %s20
        %p1357 = scmp.lt.s32.totalorder %s1355, 1
        %s1358 = scalar_select %p1357, %s1355, 1
        %p1359 = scmp.lt.s32.totalorder %s1356, 3
        %s1360 = scalar_select %p1359, %s1356, 3
        %s1361 = smul.addr %s1358, 4
        %s1362 = sadd.s32 %s1360, %s1361
        %s1363 = smul.addr %s1362, 8
        %s1364 = scalar_lea.vmem %s3, %s1363
        // Predicated region
        $region64: #{_lambda_.22} parent=50 // pred_check
          %p1365 = pneg %p135
        $region65: #{_lambda_.22} parent=50 // pred_check_branch
          %1367 = sbr.rel (%p1365) target = $region67
        $region66: #{_lambda_.22} parent=50 // pred_region
          %s1368 = smul.u32 2, %s19
          %s1369 = smul.u32 4, %s20
        $region67: #{_lambda_.22} parent=50 // pred_fallthru
          _
        // Predicated region
        $region68: #{_lambda_.22} parent=50 // pred_check
          %p1370 = pneg %p135
        $region69: #{_lambda_.22} parent=50 // pred_check_branch
          %1372 = sbr.rel (%p1370) target = $region71
        $region70: #{_lambda_.22} parent=50 // pred_region
          %s1373 = smul.u32 2, %s19
          %s1374 = smul.u32 4, %s20
          %p1375 = scmp.lt.s32.totalorder %s1373, 1
          %s1376 = scalar_select %p1375, %s1373, 1
          %p1377 = scmp.lt.s32.totalorder %s1374, 3
          %s1378 = scalar_select %p1377, %s1374, 3
          %s1379 = smul.addr %s1376, 4
          %s1380 = sadd.s32 %s1378, %s1379
          %s1381 = smul.addr %s1380, 8
          %s1382 = scalar_lea.vmem %s3, %s1381
        $region71: #{_lambda_.22} parent=50 // pred_fallthru
          _
      $region51: #{_lambda_.22} parent=5 // pred_fallthru
        _
      %p1383 = scmp.le.s32.totalorder 2, %s9
      // Predicated region
      $region72: #{_lambda_.22} parent=5 // pred_check
        %p1384 = pneg %p1383
      $region73: #{_lambda_.22} parent=5 // pred_check_branch
        %1386 = sbr.rel (%p1384) target = $region75
      $region74: #{_lambda_.22} parent=5 // pred_region
        %s1387 = ssub.s32 %s9, 2
      $region75: #{_lambda_.22} parent=5 // pred_fallthru
        _
    $region6: #{_lambda_.22} parent=1 // loop_footer
      %s13 = sadd.s32 1, %s9
    $region7: #{_lambda_.22} parent=1 // loop_footer_branch
      %8 = sbr.rel target = $region3
    $region8: #{_lambda_.22} parent=1 // loop_exit
      _

// kernel: _lambda_.23
$region0: #{_lambda_.23}
  #allocation0 [shape = 'u32[]', space=smem, size = 0x4, offset = 0x4, fixed_abs, tag = 'smem constant byte address 0x4 - core index']
  #allocation1 [shape = 'u32[144,128]{1,0:T(1,128)}', space=vmem, size = 0x12000, scoped, tag = 'internal scratch']
  #allocation2 [shape = 'f32[16,512]{1,0:T(8,128)}', space=vmem, size = 0x8000, scoped, tag = 'scratch operand']
  %s0 = inlined_call_operand.vmem [shape: bf16[16,2048], index: 0, kind: input, shape index: {}]
  %s1 = inlined_call_operand.vmem [shape: bf16[2048,512], index: 1, kind: input, shape index: {}]
  %s2 = inlined_call_operand.vmem [shape: f32[16,512], index: 2, kind: output, shape index: {0}]
  %s3 = inlined_call_operand.vmem [shape: f32[1,512], index: 3, kind: output, shape index: {1}]
  %s4 = inlined_call_operand.vmem [shape: f32[1,512], index: 4, kind: output, shape index: {2}]
  %5 = xla_tuple %s2, %s3, %s4
  %s6 = sld [smem:[#allocation0]]
  $region92: #{_lambda_.23} parent=0
    _
  %s8 = ssub.s32 1, %s6
  %s9 = scalar_select 0, %s8, %s6
  $region1: #{_lambda_.23} parent=0
    #allocation3 [shape = 'u8[32768]{0}', space=vmem, size = 0x8000, scoped, tag = 'input window, operand 0']
    loop: start=0, step=1, limit=6
    $region2: #{_lambda_.23} parent=1 // loop_pre_header
      _
    $region3: #{_lambda_.23} parent=1 // loop_header
      %s11 = sphi 0, %s15
      %p12 = scmp.ge.s32.totalorder %s11, 6
      %s18 = sphi 0, %s37
      %s19 = sphi 0, %s33
      %s20 = sphi 0, %s29
      %s21 = sphi 0, %s18
      %s22 = sphi 0, %s19
      %s23 = sphi 0, %s20
      %s24 = sphi 0, %s21
      %s25 = sphi 0, %s22
      %s26 = sphi 0, %s23
      %s42 = sphi 0, %s44
      %s45 = sphi 0, %s42
      %s46 = sphi 0, %s45
      %s62 = sphi 0, %s46
      %s70 = sphi 0, %s72
      %s73 = sphi 0, %s70
      %s74 = sphi 0, %s73
      %s90 = sphi 0, %s74
      %s98 = sphi 0, %s100
      %s101 = sphi 0, %s98
      %s102 = sphi 0, %s101
      %s118 = sphi 0, %s102
      %s124 = sphi 0, %s126
      %s127 = sphi 0, %s124
      %s128 = sphi 0, %s127
      %s144 = sphi 0, %s128
      %s150 = sphi 0, %s152
      %s153 = sphi 0, %s150
      %s154 = sphi 0, %s153
      %s170 = sphi 0, %s154
    $region4: #{_lambda_.23} parent=1 // loop_header_branch
      %14 = sbr.rel (%p12) target = $region8
    $region5: #{_lambda_.23} parent=1 // loop_body
      %s16 = ssub.s32 %s11, 1
      %s17 = ssub.s32 %s11, 2
      %s27 = sadd.s32 1, %s20
      %p28 = scmp.ge.s32.totalorder %s27, 4
      %s29 = scalar_select %p28, 0, %s27
      %s30 = sadd.s32 1, %s19
      %s31 = scalar_select %p28, %s30, %s19
      %p32 = scmp.ge.s32.totalorder %s31, 1
      %s33 = scalar_select %p32, 0, %s31
      %s34 = sadd.s32 1, %s18
      %s35 = scalar_select %p32, %s34, %s18
      %p36 = scmp.ge.s32.totalorder %s35, 1
      %s37 = scalar_select %p36, 0, %s35
      %s38 = ssub.s32 %s19, %s33
      %s39 = ssub.s32 %s20, %s29
      %s40 = sor.u32 %s38, %s39
      %p41 = scmp.eq.s32.totalorder %s40, 0
      %s43 = sadd.s32 %s42, 1
      %s44 = scalar_select %p41, %s42, %s43
      %p47 = pneg %p41
      %p48 = scmp.eq.s32.totalorder %s11, 3
      %p49 = por %p47, %p48
      %p50 = scmp.ne.s32.totalorder %s42, %s45
      %p51 = scmp.eq.s32.totalorder %s11, 0
      %p52 = por %p50, %p51
      %p53 = scmp.ne.s32.totalorder %s42, %s45
      %p54 = scmp.eq.s32.totalorder %s16, 3
      %p55 = por %p53, %p54
      %p56 = scmp.ne.s32.totalorder %s45, %s46
      %p57 = scmp.eq.s32.totalorder %s16, 0
      %p58 = por %p56, %p57
      %p59 = scmp.ne.s32.totalorder %s45, %s46
      %p60 = scmp.eq.s32.totalorder %s17, 3
      %p61 = por %p59, %p60
      %p63 = scmp.ne.s32.totalorder %s46, %s62
      %p64 = scmp.eq.s32.totalorder %s17, 0
      %p65 = por %p63, %p64
      %s66 = ssub.s32 %s20, %s29
      %s67 = ssub.s32 %s18, %s37
      %s68 = sor.u32 %s66, %s67
      %p69 = scmp.eq.s32.totalorder %s68, 0
      %s71 = sadd.s32 %s70, 1
      %s72 = scalar_select %p69, %s70, %s71
      %p75 = pneg %p69
      %p76 = scmp.eq.s32.totalorder %s11, 3
      %p77 = por %p75, %p76
      %p78 = scmp.ne.s32.totalorder %s70, %s73
      %p79 = scmp.eq.s32.totalorder %s11, 0
      %p80 = por %p78, %p79
      %p81 = scmp.ne.s32.totalorder %s70, %s73
      %p82 = scmp.eq.s32.totalorder %s16, 3
      %p83 = por %p81, %p82
      %p84 = scmp.ne.s32.totalorder %s73, %s74
      %p85 = scmp.eq.s32.totalorder %s16, 0
      %p86 = por %p84, %p85
      %p87 = scmp.ne.s32.totalorder %s73, %s74
      %p88 = scmp.eq.s32.totalorder %s17, 3
      %p89 = por %p87, %p88
      %p91 = scmp.ne.s32.totalorder %s74, %s90
      %p92 = scmp.eq.s32.totalorder %s17, 0
      %p93 = por %p91, %p92
      %s94 = ssub.s32 %s19, %s33
      %s95 = ssub.s32 %s18, %s37
      %s96 = sor.u32 %s94, %s95
      %p97 = scmp.eq.s32.totalorder %s96, 0
      %s99 = sadd.s32 %s98, 1
      %s100 = scalar_select %p97, %s98, %s99
      %p103 = pneg %p97
      %p104 = scmp.eq.s32.totalorder %s11, 3
      %p105 = por %p103, %p104
      %p106 = scmp.ne.s32.totalorder %s98, %s101
      %p107 = scmp.eq.s32.totalorder %s11, 0
      %p108 = por %p106, %p107
      %p109 = scmp.ne.s32.totalorder %s98, %s101
      %p110 = scmp.eq.s32.totalorder %s16, 3
      %p111 = por %p109, %p110
      %p112 = scmp.ne.s32.totalorder %s101, %s102
      %p113 = scmp.eq.s32.totalorder %s16, 0
      %p114 = por %p112, %p113
      %p115 = scmp.ne.s32.totalorder %s101, %s102
      %p116 = scmp.eq.s32.totalorder %s17, 3
      %p117 = por %p115, %p116
      %p119 = scmp.ne.s32.totalorder %s102, %s118
      %p120 = scmp.eq.s32.totalorder %s17, 0
      %p121 = por %p119, %p120
      %s122 = ssub.s32 %s18, %s37
      %p123 = scmp.eq.s32.totalorder %s122, 0
      %s125 = sadd.s32 %s124, 1
      %s126 = scalar_select %p123, %s124, %s125
      %p129 = pneg %p123
      %p130 = scmp.eq.s32.totalorder %s11, 3
      %p131 = por %p129, %p130
      %p132 = scmp.ne.s32.totalorder %s124, %s127
      %p133 = scmp.eq.s32.totalorder %s11, 0
      %p134 = por %p132, %p133
      %p135 = scmp.ne.s32.totalorder %s124, %s127
      %p136 = scmp.eq.s32.totalorder %s16, 3
      %p137 = por %p135, %p136
      %p138 = scmp.ne.s32.totalorder %s127, %s128
      %p139 = scmp.eq.s32.totalorder %s16, 0
      %p140 = por %p138, %p139
      %p141 = scmp.ne.s32.totalorder %s127, %s128
      %p142 = scmp.eq.s32.totalorder %s17, 3
      %p143 = por %p141, %p142
      %p145 = scmp.ne.s32.totalorder %s128, %s144
      %p146 = scmp.eq.s32.totalorder %s17, 0
      %p147 = por %p145, %p146
      %s148 = ssub.s32 %s18, %s37
      %p149 = scmp.eq.s32.totalorder %s148, 0
      %s151 = sadd.s32 %s150, 1
      %s152 = scalar_select %p149, %s150, %s151
      %p155 = pneg %p149
      %p156 = scmp.eq.s32.totalorder %s11, 3
      %p157 = por %p155, %p156
      %p158 = scmp.ne.s32.totalorder %s150, %s153
      %p159 = scmp.eq.s32.totalorder %s11, 0
      %p160 = por %p158, %p159
      %p161 = scmp.ne.s32.totalorder %s150, %s153
      %p162 = scmp.eq.s32.totalorder %s16, 3
      %p163 = por %p161, %p162
      %p164 = scmp.ne.s32.totalorder %s153, %s154
      %p165 = scmp.eq.s32.totalorder %s16, 0
      %p166 = por %p164, %p165
      %p167 = scmp.ne.s32.totalorder %s153, %s154
      %p168 = scmp.eq.s32.totalorder %s17, 3
      %p169 = por %p167, %p168
      %p171 = scmp.ne.s32.totalorder %s154, %s170
      %p172 = scmp.eq.s32.totalorder %s17, 0
      %p173 = por %p171, %p172
      %p174 = scmp.le.s32.totalorder 1, %s11
      %p175 = scmp.lt.s32.totalorder %s11, 5
      %p176 = pnand %p174, %p175
      %p177 = pneg %p176
      // Predicated region
      $region9: #{_lambda_.23} parent=5 // pred_check
        _
      $region10: #{_lambda_.23} parent=5 // pred_check_branch
        %179 = sbr.rel (%p176) target = $region12
      $region11: #{_lambda_.23} parent=5 // pred_region
        %s180 = ssub.s32 %s11, 1
      $region12: #{_lambda_.23} parent=5 // pred_fallthru
        _
      %p181 = scmp.lt.s32.totalorder %s11, 4
      // Predicated region
      $region13: #{_lambda_.23} parent=5 // pred_check
        %p182 = pneg %p181
      $region14: #{_lambda_.23} parent=5 // pred_check_branch
        %184 = sbr.rel (%p182) target = $region16
      $region15: #{_lambda_.23} parent=5 // pred_region
        // Predicated region
        $region17: #{_lambda_.23} parent=15 // pred_check
          %p185 = pneg %p52
        $region18: #{_lambda_.23} parent=15 // pred_check_branch
          %187 = sbr.rel (%p185) target = $region20
        $region19: #{_lambda_.23} parent=15 // pred_region
          %s188 = sand.u32 %s42, 1
          %s189 = sand.u32 %s42, 1
          %s190 = smul.addr %s189, 32
          %s191 = scalar_lea.vmem [#allocation3], %s190
          %s192 = smul.u32 2, %s19
          %s193 = smul.u32 4, %s20
          %s194 = smul.addr %s192, 16
          %s195 = sadd.s32 %s193, %s194
          %s196 = smul.addr %s195, 4
          %s197 = scalar_lea.vmem %s0, %s196
          // Predicated region
          $region21: #{_lambda_.23} parent=19 // pred_check
            _
          $region22: #{_lambda_.23} parent=19 // pred_check_branch
            %199 = sbr.rel (0) target = $region24
          $region23: #{_lambda_.23} parent=19 // pred_region
            // Predicated region
            $region25: #{_lambda_.23} parent=23 // pred_check
              _
            $region26: #{_lambda_.23} parent=23 // pred_check_branch
              %201 = sbr.rel (0) target = $region28
            $region27: #{_lambda_.23} parent=23 // pred_region
              loop: start=0, step=1, limit=1
              $region29: #{_lambda_.23} parent=27 // loop_pre_header
                _
              $region30: #{_lambda_.23} parent=27 // loop_header
                %s203 = sphi 0, %s207
                %p204 = scmp.ge.s32.totalorder %s203, 1
                %s208 = sphi %s197, %s197
                %s209 = sphi %s191, %s191
              $region31: #{_lambda_.23} parent=27 // loop_header_branch
                %206 = sbr.rel (%p204) target = $region35
              $region32: #{_lambda_.23} parent=27 // loop_body
                %v210 = vld [vmem:[%s208] sm:$0xff]
                %211 = vst [vmem:[%s209] sm:$0xff] %v210
                %v212 = vld [vmem:[%s208 + $0x8] sm:$0xff]
                %213 = vst [vmem:[%s209 + $0x8] sm:$0xff] %v212
                %v214 = vld [vmem:[%s208 + $0x40] sm:$0xff]
                %215 = vst [vmem:[%s209 + $0x10] sm:$0xff] %v214
                %v216 = vld [vmem:[%s208 + $0x48] sm:$0xff]
                %217 = vst [vmem:[%s209 + $0x18] sm:$0xff] %v216
              $region33: #{_lambda_.23} parent=27 // loop_footer
                %s207 = sadd.s32 1, %s203
              $region34: #{_lambda_.23} parent=27 // loop_footer_branch
                %202 = sbr.rel target = $region30
              $region35: #{_lambda_.23} parent=27 // loop_exit
                _
            $region28: #{_lambda_.23} parent=23 // pred_fallthru
              _
            // Predicated region
            $region36: #{_lambda_.23} parent=23 // pred_check
              _
            $region37: #{_lambda_.23} parent=23 // pred_check_branch
              %219 = sbr.rel target = $region39
            $region38: #{_lambda_.23} parent=23 // pred_region
              _
            $region39: #{_lambda_.23} parent=23 // pred_fallthru
              _
          $region24: #{_lambda_.23} parent=19 // pred_fallthru
            _
          %220 = vnop
        $region20: #{_lambda_.23} parent=15 // pred_fallthru
          _
        // Predicated region
        $region40: #{_lambda_.23} parent=15 // pred_check
          %p221 = pneg %p80
        $region41: #{_lambda_.23} parent=15 // pred_check_branch
          %223 = sbr.rel (%p221) target = $region43
        $region42: #{_lambda_.23} parent=15 // pred_region
          %s224 = smul.u32 64, %s20
          %s225 = smul.u32 4, %s18
          %p226 = scmp.lt.s32.totalorder %s224, 255
          %s227 = scalar_select %p226, %s224, 255
          %p228 = scmp.lt.s32.totalorder %s225, 3
          %s229 = scalar_select %p228, %s225, 3
          %s230 = smul.addr %s227, 4
          %s231 = sadd.s32 %s229, %s230
          %s232 = smul.addr %s231, 4
          %s233 = scalar_lea.vmem %s1, %s232
          %s234 = smul.u32 64, %s20
          %s235 = smul.u32 4, %s18
        $region43: #{_lambda_.23} parent=15 // pred_fallthru
          _
      $region16: #{_lambda_.23} parent=5 // pred_fallthru
        _
      %p236 = scmp.le.s32.totalorder 1, %s11
      %p237 = scmp.lt.s32.totalorder %s11, 5
      %p238 = pnand %p236, %p237
      %p239 = pneg %p238
      // Predicated region
      $region44: #{_lambda_.23} parent=5 // pred_check
        _
      $region45: #{_lambda_.23} parent=5 // pred_check_branch
        %241 = sbr.rel (%p238) target = $region47
      $region46: #{_lambda_.23} parent=5 // pred_region
        %s242 = ssub.s32 %s11, 1
        %s243 = sand.u32 %s45, 1
        %s244 = sand.u32 %s45, 1
        %s245 = smul.addr %s244, 32
        %s246 = scalar_lea.vmem [#allocation3], %s245
        // Predicated region
        $region48: #{_lambda_.23} parent=46 // pred_check
          %p247 = pneg %p58
        $region49: #{_lambda_.23} parent=46 // pred_check_branch
          %249 = sbr.rel (%p247) target = $region51
        $region50: #{_lambda_.23} parent=46 // pred_region
          _
        $region51: #{_lambda_.23} parent=46 // pred_fallthru
          _
        %s250 = sand.u32 %s45, 1
        %s251 = sand.u32 %s45, 1
        %s252 = smul.addr %s251, 32
        %s253 = scalar_lea.vmem [#allocation3], %s252
        %p254 = pneg %p58
        %p255 = pneg %p55
        %s256 = smul.u32 64, %s23
        %s257 = smul.u32 4, %s21
        %p258 = scmp.lt.s32.totalorder %s256, 255
        %s259 = scalar_select %p258, %s256, 255
        %p260 = scmp.lt.s32.totalorder %s257, 3
        %s261 = scalar_select %p260, %s257, 3
        %s262 = smul.addr %s259, 4
        %s263 = sadd.s32 %s261, %s262
        %s264 = smul.addr %s263, 4
        %s265 = scalar_lea.vmem %s1, %s264
        %p266 = pneg %p86
        %p267 = pneg %p83
        %p268 = pneg %p114
        %p269 = pneg %p111
        %s270 = smul.u32 2, %s22
        %s271 = smul.u32 4, %s21
        %p272 = scmp.lt.s32.totalorder %s270, 1
        %s273 = scalar_select %p272, %s270, 1
        %p274 = scmp.lt.s32.totalorder %s271, 3
        %s275 = scalar_select %p274, %s271, 3
        %s276 = smul.addr %s273, 4
        %s277 = sadd.s32 %s275, %s276
        %s278 = smul.addr %s277, 8
        %s279 = scalar_lea.vmem %s2, %s278
        %p280 = pneg %p140
        %p281 = pneg %p137
        %s282 = smul.u32 4, %s21
        %p283 = scmp.lt.s32.totalorder %s282, 3
        %s284 = scalar_select %p283, %s282, 3
        %s285 = scalar_lea.vmem %s3, %s284
        %p286 = pneg %p166
        %p287 = pneg %p163
        %s288 = smul.u32 4, %s21
        %p289 = scmp.lt.s32.totalorder %s288, 3
        %s290 = scalar_select %p289, %s288, 3
        %s291 = scalar_lea.vmem %s4, %s290
        %s292 = smul.u32 2, %s22
        %s293 = smul.u32 4, %s23
        %s294 = smul.u32 64, %s23
        %s295 = smul.u32 4, %s21
        %p296 = scmp.lt.s32.totalorder %s294, 255
        %s297 = scalar_select %p296, %s294, 255
        %p298 = scmp.lt.s32.totalorder %s295, 3
        %s299 = scalar_select %p298, %s295, 3
        %s300 = smul.addr %s297, 4
        %s301 = sadd.s32 %s299, %s300
        %s302 = smul.addr %s301, 4
        %s303 = scalar_lea.vmem %s1, %s302
        %s304 = smul.u32 64, %s23
        %s305 = smul.u32 4, %s21
        %s306 = smul.u32 2, %s22
        %s307 = smul.u32 4, %s21
        %p308 = scmp.lt.s32.totalorder %s306, 1
        %s309 = scalar_select %p308, %s306, 1
        %p310 = scmp.lt.s32.totalorder %s307, 3
        %s311 = scalar_select %p310, %s307, 3
        %s312 = smul.addr %s309, 4
        %s313 = sadd.s32 %s311, %s312
        %s314 = smul.addr %s313, 8
        %s315 = scalar_lea.vmem %s2, %s314
        %s316 = smul.u32 2, %s22
        %s317 = smul.u32 4, %s21
        %s318 = smul.u32 4, %s21
        %p319 = scmp.lt.s32.totalorder %s318, 3
        %s320 = scalar_select %p319, %s318, 3
        %s321 = scalar_lea.vmem %s3, %s320
        %s322 = smul.u32 4, %s21
        %s323 = smul.u32 4, %s21
        %p324 = scmp.lt.s32.totalorder %s323, 3
        %s325 = scalar_select %p324, %s323, 3
        %s326 = scalar_lea.vmem %s4, %s325
        %s327 = smul.u32 4, %s21
        %p328 = scmp.eq.s32.totalorder %s23, 0
        // Predicated region
        $region52: #{_lambda_.23} parent=46 // pred_check
          %p329 = pneg %p328
        $region53: #{_lambda_.23} parent=46 // pred_check_branch
          %331 = sbr.rel (%p329) target = $region55
        $region54: #{_lambda_.23} parent=46 // pred_region
          %332 = vst [vmem:[#allocation2] sm:$0xff] 0.0
          %333 = vst [vmem:[#allocation2 + $0x8] sm:$0xff] 0.0
          %334 = vst [vmem:[#allocation2 + $0x10] sm:$0xff] 0.0
          %335 = vst [vmem:[#allocation2 + $0x18] sm:$0xff] 0.0
          %336 = vst [vmem:[#allocation2 + $0x20] sm:$0xff] 0.0
          %337 = vst [vmem:[#allocation2 + $0x28] sm:$0xff] 0.0
          %338 = vst [vmem:[#allocation2 + $0x30] sm:$0xff] 0.0
          %339 = vst [vmem:[#allocation2 + $0x38] sm:$0xff] 0.0
        $region55: #{_lambda_.23} parent=46 // pred_fallthru
          _
        %v340 = vld [vmem:[#allocation2] sm:$0xff]
        %v341 = vld [vmem:[#allocation2 + $0x8] sm:$0xff]
        %v342 = vld [vmem:[#allocation2 + $0x10] sm:$0xff]
        %v343 = vld [vmem:[#allocation2 + $0x18] sm:$0xff]
        %v344 = vld [vmem:[#allocation2 + $0x20] sm:$0xff]
        %v345 = vld [vmem:[#allocation2 + $0x28] sm:$0xff]
        %v346 = vld [vmem:[#allocation2 + $0x30] sm:$0xff]
        %v347 = vld [vmem:[#allocation2 + $0x38] sm:$0xff]
        %v348 = vld [vmem:[%s246] sm:$0xff]
        %v349 = vld [vmem:[%s246 + $0x8] sm:$0xff]
        %v350 = vld [vmem:[%s246 + $0x10] sm:$0xff]
        %v351 = vld [vmem:[%s246 + $0x18] sm:$0xff]
        %v352 = vld [vmem:[%s303] sm:$0xff]
        %v353 = vld [vmem:[%s303 + $0x8] sm:$0xff]
        %v354 = vld [vmem:[%s303 + $0x10] sm:$0xff]
        %v355 = vld [vmem:[%s303 + $0x18] sm:$0xff]
        %v356 = vld [vmem:[%s303 + $0x20] sm:$0xff]
        %v357 = vld [vmem:[%s303 + $0x28] sm:$0xff]
        %v358 = vld [vmem:[%s303 + $0x30] sm:$0xff]
        %v359 = vld [vmem:[%s303 + $0x38] sm:$0xff]
        %v360 = vld [vmem:[%s303 + $0x40] sm:$0xff]
        %v361 = vld [vmem:[%s303 + $0x48] sm:$0xff]
        %v362 = vld [vmem:[%s303 + $0x50] sm:$0xff]
        %v363 = vld [vmem:[%s303 + $0x58] sm:$0xff]
        %v364 = vld [vmem:[%s303 + $0x60] sm:$0xff]
        %v365 = vld [vmem:[%s303 + $0x68] sm:$0xff]
        %v366 = vld [vmem:[%s303 + $0x70] sm:$0xff]
        %v367 = vld [vmem:[%s303 + $0x78] sm:$0xff]
        %v368 = vld [vmem:[%s303 + $0x80] sm:$0xff]
        %v369 = vld [vmem:[%s303 + $0x88] sm:$0xff]
        %v370 = vld [vmem:[%s303 + $0x90] sm:$0xff]
        %v371 = vld [vmem:[%s303 + $0x98] sm:$0xff]
        %v372 = vld [vmem:[%s303 + $0xa0] sm:$0xff]
        %v373 = vld [vmem:[%s303 + $0xa8] sm:$0xff]
        %v374 = vld [vmem:[%s303 + $0xb0] sm:$0xff]
        %v375 = vld [vmem:[%s303 + $0xb8] sm:$0xff]
        %v376 = vld [vmem:[%s303 + $0xc0] sm:$0xff]
        %v377 = vld [vmem:[%s303 + $0xc8] sm:$0xff]
        %v378 = vld [vmem:[%s303 + $0xd0] sm:$0xff]
        %v379 = vld [vmem:[%s303 + $0xd8] sm:$0xff]
        %v380 = vld [vmem:[%s303 + $0xe0] sm:$0xff]
        %v381 = vld [vmem:[%s303 + $0xe8] sm:$0xff]
        %v382 = vld [vmem:[%s303 + $0xf0] sm:$0xff]
        %v383 = vld [vmem:[%s303 + $0xf8] sm:$0xff]
        %v384 = vld [vmem:[%s303 + $0x100] sm:$0xff]
        %v385 = vld [vmem:[%s303 + $0x108] sm:$0xff]
        %v386 = vld [vmem:[%s303 + $0x110] sm:$0xff]
        %v387 = vld [vmem:[%s303 + $0x118] sm:$0xff]
        %v388 = vld [vmem:[%s303 + $0x120] sm:$0xff]
        %v389 = vld [vmem:[%s303 + $0x128] sm:$0xff]
        %v390 = vld [vmem:[%s303 + $0x130] sm:$0xff]
        %v391 = vld [vmem:[%s303 + $0x138] sm:$0xff]
        %v392 = vld [vmem:[%s303 + $0x140] sm:$0xff]
        %v393 = vld [vmem:[%s303 + $0x148] sm:$0xff]
        %v394 = vld [vmem:[%s303 + $0x150] sm:$0xff]
        %v395 = vld [vmem:[%s303 + $0x158] sm:$0xff]
        %v396 = vld [vmem:[%s303 + $0x160] sm:$0xff]
        %v397 = vld [vmem:[%s303 + $0x168] sm:$0xff]
        %v398 = vld [vmem:[%s303 + $0x170] sm:$0xff]
        %v399 = vld [vmem:[%s303 + $0x178] sm:$0xff]
        %v400 = vld [vmem:[%s303 + $0x180] sm:$0xff]
        %v401 = vld [vmem:[%s303 + $0x188] sm:$0xff]
        %v402 = vld [vmem:[%s303 + $0x190] sm:$0xff]
        %v403 = vld [vmem:[%s303 + $0x198] sm:$0xff]
        %v404 = vld [vmem:[%s303 + $0x1a0] sm:$0xff]
        %v405 = vld [vmem:[%s303 + $0x1a8] sm:$0xff]
        %v406 = vld [vmem:[%s303 + $0x1b0] sm:$0xff]
        %v407 = vld [vmem:[%s303 + $0x1b8] sm:$0xff]
        %v408 = vld [vmem:[%s303 + $0x1c0] sm:$0xff]
        %v409 = vld [vmem:[%s303 + $0x1c8] sm:$0xff]
        %v410 = vld [vmem:[%s303 + $0x1d0] sm:$0xff]
        %v411 = vld [vmem:[%s303 + $0x1d8] sm:$0xff]
        %v412 = vld [vmem:[%s303 + $0x1e0] sm:$0xff]
        %v413 = vld [vmem:[%s303 + $0x1e8] sm:$0xff]
        %v414 = vld [vmem:[%s303 + $0x1f0] sm:$0xff]
        %v415 = vld [vmem:[%s303 + $0x1f8] sm:$0xff]
        %v416 = vld [vmem:[%s303 + $0x200] sm:$0xff]
        %v417 = vld [vmem:[%s303 + $0x208] sm:$0xff]
        %v418 = vld [vmem:[%s303 + $0x210] sm:$0xff]
        %v419 = vld [vmem:[%s303 + $0x218] sm:$0xff]
        %v420 = vld [vmem:[%s303 + $0x220] sm:$0xff]
        %v421 = vld [vmem:[%s303 + $0x228] sm:$0xff]
        %v422 = vld [vmem:[%s303 + $0x230] sm:$0xff]
        %v423 = vld [vmem:[%s303 + $0x238] sm:$0xff]
        %v424 = vld [vmem:[%s303 + $0x240] sm:$0xff]
        %v425 = vld [vmem:[%s303 + $0x248] sm:$0xff]
        %v426 = vld [vmem:[%s303 + $0x250] sm:$0xff]
        %v427 = vld [vmem:[%s303 + $0x258] sm:$0xff]
        %v428 = vld [vmem:[%s303 + $0x260] sm:$0xff]
        %v429 = vld [vmem:[%s303 + $0x268] sm:$0xff]
        %v430 = vld [vmem:[%s303 + $0x270] sm:$0xff]
        %v431 = vld [vmem:[%s303 + $0x278] sm:$0xff]
        %v432 = vld [vmem:[%s303 + $0x280] sm:$0xff]
        %v433 = vld [vmem:[%s303 + $0x288] sm:$0xff]
        %v434 = vld [vmem:[%s303 + $0x290] sm:$0xff]
        %v435 = vld [vmem:[%s303 + $0x298] sm:$0xff]
        %v436 = vld [vmem:[%s303 + $0x2a0] sm:$0xff]
        %v437 = vld [vmem:[%s303 + $0x2a8] sm:$0xff]
        %v438 = vld [vmem:[%s303 + $0x2b0] sm:$0xff]
        %v439 = vld [vmem:[%s303 + $0x2b8] sm:$0xff]
        %v440 = vld [vmem:[%s303 + $0x2c0] sm:$0xff]
        %v441 = vld [vmem:[%s303 + $0x2c8] sm:$0xff]
        %v442 = vld [vmem:[%s303 + $0x2d0] sm:$0xff]
        %v443 = vld [vmem:[%s303 + $0x2d8] sm:$0xff]
        %v444 = vld [vmem:[%s303 + $0x2e0] sm:$0xff]
        %v445 = vld [vmem:[%s303 + $0x2e8] sm:$0xff]
        %v446 = vld [vmem:[%s303 + $0x2f0] sm:$0xff]
        %v447 = vld [vmem:[%s303 + $0x2f8] sm:$0xff]
        %v448 = vld [vmem:[%s303 + $0x300] sm:$0xff]
        %v449 = vld [vmem:[%s303 + $0x308] sm:$0xff]
        %v450 = vld [vmem:[%s303 + $0x310] sm:$0xff]
        %v451 = vld [vmem:[%s303 + $0x318] sm:$0xff]
        %v452 = vld [vmem:[%s303 + $0x320] sm:$0xff]
        %v453 = vld [vmem:[%s303 + $0x328] sm:$0xff]
        %v454 = vld [vmem:[%s303 + $0x330] sm:$0xff]
        %v455 = vld [vmem:[%s303 + $0x338] sm:$0xff]
        %v456 = vld [vmem:[%s303 + $0x340] sm:$0xff]
        %v457 = vld [vmem:[%s303 + $0x348] sm:$0xff]
        %v458 = vld [vmem:[%s303 + $0x350] sm:$0xff]
        %v459 = vld [vmem:[%s303 + $0x358] sm:$0xff]
        %v460 = vld [vmem:[%s303 + $0x360] sm:$0xff]
        %v461 = vld [vmem:[%s303 + $0x368] sm:$0xff]
        %v462 = vld [vmem:[%s303 + $0x370] sm:$0xff]
        %v463 = vld [vmem:[%s303 + $0x378] sm:$0xff]
        %v464 = vld [vmem:[%s303 + $0x380] sm:$0xff]
        %v465 = vld [vmem:[%s303 + $0x388] sm:$0xff]
        %v466 = vld [vmem:[%s303 + $0x390] sm:$0xff]
        %v467 = vld [vmem:[%s303 + $0x398] sm:$0xff]
        %v468 = vld [vmem:[%s303 + $0x3a0] sm:$0xff]
        %v469 = vld [vmem:[%s303 + $0x3a8] sm:$0xff]
        %v470 = vld [vmem:[%s303 + $0x3b0] sm:$0xff]
        %v471 = vld [vmem:[%s303 + $0x3b8] sm:$0xff]
        %v472 = vld [vmem:[%s303 + $0x3c0] sm:$0xff]
        %v473 = vld [vmem:[%s303 + $0x3c8] sm:$0xff]
        %v474 = vld [vmem:[%s303 + $0x3d0] sm:$0xff]
        %v475 = vld [vmem:[%s303 + $0x3d8] sm:$0xff]
        %v476 = vld [vmem:[%s303 + $0x3e0] sm:$0xff]
        %v477 = vld [vmem:[%s303 + $0x3e8] sm:$0xff]
        %v478 = vld [vmem:[%s303 + $0x3f0] sm:$0xff]
        %v479 = vld [vmem:[%s303 + $0x3f8] sm:$0xff]
        %v484 = vunpack.c.l.b16 %v348
        %v485 = vunpack.c.h.b16 %v348
        %v486 = vunpack.c.l.b16 %v349
        %v487 = vunpack.c.h.b16 %v349
        %v488 = vunpack.c.l.b16 %v350
        %v489 = vunpack.c.h.b16 %v350
        %v490 = vunpack.c.l.b16 %v351
        %v491 = vunpack.c.h.b16 %v351
        %v492 = vpack.c.b16 %v488, %v484
        %v493 = vpack.c.b16 %v489, %v485
        %v494 = vpack.c.b16 %v490, %v486
        %v495 = vpack.c.b16 %v491, %v487
        %v628 = vunpack.c.l.b16 %v352
        %v629 = vunpack.c.h.b16 %v352
        %v630 = vunpack.c.l.b16 %v353
        %v631 = vunpack.c.h.b16 %v353
        %v632 = vunpack.c.l.b16 %v354
        %v633 = vunpack.c.h.b16 %v354
        %v634 = vunpack.c.l.b16 %v355
        %v635 = vunpack.c.h.b16 %v355
        %v636 = vunpack.c.l.b16 %v356
        %v637 = vunpack.c.h.b16 %v356
        %v638 = vunpack.c.l.b16 %v357
        %v639 = vunpack.c.h.b16 %v357
        %v640 = vunpack.c.l.b16 %v358
        %v641 = vunpack.c.h.b16 %v358
        %v642 = vunpack.c.l.b16 %v359
        %v643 = vunpack.c.h.b16 %v359
        %v644 = vunpack.c.l.b16 %v360
        %v645 = vunpack.c.h.b16 %v360
        %v646 = vunpack.c.l.b16 %v361
        %v647 = vunpack.c.h.b16 %v361
        %v648 = vunpack.c.l.b16 %v362
        %v649 = vunpack.c.h.b16 %v362
        %v650 = vunpack.c.l.b16 %v363
        %v651 = vunpack.c.h.b16 %v363
        %v652 = vunpack.c.l.b16 %v364
        %v653 = vunpack.c.h.b16 %v364
        %v654 = vunpack.c.l.b16 %v365
        %v655 = vunpack.c.h.b16 %v365
        %v656 = vunpack.c.l.b16 %v366
        %v657 = vunpack.c.h.b16 %v366
        %v658 = vunpack.c.l.b16 %v367
        %v659 = vunpack.c.h.b16 %v367
        %v660 = vunpack.c.l.b16 %v368
        %v661 = vunpack.c.h.b16 %v368
        %v662 = vunpack.c.l.b16 %v369
        %v663 = vunpack.c.h.b16 %v369
        %v664 = vunpack.c.l.b16 %v370
        %v665 = vunpack.c.h.b16 %v370
        %v666 = vunpack.c.l.b16 %v371
        %v667 = vunpack.c.h.b16 %v371
        %v668 = vunpack.c.l.b16 %v372
        %v669 = vunpack.c.h.b16 %v372
        %v670 = vunpack.c.l.b16 %v373
        %v671 = vunpack.c.h.b16 %v373
        %v672 = vunpack.c.l.b16 %v374
        %v673 = vunpack.c.h.b16 %v374
        %v674 = vunpack.c.l.b16 %v375
        %v675 = vunpack.c.h.b16 %v375
        %v676 = vunpack.c.l.b16 %v376
        %v677 = vunpack.c.h.b16 %v376
        %v678 = vunpack.c.l.b16 %v377
        %v679 = vunpack.c.h.b16 %v377
        %v680 = vunpack.c.l.b16 %v378
        %v681 = vunpack.c.h.b16 %v378
        %v682 = vunpack.c.l.b16 %v379
        %v683 = vunpack.c.h.b16 %v379
        %v684 = vunpack.c.l.b16 %v380
        %v685 = vunpack.c.h.b16 %v380
        %v686 = vunpack.c.l.b16 %v381
        %v687 = vunpack.c.h.b16 %v381
        %v688 = vunpack.c.l.b16 %v382
        %v689 = vunpack.c.h.b16 %v382
        %v690 = vunpack.c.l.b16 %v383
        %v691 = vunpack.c.h.b16 %v383
        %v692 = vunpack.c.l.b16 %v384
        %v693 = vunpack.c.h.b16 %v384
        %v694 = vunpack.c.l.b16 %v385
        %v695 = vunpack.c.h.b16 %v385
        %v696 = vunpack.c.l.b16 %v386
        %v697 = vunpack.c.h.b16 %v386
        %v698 = vunpack.c.l.b16 %v387
        %v699 = vunpack.c.h.b16 %v387
        %v700 = vunpack.c.l.b16 %v388
        %v701 = vunpack.c.h.b16 %v388
        %v702 = vunpack.c.l.b16 %v389
        %v703 = vunpack.c.h.b16 %v389
        %v704 = vunpack.c.l.b16 %v390
        %v705 = vunpack.c.h.b16 %v390
        %v706 = vunpack.c.l.b16 %v391
        %v707 = vunpack.c.h.b16 %v391
        %v708 = vunpack.c.l.b16 %v392
        %v709 = vunpack.c.h.b16 %v392
        %v710 = vunpack.c.l.b16 %v393
        %v711 = vunpack.c.h.b16 %v393
        %v712 = vunpack.c.l.b16 %v394
        %v713 = vunpack.c.h.b16 %v394
        %v714 = vunpack.c.l.b16 %v395
        %v715 = vunpack.c.h.b16 %v395
        %v716 = vunpack.c.l.b16 %v396
        %v717 = vunpack.c.h.b16 %v396
        %v718 = vunpack.c.l.b16 %v397
        %v719 = vunpack.c.h.b16 %v397
        %v720 = vunpack.c.l.b16 %v398
        %v721 = vunpack.c.h.b16 %v398
        %v722 = vunpack.c.l.b16 %v399
        %v723 = vunpack.c.h.b16 %v399
        %v724 = vunpack.c.l.b16 %v400
        %v725 = vunpack.c.h.b16 %v400
        %v726 = vunpack.c.l.b16 %v401
        %v727 = vunpack.c.h.b16 %v401
        %v728 = vunpack.c.l.b16 %v402
        %v729 = vunpack.c.h.b16 %v402
        %v730 = vunpack.c.l.b16 %v403
        %v731 = vunpack.c.h.b16 %v403
        %v732 = vunpack.c.l.b16 %v404
        %v733 = vunpack.c.h.b16 %v404
        %v734 = vunpack.c.l.b16 %v405
        %v735 = vunpack.c.h.b16 %v405
        %v736 = vunpack.c.l.b16 %v406
        %v737 = vunpack.c.h.b16 %v406
        %v738 = vunpack.c.l.b16 %v407
        %v739 = vunpack.c.h.b16 %v407
        %v740 = vunpack.c.l.b16 %v408
        %v741 = vunpack.c.h.b16 %v408
        %v742 = vunpack.c.l.b16 %v409
        %v743 = vunpack.c.h.b16 %v409
        %v744 = vunpack.c.l.b16 %v410
        %v745 = vunpack.c.h.b16 %v410
        %v746 = vunpack.c.l.b16 %v411
        %v747 = vunpack.c.h.b16 %v411
        %v748 = vunpack.c.l.b16 %v412
        %v749 = vunpack.c.h.b16 %v412
        %v750 = vunpack.c.l.b16 %v413
        %v751 = vunpack.c.h.b16 %v413
        %v752 = vunpack.c.l.b16 %v414
        %v753 = vunpack.c.h.b16 %v414
        %v754 = vunpack.c.l.b16 %v415
        %v755 = vunpack.c.h.b16 %v415
        %v756 = vunpack.c.l.b16 %v416
        %v757 = vunpack.c.h.b16 %v416
        %v758 = vunpack.c.l.b16 %v417
        %v759 = vunpack.c.h.b16 %v417
        %v760 = vunpack.c.l.b16 %v418
        %v761 = vunpack.c.h.b16 %v418
        %v762 = vunpack.c.l.b16 %v419
        %v763 = vunpack.c.h.b16 %v419
        %v764 = vunpack.c.l.b16 %v420
        %v765 = vunpack.c.h.b16 %v420
        %v766 = vunpack.c.l.b16 %v421
        %v767 = vunpack.c.h.b16 %v421
        %v768 = vunpack.c.l.b16 %v422
        %v769 = vunpack.c.h.b16 %v422
        %v770 = vunpack.c.l.b16 %v423
        %v771 = vunpack.c.h.b16 %v423
        %v772 = vunpack.c.l.b16 %v424
        %v773 = vunpack.c.h.b16 %v424
        %v774 = vunpack.c.l.b16 %v425
        %v775 = vunpack.c.h.b16 %v425
        %v776 = vunpack.c.l.b16 %v426
        %v777 = vunpack.c.h.b16 %v426
        %v778 = vunpack.c.l.b16 %v427
        %v779 = vunpack.c.h.b16 %v427
        %v780 = vunpack.c.l.b16 %v428
        %v781 = vunpack.c.h.b16 %v428
        %v782 = vunpack.c.l.b16 %v429
        %v783 = vunpack.c.h.b16 %v429
        %v784 = vunpack.c.l.b16 %v430
        %v785 = vunpack.c.h.b16 %v430
        %v786 = vunpack.c.l.b16 %v431
        %v787 = vunpack.c.h.b16 %v431
        %v788 = vunpack.c.l.b16 %v432
        %v789 = vunpack.c.h.b16 %v432
        %v790 = vunpack.c.l.b16 %v433
        %v791 = vunpack.c.h.b16 %v433
        %v792 = vunpack.c.l.b16 %v434
        %v793 = vunpack.c.h.b16 %v434
        %v794 = vunpack.c.l.b16 %v435
        %v795 = vunpack.c.h.b16 %v435
        %v796 = vunpack.c.l.b16 %v436
        %v797 = vunpack.c.h.b16 %v436
        %v798 = vunpack.c.l.b16 %v437
        %v799 = vunpack.c.h.b16 %v437
        %v800 = vunpack.c.l.b16 %v438
        %v801 = vunpack.c.h.b16 %v438
        %v802 = vunpack.c.l.b16 %v439
        %v803 = vunpack.c.h.b16 %v439
        %v804 = vunpack.c.l.b16 %v440
        %v805 = vunpack.c.h.b16 %v440
        %v806 = vunpack.c.l.b16 %v441
        %v807 = vunpack.c.h.b16 %v441
        %v808 = vunpack.c.l.b16 %v442
        %v809 = vunpack.c.h.b16 %v442
        %v810 = vunpack.c.l.b16 %v443
        %v811 = vunpack.c.h.b16 %v443
        %v812 = vunpack.c.l.b16 %v444
        %v813 = vunpack.c.h.b16 %v444
        %v814 = vunpack.c.l.b16 %v445
        %v815 = vunpack.c.h.b16 %v445
        %v816 = vunpack.c.l.b16 %v446
        %v817 = vunpack.c.h.b16 %v446
        %v818 = vunpack.c.l.b16 %v447
        %v819 = vunpack.c.h.b16 %v447
        %v820 = vunpack.c.l.b16 %v448
        %v821 = vunpack.c.h.b16 %v448
        %v822 = vunpack.c.l.b16 %v449
        %v823 = vunpack.c.h.b16 %v449
        %v824 = vunpack.c.l.b16 %v450
        %v825 = vunpack.c.h.b16 %v450
        %v826 = vunpack.c.l.b16 %v451
        %v827 = vunpack.c.h.b16 %v451
        %v828 = vunpack.c.l.b16 %v452
        %v829 = vunpack.c.h.b16 %v452
        %v830 = vunpack.c.l.b16 %v453
        %v831 = vunpack.c.h.b16 %v453
        %v832 = vunpack.c.l.b16 %v454
        %v833 = vunpack.c.h.b16 %v454
        %v834 = vunpack.c.l.b16 %v455
        %v835 = vunpack.c.h.b16 %v455
        %v836 = vunpack.c.l.b16 %v456
        %v837 = vunpack.c.h.b16 %v456
        %v838 = vunpack.c.l.b16 %v457
        %v839 = vunpack.c.h.b16 %v457
        %v840 = vunpack.c.l.b16 %v458
        %v841 = vunpack.c.h.b16 %v458
        %v842 = vunpack.c.l.b16 %v459
        %v843 = vunpack.c.h.b16 %v459
        %v844 = vunpack.c.l.b16 %v460
        %v845 = vunpack.c.h.b16 %v460
        %v846 = vunpack.c.l.b16 %v461
        %v847 = vunpack.c.h.b16 %v461
        %v848 = vunpack.c.l.b16 %v462
        %v849 = vunpack.c.h.b16 %v462
        %v850 = vunpack.c.l.b16 %v463
        %v851 = vunpack.c.h.b16 %v463
        %v852 = vunpack.c.l.b16 %v464
        %v853 = vunpack.c.h.b16 %v464
        %v854 = vunpack.c.l.b16 %v465
        %v855 = vunpack.c.h.b16 %v465
        %v856 = vunpack.c.l.b16 %v466
        %v857 = vunpack.c.h.b16 %v466
        %v858 = vunpack.c.l.b16 %v467
        %v859 = vunpack.c.h.b16 %v467
        %v860 = vunpack.c.l.b16 %v468
        %v861 = vunpack.c.h.b16 %v468
        %v862 = vunpack.c.l.b16 %v469
        %v863 = vunpack.c.h.b16 %v469
        %v864 = vunpack.c.l.b16 %v470
        %v865 = vunpack.c.h.b16 %v470
        %v866 = vunpack.c.l.b16 %v471
        %v867 = vunpack.c.h.b16 %v471
        %v868 = vunpack.c.l.b16 %v472
        %v869 = vunpack.c.h.b16 %v472
        %v870 = vunpack.c.l.b16 %v473
        %v871 = vunpack.c.h.b16 %v473
        %v872 = vunpack.c.l.b16 %v474
        %v873 = vunpack.c.h.b16 %v474
        %v874 = vunpack.c.l.b16 %v475
        %v875 = vunpack.c.h.b16 %v475
        %v876 = vunpack.c.l.b16 %v476
        %v877 = vunpack.c.h.b16 %v476
        %v878 = vunpack.c.l.b16 %v477
        %v879 = vunpack.c.h.b16 %v477
        %v880 = vunpack.c.l.b16 %v478
        %v881 = vunpack.c.h.b16 %v478
        %v882 = vunpack.c.l.b16 %v479
        %v883 = vunpack.c.h.b16 %v479
        %v884 = vpack.c.b16 %v632, %v628
        %v885 = vpack.c.b16 %v633, %v629
        %v886 = vpack.c.b16 %v634, %v630
        %v887 = vpack.c.b16 %v635, %v631
        %v888 = vpack.c.b16 %v640, %v636
        %v889 = vpack.c.b16 %v641, %v637
        %v890 = vpack.c.b16 %v642, %v638
        %v891 = vpack.c.b16 %v643, %v639
        %v892 = vpack.c.b16 %v648, %v644
        %v893 = vpack.c.b16 %v649, %v645
        %v894 = vpack.c.b16 %v650, %v646
        %v895 = vpack.c.b16 %v651, %v647
        %v896 = vpack.c.b16 %v656, %v652
        %v897 = vpack.c.b16 %v657, %v653
        %v898 = vpack.c.b16 %v658, %v654
        %v899 = vpack.c.b16 %v659, %v655
        %v900 = vpack.c.b16 %v664, %v660
        %v901 = vpack.c.b16 %v665, %v661
        %v902 = vpack.c.b16 %v666, %v662
        %v903 = vpack.c.b16 %v667, %v663
        %v904 = vpack.c.b16 %v672, %v668
        %v905 = vpack.c.b16 %v673, %v669
        %v906 = vpack.c.b16 %v674, %v670
        %v907 = vpack.c.b16 %v675, %v671
        %v908 = vpack.c.b16 %v680, %v676
        %v909 = vpack.c.b16 %v681, %v677
        %v910 = vpack.c.b16 %v682, %v678
        %v911 = vpack.c.b16 %v683, %v679
        %v912 = vpack.c.b16 %v688, %v684
        %v913 = vpack.c.b16 %v689, %v685
        %v914 = vpack.c.b16 %v690, %v686
        %v915 = vpack.c.b16 %v691, %v687
        %v916 = vpack.c.b16 %v696, %v692
        %v917 = vpack.c.b16 %v697, %v693
        %v918 = vpack.c.b16 %v698, %v694
        %v919 = vpack.c.b16 %v699, %v695
        %v920 = vpack.c.b16 %v704, %v700
        %v921 = vpack.c.b16 %v705, %v701
        %v922 = vpack.c.b16 %v706, %v702
        %v923 = vpack.c.b16 %v707, %v703
        %v924 = vpack.c.b16 %v712, %v708
        %v925 = vpack.c.b16 %v713, %v709
        %v926 = vpack.c.b16 %v714, %v710
        %v927 = vpack.c.b16 %v715, %v711
        %v928 = vpack.c.b16 %v720, %v716
        %v929 = vpack.c.b16 %v721, %v717
        %v930 = vpack.c.b16 %v722, %v718
        %v931 = vpack.c.b16 %v723, %v719
        %v932 = vpack.c.b16 %v728, %v724
        %v933 = vpack.c.b16 %v729, %v725
        %v934 = vpack.c.b16 %v730, %v726
        %v935 = vpack.c.b16 %v731, %v727
        %v936 = vpack.c.b16 %v736, %v732
        %v937 = vpack.c.b16 %v737, %v733
        %v938 = vpack.c.b16 %v738, %v734
        %v939 = vpack.c.b16 %v739, %v735
        %v940 = vpack.c.b16 %v744, %v740
        %v941 = vpack.c.b16 %v745, %v741
        %v942 = vpack.c.b16 %v746, %v742
        %v943 = vpack.c.b16 %v747, %v743
        %v944 = vpack.c.b16 %v752, %v748
        %v945 = vpack.c.b16 %v753, %v749
        %v946 = vpack.c.b16 %v754, %v750
        %v947 = vpack.c.b16 %v755, %v751
        %v948 = vpack.c.b16 %v760, %v756
        %v949 = vpack.c.b16 %v761, %v757
        %v950 = vpack.c.b16 %v762, %v758
        %v951 = vpack.c.b16 %v763, %v759
        %v952 = vpack.c.b16 %v768, %v764
        %v953 = vpack.c.b16 %v769, %v765
        %v954 = vpack.c.b16 %v770, %v766
        %v955 = vpack.c.b16 %v771, %v767
        %v956 = vpack.c.b16 %v776, %v772
        %v957 = vpack.c.b16 %v777, %v773
        %v958 = vpack.c.b16 %v778, %v774
        %v959 = vpack.c.b16 %v779, %v775
        %v960 = vpack.c.b16 %v784, %v780
        %v961 = vpack.c.b16 %v785, %v781
        %v962 = vpack.c.b16 %v786, %v782
        %v963 = vpack.c.b16 %v787, %v783
        %v964 = vpack.c.b16 %v792, %v788
        %v965 = vpack.c.b16 %v793, %v789
        %v966 = vpack.c.b16 %v794, %v790
        %v967 = vpack.c.b16 %v795, %v791
        %v968 = vpack.c.b16 %v800, %v796
        %v969 = vpack.c.b16 %v801, %v797
        %v970 = vpack.c.b16 %v802, %v798
        %v971 = vpack.c.b16 %v803, %v799
        %v972 = vpack.c.b16 %v808, %v804
        %v973 = vpack.c.b16 %v809, %v805
        %v974 = vpack.c.b16 %v810, %v806
        %v975 = vpack.c.b16 %v811, %v807
        %v976 = vpack.c.b16 %v816, %v812
        %v977 = vpack.c.b16 %v817, %v813
        %v978 = vpack.c.b16 %v818, %v814
        %v979 = vpack.c.b16 %v819, %v815
        %v980 = vpack.c.b16 %v824, %v820
        %v981 = vpack.c.b16 %v825, %v821
        %v982 = vpack.c.b16 %v826, %v822
        %v983 = vpack.c.b16 %v827, %v823
        %v984 = vpack.c.b16 %v832, %v828
        %v985 = vpack.c.b16 %v833, %v829
        %v986 = vpack.c.b16 %v834, %v830
        %v987 = vpack.c.b16 %v835, %v831
        %v988 = vpack.c.b16 %v840, %v836
        %v989 = vpack.c.b16 %v841, %v837
        %v990 = vpack.c.b16 %v842, %v838
        %v991 = vpack.c.b16 %v843, %v839
        %v992 = vpack.c.b16 %v848, %v844
        %v993 = vpack.c.b16 %v849, %v845
        %v994 = vpack.c.b16 %v850, %v846
        %v995 = vpack.c.b16 %v851, %v847
        %v996 = vpack.c.b16 %v856, %v852
        %v997 = vpack.c.b16 %v857, %v853
        %v998 = vpack.c.b16 %v858, %v854
        %v999 = vpack.c.b16 %v859, %v855
        %v1000 = vpack.c.b16 %v864, %v860
        %v1001 = vpack.c.b16 %v865, %v861
        %v1002 = vpack.c.b16 %v866, %v862
        %v1003 = vpack.c.b16 %v867, %v863
        %v1004 = vpack.c.b16 %v872, %v868
        %v1005 = vpack.c.b16 %v873, %v869
        %v1006 = vpack.c.b16 %v874, %v870
        %v1007 = vpack.c.b16 %v875, %v871
        %v1008 = vpack.c.b16 %v880, %v876
        %v1009 = vpack.c.b16 %v881, %v877
        %v1010 = vpack.c.b16 %v882, %v878
        %v1011 = vpack.c.b16 %v883, %v879
        %1140 = vmatprep.subr.bf16.mxu0 %v885
        %1141 = vmatpush1.bf16.msra.mxu0 %v884
        %1142 = vmatprep.subr.bf16.mxu0 %v889
        %1143 = vmatpush1.bf16.msra.mxu0 %v888
        %1144 = vmatprep.subr.bf16.mxu0 %v893
        %1145 = vmatpush1.bf16.msra.mxu0 %v892
        %1146 = vmatprep.subr.bf16.mxu0 %v897
        %1147 = vmatpush1.bf16.msra.mxu0 %v896
        %1148 = vmatprep.subr.bf16.mxu0 %v901
        %1149 = vmatpush1.bf16.msra.mxu0 %v900
        %1150 = vmatprep.subr.bf16.mxu0 %v905
        %1151 = vmatpush1.bf16.msra.mxu0 %v904
        %1152 = vmatprep.subr.bf16.mxu0 %v909
        %1153 = vmatpush1.bf16.msra.mxu0 %v908
        %1154 = vmatprep.subr.bf16.mxu0 %v913
        %1155 = vmatpush1.bf16.msra.mxu0 %v912
        %1156 = vmatprep.subr.bf16.mxu0 %v917
        %1157 = vmatpush1.bf16.msra.mxu0 %v916
        %1158 = vmatprep.subr.bf16.mxu0 %v921
        %1159 = vmatpush1.bf16.msra.mxu0 %v920
        %1160 = vmatprep.subr.bf16.mxu0 %v925
        %1161 = vmatpush1.bf16.msra.mxu0 %v924
        %1162 = vmatprep.subr.bf16.mxu0 %v929
        %1163 = vmatpush1.bf16.msra.mxu0 %v928
        %1164 = vmatprep.subr.bf16.mxu0 %v933
        %1165 = vmatpush1.bf16.msra.mxu0 %v932
        %1166 = vmatprep.subr.bf16.mxu0 %v937
        %1167 = vmatpush1.bf16.msra.mxu0 %v936
        %1168 = vmatprep.subr.bf16.mxu0 %v941
        %1169 = vmatpush1.bf16.msra.mxu0 %v940
        %1170 = vmatprep.subr.bf16.mxu0 %v945
        %1171 = vmatpush1.bf16.msra.mxu0 %v944
        %1172 = vmatprep.mubr.bf16.mxu0 %v493
        %1173 = vmatmul.mubr.bf16.gmra.mrb[0].mxu0 %v492
        %v1174 = vpop.f32.mrb[0].mxu0
        %v1175 = vadd.f32 0.0, %v1174
        %v1176 = vpop.f32.mrb[0].mxu0
        %v1177 = vadd.f32 0.0, %v1176
        %v1178 = vpop.f32.mrb[0].mxu0
        %v1179 = vadd.f32 0.0, %v1178
        %v1180 = vpop.f32.mrb[0].mxu0
        %v1181 = vadd.f32 0.0, %v1180
        %1182 = vdwg.mxu0
        %1183 = vmatprep.subr.bf16.mxu0 %v949
        %1184 = vmatpush1.bf16.msra.mxu0 %v948
        %1185 = vmatprep.subr.bf16.mxu0 %v953
        %1186 = vmatpush1.bf16.msra.mxu0 %v952
        %1187 = vmatprep.subr.bf16.mxu0 %v957
        %1188 = vmatpush1.bf16.msra.mxu0 %v956
        %1189 = vmatprep.subr.bf16.mxu0 %v961
        %1190 = vmatpush1.bf16.msra.mxu0 %v960
        %1191 = vmatprep.subr.bf16.mxu0 %v965
        %1192 = vmatpush1.bf16.msra.mxu0 %v964
        %1193 = vmatprep.subr.bf16.mxu0 %v969
        %1194 = vmatpush1.bf16.msra.mxu0 %v968
        %1195 = vmatprep.subr.bf16.mxu0 %v973
        %1196 = vmatpush1.bf16.msra.mxu0 %v972
        %1197 = vmatprep.subr.bf16.mxu0 %v977
        %1198 = vmatpush1.bf16.msra.mxu0 %v976
        %1199 = vmatprep.subr.bf16.mxu0 %v981
        %1200 = vmatpush1.bf16.msra.mxu0 %v980
        %1201 = vmatprep.subr.bf16.mxu0 %v985
        %1202 = vmatpush1.bf16.msra.mxu0 %v984
        %1203 = vmatprep.subr.bf16.mxu0 %v989
        %1204 = vmatpush1.bf16.msra.mxu0 %v988
        %1205 = vmatprep.subr.bf16.mxu0 %v993
        %1206 = vmatpush1.bf16.msra.mxu0 %v992
        %1207 = vmatprep.subr.bf16.mxu0 %v997
        %1208 = vmatpush1.bf16.msra.mxu0 %v996
        %1209 = vmatprep.subr.bf16.mxu0 %v1001
        %1210 = vmatpush1.bf16.msra.mxu0 %v1000
        %1211 = vmatprep.subr.bf16.mxu0 %v1005
        %1212 = vmatpush1.bf16.msra.mxu0 %v1004
        %1213 = vmatprep.subr.bf16.mxu0 %v1009
        %1214 = vmatpush1.bf16.msra.mxu0 %v1008
        %1215 = vmatprep.mubr.bf16.mxu0 %v495
        %1216 = vmatmul.mubr.bf16.gmra.mrb[0].mxu0 %v494
        %v1217 = vpop.f32.mrb[0].mxu0
        %v1218 = vadd.f32 %v1175, %v1217
        %v1219 = vpop.f32.mrb[0].mxu0
        %v1220 = vadd.f32 %v1177, %v1219
        %v1221 = vpop.f32.mrb[0].mxu0
        %v1222 = vadd.f32 %v1179, %v1221
        %v1223 = vpop.f32.mrb[0].mxu0
        %v1224 = vadd.f32 %v1181, %v1223
        %1225 = vdwg.mxu0
        %1226 = vmatprep.subr.bf16.mxu0 %v887
        %1227 = vmatpush1.bf16.msra.mxu0 %v886
        %1228 = vmatprep.subr.bf16.mxu0 %v891
        %1229 = vmatpush1.bf16.msra.mxu0 %v890
        %1230 = vmatprep.subr.bf16.mxu0 %v895
        %1231 = vmatpush1.bf16.msra.mxu0 %v894
        %1232 = vmatprep.subr.bf16.mxu0 %v899
        %1233 = vmatpush1.bf16.msra.mxu0 %v898
        %1234 = vmatprep.subr.bf16.mxu0 %v903
        %1235 = vmatpush1.bf16.msra.mxu0 %v902
        %1236 = vmatprep.subr.bf16.mxu0 %v907
        %1237 = vmatpush1.bf16.msra.mxu0 %v906
        %1238 = vmatprep.subr.bf16.mxu0 %v911
        %1239 = vmatpush1.bf16.msra.mxu0 %v910
        %1240 = vmatprep.subr.bf16.mxu0 %v915
        %1241 = vmatpush1.bf16.msra.mxu0 %v914
        %1242 = vmatprep.subr.bf16.mxu0 %v919
        %1243 = vmatpush1.bf16.msra.mxu0 %v918
        %1244 = vmatprep.subr.bf16.mxu0 %v923
        %1245 = vmatpush1.bf16.msra.mxu0 %v922
        %1246 = vmatprep.subr.bf16.mxu0 %v927
        %1247 = vmatpush1.bf16.msra.mxu0 %v926
        %1248 = vmatprep.subr.bf16.mxu0 %v931
        %1249 = vmatpush1.bf16.msra.mxu0 %v930
        %1250 = vmatprep.subr.bf16.mxu0 %v935
        %1251 = vmatpush1.bf16.msra.mxu0 %v934
        %1252 = vmatprep.subr.bf16.mxu0 %v939
        %1253 = vmatpush1.bf16.msra.mxu0 %v938
        %1254 = vmatprep.subr.bf16.mxu0 %v943
        %1255 = vmatpush1.bf16.msra.mxu0 %v942
        %1256 = vmatprep.subr.bf16.mxu0 %v947
        %1257 = vmatpush1.bf16.msra.mxu0 %v946
        %1258 = vmatprep.mubr.bf16.mxu0 %v493
        %1259 = vmatmul.mubr.bf16.gmra.mrb[0].mxu0 %v492
        %v1260 = vpop.f32.mrb[0].mxu0
        %v1261 = vadd.f32 0.0, %v1260
        %v1262 = vpop.f32.mrb[0].mxu0
        %v1263 = vadd.f32 0.0, %v1262
        %v1264 = vpop.f32.mrb[0].mxu0
        %v1265 = vadd.f32 0.0, %v1264
        %v1266 = vpop.f32.mrb[0].mxu0
        %v1267 = vadd.f32 0.0, %v1266
        %1268 = vdwg.mxu0
        %1269 = vmatprep.subr.bf16.mxu0 %v951
        %1270 = vmatpush1.bf16.msra.mxu0 %v950
        %1271 = vmatprep.subr.bf16.mxu0 %v955
        %1272 = vmatpush1.bf16.msra.mxu0 %v954
        %1273 = vmatprep.subr.bf16.mxu0 %v959
        %1274 = vmatpush1.bf16.msra.mxu0 %v958
        %1275 = vmatprep.subr.bf16.mxu0 %v963
        %1276 = vmatpush1.bf16.msra.mxu0 %v962
        %1277 = vmatprep.subr.bf16.mxu0 %v967
        %1278 = vmatpush1.bf16.msra.mxu0 %v966
        %1279 = vmatprep.subr.bf16.mxu0 %v971
        %1280 = vmatpush1.bf16.msra.mxu0 %v970
        %1281 = vmatprep.subr.bf16.mxu0 %v975
        %1282 = vmatpush1.bf16.msra.mxu0 %v974
        %1283 = vmatprep.subr.bf16.mxu0 %v979
        %1284 = vmatpush1.bf16.msra.mxu0 %v978
        %1285 = vmatprep.subr.bf16.mxu0 %v983
        %1286 = vmatpush1.bf16.msra.mxu0 %v982
        %1287 = vmatprep.subr.bf16.mxu0 %v987
        %1288 = vmatpush1.bf16.msra.mxu0 %v986
        %1289 = vmatprep.subr.bf16.mxu0 %v991
        %1290 = vmatpush1.bf16.msra.mxu0 %v990
        %1291 = vmatprep.subr.bf16.mxu0 %v995
        %1292 = vmatpush1.bf16.msra.mxu0 %v994
        %1293 = vmatprep.subr.bf16.mxu0 %v999
        %1294 = vmatpush1.bf16.msra.mxu0 %v998
        %1295 = vmatprep.subr.bf16.mxu0 %v1003
        %1296 = vmatpush1.bf16.msra.mxu0 %v1002
        %1297 = vmatprep.subr.bf16.mxu0 %v1007
        %1298 = vmatpush1.bf16.msra.mxu0 %v1006
        %1299 = vmatprep.subr.bf16.mxu0 %v1011
        %1300 = vmatpush1.bf16.msra.mxu0 %v1010
        %1301 = vmatprep.mubr.bf16.mxu0 %v495
        %1302 = vmatmul.mubr.bf16.gmra.mrb[0].mxu0 %v494
        %v1303 = vpop.f32.mrb[0].mxu0
        %v1304 = vadd.f32 %v1261, %v1303
        %v1305 = vpop.f32.mrb[0].mxu0
        %v1306 = vadd.f32 %v1263, %v1305
        %v1307 = vpop.f32.mrb[0].mxu0
        %v1308 = vadd.f32 %v1265, %v1307
        %v1309 = vpop.f32.mrb[0].mxu0
        %v1310 = vadd.f32 %v1267, %v1309
        %1311 = vdwg.mxu0
        %v1312 = vadd.f32 %v340, %v1218
        %v1313 = vadd.f32 %v341, %v1220
        %v1314 = vadd.f32 %v342, %v1304
        %v1315 = vadd.f32 %v343, %v1306
        %v1316 = vadd.f32 %v344, %v1222
        %v1317 = vadd.f32 %v345, %v1224
        %v1318 = vadd.f32 %v346, %v1308
        %v1319 = vadd.f32 %v347, %v1310
        %1320 = vst [vmem:[#allocation2] sm:$0xff] %v1312
        %1321 = vst [vmem:[#allocation2 + $0x8] sm:$0xff] %v1313
        %1322 = vst [vmem:[#allocation2 + $0x10] sm:$0xff] %v1314
        %1323 = vst [vmem:[#allocation2 + $0x18] sm:$0xff] %v1315
        %1324 = vst [vmem:[#allocation2 + $0x20] sm:$0xff] %v1316
        %1325 = vst [vmem:[#allocation2 + $0x28] sm:$0xff] %v1317
        %1326 = vst [vmem:[#allocation2 + $0x30] sm:$0xff] %v1318
        %1327 = vst [vmem:[#allocation2 + $0x38] sm:$0xff] %v1319
        %p1328 = scmp.eq.s32.totalorder %s23, 3
        %p1329 = scmp.eq.s32.totalorder %s22, 0
        %p1330 = pnand %p1328, %p1329
        %p1331 = pneg %p1330
        // Predicated region
        $region56: #{_lambda_.23} parent=46 // pred_check
          _
        $region57: #{_lambda_.23} parent=46 // pred_check_branch
          %1333 = sbr.rel (%p1330) target = $region59
        $region58: #{_lambda_.23} parent=46 // pred_region
          %v1334 = vlaneseq
          %vm1335 = vcmp.ge.s32.totalorder %v1334, 0
          %vm1336 = vcmp.lt.s32.totalorder %v1334, 512
          %vm1337 = vmand %vm1335, %vm1336
          %1338 = vst.msk [vmem:[%s321] sm:$0xf] %vm1337, 0.0
          %1339 = vst.msk [vmem:[%s326] sm:$0xf] %vm1337, 0.0
        $region59: #{_lambda_.23} parent=46 // pred_fallthru
          _
        // Predicated region
        $region60: #{_lambda_.23} parent=46 // pred_check
          %p1340 = pneg %p1328
        $region61: #{_lambda_.23} parent=46 // pred_check_branch
          %1342 = sbr.rel (%p1340) target = $region63
        $region62: #{_lambda_.23} parent=46 // pred_region
          %v1343 = vld [vmem:[#allocation2] sm:$0xff]
          %v1344 = vld [vmem:[#allocation2 + $0x8] sm:$0xff]
          %v1345 = vld [vmem:[#allocation2 + $0x10] sm:$0xff]
          %v1346 = vld [vmem:[#allocation2 + $0x18] sm:$0xff]
          %v1347 = vld [vmem:[#allocation2 + $0x20] sm:$0xff]
          %v1348 = vld [vmem:[#allocation2 + $0x28] sm:$0xff]
          %v1349 = vld [vmem:[#allocation2 + $0x30] sm:$0xff]
          %v1350 = vld [vmem:[#allocation2 + $0x38] sm:$0xff]
          %1351 = vst [vmem:[%s315] sm:$0xff] %v1343
          %1352 = vst [vmem:[%s315 + $0x8] sm:$0xff] %v1344
          %1353 = vst [vmem:[%s315 + $0x10] sm:$0xff] %v1345
          %1354 = vst [vmem:[%s315 + $0x18] sm:$0xff] %v1346
          %1355 = vst [vmem:[%s315 + $0x20] sm:$0xff] %v1347
          %1356 = vst [vmem:[%s315 + $0x28] sm:$0xff] %v1348
          %1357 = vst [vmem:[%s315 + $0x30] sm:$0xff] %v1349
          %1358 = vst [vmem:[%s315 + $0x38] sm:$0xff] %v1350
          %v1359 = vld [vmem:[%s321] sm:$0xf]
          %v1360 = vadd.f32 %v1343, %v1347
          %v1361 = vrot.slane %v1360, 4
          %v1362 = vadd.f32 %v1360, %v1361
          %v1363 = vrot.slane %v1362, 2
          %v1364 = vadd.f32 %v1362, %v1363
          %v1365 = vrot.slane %v1364, 1
          %v1366 = vadd.f32 %v1364, %v1365
          %v1367 = vadd.f32 %v1344, %v1348
          %v1368 = vrot.slane %v1367, 4
          %v1369 = vadd.f32 %v1367, %v1368
          %v1370 = vrot.slane %v1369, 2
          %v1371 = vadd.f32 %v1369, %v1370
          %v1372 = vrot.slane %v1371, 1
          %v1373 = vadd.f32 %v1371, %v1372
          %v1374 = vadd.f32 %v1345, %v1349
          %v1375 = vrot.slane %v1374, 4
          %v1376 = vadd.f32 %v1374, %v1375
          %v1377 = vrot.slane %v1376, 2
          %v1378 = vadd.f32 %v1376, %v1377
          %v1379 = vrot.slane %v1378, 1
          %v1380 = vadd.f32 %v1378, %v1379
          %v1381 = vadd.f32 %v1346, %v1350
          %v1382 = vrot.slane %v1381, 4
          %v1383 = vadd.f32 %v1381, %v1382
          %v1384 = vrot.slane %v1383, 2
          %v1385 = vadd.f32 %v1383, %v1384
          %v1386 = vrot.slane %v1385, 1
          %v1387 = vadd.f32 %v1385, %v1386
          %v1392 = vcombine.low %v1366, %v1373
          %v1393 = vcombine.low %v1380, %v1387
          %v1395 = vunpack.c.l.s4 1966171168
          %v1396 = vunpack.c.0.s8 %v1395
          %v1397 = vlaneseq
          %v1398 = vshrl.u32 %v1397, 7
          %v1399 = vsub.s32 %v1396, %v1398
          %v1400 = vrot.slane %v1392, %v1399
          %v1402 = vunpack.c.l.s4 1966171168
          %v1403 = vunpack.c.0.s8 %v1402
          %v1404 = vlaneseq
          %v1405 = vshrl.u32 %v1404, 7
          %v1406 = vsub.s32 %v1403, %v1405
          %v1407 = vrot.slane %v1393, %v1406
          %v1408 = vcombine.low %v1400, %v1407
          %v1410 = vunpack.c.l.s4 1966171168
          %v1411 = vunpack.c.0.s8 %v1410
          %v1412 = vlaneseq
          %v1413 = vshrl.u32 %v1412, 7
          %v1414 = vsub.s32 %v1411, %v1413
          %v1415 = vrot.slane %v1408, %v1414
          %v1417 = vadd.f32 %v1359, %v1415
          %v1418 = vlaneseq
          %vm1419 = vcmp.ge.s32.totalorder %v1418, 0
          %vm1420 = vcmp.lt.s32.totalorder %v1418, 512
          %vm1421 = vmand %vm1419, %vm1420
          %1422 = vst.msk [vmem:[%s321] sm:$0xf] %vm1421, %v1417
          %v1423 = vld [vmem:[%s326] sm:$0xf]
          %v1424 = vmul.f32 %v1343, %v1343
          %v1425 = vmul.f32 %v1344, %v1344
          %v1426 = vmul.f32 %v1345, %v1345
          %v1427 = vmul.f32 %v1346, %v1346
          %v1428 = vmul.f32 %v1347, %v1347
          %v1429 = vmul.f32 %v1348, %v1348
          %v1430 = vmul.f32 %v1349, %v1349
          %v1431 = vmul.f32 %v1350, %v1350
          %v1432 = vadd.f32 %v1424, %v1428
          %v1433 = vrot.slane %v1432, 4
          %v1434 = vadd.f32 %v1432, %v1433
          %v1435 = vrot.slane %v1434, 2
          %v1436 = vadd.f32 %v1434, %v1435
          %v1437 = vrot.slane %v1436, 1
          %v1438 = vadd.f32 %v1436, %v1437
          %v1439 = vadd.f32 %v1425, %v1429
          %v1440 = vrot.slane %v1439, 4
          %v1441 = vadd.f32 %v1439, %v1440
          %v1442 = vrot.slane %v1441, 2
          %v1443 = vadd.f32 %v1441, %v1442
          %v1444 = vrot.slane %v1443, 1
          %v1445 = vadd.f32 %v1443, %v1444
          %v1446 = vadd.f32 %v1426, %v1430
          %v1447 = vrot.slane %v1446, 4
          %v1448 = vadd.f32 %v1446, %v1447
          %v1449 = vrot.slane %v1448, 2
          %v1450 = vadd.f32 %v1448, %v1449
          %v1451 = vrot.slane %v1450, 1
          %v1452 = vadd.f32 %v1450, %v1451
          %v1453 = vadd.f32 %v1427, %v1431
          %v1454 = vrot.slane %v1453, 4
          %v1455 = vadd.f32 %v1453, %v1454
          %v1456 = vrot.slane %v1455, 2
          %v1457 = vadd.f32 %v1455, %v1456
          %v1458 = vrot.slane %v1457, 1
          %v1459 = vadd.f32 %v1457, %v1458
          %v1464 = vcombine.low %v1438, %v1445
          %v1465 = vcombine.low %v1452, %v1459
          %v1467 = vunpack.c.l.s4 1966171168
          %v1468 = vunpack.c.0.s8 %v1467
          %v1469 = vlaneseq
          %v1470 = vshrl.u32 %v1469, 7
          %v1471 = vsub.s32 %v1468, %v1470
          %v1472 = vrot.slane %v1464, %v1471
          %v1474 = vunpack.c.l.s4 1966171168
          %v1475 = vunpack.c.0.s8 %v1474
          %v1476 = vlaneseq
          %v1477 = vshrl.u32 %v1476, 7
          %v1478 = vsub.s32 %v1475, %v1477
          %v1479 = vrot.slane %v1465, %v1478
          %v1480 = vcombine.low %v1472, %v1479
          %v1482 = vunpack.c.l.s4 1966171168
          %v1483 = vunpack.c.0.s8 %v1482
          %v1484 = vlaneseq
          %v1485 = vshrl.u32 %v1484, 7
          %v1486 = vsub.s32 %v1483, %v1485
          %v1487 = vrot.slane %v1480, %v1486
          %v1489 = vadd.f32 %v1423, %v1487
          %1490 = vst.msk [vmem:[%s326] sm:$0xf] %vm1421, %v1489
        $region63: #{_lambda_.23} parent=46 // pred_fallthru
          _
        %s1491 = smul.u32 2, %s22
        %s1492 = smul.u32 4, %s21
        %p1493 = scmp.lt.s32.totalorder %s1491, 1
        %s1494 = scalar_select %p1493, %s1491, 1
        %p1495 = scmp.lt.s32.totalorder %s1492, 3
        %s1496 = scalar_select %p1495, %s1492, 3
        %s1497 = smul.addr %s1494, 4
        %s1498 = sadd.s32 %s1496, %s1497
        %s1499 = smul.addr %s1498, 8
        %s1500 = scalar_lea.vmem %s2, %s1499
        %s1501 = smul.u32 4, %s21
        %p1502 = scmp.lt.s32.totalorder %s1501, 3
        %s1503 = scalar_select %p1502, %s1501, 3
        %s1504 = scalar_lea.vmem %s3, %s1503
        %s1505 = smul.u32 4, %s21
        %p1506 = scmp.lt.s32.totalorder %s1505, 3
        %s1507 = scalar_select %p1506, %s1505, 3
        %s1508 = scalar_lea.vmem %s4, %s1507
        // Predicated region
        $region64: #{_lambda_.23} parent=46 // pred_check
          %p1509 = pneg %p111
        $region65: #{_lambda_.23} parent=46 // pred_check_branch
          %1511 = sbr.rel (%p1509) target = $region67
        $region66: #{_lambda_.23} parent=46 // pred_region
          %s1512 = smul.u32 2, %s22
          %s1513 = smul.u32 4, %s21
        $region67: #{_lambda_.23} parent=46 // pred_fallthru
          _
        // Predicated region
        $region68: #{_lambda_.23} parent=46 // pred_check
          %p1514 = pneg %p137
        $region69: #{_lambda_.23} parent=46 // pred_check_branch
          %1516 = sbr.rel (%p1514) target = $region71
        $region70: #{_lambda_.23} parent=46 // pred_region
          %s1517 = smul.u32 4, %s21
        $region71: #{_lambda_.23} parent=46 // pred_fallthru
          _
        // Predicated region
        $region72: #{_lambda_.23} parent=46 // pred_check
          %p1518 = pneg %p163
        $region73: #{_lambda_.23} parent=46 // pred_check_branch
          %1520 = sbr.rel (%p1518) target = $region75
        $region74: #{_lambda_.23} parent=46 // pred_region
          %s1521 = smul.u32 4, %s21
        $region75: #{_lambda_.23} parent=46 // pred_fallthru
          _
        // Predicated region
        $region76: #{_lambda_.23} parent=46 // pred_check
          %p1522 = pneg %p111
        $region77: #{_lambda_.23} parent=46 // pred_check_branch
          %1524 = sbr.rel (%p1522) target = $region79
        $region78: #{_lambda_.23} parent=46 // pred_region
          %s1525 = smul.u32 2, %s22
          %s1526 = smul.u32 4, %s21
          %p1527 = scmp.lt.s32.totalorder %s1525, 1
          %s1528 = scalar_select %p1527, %s1525, 1
          %p1529 = scmp.lt.s32.totalorder %s1526, 3
          %s1530 = scalar_select %p1529, %s1526, 3
          %s1531 = smul.addr %s1528, 4
          %s1532 = sadd.s32 %s1530, %s1531
          %s1533 = smul.addr %s1532, 8
          %s1534 = scalar_lea.vmem %s2, %s1533
        $region79: #{_lambda_.23} parent=46 // pred_fallthru
          _
        // Predicated region
        $region80: #{_lambda_.23} parent=46 // pred_check
          %p1535 = pneg %p137
        $region81: #{_lambda_.23} parent=46 // pred_check_branch
          %1537 = sbr.rel (%p1535) target = $region83
        $region82: #{_lambda_.23} parent=46 // pred_region
          %s1538 = smul.u32 4, %s21
          %p1539 = scmp.lt.s32.totalorder %s1538, 3
          %s1540 = scalar_select %p1539, %s1538, 3
          %s1541 = scalar_lea.vmem %s3, %s1540
        $region83: #{_lambda_.23} parent=46 // pred_fallthru
          _
        // Predicated region
        $region84: #{_lambda_.23} parent=46 // pred_check
          %p1542 = pneg %p163
        $region85: #{_lambda_.23} parent=46 // pred_check_branch
          %1544 = sbr.rel (%p1542) target = $region87
        $region86: #{_lambda_.23} parent=46 // pred_region
          %s1545 = smul.u32 4, %s21
          %p1546 = scmp.lt.s32.totalorder %s1545, 3
          %s1547 = scalar_select %p1546, %s1545, 3
          %s1548 = scalar_lea.vmem %s4, %s1547
        $region87: #{_lambda_.23} parent=46 // pred_fallthru
          _
      $region47: #{_lambda_.23} parent=5 // pred_fallthru
        _
      %p1549 = scmp.le.s32.totalorder 2, %s11
      // Predicated region
      $region88: #{_lambda_.23} parent=5 // pred_check
        %p1550 = pneg %p1549
      $region89: #{_lambda_.23} parent=5 // pred_check_branch
        %1552 = sbr.rel (%p1550) target = $region91
      $region90: #{_lambda_.23} parent=5 // pred_region
        %s1553 = ssub.s32 %s11, 2
      $region91: #{_lambda_.23} parent=5 // pred_fallthru
        _
    $region6: #{_lambda_.23} parent=1 // loop_footer
      %s15 = sadd.s32 1, %s11
    $region7: #{_lambda_.23} parent=1 // loop_footer_branch
      %10 = sbr.rel target = $region3
    $region8: #{_lambda_.23} parent=1 // loop_exit
      _

// kernel: _lambda_.24
$region0: #{_lambda_.24}
  #allocation0 [shape = 'u32[]', space=smem, size = 0x4, offset = 0x4, fixed_abs, tag = 'smem constant byte address 0x4 - core index']
  #allocation1 [shape = 'u32[144,128]{1,0:T(1,128)}', space=vmem, size = 0x12000, scoped, tag = 'internal scratch']
  %s0 = inlined_call_operand.vmem [shape: f32[16,512], index: 0, kind: input, shape index: {}]
  %s1 = inlined_call_operand.vmem [shape: f32[1,512], index: 1, kind: input, shape index: {}]
  %s2 = inlined_call_operand.vmem [shape: f32[1,512], index: 2, kind: input, shape index: {}]
  %s3 = inlined_call_operand.vmem [shape: f32[16,512], index: 3, kind: output, shape index: {}]
  %s4 = sld [smem:[#allocation0]]
  $region22: #{_lambda_.24} parent=0
    _
  %s6 = ssub.s32 1, %s4
  %s7 = scalar_select 0, %s6, %s4
  // Predicated region
  $region2: #{_lambda_.24} parent=0 // pred_check
    _
  $region3: #{_lambda_.24} parent=0 // pred_check_branch
    %9 = sbr.rel (0) target = $region5
  $region4: #{_lambda_.24} parent=0 // pred_region
    _
  $region5: #{_lambda_.24} parent=0 // pred_fallthru
    _
  // Predicated region
  $region6: #{_lambda_.24} parent=0 // pred_check
    _
  $region7: #{_lambda_.24} parent=0 // pred_check_branch
    %11 = sbr.rel (0) target = $region9
  $region8: #{_lambda_.24} parent=0 // pred_region
    _
  $region9: #{_lambda_.24} parent=0 // pred_fallthru
    _
  // Predicated region
  $region10: #{_lambda_.24} parent=0 // pred_check
    _
  $region11: #{_lambda_.24} parent=0 // pred_check_branch
    %13 = sbr.rel (0) target = $region13
  $region12: #{_lambda_.24} parent=0 // pred_region
    _
  $region13: #{_lambda_.24} parent=0 // pred_fallthru
    _
  %v14 = vld [vmem:[%s0] sm:$0xff]
  %v15 = vld [vmem:[%s0 + $0x8] sm:$0xff]
  %v16 = vld [vmem:[%s0 + $0x10] sm:$0xff]
  %v17 = vld [vmem:[%s0 + $0x18] sm:$0xff]
  %v18 = vld [vmem:[%s0 + $0x20] sm:$0xff]
  %v19 = vld [vmem:[%s0 + $0x28] sm:$0xff]
  %v20 = vld [vmem:[%s0 + $0x30] sm:$0xff]
  %v21 = vld [vmem:[%s0 + $0x38] sm:$0xff]
  %v22 = vld [vmem:[%s1] sm:$0xf]
  %v24 = vlaneseq
  %v25 = vshrl.u32 %v24, 7
  %v26 = vsub.s32 0, %v25
  %v27 = vrot.slane %v22, %v26
  %v28 = vlaneseq
  %v29 = vshrl.u32 %v28, 7
  %v30 = vsub.s32 1, %v29
  %v31 = vrot.slane %v22, %v30
  %v32 = vlaneseq
  %v33 = vshrl.u32 %v32, 7
  %v34 = vsub.s32 2, %v33
  %v35 = vrot.slane %v22, %v34
  %v36 = vlaneseq
  %v37 = vshrl.u32 %v36, 7
  %v38 = vsub.s32 3, %v37
  %v39 = vrot.slane %v22, %v38
  %v44 = vmul.f32 %v14, %v27
  %v45 = vmul.f32 %v15, %v31
  %v46 = vmul.f32 %v16, %v35
  %v47 = vmul.f32 %v17, %v39
  %v48 = vmul.f32 %v18, %v27
  %v49 = vmul.f32 %v19, %v31
  %v50 = vmul.f32 %v20, %v35
  %v51 = vmul.f32 %v21, %v39
  %v52 = vld [vmem:[%s2] sm:$0xf]
  %v54 = vlaneseq
  %v55 = vshrl.u32 %v54, 7
  %v56 = vsub.s32 0, %v55
  %v57 = vrot.slane %v52, %v56
  %v58 = vlaneseq
  %v59 = vshrl.u32 %v58, 7
  %v60 = vsub.s32 1, %v59
  %v61 = vrot.slane %v52, %v60
  %v62 = vlaneseq
  %v63 = vshrl.u32 %v62, 7
  %v64 = vsub.s32 2, %v63
  %v65 = vrot.slane %v52, %v64
  %v66 = vlaneseq
  %v67 = vshrl.u32 %v66, 7
  %v68 = vsub.s32 3, %v67
  %v69 = vrot.slane %v52, %v68
  %v74 = vadd.f32 %v44, %v57
  %v75 = vadd.f32 %v45, %v61
  %v76 = vadd.f32 %v46, %v65
  %v77 = vadd.f32 %v47, %v69
  %v78 = vadd.f32 %v48, %v57
  %v79 = vadd.f32 %v49, %v61
  %v80 = vadd.f32 %v50, %v65
  %v81 = vadd.f32 %v51, %v69
  %v82 = vmax.f32 %v74, 0.0
  %v83 = vmax.f32 %v75, 0.0
  %v84 = vmax.f32 %v76, 0.0
  %v85 = vmax.f32 %v77, 0.0
  %v86 = vmax.f32 %v78, 0.0
  %v87 = vmax.f32 %v79, 0.0
  %v88 = vmax.f32 %v80, 0.0
  %v89 = vmax.f32 %v81, 0.0
  %90 = vst [vmem:[%s3] sm:$0xff] %v82
  %91 = vst [vmem:[%s3 + $0x8] sm:$0xff] %v83
  %92 = vst [vmem:[%s3 + $0x10] sm:$0xff] %v84
  %93 = vst [vmem:[%s3 + $0x18] sm:$0xff] %v85
  %94 = vst [vmem:[%s3 + $0x20] sm:$0xff] %v86
  %95 = vst [vmem:[%s3 + $0x28] sm:$0xff] %v87
  %96 = vst [vmem:[%s3 + $0x30] sm:$0xff] %v88
  %97 = vst [vmem:[%s3 + $0x38] sm:$0xff] %v89
  // Predicated region
  $region14: #{_lambda_.24} parent=0 // pred_check
    _
  $region15: #{_lambda_.24} parent=0 // pred_check_branch
    %99 = sbr.rel (0) target = $region17
  $region16: #{_lambda_.24} parent=0 // pred_region
    _
  $region17: #{_lambda_.24} parent=0 // pred_fallthru
    _
  // Predicated region
  $region18: #{_lambda_.24} parent=0 // pred_check
    _
  $region19: #{_lambda_.24} parent=0 // pred_check_branch
    %101 = sbr.rel (0) target = $region21
  $region20: #{_lambda_.24} parent=0 // pred_region
    _
  $region21: #{_lambda_.24} parent=0 // pred_fallthru
    _

// kernel: _lambda_.25
$region0: #{_lambda_.25}
  #allocation0 [shape = 'u32[]', space=smem, size = 0x4, offset = 0x4, fixed_abs, tag = 'smem constant byte address 0x4 - core index']
  #allocation1 [shape = 'u32[144,128]{1,0:T(1,128)}', space=vmem, size = 0x12000, scoped, tag = 'internal scratch']
  #allocation2 [shape = 'f32[16,256]{1,0:T(8,128)}', space=vmem, size = 0x4000, scoped, tag = 'scratch operand']
  %s0 = inlined_call_operand.vmem [shape: bf16[16,512], index: 0, kind: input, shape index: {}]
  %s1 = inlined_call_operand.vmem [shape: bf16[512,256], index: 1, kind: input, shape index: {}]
  %s2 = inlined_call_operand.vmem [shape: f32[1,256], index: 2, kind: input, shape index: {}]
  %s3 = inlined_call_operand.vmem [shape: f32[16,256], index: 3, kind: output, shape index: {}]
  %s4 = sld [smem:[#allocation0]]
  $region30: #{_lambda_.25} parent=0
    _
  %s6 = ssub.s32 1, %s4
  %s7 = scalar_select 0, %s6, %s4
  // Predicated region
  $region2: #{_lambda_.25} parent=0 // pred_check
    _
  $region3: #{_lambda_.25} parent=0 // pred_check_branch
    %9 = sbr.rel (0) target = $region5
  $region4: #{_lambda_.25} parent=0 // pred_region
    _
  $region5: #{_lambda_.25} parent=0 // pred_fallthru
    _
  // Predicated region
  $region6: #{_lambda_.25} parent=0 // pred_check
    _
  $region7: #{_lambda_.25} parent=0 // pred_check_branch
    %11 = sbr.rel (0) target = $region9
  $region8: #{_lambda_.25} parent=0 // pred_region
    _
  $region9: #{_lambda_.25} parent=0 // pred_fallthru
    _
  // Predicated region
  $region10: #{_lambda_.25} parent=0 // pred_check
    _
  $region11: #{_lambda_.25} parent=0 // pred_check_branch
    %13 = sbr.rel (0) target = $region13
  $region12: #{_lambda_.25} parent=0 // pred_region
    _
  $region13: #{_lambda_.25} parent=0 // pred_fallthru
    _
  %p14 = scmp.eq.s32.totalorder 0, 0
  // Predicated region
  $region14: #{_lambda_.25} parent=0 // pred_check
    %p15 = pneg %p14
  $region15: #{_lambda_.25} parent=0 // pred_check_branch
    %17 = sbr.rel (%p15) target = $region17
  $region16: #{_lambda_.25} parent=0 // pred_region
    %18 = vst [vmem:[#allocation2] sm:$0xff] 0.0
    %19 = vst [vmem:[#allocation2 + $0x8] sm:$0xff] 0.0
    %20 = vst [vmem:[#allocation2 + $0x10] sm:$0xff] 0.0
    %21 = vst [vmem:[#allocation2 + $0x18] sm:$0xff] 0.0
  $region17: #{_lambda_.25} parent=0 // pred_fallthru
    _
  %v22 = vld [vmem:[#allocation2] sm:$0xff]
  %v23 = vld [vmem:[#allocation2 + $0x8] sm:$0xff]
  %v24 = vld [vmem:[#allocation2 + $0x10] sm:$0xff]
  %v25 = vld [vmem:[#allocation2 + $0x18] sm:$0xff]
  %v26 = vld [vmem:[%s0] sm:$0xff]
  %v27 = vld [vmem:[%s0 + $0x8] sm:$0xff]
  %v28 = vld [vmem:[%s0 + $0x10] sm:$0xff]
  %v29 = vld [vmem:[%s0 + $0x18] sm:$0xff]
  %v30 = vld [vmem:[%s1] sm:$0xff]
  %v31 = vld [vmem:[%s1 + $0x8] sm:$0xff]
  %v32 = vld [vmem:[%s1 + $0x10] sm:$0xff]
  %v33 = vld [vmem:[%s1 + $0x18] sm:$0xff]
  %v34 = vld [vmem:[%s1 + $0x20] sm:$0xff]
  %v35 = vld [vmem:[%s1 + $0x28] sm:$0xff]
  %v36 = vld [vmem:[%s1 + $0x30] sm:$0xff]
  %v37 = vld [vmem:[%s1 + $0x38] sm:$0xff]
  %v38 = vld [vmem:[%s1 + $0x40] sm:$0xff]
  %v39 = vld [vmem:[%s1 + $0x48] sm:$0xff]
  %v40 = vld [vmem:[%s1 + $0x50] sm:$0xff]
  %v41 = vld [vmem:[%s1 + $0x58] sm:$0xff]
  %v42 = vld [vmem:[%s1 + $0x60] sm:$0xff]
  %v43 = vld [vmem:[%s1 + $0x68] sm:$0xff]
  %v44 = vld [vmem:[%s1 + $0x70] sm:$0xff]
  %v45 = vld [vmem:[%s1 + $0x78] sm:$0xff]
  %v46 = vld [vmem:[%s1 + $0x80] sm:$0xff]
  %v47 = vld [vmem:[%s1 + $0x88] sm:$0xff]
  %v48 = vld [vmem:[%s1 + $0x90] sm:$0xff]
  %v49 = vld [vmem:[%s1 + $0x98] sm:$0xff]
  %v50 = vld [vmem:[%s1 + $0xa0] sm:$0xff]
  %v51 = vld [vmem:[%s1 + $0xa8] sm:$0xff]
  %v52 = vld [vmem:[%s1 + $0xb0] sm:$0xff]
  %v53 = vld [vmem:[%s1 + $0xb8] sm:$0xff]
  %v54 = vld [vmem:[%s1 + $0xc0] sm:$0xff]
  %v55 = vld [vmem:[%s1 + $0xc8] sm:$0xff]
  %v56 = vld [vmem:[%s1 + $0xd0] sm:$0xff]
  %v57 = vld [vmem:[%s1 + $0xd8] sm:$0xff]
  %v58 = vld [vmem:[%s1 + $0xe0] sm:$0xff]
  %v59 = vld [vmem:[%s1 + $0xe8] sm:$0xff]
  %v60 = vld [vmem:[%s1 + $0xf0] sm:$0xff]
  %v61 = vld [vmem:[%s1 + $0xf8] sm:$0xff]
  %v62 = vld [vmem:[%s1 + $0x100] sm:$0xff]
  %v63 = vld [vmem:[%s1 + $0x108] sm:$0xff]
  %v64 = vld [vmem:[%s1 + $0x110] sm:$0xff]
  %v65 = vld [vmem:[%s1 + $0x118] sm:$0xff]
  %v66 = vld [vmem:[%s1 + $0x120] sm:$0xff]
  %v67 = vld [vmem:[%s1 + $0x128] sm:$0xff]
  %v68 = vld [vmem:[%s1 + $0x130] sm:$0xff]
  %v69 = vld [vmem:[%s1 + $0x138] sm:$0xff]
  %v70 = vld [vmem:[%s1 + $0x140] sm:$0xff]
  %v71 = vld [vmem:[%s1 + $0x148] sm:$0xff]
  %v72 = vld [vmem:[%s1 + $0x150] sm:$0xff]
  %v73 = vld [vmem:[%s1 + $0x158] sm:$0xff]
  %v74 = vld [vmem:[%s1 + $0x160] sm:$0xff]
  %v75 = vld [vmem:[%s1 + $0x168] sm:$0xff]
  %v76 = vld [vmem:[%s1 + $0x170] sm:$0xff]
  %v77 = vld [vmem:[%s1 + $0x178] sm:$0xff]
  %v78 = vld [vmem:[%s1 + $0x180] sm:$0xff]
  %v79 = vld [vmem:[%s1 + $0x188] sm:$0xff]
  %v80 = vld [vmem:[%s1 + $0x190] sm:$0xff]
  %v81 = vld [vmem:[%s1 + $0x198] sm:$0xff]
  %v82 = vld [vmem:[%s1 + $0x1a0] sm:$0xff]
  %v83 = vld [vmem:[%s1 + $0x1a8] sm:$0xff]
  %v84 = vld [vmem:[%s1 + $0x1b0] sm:$0xff]
  %v85 = vld [vmem:[%s1 + $0x1b8] sm:$0xff]
  %v86 = vld [vmem:[%s1 + $0x1c0] sm:$0xff]
  %v87 = vld [vmem:[%s1 + $0x1c8] sm:$0xff]
  %v88 = vld [vmem:[%s1 + $0x1d0] sm:$0xff]
  %v89 = vld [vmem:[%s1 + $0x1d8] sm:$0xff]
  %v90 = vld [vmem:[%s1 + $0x1e0] sm:$0xff]
  %v91 = vld [vmem:[%s1 + $0x1e8] sm:$0xff]
  %v92 = vld [vmem:[%s1 + $0x1f0] sm:$0xff]
  %v93 = vld [vmem:[%s1 + $0x1f8] sm:$0xff]
  %v98 = vunpack.c.l.b16 %v26
  %v99 = vunpack.c.h.b16 %v26
  %v100 = vunpack.c.l.b16 %v27
  %v101 = vunpack.c.h.b16 %v27
  %v102 = vunpack.c.l.b16 %v28
  %v103 = vunpack.c.h.b16 %v28
  %v104 = vunpack.c.l.b16 %v29
  %v105 = vunpack.c.h.b16 %v29
  %v106 = vpack.c.b16 %v102, %v98
  %v107 = vpack.c.b16 %v103, %v99
  %v108 = vpack.c.b16 %v104, %v100
  %v109 = vpack.c.b16 %v105, %v101
  %v178 = vunpack.c.l.b16 %v30
  %v179 = vunpack.c.h.b16 %v30
  %v180 = vunpack.c.l.b16 %v31
  %v181 = vunpack.c.h.b16 %v31
  %v182 = vunpack.c.l.b16 %v32
  %v183 = vunpack.c.h.b16 %v32
  %v184 = vunpack.c.l.b16 %v33
  %v185 = vunpack.c.h.b16 %v33
  %v186 = vunpack.c.l.b16 %v34
  %v187 = vunpack.c.h.b16 %v34
  %v188 = vunpack.c.l.b16 %v35
  %v189 = vunpack.c.h.b16 %v35
  %v190 = vunpack.c.l.b16 %v36
  %v191 = vunpack.c.h.b16 %v36
  %v192 = vunpack.c.l.b16 %v37
  %v193 = vunpack.c.h.b16 %v37
  %v194 = vunpack.c.l.b16 %v38
  %v195 = vunpack.c.h.b16 %v38
  %v196 = vunpack.c.l.b16 %v39
  %v197 = vunpack.c.h.b16 %v39
  %v198 = vunpack.c.l.b16 %v40
  %v199 = vunpack.c.h.b16 %v40
  %v200 = vunpack.c.l.b16 %v41
  %v201 = vunpack.c.h.b16 %v41
  %v202 = vunpack.c.l.b16 %v42
  %v203 = vunpack.c.h.b16 %v42
  %v204 = vunpack.c.l.b16 %v43
  %v205 = vunpack.c.h.b16 %v43
  %v206 = vunpack.c.l.b16 %v44
  %v207 = vunpack.c.h.b16 %v44
  %v208 = vunpack.c.l.b16 %v45
  %v209 = vunpack.c.h.b16 %v45
  %v210 = vunpack.c.l.b16 %v46
  %v211 = vunpack.c.h.b16 %v46
  %v212 = vunpack.c.l.b16 %v47
  %v213 = vunpack.c.h.b16 %v47
  %v214 = vunpack.c.l.b16 %v48
  %v215 = vunpack.c.h.b16 %v48
  %v216 = vunpack.c.l.b16 %v49
  %v217 = vunpack.c.h.b16 %v49
  %v218 = vunpack.c.l.b16 %v50
  %v219 = vunpack.c.h.b16 %v50
  %v220 = vunpack.c.l.b16 %v51
  %v221 = vunpack.c.h.b16 %v51
  %v222 = vunpack.c.l.b16 %v52
  %v223 = vunpack.c.h.b16 %v52
  %v224 = vunpack.c.l.b16 %v53
  %v225 = vunpack.c.h.b16 %v53
  %v226 = vunpack.c.l.b16 %v54
  %v227 = vunpack.c.h.b16 %v54
  %v228 = vunpack.c.l.b16 %v55
  %v229 = vunpack.c.h.b16 %v55
  %v230 = vunpack.c.l.b16 %v56
  %v231 = vunpack.c.h.b16 %v56
  %v232 = vunpack.c.l.b16 %v57
  %v233 = vunpack.c.h.b16 %v57
  %v234 = vunpack.c.l.b16 %v58
  %v235 = vunpack.c.h.b16 %v58
  %v236 = vunpack.c.l.b16 %v59
  %v237 = vunpack.c.h.b16 %v59
  %v238 = vunpack.c.l.b16 %v60
  %v239 = vunpack.c.h.b16 %v60
  %v240 = vunpack.c.l.b16 %v61
  %v241 = vunpack.c.h.b16 %v61
  %v242 = vunpack.c.l.b16 %v62
  %v243 = vunpack.c.h.b16 %v62
  %v244 = vunpack.c.l.b16 %v63
  %v245 = vunpack.c.h.b16 %v63
  %v246 = vunpack.c.l.b16 %v64
  %v247 = vunpack.c.h.b16 %v64
  %v248 = vunpack.c.l.b16 %v65
  %v249 = vunpack.c.h.b16 %v65
  %v250 = vunpack.c.l.b16 %v66
  %v251 = vunpack.c.h.b16 %v66
  %v252 = vunpack.c.l.b16 %v67
  %v253 = vunpack.c.h.b16 %v67
  %v254 = vunpack.c.l.b16 %v68
  %v255 = vunpack.c.h.b16 %v68
  %v256 = vunpack.c.l.b16 %v69
  %v257 = vunpack.c.h.b16 %v69
  %v258 = vunpack.c.l.b16 %v70
  %v259 = vunpack.c.h.b16 %v70
  %v260 = vunpack.c.l.b16 %v71
  %v261 = vunpack.c.h.b16 %v71
  %v262 = vunpack.c.l.b16 %v72
  %v263 = vunpack.c.h.b16 %v72
  %v264 = vunpack.c.l.b16 %v73
  %v265 = vunpack.c.h.b16 %v73
  %v266 = vunpack.c.l.b16 %v74
  %v267 = vunpack.c.h.b16 %v74
  %v268 = vunpack.c.l.b16 %v75
  %v269 = vunpack.c.h.b16 %v75
  %v270 = vunpack.c.l.b16 %v76
  %v271 = vunpack.c.h.b16 %v76
  %v272 = vunpack.c.l.b16 %v77
  %v273 = vunpack.c.h.b16 %v77
  %v274 = vunpack.c.l.b16 %v78
  %v275 = vunpack.c.h.b16 %v78
  %v276 = vunpack.c.l.b16 %v79
  %v277 = vunpack.c.h.b16 %v79
  %v278 = vunpack.c.l.b16 %v80
  %v279 = vunpack.c.h.b16 %v80
  %v280 = vunpack.c.l.b16 %v81
  %v281 = vunpack.c.h.b16 %v81
  %v282 = vunpack.c.l.b16 %v82
  %v283 = vunpack.c.h.b16 %v82
  %v284 = vunpack.c.l.b16 %v83
  %v285 = vunpack.c.h.b16 %v83
  %v286 = vunpack.c.l.b16 %v84
  %v287 = vunpack.c.h.b16 %v84
  %v288 = vunpack.c.l.b16 %v85
  %v289 = vunpack.c.h.b16 %v85
  %v290 = vunpack.c.l.b16 %v86
  %v291 = vunpack.c.h.b16 %v86
  %v292 = vunpack.c.l.b16 %v87
  %v293 = vunpack.c.h.b16 %v87
  %v294 = vunpack.c.l.b16 %v88
  %v295 = vunpack.c.h.b16 %v88
  %v296 = vunpack.c.l.b16 %v89
  %v297 = vunpack.c.h.b16 %v89
  %v298 = vunpack.c.l.b16 %v90
  %v299 = vunpack.c.h.b16 %v90
  %v300 = vunpack.c.l.b16 %v91
  %v301 = vunpack.c.h.b16 %v91
  %v302 = vunpack.c.l.b16 %v92
  %v303 = vunpack.c.h.b16 %v92
  %v304 = vunpack.c.l.b16 %v93
  %v305 = vunpack.c.h.b16 %v93
  %v306 = vpack.c.b16 %v180, %v178
  %v307 = vpack.c.b16 %v181, %v179
  %v308 = vpack.c.b16 %v184, %v182
  %v309 = vpack.c.b16 %v185, %v183
  %v310 = vpack.c.b16 %v188, %v186
  %v311 = vpack.c.b16 %v189, %v187
  %v312 = vpack.c.b16 %v192, %v190
  %v313 = vpack.c.b16 %v193, %v191
  %v314 = vpack.c.b16 %v196, %v194
  %v315 = vpack.c.b16 %v197, %v195
  %v316 = vpack.c.b16 %v200, %v198
  %v317 = vpack.c.b16 %v201, %v199
  %v318 = vpack.c.b16 %v204, %v202
  %v319 = vpack.c.b16 %v205, %v203
  %v320 = vpack.c.b16 %v208, %v206
  %v321 = vpack.c.b16 %v209, %v207
  %v322 = vpack.c.b16 %v212, %v210
  %v323 = vpack.c.b16 %v213, %v211
  %v324 = vpack.c.b16 %v216, %v214
  %v325 = vpack.c.b16 %v217, %v215
  %v326 = vpack.c.b16 %v220, %v218
  %v327 = vpack.c.b16 %v221, %v219
  %v328 = vpack.c.b16 %v224, %v222
  %v329 = vpack.c.b16 %v225, %v223
  %v330 = vpack.c.b16 %v228, %v226
  %v331 = vpack.c.b16 %v229, %v227
  %v332 = vpack.c.b16 %v232, %v230
  %v333 = vpack.c.b16 %v233, %v231
  %v334 = vpack.c.b16 %v236, %v234
  %v335 = vpack.c.b16 %v237, %v235
  %v336 = vpack.c.b16 %v240, %v238
  %v337 = vpack.c.b16 %v241, %v239
  %v338 = vpack.c.b16 %v244, %v242
  %v339 = vpack.c.b16 %v245, %v243
  %v340 = vpack.c.b16 %v248, %v246
  %v341 = vpack.c.b16 %v249, %v247
  %v342 = vpack.c.b16 %v252, %v250
  %v343 = vpack.c.b16 %v253, %v251
  %v344 = vpack.c.b16 %v256, %v254
  %v345 = vpack.c.b16 %v257, %v255
  %v346 = vpack.c.b16 %v260, %v258
  %v347 = vpack.c.b16 %v261, %v259
  %v348 = vpack.c.b16 %v264, %v262
  %v349 = vpack.c.b16 %v265, %v263
  %v350 = vpack.c.b16 %v268, %v266
  %v351 = vpack.c.b16 %v269, %v267
  %v352 = vpack.c.b16 %v272, %v270
  %v353 = vpack.c.b16 %v273, %v271
  %v354 = vpack.c.b16 %v276, %v274
  %v355 = vpack.c.b16 %v277, %v275
  %v356 = vpack.c.b16 %v280, %v278
  %v357 = vpack.c.b16 %v281, %v279
  %v358 = vpack.c.b16 %v284, %v282
  %v359 = vpack.c.b16 %v285, %v283
  %v360 = vpack.c.b16 %v288, %v286
  %v361 = vpack.c.b16 %v289, %v287
  %v362 = vpack.c.b16 %v292, %v290
  %v363 = vpack.c.b16 %v293, %v291
  %v364 = vpack.c.b16 %v296, %v294
  %v365 = vpack.c.b16 %v297, %v295
  %v366 = vpack.c.b16 %v300, %v298
  %v367 = vpack.c.b16 %v301, %v299
  %v368 = vpack.c.b16 %v304, %v302
  %v369 = vpack.c.b16 %v305, %v303
  %434 = vmatprep.subr.bf16.mxu0 %v307
  %435 = vmatpush1.bf16.msra.mxu0 %v306
  %436 = vmatprep.subr.bf16.mxu0 %v309
  %437 = vmatpush1.bf16.msra.mxu0 %v308
  %438 = vmatprep.subr.bf16.mxu0 %v311
  %439 = vmatpush1.bf16.msra.mxu0 %v310
  %440 = vmatprep.subr.bf16.mxu0 %v313
  %441 = vmatpush1.bf16.msra.mxu0 %v312
  %442 = vmatprep.subr.bf16.mxu0 %v315
  %443 = vmatpush1.bf16.msra.mxu0 %v314
  %444 = vmatprep.subr.bf16.mxu0 %v317
  %445 = vmatpush1.bf16.msra.mxu0 %v316
  %446 = vmatprep.subr.bf16.mxu0 %v319
  %447 = vmatpush1.bf16.msra.mxu0 %v318
  %448 = vmatprep.subr.bf16.mxu0 %v321
  %449 = vmatpush1.bf16.msra.mxu0 %v320
  %450 = vmatprep.subr.bf16.mxu0 %v323
  %451 = vmatpush1.bf16.msra.mxu0 %v322
  %452 = vmatprep.subr.bf16.mxu0 %v325
  %453 = vmatpush1.bf16.msra.mxu0 %v324
  %454 = vmatprep.subr.bf16.mxu0 %v327
  %455 = vmatpush1.bf16.msra.mxu0 %v326
  %456 = vmatprep.subr.bf16.mxu0 %v329
  %457 = vmatpush1.bf16.msra.mxu0 %v328
  %458 = vmatprep.subr.bf16.mxu0 %v331
  %459 = vmatpush1.bf16.msra.mxu0 %v330
  %460 = vmatprep.subr.bf16.mxu0 %v333
  %461 = vmatpush1.bf16.msra.mxu0 %v332
  %462 = vmatprep.subr.bf16.mxu0 %v335
  %463 = vmatpush1.bf16.msra.mxu0 %v334
  %464 = vmatprep.subr.bf16.mxu0 %v337
  %465 = vmatpush1.bf16.msra.mxu0 %v336
  %466 = vmatprep.mubr.bf16.mxu0 %v107
  %467 = vmatmul.mubr.bf16.gmra.mrb[0].mxu0 %v106
  %v468 = vpop.f32.mrb[0].mxu0
  %v469 = vadd.f32 0.0, %v468
  %v470 = vpop.f32.mrb[0].mxu0
  %v471 = vadd.f32 0.0, %v470
  %v472 = vpop.f32.mrb[0].mxu0
  %v473 = vadd.f32 0.0, %v472
  %v474 = vpop.f32.mrb[0].mxu0
  %v475 = vadd.f32 0.0, %v474
  %476 = vdwg.mxu0
  %477 = vmatprep.subr.bf16.mxu0 %v339
  %478 = vmatpush1.bf16.msra.mxu0 %v338
  %479 = vmatprep.subr.bf16.mxu0 %v341
  %480 = vmatpush1.bf16.msra.mxu0 %v340
  %481 = vmatprep.subr.bf16.mxu0 %v343
  %482 = vmatpush1.bf16.msra.mxu0 %v342
  %483 = vmatprep.subr.bf16.mxu0 %v345
  %484 = vmatpush1.bf16.msra.mxu0 %v344
  %485 = vmatprep.subr.bf16.mxu0 %v347
  %486 = vmatpush1.bf16.msra.mxu0 %v346
  %487 = vmatprep.subr.bf16.mxu0 %v349
  %488 = vmatpush1.bf16.msra.mxu0 %v348
  %489 = vmatprep.subr.bf16.mxu0 %v351
  %490 = vmatpush1.bf16.msra.mxu0 %v350
  %491 = vmatprep.subr.bf16.mxu0 %v353
  %492 = vmatpush1.bf16.msra.mxu0 %v352
  %493 = vmatprep.subr.bf16.mxu0 %v355
  %494 = vmatpush1.bf16.msra.mxu0 %v354
  %495 = vmatprep.subr.bf16.mxu0 %v357
  %496 = vmatpush1.bf16.msra.mxu0 %v356
  %497 = vmatprep.subr.bf16.mxu0 %v359
  %498 = vmatpush1.bf16.msra.mxu0 %v358
  %499 = vmatprep.subr.bf16.mxu0 %v361
  %500 = vmatpush1.bf16.msra.mxu0 %v360
  %501 = vmatprep.subr.bf16.mxu0 %v363
  %502 = vmatpush1.bf16.msra.mxu0 %v362
  %503 = vmatprep.subr.bf16.mxu0 %v365
  %504 = vmatpush1.bf16.msra.mxu0 %v364
  %505 = vmatprep.subr.bf16.mxu0 %v367
  %506 = vmatpush1.bf16.msra.mxu0 %v366
  %507 = vmatprep.subr.bf16.mxu0 %v369
  %508 = vmatpush1.bf16.msra.mxu0 %v368
  %509 = vmatprep.mubr.bf16.mxu0 %v109
  %510 = vmatmul.mubr.bf16.gmra.mrb[0].mxu0 %v108
  %v511 = vpop.f32.mrb[0].mxu0
  %v512 = vadd.f32 %v469, %v511
  %v513 = vpop.f32.mrb[0].mxu0
  %v514 = vadd.f32 %v471, %v513
  %v515 = vpop.f32.mrb[0].mxu0
  %v516 = vadd.f32 %v473, %v515
  %v517 = vpop.f32.mrb[0].mxu0
  %v518 = vadd.f32 %v475, %v517
  %519 = vdwg.mxu0
  %v520 = vadd.f32 %v22, %v512
  %v521 = vadd.f32 %v23, %v514
  %v522 = vadd.f32 %v24, %v516
  %v523 = vadd.f32 %v25, %v518
  %524 = vst [vmem:[#allocation2] sm:$0xff] %v520
  %525 = vst [vmem:[#allocation2 + $0x8] sm:$0xff] %v521
  %526 = vst [vmem:[#allocation2 + $0x10] sm:$0xff] %v522
  %527 = vst [vmem:[#allocation2 + $0x18] sm:$0xff] %v523
  // Predicated region
  $region18: #{_lambda_.25} parent=0 // pred_check
    %p528 = pneg %p14
  $region19: #{_lambda_.25} parent=0 // pred_check_branch
    %530 = sbr.rel (%p528) target = $region21
  $region20: #{_lambda_.25} parent=0 // pred_region
    %v531 = vld [vmem:[#allocation2] sm:$0xff]
    %v532 = vld [vmem:[#allocation2 + $0x8] sm:$0xff]
    %v533 = vld [vmem:[#allocation2 + $0x10] sm:$0xff]
    %v534 = vld [vmem:[#allocation2 + $0x18] sm:$0xff]
    %v535 = vld [vmem:[%s2] sm:$0x3]
    %v537 = vlaneseq
    %v538 = vshrl.u32 %v537, 7
    %v539 = vsub.s32 0, %v538
    %v540 = vrot.slane %v535, %v539
    %v541 = vlaneseq
    %v542 = vshrl.u32 %v541, 7
    %v543 = vsub.s32 1, %v542
    %v544 = vrot.slane %v535, %v543
    %v547 = vadd.f32 %v531, %v540
    %v548 = vadd.f32 %v532, %v544
    %v549 = vadd.f32 %v533, %v540
    %v550 = vadd.f32 %v534, %v544
    %551 = vst [vmem:[%s3] sm:$0xff] %v547
    %552 = vst [vmem:[%s3 + $0x8] sm:$0xff] %v548
    %553 = vst [vmem:[%s3 + $0x10] sm:$0xff] %v549
    %554 = vst [vmem:[%s3 + $0x18] sm:$0xff] %v550
  $region21: #{_lambda_.25} parent=0 // pred_fallthru
    _
  // Predicated region
  $region22: #{_lambda_.25} parent=0 // pred_check
    _
  $region23: #{_lambda_.25} parent=0 // pred_check_branch
    %556 = sbr.rel (0) target = $region25
  $region24: #{_lambda_.25} parent=0 // pred_region
    _
  $region25: #{_lambda_.25} parent=0 // pred_fallthru
    _
  // Predicated region
  $region26: #{_lambda_.25} parent=0 // pred_check
    _
  $region27: #{_lambda_.25} parent=0 // pred_check_branch
    %558 = sbr.rel (0) target = $region29
  $region28: #{_lambda_.25} parent=0 // pred_region
    _
  $region29: #{_lambda_.25} parent=0 // pred_fallthru
    _

// kernel: _lambda_.26
$region0: #{_lambda_.26}
  #allocation0 [shape = 'u32[]', space=smem, size = 0x4, offset = 0x4, fixed_abs, tag = 'smem constant byte address 0x4 - core index']
  #allocation1 [shape = 'u32[144,128]{1,0:T(1,128)}', space=vmem, size = 0x12000, scoped, tag = 'internal scratch']
  %s0 = inlined_call_operand.vmem [shape: f32[2,3,2,128], index: 0, kind: input, shape index: {}]
  %s1 = inlined_call_operand.vmem [shape: bf16[2,32,128], index: 1, kind: input, shape index: {}]
  %s2 = inlined_call_operand.vmem [shape: f32[2,3,2,32], index: 2, kind: output, shape index: {}]
  %s3 = sld [smem:[#allocation0]]
  $region41: #{_lambda_.26} parent=0
    _
  %s5 = ssub.s32 1, %s3
  %s6 = scalar_select 0, %s5, %s3
  loop: start=0, step=1, limit=4
  $region2: #{_lambda_.26} parent=0 // loop_pre_header
    _
  $region3: #{_lambda_.26} parent=0 // loop_header
    %s8 = sphi 0, %s12
    %p9 = scmp.ge.s32.totalorder %s8, 4
    %s18 = sphi 0, %s20
    %s21 = sphi 0, %s18
    %s22 = sphi 0, %s21
    %s38 = sphi 0, %s22
    %s44 = sphi 0, %s46
    %s47 = sphi 0, %s44
    %s48 = sphi 0, %s47
    %s64 = sphi 0, %s48
    %s70 = sphi 0, %s72
    %s73 = sphi 0, %s70
    %s74 = sphi 0, %s73
    %s90 = sphi 0, %s74
  $region4: #{_lambda_.26} parent=0 // loop_header_branch
    %11 = sbr.rel (%p9) target = $region8
  $region5: #{_lambda_.26} parent=0 // loop_body
    %s13 = ssub.s32 %s8, 1
    %s14 = ssub.s32 %s8, 2
    %s15 = sadd.s32 %s8, 1
    %s16 = ssub.s32 %s8, %s15
    %p17 = scmp.eq.s32.totalorder %s16, 0
    %s19 = sadd.s32 %s18, 1
    %s20 = scalar_select %p17, %s18, %s19
    %p23 = pneg %p17
    %p24 = scmp.eq.s32.totalorder %s8, 1
    %p25 = por %p23, %p24
    %p26 = scmp.ne.s32.totalorder %s18, %s21
    %p27 = scmp.eq.s32.totalorder %s8, 0
    %p28 = por %p26, %p27
    %p29 = scmp.ne.s32.totalorder %s18, %s21
    %p30 = scmp.eq.s32.totalorder %s13, 1
    %p31 = por %p29, %p30
    %p32 = scmp.ne.s32.totalorder %s21, %s22
    %p33 = scmp.eq.s32.totalorder %s13, 0
    %p34 = por %p32, %p33
    %p35 = scmp.ne.s32.totalorder %s21, %s22
    %p36 = scmp.eq.s32.totalorder %s14, 1
    %p37 = por %p35, %p36
    %p39 = scmp.ne.s32.totalorder %s22, %s38
    %p40 = scmp.eq.s32.totalorder %s14, 0
    %p41 = por %p39, %p40
    %s42 = ssub.s32 %s8, %s15
    %p43 = scmp.eq.s32.totalorder %s42, 0
    %s45 = sadd.s32 %s44, 1
    %s46 = scalar_select %p43, %s44, %s45
    %p49 = pneg %p43
    %p50 = scmp.eq.s32.totalorder %s8, 1
    %p51 = por %p49, %p50
    %p52 = scmp.ne.s32.totalorder %s44, %s47
    %p53 = scmp.eq.s32.totalorder %s8, 0
    %p54 = por %p52, %p53
    %p55 = scmp.ne.s32.totalorder %s44, %s47
    %p56 = scmp.eq.s32.totalorder %s13, 1
    %p57 = por %p55, %p56
    %p58 = scmp.ne.s32.totalorder %s47, %s48
    %p59 = scmp.eq.s32.totalorder %s13, 0
    %p60 = por %p58, %p59
    %p61 = scmp.ne.s32.totalorder %s47, %s48
    %p62 = scmp.eq.s32.totalorder %s14, 1
    %p63 = por %p61, %p62
    %p65 = scmp.ne.s32.totalorder %s48, %s64
    %p66 = scmp.eq.s32.totalorder %s14, 0
    %p67 = por %p65, %p66
    %s68 = ssub.s32 %s8, %s15
    %p69 = scmp.eq.s32.totalorder %s68, 0
    %s71 = sadd.s32 %s70, 1
    %s72 = scalar_select %p69, %s70, %s71
    %p75 = pneg %p69
    %p76 = scmp.eq.s32.totalorder %s8, 1
    %p77 = por %p75, %p76
    %p78 = scmp.ne.s32.totalorder %s70, %s73
    %p79 = scmp.eq.s32.totalorder %s8, 0
    %p80 = por %p78, %p79
    %p81 = scmp.ne.s32.totalorder %s70, %s73
    %p82 = scmp.eq.s32.totalorder %s13, 1
    %p83 = por %p81, %p82
    %p84 = scmp.ne.s32.totalorder %s73, %s74
    %p85 = scmp.eq.s32.totalorder %s13, 0
    %p86 = por %p84, %p85
    %p87 = scmp.ne.s32.totalorder %s73, %s74
    %p88 = scmp.eq.s32.totalorder %s14, 1
    %p89 = por %p87, %p88
    %p91 = scmp.ne.s32.totalorder %s74, %s90
    %p92 = scmp.eq.s32.totalorder %s14, 0
    %p93 = por %p91, %p92
    %p94 = scmp.le.s32.totalorder 1, %s8
    %p95 = scmp.lt.s32.totalorder %s8, 3
    %p96 = pnand %p94, %p95
    %p97 = pneg %p96
    // Predicated region
    $region9: #{_lambda_.26} parent=5 // pred_check
      _
    $region10: #{_lambda_.26} parent=5 // pred_check_branch
      %99 = sbr.rel (%p96) target = $region12
    $region11: #{_lambda_.26} parent=5 // pred_region
      %s100 = ssub.s32 %s8, 1
    $region12: #{_lambda_.26} parent=5 // pred_fallthru
      _
    %p101 = scmp.lt.s32.totalorder %s8, 2
    // Predicated region
    $region13: #{_lambda_.26} parent=5 // pred_check
      %p102 = pneg %p101
    $region14: #{_lambda_.26} parent=5 // pred_check_branch
      %104 = sbr.rel (%p102) target = $region16
    $region15: #{_lambda_.26} parent=5 // pred_region
      // Predicated region
      $region17: #{_lambda_.26} parent=15 // pred_check
        %p105 = pneg %p28
      $region18: #{_lambda_.26} parent=15 // pred_check_branch
        %107 = sbr.rel (%p105) target = $region20
      $region19: #{_lambda_.26} parent=15 // pred_region
        %p108 = scmp.lt.s32.totalorder %s8, 1
        %s109 = scalar_select %p108, %s8, 1
        %s110 = smul.addr %s109, 3
        %s111 = smul.addr %s110, 2
        %s112 = scalar_lea.vmem %s0, %s111
      $region20: #{_lambda_.26} parent=15 // pred_fallthru
        _
      // Predicated region
      $region21: #{_lambda_.26} parent=15 // pred_check
        %p113 = pneg %p54
      $region22: #{_lambda_.26} parent=15 // pred_check_branch
        %115 = sbr.rel (%p113) target = $region24
      $region23: #{_lambda_.26} parent=15 // pred_region
        %p116 = scmp.lt.s32.totalorder %s8, 1
        %s117 = scalar_select %p116, %s8, 1
        %s118 = smul.addr %s117, 4
        %s119 = smul.addr %s118, 4
        %s120 = scalar_lea.vmem %s1, %s119
      $region24: #{_lambda_.26} parent=15 // pred_fallthru
        _
    $region16: #{_lambda_.26} parent=5 // pred_fallthru
      _
    %p121 = scmp.le.s32.totalorder 1, %s8
    %p122 = scmp.lt.s32.totalorder %s8, 3
    %p123 = pnand %p121, %p122
    %p124 = pneg %p123
    // Predicated region
    $region25: #{_lambda_.26} parent=5 // pred_check
      _
    $region26: #{_lambda_.26} parent=5 // pred_check_branch
      %126 = sbr.rel (%p123) target = $region28
    $region27: #{_lambda_.26} parent=5 // pred_region
      %s127 = ssub.s32 %s8, 1
      %p128 = scmp.lt.s32.totalorder %s13, 1
      %s129 = scalar_select %p128, %s13, 1
      %s130 = smul.addr %s129, 3
      %s131 = smul.addr %s130, 2
      %s132 = scalar_lea.vmem %s0, %s131
      %p133 = pneg %p34
      %p134 = pneg %p31
      %p135 = scmp.lt.s32.totalorder %s13, 1
      %s136 = scalar_select %p135, %s13, 1
      %s137 = smul.addr %s136, 4
      %s138 = smul.addr %s137, 4
      %s139 = scalar_lea.vmem %s1, %s138
      %p140 = pneg %p60
      %p141 = pneg %p57
      %p142 = pneg %p86
      %p143 = pneg %p83
      %p144 = scmp.lt.s32.totalorder %s13, 1
      %s145 = scalar_select %p144, %s13, 1
      %s146 = smul.addr %s145, 3
      %s147 = smul.addr %s146, 2
      %s148 = scalar_lea.vmem %s2, %s147
      %p149 = scmp.lt.s32.totalorder %s13, 1
      %s150 = scalar_select %p149, %s13, 1
      %s151 = smul.addr %s150, 3
      %s152 = smul.addr %s151, 2
      %s153 = scalar_lea.vmem %s0, %s152
      %p154 = scmp.lt.s32.totalorder %s13, 1
      %s155 = scalar_select %p154, %s13, 1
      %s156 = smul.addr %s155, 4
      %s157 = smul.addr %s156, 4
      %s158 = scalar_lea.vmem %s1, %s157
      %p159 = scmp.lt.s32.totalorder %s13, 1
      %s160 = scalar_select %p159, %s13, 1
      %s161 = smul.addr %s160, 3
      %s162 = smul.addr %s161, 2
      %s163 = scalar_lea.vmem %s2, %s162
      %v165 = vld [vmem:[%s158] sm:$0xf]
      %v166 = vld [vmem:[%s158 + $0x4] sm:$0xf]
      %v167 = vld [vmem:[%s158 + $0x8] sm:$0xf]
      %v168 = vld [vmem:[%s158 + $0xc] sm:$0xf]
      %v169 = vld [vmem:[%s153] sm:$0x3]
      %v174 = vunpack.c.l.b16 %v165
      %v175 = vunpack.c.l.b16 %v166
      %v176 = vunpack.c.l.b16 %v167
      %v177 = vunpack.c.l.b16 %v168
      %v178 = vpack.c.b16 %v175, %v174
      %v179 = vpack.c.b16 %v177, %v176
      %vm182 = vcmask 261120
      %v184 = vsel %vm182, 0, 0
      %186 = vmatprep.subr.bf16.mxu0 0
      %187 = vmatpush1.bf16.msra.mxu0 %v178
      %188 = vmatprep.subr.bf16.mxu0 0
      %189 = vmatpush1.bf16.msra.mxu0 %v179
      %190 = vmatprep.subr.bf16.mxu0 0
      %191 = vmatpush1.bf16.msra.mxu0 0
      %192 = vmatprep.subr.bf16.mxu0 0
      %193 = vmatpush1.bf16.msra.mxu0 0
      %194 = vmatprep.subr.bf16.mxu0 0
      %195 = vmatpush1.bf16.msra.mxu0 0
      %196 = vmatprep.subr.bf16.mxu0 0
      %197 = vmatpush1.bf16.msra.mxu0 0
      %198 = vmatprep.subr.bf16.mxu0 0
      %199 = vmatpush1.bf16.msra.mxu0 0
      %200 = vmatprep.subr.bf16.mxu0 0
      %201 = vmatpush1.bf16.msra.mxu0 0
      %202 = vmatprep.subr.bf16.mxu0 0
      %203 = vmatpush1.bf16.msra.mxu0 0
      %204 = vmatprep.subr.bf16.mxu0 0
      %205 = vmatpush1.bf16.msra.mxu0 0
      %206 = vmatprep.subr.bf16.mxu0 0
      %207 = vmatpush1.bf16.msra.mxu0 0
      %208 = vmatprep.subr.bf16.mxu0 0
      %209 = vmatpush1.bf16.msra.mxu0 0
      %210 = vmatprep.subr.bf16.mxu0 0
      %211 = vmatpush1.bf16.msra.mxu0 0
      %212 = vmatprep.subr.bf16.mxu0 0
      %213 = vmatpush1.bf16.msra.mxu0 0
      %214 = vmatprep.subr.bf16.mxu0 0
      %215 = vmatpush1.bf16.msra.mxu0 0
      %216 = vmatprep.subr.bf16.mxu0 0
      %217 = vmatpush1.bf16.msra.mxu0 0
      %218 = vmatprep.mubr.bf16.mxu0 0
      %219 = vmatmul.mubr.bf16.gmra.mrb[0].mxu0 %v184
      %v220 = vpop.f32.mrb[0].mxu0
      %v221 = vadd.f32 0.0, %v220
      %v222 = vpop.f32.mrb[0].mxu0
      %v223 = vpop.f32.mrb[0].mxu0
      %v224 = vpop.f32.mrb[0].mxu0
      %225 = vdwg.mxu0
      %v226 = vadd.f32 %v169, %v221
      %v227 = vxor.u32 %v226, 2147483648
      %v228 = vmul.f32 %v227, 1.442695
      %v229 = vpow.pop %v228
      %v230 = vadd.f32 %v229, 1.0
      %v231 = vrcp.pop %v230
      %v232 = vmul.f32 1.0, %v231
      %v233 = vtanh.pop %v226
      %v234 = vmul.f32 %v232, 0.0
      %236 = vrot.lane.b32.xlu0 %v233, 64
      %v237 = vpop.permute.xlu0 %236
      %v239 = vmul.f32 %v232, %v237
      %241 = vrot.lane.b32.xlu0 %v239, 32
      %v242 = vpop.permute.xlu0 %241
      %v244 = vadd.f32 %v234, %v242
      %v245 = vtanh.pop %v244
      %247 = vrot.lane.b32.xlu0 %v245, 64
      %v248 = vpop.permute.xlu0 %247
      %v250 = vmul.f32 %v232, %v248
      %252 = vrot.lane.b32.xlu0 %v250, 32
      %v253 = vpop.permute.xlu0 %252
      %vm255 = vcmask 254976
      %256 = vst.msk [vmem:[%s163] sm:$0x3] %vm255, %v253
      %s257 = scalar_lea.vmem %s153, 2
      %v258 = vld [vmem:[%s257] sm:$0x3]
      %v259 = vpack.c.bf16 %v250, %v250
      %261 = vrot.lane.b32.xlu0 %v259, 32
      %v262 = vpop.permute.xlu0 %261
      %v264 = vsel %vm182, %v262, 0
      %266 = vmatprep.subr.bf16.mxu0 0
      %267 = vmatpush1.bf16.msra.mxu0 %v178
      %268 = vmatprep.subr.bf16.mxu0 0
      %269 = vmatpush1.bf16.msra.mxu0 %v179
      %270 = vmatprep.subr.bf16.mxu0 0
      %271 = vmatpush1.bf16.msra.mxu0 0
      %272 = vmatprep.subr.bf16.mxu0 0
      %273 = vmatpush1.bf16.msra.mxu0 0
      %274 = vmatprep.subr.bf16.mxu0 0
      %275 = vmatpush1.bf16.msra.mxu0 0
      %276 = vmatprep.subr.bf16.mxu0 0
      %277 = vmatpush1.bf16.msra.mxu0 0
      %278 = vmatprep.subr.bf16.mxu0 0
      %279 = vmatpush1.bf16.msra.mxu0 0
      %280 = vmatprep.subr.bf16.mxu0 0
      %281 = vmatpush1.bf16.msra.mxu0 0
      %282 = vmatprep.subr.bf16.mxu0 0
      %283 = vmatpush1.bf16.msra.mxu0 0
      %284 = vmatprep.subr.bf16.mxu0 0
      %285 = vmatpush1.bf16.msra.mxu0 0
      %286 = vmatprep.subr.bf16.mxu0 0
      %287 = vmatpush1.bf16.msra.mxu0 0
      %288 = vmatprep.subr.bf16.mxu0 0
      %289 = vmatpush1.bf16.msra.mxu0 0
      %290 = vmatprep.subr.bf16.mxu0 0
      %291 = vmatpush1.bf16.msra.mxu0 0
      %292 = vmatprep.subr.bf16.mxu0 0
      %293 = vmatpush1.bf16.msra.mxu0 0
      %294 = vmatprep.subr.bf16.mxu0 0
      %295 = vmatpush1.bf16.msra.mxu0 0
      %296 = vmatprep.subr.bf16.mxu0 0
      %297 = vmatpush1.bf16.msra.mxu0 0
      %298 = vmatprep.mubr.bf16.mxu0 0
      %299 = vmatmul.mubr.bf16.gmra.mrb[0].mxu0 %v264
      %v300 = vpop.f32.mrb[0].mxu0
      %v301 = vadd.f32 0.0, %v300
      %v302 = vpop.f32.mrb[0].mxu0
      %v303 = vpop.f32.mrb[0].mxu0
      %v304 = vpop.f32.mrb[0].mxu0
      %305 = vdwg.mxu0
      %v306 = vadd.f32 %v258, %v301
      %v307 = vxor.u32 %v306, 2147483648
      %v308 = vmul.f32 %v307, 1.442695
      %v309 = vpow.pop %v308
      %v310 = vadd.f32 %v309, 1.0
      %v311 = vrcp.pop %v310
      %v312 = vmul.f32 1.0, %v311
      %v313 = vtanh.pop %v306
      %v314 = vmul.f32 %v312, %v244
      %316 = vrot.lane.b32.xlu0 %v313, 64
      %v317 = vpop.permute.xlu0 %316
      %v319 = vmul.f32 %v312, %v317
      %321 = vrot.lane.b32.xlu0 %v319, 32
      %v322 = vpop.permute.xlu0 %321
      %v324 = vadd.f32 %v314, %v322
      %v325 = vtanh.pop %v324
      %327 = vrot.lane.b32.xlu0 %v325, 64
      %v328 = vpop.permute.xlu0 %327
      %v330 = vmul.f32 %v312, %v328
      %332 = vrot.lane.b32.xlu0 %v330, 32
      %v333 = vpop.permute.xlu0 %332
      %s335 = scalar_lea.vmem %s163, 2
      %336 = vst.msk [vmem:[%s335] sm:$0x3] %vm255, %v333
      %s337 = scalar_lea.vmem %s153, 4
      %v338 = vld [vmem:[%s337] sm:$0x3]
      %v339 = vpack.c.bf16 %v330, %v330
      %341 = vrot.lane.b32.xlu0 %v339, 32
      %v342 = vpop.permute.xlu0 %341
      %v344 = vsel %vm182, %v342, 0
      %346 = vmatprep.subr.bf16.mxu0 0
      %347 = vmatpush1.bf16.msra.mxu0 %v178
      %348 = vmatprep.subr.bf16.mxu0 0
      %349 = vmatpush1.bf16.msra.mxu0 %v179
      %350 = vmatprep.subr.bf16.mxu0 0
      %351 = vmatpush1.bf16.msra.mxu0 0
      %352 = vmatprep.subr.bf16.mxu0 0
      %353 = vmatpush1.bf16.msra.mxu0 0
      %354 = vmatprep.subr.bf16.mxu0 0
      %355 = vmatpush1.bf16.msra.mxu0 0
      %356 = vmatprep.subr.bf16.mxu0 0
      %357 = vmatpush1.bf16.msra.mxu0 0
      %358 = vmatprep.subr.bf16.mxu0 0
      %359 = vmatpush1.bf16.msra.mxu0 0
      %360 = vmatprep.subr.bf16.mxu0 0
      %361 = vmatpush1.bf16.msra.mxu0 0
      %362 = vmatprep.subr.bf16.mxu0 0
      %363 = vmatpush1.bf16.msra.mxu0 0
      %364 = vmatprep.subr.bf16.mxu0 0
      %365 = vmatpush1.bf16.msra.mxu0 0
      %366 = vmatprep.subr.bf16.mxu0 0
      %367 = vmatpush1.bf16.msra.mxu0 0
      %368 = vmatprep.subr.bf16.mxu0 0
      %369 = vmatpush1.bf16.msra.mxu0 0
      %370 = vmatprep.subr.bf16.mxu0 0
      %371 = vmatpush1.bf16.msra.mxu0 0
      %372 = vmatprep.subr.bf16.mxu0 0
      %373 = vmatpush1.bf16.msra.mxu0 0
      %374 = vmatprep.subr.bf16.mxu0 0
      %375 = vmatpush1.bf16.msra.mxu0 0
      %376 = vmatprep.subr.bf16.mxu0 0
      %377 = vmatpush1.bf16.msra.mxu0 0
      %378 = vmatprep.mubr.bf16.mxu0 0
      %379 = vmatmul.mubr.bf16.gmra.mrb[0].mxu0 %v344
      %v380 = vpop.f32.mrb[0].mxu0
      %v381 = vadd.f32 0.0, %v380
      %v382 = vpop.f32.mrb[0].mxu0
      %v383 = vpop.f32.mrb[0].mxu0
      %v384 = vpop.f32.mrb[0].mxu0
      %385 = vdwg.mxu0
      %v386 = vadd.f32 %v338, %v381
      %v387 = vxor.u32 %v386, 2147483648
      %v388 = vmul.f32 %v387, 1.442695
      %v389 = vpow.pop %v388
      %v390 = vadd.f32 %v389, 1.0
      %v391 = vrcp.pop %v390
      %v392 = vmul.f32 1.0, %v391
      %v393 = vtanh.pop %v386
      %v394 = vmul.f32 %v392, %v324
      %396 = vrot.lane.b32.xlu0 %v393, 64
      %v397 = vpop.permute.xlu0 %396
      %v399 = vmul.f32 %v392, %v397
      %401 = vrot.lane.b32.xlu0 %v399, 32
      %v402 = vpop.permute.xlu0 %401
      %v404 = vadd.f32 %v394, %v402
      %v405 = vtanh.pop %v404
      %407 = vrot.lane.b32.xlu0 %v405, 64
      %v408 = vpop.permute.xlu0 %407
      %v410 = vmul.f32 %v392, %v408
      %412 = vrot.lane.b32.xlu0 %v410, 32
      %v413 = vpop.permute.xlu0 %412
      %s415 = scalar_lea.vmem %s163, 4
      %416 = vst.msk [vmem:[%s415] sm:$0x3] %vm255, %v413
      %p417 = scmp.lt.s32.totalorder %s13, 1
      %s418 = scalar_select %p417, %s13, 1
      %s419 = smul.addr %s418, 3
      %s420 = smul.addr %s419, 2
      %s421 = scalar_lea.vmem %s2, %s420
      // Predicated region
      $region29: #{_lambda_.26} parent=27 // pred_check
        %p422 = pneg %p83
      $region30: #{_lambda_.26} parent=27 // pred_check_branch
        %424 = sbr.rel (%p422) target = $region32
      $region31: #{_lambda_.26} parent=27 // pred_region
        _
      $region32: #{_lambda_.26} parent=27 // pred_fallthru
        _
    $region28: #{_lambda_.26} parent=5 // pred_fallthru
      _
    %p425 = scmp.le.s32.totalorder 2, %s8
    // Predicated region
    $region33: #{_lambda_.26} parent=5 // pred_check
      %p426 = pneg %p425
    $region34: #{_lambda_.26} parent=5 // pred_check_branch
      %428 = sbr.rel (%p426) target = $region36
    $region35: #{_lambda_.26} parent=5 // pred_region
      %s429 = ssub.s32 %s8, 2
      // Predicated region
      $region37: #{_lambda_.26} parent=35 // pred_check
        %p430 = pneg %p89
      $region38: #{_lambda_.26} parent=35 // pred_check_branch
        %432 = sbr.rel (%p430) target = $region40
      $region39: #{_lambda_.26} parent=35 // pred_region
        %p433 = scmp.lt.s32.totalorder %s14, 1
        %s434 = scalar_select %p433, %s14, 1
        %s435 = smul.addr %s434, 3
        %s436 = smul.addr %s435, 2
        %s437 = scalar_lea.vmem %s2, %s436
      $region40: #{_lambda_.26} parent=35 // pred_fallthru
        _
    $region36: #{_lambda_.26} parent=5 // pred_fallthru
      _
  $region6: #{_lambda_.26} parent=0 // loop_footer
    %s12 = sadd.s32 1, %s8
  $region7: #{_lambda_.26} parent=0 // loop_footer_branch
    %7 = sbr.rel target = $region3
  $region8: #{_lambda_.26} parent=0 // loop_exit
    _

// kernel: _lambda_.27
$region0: #{_lambda_.27}
  #allocation0 [shape = 'u32[]', space=smem, size = 0x4, offset = 0x4, fixed_abs, tag = 'smem constant byte address 0x4 - core index']
  #allocation1 [shape = 'u32[144,128]{1,0:T(1,128)}', space=vmem, size = 0x12000, scoped, tag = 'internal scratch']
  #allocation2 [shape = 'f32[16,256]{1,0:T(8,128)}', space=vmem, size = 0x4000, scoped, tag = 'scratch operand']
  %s0 = inlined_call_operand.vmem [shape: bf16[16,128], index: 0, kind: input, shape index: {}]
  %s1 = inlined_call_operand.vmem [shape: bf16[128,256], index: 1, kind: input, shape index: {}]
  %s2 = inlined_call_operand.vmem [shape: f32[1,256], index: 2, kind: input, shape index: {}]
  %s3 = inlined_call_operand.vmem [shape: f32[16,256], index: 3, kind: output, shape index: {}]
  %s4 = sld [smem:[#allocation0]]
  $region30: #{_lambda_.27} parent=0
    _
  %s6 = ssub.s32 1, %s4
  %s7 = scalar_select 0, %s6, %s4
  // Predicated region
  $region2: #{_lambda_.27} parent=0 // pred_check
    _
  $region3: #{_lambda_.27} parent=0 // pred_check_branch
    %9 = sbr.rel (0) target = $region5
  $region4: #{_lambda_.27} parent=0 // pred_region
    _
  $region5: #{_lambda_.27} parent=0 // pred_fallthru
    _
  // Predicated region
  $region6: #{_lambda_.27} parent=0 // pred_check
    _
  $region7: #{_lambda_.27} parent=0 // pred_check_branch
    %11 = sbr.rel (0) target = $region9
  $region8: #{_lambda_.27} parent=0 // pred_region
    _
  $region9: #{_lambda_.27} parent=0 // pred_fallthru
    _
  // Predicated region
  $region10: #{_lambda_.27} parent=0 // pred_check
    _
  $region11: #{_lambda_.27} parent=0 // pred_check_branch
    %13 = sbr.rel (0) target = $region13
  $region12: #{_lambda_.27} parent=0 // pred_region
    _
  $region13: #{_lambda_.27} parent=0 // pred_fallthru
    _
  %p15 = scmp.eq.s32.totalorder 0, 0
  // Predicated region
  $region14: #{_lambda_.27} parent=0 // pred_check
    %p16 = pneg %p15
  $region15: #{_lambda_.27} parent=0 // pred_check_branch
    %18 = sbr.rel (%p16) target = $region17
  $region16: #{_lambda_.27} parent=0 // pred_region
    %19 = vst [vmem:[#allocation2] sm:$0xff] 0.0
    %20 = vst [vmem:[#allocation2 + $0x8] sm:$0xff] 0.0
    %21 = vst [vmem:[#allocation2 + $0x10] sm:$0xff] 0.0
    %22 = vst [vmem:[#allocation2 + $0x18] sm:$0xff] 0.0
  $region17: #{_lambda_.27} parent=0 // pred_fallthru
    _
  %v23 = vld [vmem:[#allocation2] sm:$0xff]
  %v24 = vld [vmem:[#allocation2 + $0x8] sm:$0xff]
  %v25 = vld [vmem:[#allocation2 + $0x10] sm:$0xff]
  %v26 = vld [vmem:[#allocation2 + $0x18] sm:$0xff]
  %v27 = vld [vmem:[%s0] sm:$0xf]
  %v28 = vld [vmem:[%s0 + $0x4] sm:$0xf]
  %v29 = vld [vmem:[%s1] sm:$0xff]
  %v30 = vld [vmem:[%s1 + $0x8] sm:$0xff]
  %v31 = vld [vmem:[%s1 + $0x10] sm:$0xff]
  %v32 = vld [vmem:[%s1 + $0x18] sm:$0xff]
  %v33 = vld [vmem:[%s1 + $0x20] sm:$0xff]
  %v34 = vld [vmem:[%s1 + $0x28] sm:$0xff]
  %v35 = vld [vmem:[%s1 + $0x30] sm:$0xff]
  %v36 = vld [vmem:[%s1 + $0x38] sm:$0xff]
  %v37 = vld [vmem:[%s1 + $0x40] sm:$0xff]
  %v38 = vld [vmem:[%s1 + $0x48] sm:$0xff]
  %v39 = vld [vmem:[%s1 + $0x50] sm:$0xff]
  %v40 = vld [vmem:[%s1 + $0x58] sm:$0xff]
  %v41 = vld [vmem:[%s1 + $0x60] sm:$0xff]
  %v42 = vld [vmem:[%s1 + $0x68] sm:$0xff]
  %v43 = vld [vmem:[%s1 + $0x70] sm:$0xff]
  %v44 = vld [vmem:[%s1 + $0x78] sm:$0xff]
  %v47 = vunpack.c.l.b16 %v27
  %v48 = vunpack.c.l.b16 %v28
  %v49 = vpack.c.b16 %v48, %v47
  %v67 = vunpack.c.l.b16 %v29
  %v68 = vunpack.c.h.b16 %v29
  %v69 = vunpack.c.l.b16 %v30
  %v70 = vunpack.c.h.b16 %v30
  %v71 = vunpack.c.l.b16 %v31
  %v72 = vunpack.c.h.b16 %v31
  %v73 = vunpack.c.l.b16 %v32
  %v74 = vunpack.c.h.b16 %v32
  %v75 = vunpack.c.l.b16 %v33
  %v76 = vunpack.c.h.b16 %v33
  %v77 = vunpack.c.l.b16 %v34
  %v78 = vunpack.c.h.b16 %v34
  %v79 = vunpack.c.l.b16 %v35
  %v80 = vunpack.c.h.b16 %v35
  %v81 = vunpack.c.l.b16 %v36
  %v82 = vunpack.c.h.b16 %v36
  %v83 = vunpack.c.l.b16 %v37
  %v84 = vunpack.c.h.b16 %v37
  %v85 = vunpack.c.l.b16 %v38
  %v86 = vunpack.c.h.b16 %v38
  %v87 = vunpack.c.l.b16 %v39
  %v88 = vunpack.c.h.b16 %v39
  %v89 = vunpack.c.l.b16 %v40
  %v90 = vunpack.c.h.b16 %v40
  %v91 = vunpack.c.l.b16 %v41
  %v92 = vunpack.c.h.b16 %v41
  %v93 = vunpack.c.l.b16 %v42
  %v94 = vunpack.c.h.b16 %v42
  %v95 = vunpack.c.l.b16 %v43
  %v96 = vunpack.c.h.b16 %v43
  %v97 = vunpack.c.l.b16 %v44
  %v98 = vunpack.c.h.b16 %v44
  %v99 = vpack.c.b16 %v69, %v67
  %v100 = vpack.c.b16 %v70, %v68
  %v101 = vpack.c.b16 %v73, %v71
  %v102 = vpack.c.b16 %v74, %v72
  %v103 = vpack.c.b16 %v77, %v75
  %v104 = vpack.c.b16 %v78, %v76
  %v105 = vpack.c.b16 %v81, %v79
  %v106 = vpack.c.b16 %v82, %v80
  %v107 = vpack.c.b16 %v85, %v83
  %v108 = vpack.c.b16 %v86, %v84
  %v109 = vpack.c.b16 %v89, %v87
  %v110 = vpack.c.b16 %v90, %v88
  %v111 = vpack.c.b16 %v93, %v91
  %v112 = vpack.c.b16 %v94, %v92
  %v113 = vpack.c.b16 %v97, %v95
  %v114 = vpack.c.b16 %v98, %v96
  %131 = vmatprep.subr.bf16.mxu0 %v100
  %132 = vmatpush1.bf16.msra.mxu0 %v99
  %133 = vmatprep.subr.bf16.mxu0 %v102
  %134 = vmatpush1.bf16.msra.mxu0 %v101
  %135 = vmatprep.subr.bf16.mxu0 %v104
  %136 = vmatpush1.bf16.msra.mxu0 %v103
  %137 = vmatprep.subr.bf16.mxu0 %v106
  %138 = vmatpush1.bf16.msra.mxu0 %v105
  %139 = vmatprep.subr.bf16.mxu0 %v108
  %140 = vmatpush1.bf16.msra.mxu0 %v107
  %141 = vmatprep.subr.bf16.mxu0 %v110
  %142 = vmatpush1.bf16.msra.mxu0 %v109
  %143 = vmatprep.subr.bf16.mxu0 %v112
  %144 = vmatpush1.bf16.msra.mxu0 %v111
  %145 = vmatprep.subr.bf16.mxu0 %v114
  %146 = vmatpush1.bf16.msra.mxu0 %v113
  %147 = vmatprep.subr.bf16.mxu0 0
  %148 = vmatpush1.bf16.msra.mxu0 0
  %149 = vmatprep.subr.bf16.mxu0 0
  %150 = vmatpush1.bf16.msra.mxu0 0
  %151 = vmatprep.subr.bf16.mxu0 0
  %152 = vmatpush1.bf16.msra.mxu0 0
  %153 = vmatprep.subr.bf16.mxu0 0
  %154 = vmatpush1.bf16.msra.mxu0 0
  %155 = vmatprep.subr.bf16.mxu0 0
  %156 = vmatpush1.bf16.msra.mxu0 0
  %157 = vmatprep.subr.bf16.mxu0 0
  %158 = vmatpush1.bf16.msra.mxu0 0
  %159 = vmatprep.subr.bf16.mxu0 0
  %160 = vmatpush1.bf16.msra.mxu0 0
  %161 = vmatprep.subr.bf16.mxu0 0
  %162 = vmatpush1.bf16.msra.mxu0 0
  %163 = vmatprep.mubr.bf16.mxu0 0
  %164 = vmatmul.mubr.bf16.gmra.mrb[0].mxu0 %v49
  %v165 = vpop.f32.mrb[0].mxu0
  %v166 = vadd.f32 0.0, %v165
  %v167 = vpop.f32.mrb[0].mxu0
  %v168 = vadd.f32 0.0, %v167
  %v169 = vpop.f32.mrb[0].mxu0
  %v170 = vadd.f32 0.0, %v169
  %v171 = vpop.f32.mrb[0].mxu0
  %v172 = vadd.f32 0.0, %v171
  %173 = vdwg.mxu0
  %v174 = vadd.f32 %v23, %v166
  %v175 = vadd.f32 %v24, %v168
  %v176 = vadd.f32 %v25, %v170
  %v177 = vadd.f32 %v26, %v172
  %178 = vst [vmem:[#allocation2] sm:$0xff] %v174
  %179 = vst [vmem:[#allocation2 + $0x8] sm:$0xff] %v175
  %180 = vst [vmem:[#allocation2 + $0x10] sm:$0xff] %v176
  %181 = vst [vmem:[#allocation2 + $0x18] sm:$0xff] %v177
  // Predicated region
  $region18: #{_lambda_.27} parent=0 // pred_check
    %p182 = pneg %p15
  $region19: #{_lambda_.27} parent=0 // pred_check_branch
    %184 = sbr.rel (%p182) target = $region21
  $region20: #{_lambda_.27} parent=0 // pred_region
    %v185 = vld [vmem:[#allocation2] sm:$0xff]
    %v186 = vld [vmem:[#allocation2 + $0x8] sm:$0xff]
    %v187 = vld [vmem:[#allocation2 + $0x10] sm:$0xff]
    %v188 = vld [vmem:[#allocation2 + $0x18] sm:$0xff]
    %v189 = vld [vmem:[%s2] sm:$0x3]
    %v191 = vlaneseq
    %v192 = vshrl.u32 %v191, 7
    %v193 = vsub.s32 0, %v192
    %v194 = vrot.slane %v189, %v193
    %v195 = vlaneseq
    %v196 = vshrl.u32 %v195, 7
    %v197 = vsub.s32 1, %v196
    %v198 = vrot.slane %v189, %v197
    %v201 = vadd.f32 %v185, %v194
    %v202 = vadd.f32 %v186, %v198
    %v203 = vadd.f32 %v187, %v194
    %v204 = vadd.f32 %v188, %v198
    %205 = vst [vmem:[%s3] sm:$0xff] %v201
    %206 = vst [vmem:[%s3 + $0x8] sm:$0xff] %v202
    %207 = vst [vmem:[%s3 + $0x10] sm:$0xff] %v203
    %208 = vst [vmem:[%s3 + $0x18] sm:$0xff] %v204
  $region21: #{_lambda_.27} parent=0 // pred_fallthru
    _
  // Predicated region
  $region22: #{_lambda_.27} parent=0 // pred_check
    _
  $region23: #{_lambda_.27} parent=0 // pred_check_branch
    %210 = sbr.rel (0) target = $region25
  $region24: #{_lambda_.27} parent=0 // pred_region
    _
  $region25: #{_lambda_.27} parent=0 // pred_fallthru
    _
  // Predicated region
  $region26: #{_lambda_.27} parent=0 // pred_check
    _
  $region27: #{_lambda_.27} parent=0 // pred_check_branch
    %212 = sbr.rel (0) target = $region29
  $region28: #{_lambda_.27} parent=0 // pred_region
    _
  $region29: #{_lambda_.27} parent=0 // pred_fallthru
    _

// kernel: _lambda_.29
$region0: #{_lambda_.29}
  #allocation0 [shape = 'u32[]', space=smem, size = 0x4, offset = 0x4, fixed_abs, tag = 'smem constant byte address 0x4 - core index']
  #allocation1 [shape = 'u32[144,128]{1,0:T(1,128)}', space=vmem, size = 0x12000, scoped, tag = 'internal scratch']
  #allocation2 [shape = 'f32[16,128]{1,0:T(8,128)}', space=vmem, size = 0x2000, scoped, tag = 'scratch operand']
  %s0 = inlined_call_operand.vmem [shape: bf16[16,128], index: 0, kind: input, shape index: {}]
  %s1 = inlined_call_operand.vmem [shape: bf16[128,128], index: 1, kind: input, shape index: {}]
  %s2 = inlined_call_operand.vmem [shape: f32[1,128], index: 2, kind: input, shape index: {}]
  %s3 = inlined_call_operand.vmem [shape: f32[16,128], index: 3, kind: output, shape index: {}]
  %s4 = sld [smem:[#allocation0]]
  $region30: #{_lambda_.29} parent=0
    _
  %s6 = ssub.s32 1, %s4
  %s7 = scalar_select 0, %s6, %s4
  // Predicated region
  $region2: #{_lambda_.29} parent=0 // pred_check
    _
  $region3: #{_lambda_.29} parent=0 // pred_check_branch
    %9 = sbr.rel (0) target = $region5
  $region4: #{_lambda_.29} parent=0 // pred_region
    _
  $region5: #{_lambda_.29} parent=0 // pred_fallthru
    _
  // Predicated region
  $region6: #{_lambda_.29} parent=0 // pred_check
    _
  $region7: #{_lambda_.29} parent=0 // pred_check_branch
    %11 = sbr.rel (0) target = $region9
  $region8: #{_lambda_.29} parent=0 // pred_region
    _
  $region9: #{_lambda_.29} parent=0 // pred_fallthru
    _
  // Predicated region
  $region10: #{_lambda_.29} parent=0 // pred_check
    _
  $region11: #{_lambda_.29} parent=0 // pred_check_branch
    %13 = sbr.rel (0) target = $region13
  $region12: #{_lambda_.29} parent=0 // pred_region
    _
  $region13: #{_lambda_.29} parent=0 // pred_fallthru
    _
  %p15 = scmp.eq.s32.totalorder 0, 0
  // Predicated region
  $region14: #{_lambda_.29} parent=0 // pred_check
    %p16 = pneg %p15
  $region15: #{_lambda_.29} parent=0 // pred_check_branch
    %18 = sbr.rel (%p16) target = $region17
  $region16: #{_lambda_.29} parent=0 // pred_region
    %19 = vst [vmem:[#allocation2] sm:$0xff] 0.0
    %20 = vst [vmem:[#allocation2 + $0x8] sm:$0xff] 0.0
  $region17: #{_lambda_.29} parent=0 // pred_fallthru
    _
  %v21 = vld [vmem:[#allocation2] sm:$0xff]
  %v22 = vld [vmem:[#allocation2 + $0x8] sm:$0xff]
  %v23 = vld [vmem:[%s0] sm:$0xf]
  %v24 = vld [vmem:[%s0 + $0x4] sm:$0xf]
  %v25 = vld [vmem:[%s1] sm:$0xf]
  %v26 = vld [vmem:[%s1 + $0x4] sm:$0xf]
  %v27 = vld [vmem:[%s1 + $0x8] sm:$0xf]
  %v28 = vld [vmem:[%s1 + $0xc] sm:$0xf]
  %v29 = vld [vmem:[%s1 + $0x10] sm:$0xf]
  %v30 = vld [vmem:[%s1 + $0x14] sm:$0xf]
  %v31 = vld [vmem:[%s1 + $0x18] sm:$0xf]
  %v32 = vld [vmem:[%s1 + $0x1c] sm:$0xf]
  %v33 = vld [vmem:[%s1 + $0x20] sm:$0xf]
  %v34 = vld [vmem:[%s1 + $0x24] sm:$0xf]
  %v35 = vld [vmem:[%s1 + $0x28] sm:$0xf]
  %v36 = vld [vmem:[%s1 + $0x2c] sm:$0xf]
  %v37 = vld [vmem:[%s1 + $0x30] sm:$0xf]
  %v38 = vld [vmem:[%s1 + $0x34] sm:$0xf]
  %v39 = vld [vmem:[%s1 + $0x38] sm:$0xf]
  %v40 = vld [vmem:[%s1 + $0x3c] sm:$0xf]
  %v43 = vunpack.c.l.b16 %v23
  %v44 = vunpack.c.l.b16 %v24
  %v45 = vpack.c.b16 %v44, %v43
  %v63 = vunpack.c.l.b16 %v25
  %v64 = vunpack.c.l.b16 %v26
  %v65 = vunpack.c.l.b16 %v27
  %v66 = vunpack.c.l.b16 %v28
  %v67 = vunpack.c.l.b16 %v29
  %v68 = vunpack.c.l.b16 %v30
  %v69 = vunpack.c.l.b16 %v31
  %v70 = vunpack.c.l.b16 %v32
  %v71 = vunpack.c.l.b16 %v33
  %v72 = vunpack.c.l.b16 %v34
  %v73 = vunpack.c.l.b16 %v35
  %v74 = vunpack.c.l.b16 %v36
  %v75 = vunpack.c.l.b16 %v37
  %v76 = vunpack.c.l.b16 %v38
  %v77 = vunpack.c.l.b16 %v39
  %v78 = vunpack.c.l.b16 %v40
  %v79 = vpack.c.b16 %v64, %v63
  %v80 = vpack.c.b16 %v66, %v65
  %v81 = vpack.c.b16 %v68, %v67
  %v82 = vpack.c.b16 %v70, %v69
  %v83 = vpack.c.b16 %v72, %v71
  %v84 = vpack.c.b16 %v74, %v73
  %v85 = vpack.c.b16 %v76, %v75
  %v86 = vpack.c.b16 %v78, %v77
  %95 = vmatprep.subr.bf16.mxu0 0
  %96 = vmatpush1.bf16.msra.mxu0 %v79
  %97 = vmatprep.subr.bf16.mxu0 0
  %98 = vmatpush1.bf16.msra.mxu0 %v80
  %99 = vmatprep.subr.bf16.mxu0 0
  %100 = vmatpush1.bf16.msra.mxu0 %v81
  %101 = vmatprep.subr.bf16.mxu0 0
  %102 = vmatpush1.bf16.msra.mxu0 %v82
  %103 = vmatprep.subr.bf16.mxu0 0
  %104 = vmatpush1.bf16.msra.mxu0 %v83
  %105 = vmatprep.subr.bf16.mxu0 0
  %106 = vmatpush1.bf16.msra.mxu0 %v84
  %107 = vmatprep.subr.bf16.mxu0 0
  %108 = vmatpush1.bf16.msra.mxu0 %v85
  %109 = vmatprep.subr.bf16.mxu0 0
  %110 = vmatpush1.bf16.msra.mxu0 %v86
  %111 = vmatprep.subr.bf16.mxu0 0
  %112 = vmatpush1.bf16.msra.mxu0 0
  %113 = vmatprep.subr.bf16.mxu0 0
  %114 = vmatpush1.bf16.msra.mxu0 0
  %115 = vmatprep.subr.bf16.mxu0 0
  %116 = vmatpush1.bf16.msra.mxu0 0
  %117 = vmatprep.subr.bf16.mxu0 0
  %118 = vmatpush1.bf16.msra.mxu0 0
  %119 = vmatprep.subr.bf16.mxu0 0
  %120 = vmatpush1.bf16.msra.mxu0 0
  %121 = vmatprep.subr.bf16.mxu0 0
  %122 = vmatpush1.bf16.msra.mxu0 0
  %123 = vmatprep.subr.bf16.mxu0 0
  %124 = vmatpush1.bf16.msra.mxu0 0
  %125 = vmatprep.subr.bf16.mxu0 0
  %126 = vmatpush1.bf16.msra.mxu0 0
  %127 = vmatprep.mubr.bf16.mxu0 0
  %128 = vmatmul.mubr.bf16.gmra.mrb[0].mxu0 %v45
  %v129 = vpop.f32.mrb[0].mxu0
  %v130 = vadd.f32 0.0, %v129
  %v131 = vpop.f32.mrb[0].mxu0
  %v132 = vpop.f32.mrb[0].mxu0
  %v133 = vadd.f32 0.0, %v132
  %v134 = vpop.f32.mrb[0].mxu0
  %135 = vdwg.mxu0
  %v136 = vadd.f32 %v21, %v130
  %v137 = vadd.f32 %v22, %v133
  %138 = vst [vmem:[#allocation2] sm:$0xff] %v136
  %139 = vst [vmem:[#allocation2 + $0x8] sm:$0xff] %v137
  // Predicated region
  $region18: #{_lambda_.29} parent=0 // pred_check
    %p140 = pneg %p15
  $region19: #{_lambda_.29} parent=0 // pred_check_branch
    %142 = sbr.rel (%p140) target = $region21
  $region20: #{_lambda_.29} parent=0 // pred_region
    %v143 = vld [vmem:[#allocation2] sm:$0xff]
    %v144 = vld [vmem:[#allocation2 + $0x8] sm:$0xff]
    %v145 = vld [vmem:[%s2] sm:$0x1]
    %v147 = vlaneseq
    %v148 = vshrl.u32 %v147, 7
    %v149 = vsub.s32 0, %v148
    %v150 = vrot.slane %v145, %v149
    %v152 = vadd.f32 %v143, %v150
    %v153 = vadd.f32 %v144, %v150
    %154 = vst [vmem:[%s3] sm:$0xff] %v152
    %155 = vst [vmem:[%s3 + $0x8] sm:$0xff] %v153
  $region21: #{_lambda_.29} parent=0 // pred_fallthru
    _
  // Predicated region
  $region22: #{_lambda_.29} parent=0 // pred_check
    _
  $region23: #{_lambda_.29} parent=0 // pred_check_branch
    %157 = sbr.rel (0) target = $region25
  $region24: #{_lambda_.29} parent=0 // pred_region
    _
  $region25: #{_lambda_.29} parent=0 // pred_fallthru
    _
  // Predicated region
  $region26: #{_lambda_.29} parent=0 // pred_check
    _
  $region27: #{_lambda_.29} parent=0 // pred_check_branch
    %159 = sbr.rel (0) target = $region29
  $region28: #{_lambda_.29} parent=0 // pred_region
    _
  $region29: #{_lambda_.29} parent=0 // pred_fallthru
    _

</llo_original>
